<compile_context>
chip_gen: v7x
topology: tpu7x:2x2x1
jax: 0.10.0
libtpu: 0.0.40
codegen_flags: <defaults>
</compile_context>

<pallas_src>
import functools
import math

import jax
import jax.numpy as jnp
from jax.experimental import pallas as pl
from jax.experimental.pallas import tpu as pltpu

_LRELU_SLOPE = 0.01          # PyTorch nn.LeakyReLU default
_BN_EPS = 1e-5               # PyTorch nn.BatchNorm2d default
_LANE = 128
_MAX_MATMUL_ROWS = 1024      # pass-1 row-tile target (512-1024 per review)
_MAX_ELEMWISE_ROWS = 2048    # pass-2 (elementwise) row-tile target


def _round_up(x, m):
    return (x + m - 1) // m * m


@functools.lru_cache(maxsize=None)
def _vmem_limit():
    """Generation-aware scoped-VMEM limit: ~96 MiB on 128-MiB parts (v5e/v6e),
    ~48 MiB on the 64-MiB v7x.  Conservative fallback if the query fails."""
    try:
        cap = int(pltpu.get_tpu_info().vmem_capacity_bytes)
    except Exception:
        cap = 64 * 1024 * 1024
    return int(min(96 * 1024 * 1024, cap * 3 // 4))


def _compiler_params(grid_rank=1):
    return pltpu.CompilerParams(
        dimension_semantics=("parallel",) * grid_rank,
        vmem_limit_bytes=_vmem_limit(),
    )


def _divisor_tile(rows, max_rows):
    """Largest multiple-of-8 divisor of `rows` that is <= max_rows, preferring
    >= 2 tiles (so the 'parallel' grid axis can shard across v7x's 2 cores)."""
    if rows % 8 != 0:
        return rows                          # single full block fallback
    cap = max(8, min(max_rows, rows if rows <= 8 else rows // 2))
    best = 8
    for t in range(8, cap + 1, 8):
        if rows % t == 0:
            best = t
    return best


# ----------------------------------------------------------------------------
# Pass 1a: fused im2col + 3x3 conv (9 accumulating MXU matmuls) + bias + per-
# tile BN partial statistics.
#   xa_ref : (1, tile_h, W+2, Cin) main rows of the zero-padded NHWC input
#   xh1/xh2: (1, 1, W+2, Cin)      two halo rows directly below the main block
# ----------------------------------------------------------------------------
def _conv3x3_stats_kernel(xa_ref, xh1_ref, xh2_ref, w_ref, b_ref, z_ref,
                          stats_ref, *, tile_h, out_w):
    x = jnp.concatenate([xa_ref[0], xh1_ref[0], xh2_ref[0]], axis=0)
    acc = None
    for kh in range(3):
        for kw in range(3):
            win = x[kh:kh + tile_h, kw:kw + out_w, :]        # (tile_h, W, Cin)
            win = win.reshape(tile_h * out_w, win.shape[-1])
            part = jnp.dot(win, w_ref[kh * 3 + kw],
                           preferred_element_type=jnp.float32)
            acc = part if acc is None else acc + part
    z = acc + b_ref[...]                                      # (tile_h*W, Cp) f32
    z_ref[...] = z.astype(z_ref.dtype)                        # bf16 store
    stats_ref[0, 0:1, :] = jnp.sum(z, axis=0, keepdims=True)
    stats_ref[0, 1:2, :] = jnp.sum(z * z, axis=0, keepdims=True)


# ----------------------------------------------------------------------------
# Pass 1b: 1x1 conv as a row matmul + bias + masked BN partial statistics.
# With fuse_pre, the previous layer's folded BN affine + LeakyReLU is applied
# to the (raw, pre-BN) input tile before the matmul (saves a pass-2 round trip).
# ----------------------------------------------------------------------------
def _matmul_stats_kernel(*refs, total_rows, fuse_pre):
    if fuse_pre:
        x_ref, sc_ref, sh_ref, w_ref, b_ref, z_ref, stats_ref = refs
    else:
        x_ref, w_ref, b_ref, z_ref, stats_ref = refs
    x = x_ref[...]
    if fuse_pre:
        x = x.astype(jnp.float32) * sc_ref[...] + sh_ref[...]
        x = jnp.where(x > 0, x, _LRELU_SLOPE * x).astype(jnp.bfloat16)
    z = jnp.dot(x, w_ref[...], preferred_element_type=jnp.float32) + b_ref[...]
    z_ref[...] = z.astype(z_ref.dtype)
    tile = z.shape[0]
    row = pl.program_id(0) * tile + jax.lax.broadcasted_iota(
        jnp.int32, (tile, 1), 0)
    mask = (row < total_rows).astype(jnp.float32)             # exclude pad rows
    zm = z * mask
    stats_ref[0, 0:1, :] = jnp.sum(zm, axis=0, keepdims=True)
    stats_ref[0, 1:2, :] = jnp.sum(zm * z, axis=0, keepdims=True)


# ----------------------------------------------------------------------------
# Pass 2: per-channel affine (folded BN) + LeakyReLU (+ optional residual).
# ----------------------------------------------------------------------------
def _bn_lrelu_kernel(*refs, with_residual):
    if with_residual:
        z_ref, sc_ref, sh_ref, r_ref, o_ref = refs
    else:
        z_ref, sc_ref, sh_ref, o_ref = refs
    z = z_ref[...].astype(jnp.float32) * sc_ref[...] + sh_ref[...]
    z = jnp.where(z > 0, z, _LRELU_SLOPE * z)
    if with_residual:
        z = z + r_ref[...].astype(jnp.float32)
    o_ref[...] = z.astype(o_ref.dtype)


# ----------------------------------------------------------------------------
# Tiny wrapper glue: fold partial (sum, sum-sq) into per-channel scale/shift
# (training-mode batch statistics, biased variance, like PyTorch).
# ----------------------------------------------------------------------------
def _fold_stats(parts, count, gamma, beta):
    s = jnp.sum(parts, axis=0)                 # (2, Cp)
    mean = s[0] / count
    var = jnp.maximum(s[1] / count - mean * mean, 0.0)
    scale = gamma * jax.lax.rsqrt(var + _BN_EPS)
    shift = beta - mean * scale
    return scale.reshape(1, -1), shift.reshape(1, -1)


# ----------------------------------------------------------------------------
# 1x1 conv pass-1 wrapper.
# ----------------------------------------------------------------------------
def _conv1x1_stats(x2d, w, bias, *, pre_scale=None, pre_shift=None,
                   valid_rows=None):
    P, K = x2d.shape
    Cp = w.shape[-1]
    valid_rows = P if valid_rows is None else valid_rows
    fuse = pre_scale is not None

    limit = _vmem_limit()
    per_row = 2 * (K + Cp) * 2 + Cp * 4            # dbl-buffered bf16 in/out + f32 z
    fixed = 2 * K * Cp * 2 + 16 * Cp * 4
    avail = max(0, limit // 2 - fixed)
    cap = max(8, min(_MAX_MATMUL_ROWS, (avail // max(per_row, 1)) // 8 * 8))

    P8 = _round_up(P, 8)
    x2d = x2d.astype(jnp.bfloat16)
    if P8 > P:
        x2d = jnp.pad(x2d, ((0, P8 - P), (0, 0)))
    tile = _divisor_tile(P8, cap)
    T = P8 // tile

    in_specs = [pl.BlockSpec((tile, K), lambda t: (t, 0))]
    operands = [x2d]
    if fuse:
        in_specs += [pl.BlockSpec((1, K), lambda t: (0, 0)),
                     pl.BlockSpec((1, K), lambda t: (0, 0))]
        operands += [pre_scale, pre_shift]
    in_specs += [pl.BlockSpec((K, Cp), lambda t: (0, 0)),
                 pl.BlockSpec((1, Cp), lambda t: (0, 0))]
    operands += [w, bias]

    z, parts = pl.pallas_call(
        functools.partial(_matmul_stats_kernel, total_rows=valid_rows,
                          fuse_pre=fuse),
        out_shape=(jax.ShapeDtypeStruct((P8, Cp), jnp.bfloat16),
                   jax.ShapeDtypeStruct((T, 2, Cp), jnp.float32)),
        grid=(T,),
        in_specs=in_specs,
        out_specs=(pl.BlockSpec((tile, Cp), lambda t: (t, 0)),
                   pl.BlockSpec((1, 2, Cp), lambda t: (t, 0, 0))),
        compiler_params=_compiler_params(1),
    )(*operands)
    return z, parts


# ----------------------------------------------------------------------------
# Pass-2 wrapper (independent, larger row tiles; bf16 by default).
# ----------------------------------------------------------------------------
def _affine_lrelu(z, scale, shift, *, residual=None, out_dtype=jnp.bfloat16):
    P, Cp = z.shape
    P8 = _round_up(P, 8)
    if P8 > P:
        z = jnp.pad(z, ((0, P8 - P), (0, 0)))
    if residual is not None and residual.shape[0] < P8:
        residual = jnp.pad(residual, ((0, P8 - residual.shape[0]), (0, 0)))
    tile = _divisor_tile(P8, _MAX_ELEMWISE_ROWS)
    T = P8 // tile

    in_specs = [pl.BlockSpec((tile, Cp), lambda t: (t, 0)),
                pl.BlockSpec((1, Cp), lambda t: (0, 0)),
                pl.BlockSpec((1, Cp), lambda t: (0, 0))]
    operands = [z, scale, shift]
    if residual is not None:
        in_specs.append(pl.BlockSpec((tile, Cp), lambda t: (t, 0)))
        operands.append(residual)

    return pl.pallas_call(
        functools.partial(_bn_lrelu_kernel, with_residual=residual is not None),
        out_shape=jax.ShapeDtypeStruct((P8, Cp), out_dtype),
        grid=(T,),
        in_specs=in_specs,
        out_specs=pl.BlockSpec((tile, Cp), lambda t: (t, 0)),
        compiler_params=_compiler_params(1),
    )(*operands)


def _pick_tile_h(N, H, W, Cin, Cout_p):
    """Image rows per grid step for the fused 3x3 conv, sized to the per-chip
    VMEM budget and guaranteeing >= 2 total grid steps when possible."""
    limit = _vmem_limit()
    per_row = 2 * ((W + 2) * Cin * 2 + W * Cout_p * 2) + W * Cout_p * 4
    fixed = 2 * 9 * Cin * Cout_p * 2 + 4 * (W + 2) * Cin * 2 + 16 * Cout_p * 4
    avail = max(0, limit // 2 - fixed)
    cap = max(1, min(_MAX_MATMUL_ROWS // max(W, 1), avail // max(per_row, 1)))
    divisors = [t for t in range(1, H + 1) if H % t == 0 and (t * W) % 8 == 0]
    if not divisors:
        return H
    feasible = [t for t in divisors if t <= cap] or [divisors[0]]
    t = feasible[-1]
    if N * (H // t) < 2:
        smaller = [d for d in divisors if d < t]
        if smaller:
            t = smaller[-1]
    return t


# ----------------------------------------------------------------------------
# 3x3/pad=1 conv (in-kernel im2col) => BN(batch stats) => LeakyReLU (+residual).
# Returns row-flattened (N*H*W, Cout_p).
# ----------------------------------------------------------------------------
def conv3x3_bn_lrelu(x_nhwc, w9, bias, gamma, beta, *, residual=None,
                     out_dtype=jnp.bfloat16):
    N, H, W, Cin = x_nhwc.shape
    Cp = w9.shape[-1]
    P = N * H * W

    # spatial zero padding of the activation (Conv2d padding=1)
    xp = jnp.pad(x_nhwc, ((0, 0), (1, 1), (1, 1), (0, 0))).astype(jnp.bfloat16)

    tile_h = _pick_tile_h(N, H, W, Cin, Cp)
    Th = H // tile_h
    rows = tile_h * W

    z, parts = pl.pallas_call(
        functools.partial(_conv3x3_stats_kernel, tile_h=tile_h, out_w=W),
        out_shape=(jax.ShapeDtypeStruct((P, Cp), jnp.bfloat16),
                   jax.ShapeDtypeStruct((N * Th, 2, Cp), jnp.float32)),
        grid=(N, Th),
        in_specs=[
            pl.BlockSpec((1, tile_h, W + 2, Cin), lambda n, t: (n, t, 0, 0)),
            pl.BlockSpec((1, 1, W + 2, Cin),
                         lambda n, t: (n, (t + 1) * tile_h, 0, 0)),
            pl.BlockSpec((1, 1, W + 2, Cin),
                         lambda n, t: (n, (t + 1) * tile_h + 1, 0, 0)),
            pl.BlockSpec((9, Cin, Cp), lambda n, t: (0, 0, 0)),
            pl.BlockSpec((1, Cp), lambda n, t: (0, 0)),
        ],
        out_specs=(
            pl.BlockSpec((rows, Cp), lambda n, t: (n * Th + t, 0)),
            pl.BlockSpec((1, 2, Cp), lambda n, t: (n * Th + t, 0, 0)),
        ),
        compiler_params=_compiler_params(2),
    )(xp, xp, xp, w9, bias)

    scale, shift = _fold_stats(parts, float(P), gamma, beta)
    out = _affine_lrelu(z, scale, shift, residual=residual, out_dtype=out_dtype)
    return out[:P]


# ----------------------------------------------------------------------------
# Full DoubleConv forward.
# ----------------------------------------------------------------------------
def double_conv_forward(x, params, *, out_channels):
    """x: (N, C, H, W) float32 (NCHW, PyTorch convention)."""
    N, C, H, W = x.shape
    O = out_channels
    Op = params["w2"].shape[-1]

    # ---------------- FFT branch (main_fft) ----------------
    # TODO(synk): rfft2/irfft2 have no clean Pallas equivalent; kept as XLA ops.
    yc = jnp.fft.rfft2(x, axes=(-2, -1), norm="ortho")            # (N, C, H, Wf)
    y_f = jnp.concatenate([yc.real, yc.imag], axis=1)             # (N, 2C, H, Wf)
    Wf = y_f.shape[-1]
    Pf = N * H * Wf
    y2d = jnp.transpose(y_f, (0, 2, 3, 1)).reshape(Pf, 2 * C)

    z1, parts1 = _conv1x1_stats(y2d, params["wf1"], params["bf1"],
                                valid_rows=Pf)
    sc1, sh1 = _fold_stats(parts1, float(Pf), params["gf1"], params["betaf1"])
    # conv1's BN + LeakyReLU fused into conv2's matmul kernel (no pass-2 here)
    z2, parts2 = _conv1x1_stats(z1, params["wf2"], params["bf2"],
                                pre_scale=sc1, pre_shift=sh1, valid_rows=Pf)
    sc2, sh2 = _fold_stats(parts2, float(Pf), params["gf2"], params["betaf2"])
    h = _affine_lrelu(z2, sc2, sh2, out_dtype=jnp.bfloat16)

    h = h[:Pf, :2 * O].astype(jnp.float32).reshape(N, H, Wf, 2 * O)
    h = jnp.transpose(h, (0, 3, 1, 2))                            # (N, 2O, H, Wf)
    y_complex = jax.lax.complex(h[:, :O], h[:, O:])               # torch.chunk
    y_sp = jnp.fft.irfft2(y_complex, s=(H, W), axes=(-2, -1), norm="ortho")
    y_rows = jnp.transpose(y_sp, (0, 2, 3, 1)).reshape(N * H * W, O)
    y_rows = jnp.pad(y_rows, ((0, 0), (0, Op - O)))               # lane-pad residual

    # ---------------- spatial branch (main) + fused residual add --------------
    x_nhwc = jnp.transpose(x, (0, 2, 3, 1))
    h1 = conv3x3_bn_lrelu(x_nhwc, params["w1"], params["b1"],
                          params["g1"], params["beta1"])          # (N*H*W, Mp) bf16
    Mp = h1.shape[-1]
    out_rows = conv3x3_bn_lrelu(h1.reshape(N, H, W, Mp),
                                params["w2"], params["b2"],
                                params["g2"], params["beta2"],
                                residual=y_rows,                  # main(x) + y
                                out_dtype=jnp.float32)            # (N*H*W, Op)

    out = out_rows.reshape(N, H, W, Op)[..., :O]
    return jnp.transpose(out, (0, 3, 1, 2))                       # back to NCHW


# ----------------------------------------------------------------------------
# Deterministic parameter initialization (kernel layout; lane-padded to 128).
# ----------------------------------------------------------------------------
def init_params(key, in_channels, out_channels, mid_channels=None):
    if mid_channels is None:
        mid_channels = out_channels
    C, M, O = in_channels, mid_channels, out_channels
    Mp, Op = _round_up(M, _LANE), _round_up(O, _LANE)
    F1, F2 = _round_up(2 * M, _LANE), _round_up(2 * O, _LANE)
    ks = jax.random.split(key, 12)

    def conv_w(k, cout, cin, kh, kw):          # PyTorch-style uniform init
        bound = 1.0 / math.sqrt(cin * kh * kw)
        return jax.random.uniform(k, (cout, cin, kh, kw), jnp.float32,
                                  -bound, bound)

    def tap9(w, kin_pad, cout_pad):            # (cout,cin,3,3) -> (9, cin_p, cout_p)
        t = jnp.transpose(w, (2, 3, 1, 0)).reshape(9, w.shape[1], w.shape[0])
        t = jnp.pad(t, ((0, 0), (0, kin_pad - t.shape[1]),
                        (0, cout_pad - t.shape[2])))
        return t.astype(jnp.bfloat16)

    def mat(w, kin_pad, cout_pad):             # (cout,cin,1,1) -> (cin_p, cout_p)
        t = jnp.transpose(w[:, :, 0, 0], (1, 0))
        t = jnp.pad(t, ((0, kin_pad - t.shape[0]), (0, cout_pad - t.shape[1])))
        return t.astype(jnp.bfloat16)

    def bias(k, n, npad):
        b = jax.random.uniform(k, (n,), jnp.float32, -0.1, 0.1)
        return jnp.pad(b, (0, npad - n)).reshape(1, npad)

    def gamma(k, n, npad):                     # pad with 0 so pad channels stay 0
        g = 1.0 + 0.1 * jax.random.normal(k, (n,), jnp.float32)
        return jnp.pad(g, (0, npad - n))

    def beta(k, n, npad):
        b = 0.1 * jax.random.normal(k, (n,), jnp.float32)
        return jnp.pad(b, (0, npad - n))

    kw1, kw2, kwf1, kwf2, kb1, kb2, kbf1, kbf2, kg, kbt, kgf, kbtf = ks
    kg1, kg2 = jax.random.split(kg)
    kt1, kt2 = jax.random.split(kbt)
    kgf1, kgf2 = jax.random.split(kgf)
    ktf1, ktf2 = jax.random.split(kbtf)

    return {
        # main: Conv2d(C->M, 3x3, pad=1)+BN+LReLU ; Conv2d(M->O, 3x3, pad=1)+BN+LReLU
        "w1": tap9(conv_w(kw1, M, C, 3, 3), C, Mp),
        "b1": bias(kb1, M, Mp), "g1": gamma(kg1, M, Mp),
        "beta1": beta(kt1, M, Mp),
        "w2": tap9(conv_w(kw2, O, M, 3, 3), Mp, Op),
        "b2": bias(kb2, O, Op), "g2": gamma(kg2, O, Op),
        "beta2": beta(kt2, O, Op),
        # main_fft: Conv2d(2C->2M, 1x1)+BN+LReLU ; Conv2d(2M->2O, 1x1)+BN+LReLU
        "wf1": mat(conv_w(kwf1, 2 * M, 2 * C, 1, 1), 2 * C, F1),
        "bf1": bias(kbf1, 2 * M, F1), "gf1": gamma(kgf1, 2 * M, F1),
        "betaf1": beta(ktf1, 2 * M, F1),
        "wf2": mat(conv_w(kwf2, 2 * O, 2 * M, 1, 1), F1, F2),
        "bf2": bias(kbf2, 2 * O, F2), "gf2": gamma(kgf2, 2 * O, F2),
        "betaf2": beta(ktf2, 2 * O, F2),
    }


if __name__ == "__main__":
    key = jax.random.PRNGKey(0)
    kx, kp = jax.random.split(key)

    N, C, H, W = 2, 4, 16, 16
    OUT_CHANNELS = 8

    x = jax.random.normal(kx, (N, C, H, W), jnp.float32)
    params = init_params(kp, C, OUT_CHANNELS)

    fwd = jax.jit(functools.partial(double_conv_forward,
                                    out_channels=OUT_CHANNELS))
    out = jax.block_until_ready(fwd(x, params))

    assert out.shape == (N, OUT_CHANNELS, H, W), out.shape
    assert bool(jnp.all(jnp.isfinite(out)))
    print("KERNEL_OK")
</pallas_src>

<mosaic_0001>
module attributes {stable_mosaic.version = 11 : i64} {
  func.func @_matmul_stats_kernel(%arg0: i32, %arg1: memref<144x128xbf16, #tpu.memory_space<vmem>>, %arg2: memref<1x128xf32, #tpu.memory_space<vmem>>, %arg3: memref<1x128xf32, #tpu.memory_space<vmem>>, %arg4: memref<128x128xbf16, #tpu.memory_space<vmem>>, %arg5: memref<1x128xf32, #tpu.memory_space<vmem>>, %arg6: memref<144x128xbf16, #tpu.memory_space<vmem>>, %arg7: memref<1x2x128xf32, #tpu.memory_space<vmem>>) attributes {dimension_semantics = [#tpu.dimension_semantics<parallel>], iteration_bounds = array<i64: 2>, scalar_prefetch = 0 : i64, scratch_operands = 0 : i64, tpu.core_type = #tpu.core_type<tc>, window_params = [{transform_indices = @transform_0, window_bounds = array<i64: 144, 128>}, {pipeline_mode = #tpu.pipeline_mode<synchronous>, transform_indices = @transform_1, window_bounds = array<i64: 1, 128>}, {pipeline_mode = #tpu.pipeline_mode<synchronous>, transform_indices = @transform_2, window_bounds = array<i64: 1, 128>}, {pipeline_mode = #tpu.pipeline_mode<synchronous>, transform_indices = @transform_3, window_bounds = array<i64: 128, 128>}, {pipeline_mode = #tpu.pipeline_mode<synchronous>, transform_indices = @transform_4, window_bounds = array<i64: 1, 128>}, {transform_indices = @transform_5, window_bounds = array<i64: 144, 128>}, {transform_indices = @transform_6, window_bounds = array<i64: 1, 2, 128>}]} {
    %c0 = arith.constant 0 : index
    %c0_0 = arith.constant 0 : index
    %0 = vector.load %arg1[%c0, %c0_0] : memref<144x128xbf16, #tpu.memory_space<vmem>>, vector<144x128xbf16>
    %1 = arith.extf %0 : vector<144x128xbf16> to vector<144x128xf32>
    %c0_1 = arith.constant 0 : index
    %c0_2 = arith.constant 0 : index
    %2 = vector.load %arg2[%c0_1, %c0_2] : memref<1x128xf32, #tpu.memory_space<vmem>>, vector<1x128xf32>
    %3 = vector.broadcast %2 : vector<1x128xf32> to vector<144x128xf32>
    %4 = arith.mulf %1, %3 : vector<144x128xf32>
    %c0_3 = arith.constant 0 : index
    %c0_4 = arith.constant 0 : index
    %5 = vector.load %arg3[%c0_3, %c0_4] : memref<1x128xf32, #tpu.memory_space<vmem>>, vector<1x128xf32>
    %6 = vector.broadcast %5 : vector<1x128xf32> to vector<144x128xf32>
    %7 = arith.addf %4, %6 : vector<144x128xf32>
    %cst = arith.constant 0.000000e+00 : f32
    %8 = vector.broadcast %cst : f32 to vector<144x128xf32>
    %9 = arith.cmpf ogt, %7, %8 : vector<144x128xf32>
    %cst_5 = arith.constant 0.00999999977 : f32
    %10 = vector.broadcast %cst_5 : f32 to vector<144x128xf32>
    %11 = arith.mulf %10, %7 : vector<144x128xf32>
    %12 = arith.select %9, %7, %11 : vector<144x128xi1>, vector<144x128xf32>
    %13 = arith.truncf %12 : vector<144x128xf32> to vector<144x128xbf16>
    %c0_6 = arith.constant 0 : index
    %c0_7 = arith.constant 0 : index
    %14 = vector.load %arg4[%c0_6, %c0_7] : memref<128x128xbf16, #tpu.memory_space<vmem>>, vector<128x128xbf16>
    %cst_8 = arith.constant dense<0.000000e+00> : vector<144x128xf32>
    %15 = tpu.matmul %13, %14, %cst_8 {dimension_numbers = #tpu.dot_dimension_numbers<[1], [0], [0], [1], [0, 0, 1, 1], [], []>} : vector<144x128xbf16>, vector<128x128xbf16>, vector<144x128xf32> -> vector<144x128xf32>
    %c0_9 = arith.constant 0 : index
    %c0_10 = arith.constant 0 : index
    %16 = vector.load %arg5[%c0_9, %c0_10] : memref<1x128xf32, #tpu.memory_space<vmem>>, vector<1x128xf32>
    %17 = vector.broadcast %16 : vector<1x128xf32> to vector<144x128xf32>
    %18 = arith.addf %15, %17 : vector<144x128xf32>
    %19 = arith.truncf %18 : vector<144x128xf32> to vector<144x128xbf16>
    %c0_11 = arith.constant 0 : index
    %c0_12 = arith.constant 0 : index
    %20 = vector.load %arg6[%c0_11, %c0_12] : memref<144x128xbf16, #tpu.memory_space<vmem>>, vector<144x128xbf16>
    tpu.vector_store %arg6[%c0_11, %c0_12], %19 {strides = array<i32>} : memref<144x128xbf16, #tpu.memory_space<vmem>>, vector<144x128xbf16>,
    %c144_i32 = arith.constant 144 : i32
    %21 = arith.muli %arg0, %c144_i32 : i32
    %22 = tpu.iota {dimensions = array<i32: 0>} : vector<144x1xi32>
    %23 = vector.broadcast %21 : i32 to vector<144x1xi32>
    %24 = arith.addi %23, %22 : vector<144x1xi32>
    %c288_i32 = arith.constant 288 : i32
    %25 = vector.broadcast %c288_i32 : i32 to vector<144x1xi32>
    %26 = arith.cmpi slt, %24, %25 : vector<144x1xi32>
    %27 = arith.extui %26 : vector<144x1xi1> to vector<144x1xi32>
    %28 = arith.sitofp %27 : vector<144x1xi32> to vector<144x1xf32>
    %29 = vector.broadcast %28 : vector<144x1xf32> to vector<144x128xf32>
    %30 = arith.mulf %18, %29 : vector<144x128xf32>
    %cst_13 = arith.constant dense<0.000000e+00> : vector<128xf32>
    %31 = vector.multi_reduction <add>, %30, %cst_13 [0] : vector<144x128xf32> to vector<128xf32>
    %32 = vector.shape_cast %31 : vector<128xf32> to vector<1x128xf32>
    %c0_14 = arith.constant 0 : index
    %c0_15 = arith.constant 0 : index
    %c0_16 = arith.constant 0 : index
    %33 = vector.load %arg7[%c0_14, %c0_15, %c0_16] : memref<1x2x128xf32, #tpu.memory_space<vmem>>, vector<1x1x128xf32>
    %34 = vector.shape_cast %33 : vector<1x1x128xf32> to vector<1x128xf32>
    %35 = vector.shape_cast %32 : vector<1x128xf32> to vector<1x1x128xf32>
    tpu.vector_store %arg7[%c0_14, %c0_15, %c0_16], %35 {strides = array<i32>} : memref<1x2x128xf32, #tpu.memory_space<vmem>>, vector<1x1x128xf32>,
    %36 = arith.mulf %30, %18 : vector<144x128xf32>
    %cst_17 = arith.constant dense<0.000000e+00> : vector<128xf32>
    %37 = vector.multi_reduction <add>, %36, %cst_17 [0] : vector<144x128xf32> to vector<128xf32>
    %38 = vector.shape_cast %37 : vector<128xf32> to vector<1x128xf32>
    %c0_18 = arith.constant 0 : index
    %c1 = arith.constant 1 : index
    %c0_19 = arith.constant 0 : index
    %39 = vector.load %arg7[%c0_18, %c1, %c0_19] : memref<1x2x128xf32, #tpu.memory_space<vmem>>, vector<1x1x128xf32>
    %40 = vector.shape_cast %39 : vector<1x1x128xf32> to vector<1x128xf32>
    %41 = vector.shape_cast %38 : vector<1x128xf32> to vector<1x1x128xf32>
    tpu.vector_store %arg7[%c0_18, %c1, %c0_19], %41 {strides = array<i32>} : memref<1x2x128xf32, #tpu.memory_space<vmem>>, vector<1x1x128xf32>,
    return
  }
  func.func @transform_0(%arg0: i32) -> (i32, i32) {
    %c0_i32 = arith.constant 0 : i32
    %c0_i32_0 = arith.constant 0 : i32
    return %arg0, %c0_i32 : i32, i32
  }
  func.func @transform_1(%arg0: i32) -> (i32, i32) {
    %c0_i32 = arith.constant 0 : i32
    %c0_i32_0 = arith.constant 0 : i32
    %c0_i32_1 = arith.constant 0 : i32
    return %c0_i32, %c0_i32_0 : i32, i32
  }
  func.func @transform_2(%arg0: i32) -> (i32, i32) {
    %c0_i32 = arith.constant 0 : i32
    %c0_i32_0 = arith.constant 0 : i32
    %c0_i32_1 = arith.constant 0 : i32
    return %c0_i32, %c0_i32_0 : i32, i32
  }
  func.func @transform_3(%arg0: i32) -> (i32, i32) {
    %c0_i32 = arith.constant 0 : i32
    %c0_i32_0 = arith.constant 0 : i32
    %c0_i32_1 = arith.constant 0 : i32
    return %c0_i32, %c0_i32_0 : i32, i32
  }
  func.func @transform_4(%arg0: i32) -> (i32, i32) {
    %c0_i32 = arith.constant 0 : i32
    %c0_i32_0 = arith.constant 0 : i32
    %c0_i32_1 = arith.constant 0 : i32
    return %c0_i32, %c0_i32_0 : i32, i32
  }
  func.func @transform_5(%arg0: i32) -> (i32, i32) {
    %c0_i32 = arith.constant 0 : i32
    %c0_i32_0 = arith.constant 0 : i32
    return %arg0, %c0_i32 : i32, i32
  }
  func.func @transform_6(%arg0: i32) -> (i32, i32, i32) {
    %c0_i32 = arith.constant 0 : i32
    %c0_i32_0 = arith.constant 0 : i32
    %c0_i32_1 = arith.constant 0 : i32
    return %arg0, %c0_i32, %c0_i32_0 : i32, i32, i32
  }
}

module attributes {stable_mosaic.version = 11 : i64} {
  func.func @_matmul_stats_kernel(%arg0: i32, %arg1: memref<144x8xbf16, #tpu.memory_space<vmem>>, %arg2: memref<8x128xbf16, #tpu.memory_space<vmem>>, %arg3: memref<1x128xf32, #tpu.memory_space<vmem>>, %arg4: memref<144x128xbf16, #tpu.memory_space<vmem>>, %arg5: memref<1x2x128xf32, #tpu.memory_space<vmem>>) attributes {dimension_semantics = [#tpu.dimension_semantics<parallel>], iteration_bounds = array<i64: 2>, scalar_prefetch = 0 : i64, scratch_operands = 0 : i64, tpu.core_type = #tpu.core_type<tc>, window_params = [{transform_indices = @transform_0, window_bounds = array<i64: 144, 8>}, {pipeline_mode = #tpu.pipeline_mode<synchronous>, transform_indices = @transform_1, window_bounds = array<i64: 8, 128>}, {pipeline_mode = #tpu.pipeline_mode<synchronous>, transform_indices = @transform_2, window_bounds = array<i64: 1, 128>}, {transform_indices = @transform_3, window_bounds = array<i64: 144, 128>}, {transform_indices = @transform_4, window_bounds = array<i64: 1, 2, 128>}]} {
    %c0 = arith.constant 0 : index
    %c0_0 = arith.constant 0 : index
    %0 = vector.load %arg1[%c0, %c0_0] : memref<144x8xbf16, #tpu.memory_space<vmem>>, vector<144x8xbf16>
    %c0_1 = arith.constant 0 : index
    %c0_2 = arith.constant 0 : index
    %1 = vector.load %arg2[%c0_1, %c0_2] : memref<8x128xbf16, #tpu.memory_space<vmem>>, vector<8x128xbf16>
    %cst = arith.constant dense<0.000000e+00> : vector<144x128xf32>
    %2 = tpu.matmul %0, %1, %cst {dimension_numbers = #tpu.dot_dimension_numbers<[1], [0], [0], [1], [0, 0, 1, 1], [], []>} : vector<144x8xbf16>, vector<8x128xbf16>, vector<144x128xf32> -> vector<144x128xf32>
    %c0_3 = arith.constant 0 : index
    %c0_4 = arith.constant 0 : index
    %3 = vector.load %arg3[%c0_3, %c0_4] : memref<1x128xf32, #tpu.memory_space<vmem>>, vector<1x128xf32>
    %4 = vector.broadcast %3 : vector<1x128xf32> to vector<144x128xf32>
    %5 = arith.addf %2, %4 : vector<144x128xf32>
    %6 = arith.truncf %5 : vector<144x128xf32> to vector<144x128xbf16>
    %c0_5 = arith.constant 0 : index
    %c0_6 = arith.constant 0 : index
    %7 = vector.load %arg4[%c0_5, %c0_6] : memref<144x128xbf16, #tpu.memory_space<vmem>>, vector<144x128xbf16>
    tpu.vector_store %arg4[%c0_5, %c0_6], %6 {strides = array<i32>} : memref<144x128xbf16, #tpu.memory_space<vmem>>, vector<144x128xbf16>,
    %c144_i32 = arith.constant 144 : i32
    %8 = arith.muli %arg0, %c144_i32 : i32
    %9 = tpu.iota {dimensions = array<i32: 0>} : vector<144x1xi32>
    %10 = vector.broadcast %8 : i32 to vector<144x1xi32>
    %11 = arith.addi %10, %9 : vector<144x1xi32>
    %c288_i32 = arith.constant 288 : i32
    %12 = vector.broadcast %c288_i32 : i32 to vector<144x1xi32>
    %13 = arith.cmpi slt, %11, %12 : vector<144x1xi32>
    %14 = arith.extui %13 : vector<144x1xi1> to vector<144x1xi32>
    %15 = arith.sitofp %14 : vector<144x1xi32> to vector<144x1xf32>
    %16 = vector.broadcast %15 : vector<144x1xf32> to vector<144x128xf32>
    %17 = arith.mulf %5, %16 : vector<144x128xf32>
    %cst_7 = arith.constant dense<0.000000e+00> : vector<128xf32>
    %18 = vector.multi_reduction <add>, %17, %cst_7 [0] : vector<144x128xf32> to vector<128xf32>
    %19 = vector.shape_cast %18 : vector<128xf32> to vector<1x128xf32>
    %c0_8 = arith.constant 0 : index
    %c0_9 = arith.constant 0 : index
    %c0_10 = arith.constant 0 : index
    %20 = vector.load %arg5[%c0_8, %c0_9, %c0_10] : memref<1x2x128xf32, #tpu.memory_space<vmem>>, vector<1x1x128xf32>
    %21 = vector.shape_cast %20 : vector<1x1x128xf32> to vector<1x128xf32>
    %22 = vector.shape_cast %19 : vector<1x128xf32> to vector<1x1x128xf32>
    tpu.vector_store %arg5[%c0_8, %c0_9, %c0_10], %22 {strides = array<i32>} : memref<1x2x128xf32, #tpu.memory_space<vmem>>, vector<1x1x128xf32>,
    %23 = arith.mulf %17, %5 : vector<144x128xf32>
    %cst_11 = arith.constant dense<0.000000e+00> : vector<128xf32>
    %24 = vector.multi_reduction <add>, %23, %cst_11 [0] : vector<144x128xf32> to vector<128xf32>
    %25 = vector.shape_cast %24 : vector<128xf32> to vector<1x128xf32>
    %c0_12 = arith.constant 0 : index
    %c1 = arith.constant 1 : index
    %c0_13 = arith.constant 0 : index
    %26 = vector.load %arg5[%c0_12, %c1, %c0_13] : memref<1x2x128xf32, #tpu.memory_space<vmem>>, vector<1x1x128xf32>
    %27 = vector.shape_cast %26 : vector<1x1x128xf32> to vector<1x128xf32>
    %28 = vector.shape_cast %25 : vector<1x128xf32> to vector<1x1x128xf32>
    tpu.vector_store %arg5[%c0_12, %c1, %c0_13], %28 {strides = array<i32>} : memref<1x2x128xf32, #tpu.memory_space<vmem>>, vector<1x1x128xf32>,
    return
  }
  func.func @transform_0(%arg0: i32) -> (i32, i32) {
    %c0_i32 = arith.constant 0 : i32
    %c0_i32_0 = arith.constant 0 : i32
    return %arg0, %c0_i32 : i32, i32
  }
  func.func @transform_1(%arg0: i32) -> (i32, i32) {
    %c0_i32 = arith.constant 0 : i32
    %c0_i32_0 = arith.constant 0 : i32
    %c0_i32_1 = arith.constant 0 : i32
    return %c0_i32, %c0_i32_0 : i32, i32
  }
  func.func @transform_2(%arg0: i32) -> (i32, i32) {
    %c0_i32 = arith.constant 0 : i32
    %c0_i32_0 = arith.constant 0 : i32
    %c0_i32_1 = arith.constant 0 : i32
    return %c0_i32, %c0_i32_0 : i32, i32
  }
  func.func @transform_3(%arg0: i32) -> (i32, i32) {
    %c0_i32 = arith.constant 0 : i32
    %c0_i32_0 = arith.constant 0 : i32
    return %arg0, %c0_i32 : i32, i32
  }
  func.func @transform_4(%arg0: i32) -> (i32, i32, i32) {
    %c0_i32 = arith.constant 0 : i32
    %c0_i32_0 = arith.constant 0 : i32
    %c0_i32_1 = arith.constant 0 : i32
    return %arg0, %c0_i32, %c0_i32_0 : i32, i32, i32
  }
}

module attributes {stable_mosaic.version = 11 : i64} {
  func.func @_bn_lrelu_kernel(%arg0: i32, %arg1: memref<144x128xbf16, #tpu.memory_space<vmem>>, %arg2: memref<1x128xf32, #tpu.memory_space<vmem>>, %arg3: memref<1x128xf32, #tpu.memory_space<vmem>>, %arg4: memref<144x128xbf16, #tpu.memory_space<vmem>>) attributes {dimension_semantics = [#tpu.dimension_semantics<parallel>], iteration_bounds = array<i64: 2>, scalar_prefetch = 0 : i64, scratch_operands = 0 : i64, tpu.core_type = #tpu.core_type<tc>, window_params = [{transform_indices = @transform_0, window_bounds = array<i64: 144, 128>}, {pipeline_mode = #tpu.pipeline_mode<synchronous>, transform_indices = @transform_1, window_bounds = array<i64: 1, 128>}, {pipeline_mode = #tpu.pipeline_mode<synchronous>, transform_indices = @transform_2, window_bounds = array<i64: 1, 128>}, {transform_indices = @transform_3, window_bounds = array<i64: 144, 128>}]} {
    %c0 = arith.constant 0 : index
    %c0_0 = arith.constant 0 : index
    %0 = vector.load %arg1[%c0, %c0_0] : memref<144x128xbf16, #tpu.memory_space<vmem>>, vector<144x128xbf16>
    %1 = arith.extf %0 : vector<144x128xbf16> to vector<144x128xf32>
    %c0_1 = arith.constant 0 : index
    %c0_2 = arith.constant 0 : index
    %2 = vector.load %arg2[%c0_1, %c0_2] : memref<1x128xf32, #tpu.memory_space<vmem>>, vector<1x128xf32>
    %3 = vector.broadcast %2 : vector<1x128xf32> to vector<144x128xf32>
    %4 = arith.mulf %1, %3 : vector<144x128xf32>
    %c0_3 = arith.constant 0 : index
    %c0_4 = arith.constant 0 : index
    %5 = vector.load %arg3[%c0_3, %c0_4] : memref<1x128xf32, #tpu.memory_space<vmem>>, vector<1x128xf32>
    %6 = vector.broadcast %5 : vector<1x128xf32> to vector<144x128xf32>
    %7 = arith.addf %4, %6 : vector<144x128xf32>
    %cst = arith.constant 0.000000e+00 : f32
    %8 = vector.broadcast %cst : f32 to vector<144x128xf32>
    %9 = arith.cmpf ogt, %7, %8 : vector<144x128xf32>
    %cst_5 = arith.constant 0.00999999977 : f32
    %10 = vector.broadcast %cst_5 : f32 to vector<144x128xf32>
    %11 = arith.mulf %10, %7 : vector<144x128xf32>
    %12 = arith.select %9, %7, %11 : vector<144x128xi1>, vector<144x128xf32>
    %13 = arith.truncf %12 : vector<144x128xf32> to vector<144x128xbf16>
    %c0_6 = arith.constant 0 : index
    %c0_7 = arith.constant 0 : index
    %14 = vector.load %arg4[%c0_6, %c0_7] : memref<144x128xbf16, #tpu.memory_space<vmem>>, vector<144x128xbf16>
    tpu.vector_store %arg4[%c0_6, %c0_7], %13 {strides = array<i32>} : memref<144x128xbf16, #tpu.memory_space<vmem>>, vector<144x128xbf16>,
    return
  }
  func.func @transform_0(%arg0: i32) -> (i32, i32) {
    %c0_i32 = arith.constant 0 : i32
    %c0_i32_0 = arith.constant 0 : i32
    return %arg0, %c0_i32 : i32, i32
  }
  func.func @transform_1(%arg0: i32) -> (i32, i32) {
    %c0_i32 = arith.constant 0 : i32
    %c0_i32_0 = arith.constant 0 : i32
    %c0_i32_1 = arith.constant 0 : i32
    return %c0_i32, %c0_i32_0 : i32, i32
  }
  func.func @transform_2(%arg0: i32) -> (i32, i32) {
    %c0_i32 = arith.constant 0 : i32
    %c0_i32_0 = arith.constant 0 : i32
    %c0_i32_1 = arith.constant 0 : i32
    return %c0_i32, %c0_i32_0 : i32, i32
  }
  func.func @transform_3(%arg0: i32) -> (i32, i32) {
    %c0_i32 = arith.constant 0 : i32
    %c0_i32_0 = arith.constant 0 : i32
    return %arg0, %c0_i32 : i32, i32
  }
}

module attributes {stable_mosaic.version = 11 : i64} {
  func.func @_conv3x3_stats_kernel(%arg0: i32, %arg1: i32, %arg2: memref<1x16x18x4xbf16, #tpu.memory_space<vmem>>, %arg3: memref<1x1x18x4xbf16, #tpu.memory_space<vmem>>, %arg4: memref<1x1x18x4xbf16, #tpu.memory_space<vmem>>, %arg5: memref<9x4x128xbf16, #tpu.memory_space<vmem>>, %arg6: memref<1x128xf32, #tpu.memory_space<vmem>>, %arg7: memref<256x128xbf16, #tpu.memory_space<vmem>>, %arg8: memref<1x2x128xf32, #tpu.memory_space<vmem>>) attributes {dimension_semantics = [#tpu.dimension_semantics<parallel>, #tpu.dimension_semantics<parallel>], iteration_bounds = array<i64: 2, 1>, scalar_prefetch = 0 : i64, scratch_operands = 0 : i64, tpu.core_type = #tpu.core_type<tc>, window_params = [{transform_indices = @transform_0, window_bounds = array<i64: 1, 16, 18, 4>}, {transform_indices = @transform_1, window_bounds = array<i64: 1, 1, 18, 4>}, {transform_indices = @transform_2, window_bounds = array<i64: 1, 1, 18, 4>}, {pipeline_mode = #tpu.pipeline_mode<synchronous>, transform_indices = @transform_3, window_bounds = array<i64: 9, 4, 128>}, {pipeline_mode = #tpu.pipeline_mode<synchronous>, transform_indices = @transform_4, window_bounds = array<i64: 1, 128>}, {transform_indices = @transform_5, window_bounds = array<i64: 256, 128>}, {transform_indices = @transform_6, window_bounds = array<i64: 1, 2, 128>}]} {
    %c0 = arith.constant 0 : index
    %c0_0 = arith.constant 0 : index
    %c0_1 = arith.constant 0 : index
    %c0_2 = arith.constant 0 : index
    %0 = vector.load %arg2[%c0, %c0_0, %c0_1, %c0_2] : memref<1x16x18x4xbf16, #tpu.memory_space<vmem>>, vector<1x16x18x4xbf16>
    %1 = vector.shape_cast %0 : vector<1x16x18x4xbf16> to vector<16x18x4xbf16>
    %c0_3 = arith.constant 0 : index
    %c0_4 = arith.constant 0 : index
    %c0_5 = arith.constant 0 : index
    %c0_6 = arith.constant 0 : index
    %2 = vector.load %arg3[%c0_3, %c0_4, %c0_5, %c0_6] : memref<1x1x18x4xbf16, #tpu.memory_space<vmem>>, vector<1x1x18x4xbf16>
    %3 = vector.shape_cast %2 : vector<1x1x18x4xbf16> to vector<1x18x4xbf16>
    %c0_7 = arith.constant 0 : index
    %c0_8 = arith.constant 0 : index
    %c0_9 = arith.constant 0 : index
    %c0_10 = arith.constant 0 : index
    %4 = vector.load %arg4[%c0_7, %c0_8, %c0_9, %c0_10] : memref<1x1x18x4xbf16, #tpu.memory_space<vmem>>, vector<1x1x18x4xbf16>
    %5 = vector.shape_cast %4 : vector<1x1x18x4xbf16> to vector<1x18x4xbf16>
    %6 = tpu.concatenate %1, %3, %5 in 0 : vector<16x18x4xbf16>, vector<1x18x4xbf16>, vector<1x18x4xbf16> -> vector<18x18x4xbf16>
    %7 = vector.extract_strided_slice %6 {offsets = [0, 0, 0], sizes = [16, 16, 4], strides = [1, 1, 1]} : vector<18x18x4xbf16> to vector<16x16x4xbf16>
    %8 = vector.shape_cast %7 : vector<16x16x4xbf16> to vector<256x4xbf16>
    %c0_11 = arith.constant 0 : index
    %c0_12 = arith.constant 0 : index
    %c0_13 = arith.constant 0 : index
    %9 = vector.load %arg5[%c0_11, %c0_12, %c0_13] : memref<9x4x128xbf16, #tpu.memory_space<vmem>>, vector<1x4x128xbf16>
    %10 = vector.shape_cast %9 : vector<1x4x128xbf16> to vector<4x128xbf16>
    %cst = arith.constant dense<0.000000e+00> : vector<256x128xf32>
    %11 = tpu.matmul %8, %10, %cst {dimension_numbers = #tpu.dot_dimension_numbers<[1], [0], [0], [1], [0, 0, 1, 1], [], []>} : vector<256x4xbf16>, vector<4x128xbf16>, vector<256x128xf32> -> vector<256x128xf32>
    %12 = vector.extract_strided_slice %6 {offsets = [0, 1, 0], sizes = [16, 16, 4], strides = [1, 1, 1]} : vector<18x18x4xbf16> to vector<16x16x4xbf16>
    %13 = vector.shape_cast %12 : vector<16x16x4xbf16> to vector<256x4xbf16>
    %c1 = arith.constant 1 : index
    %c0_14 = arith.constant 0 : index
    %c0_15 = arith.constant 0 : index
    %14 = vector.load %arg5[%c1, %c0_14, %c0_15] : memref<9x4x128xbf16, #tpu.memory_space<vmem>>, vector<1x4x128xbf16>
    %15 = vector.shape_cast %14 : vector<1x4x128xbf16> to vector<4x128xbf16>
    %cst_16 = arith.constant dense<0.000000e+00> : vector<256x128xf32>
    %16 = tpu.matmul %13, %15, %cst_16 {dimension_numbers = #tpu.dot_dimension_numbers<[1], [0], [0], [1], [0, 0, 1, 1], [], []>} : vector<256x4xbf16>, vector<4x128xbf16>, vector<256x128xf32> -> vector<256x128xf32>
    %17 = arith.addf %11, %16 : vector<256x128xf32>
    %18 = vector.extract_strided_slice %6 {offsets = [0, 2, 0], sizes = [16, 16, 4], strides = [1, 1, 1]} : vector<18x18x4xbf16> to vector<16x16x4xbf16>
    %19 = vector.shape_cast %18 : vector<16x16x4xbf16> to vector<256x4xbf16>
    %c2 = arith.constant 2 : index
    %c0_17 = arith.constant 0 : index
    %c0_18 = arith.constant 0 : index
    %20 = vector.load %arg5[%c2, %c0_17, %c0_18] : memref<9x4x128xbf16, #tpu.memory_space<vmem>>, vector<1x4x128xbf16>
    %21 = vector.shape_cast %20 : vector<1x4x128xbf16> to vector<4x128xbf16>
    %cst_19 = arith.constant dense<0.000000e+00> : vector<256x128xf32>
    %22 = tpu.matmul %19, %21, %cst_19 {dimension_numbers = #tpu.dot_dimension_numbers<[1], [0], [0], [1], [0, 0, 1, 1], [], []>} : vector<256x4xbf16>, vector<4x128xbf16>, vector<256x128xf32> -> vector<256x128xf32>
    %23 = arith.addf %17, %22 : vector<256x128xf32>
    %24 = vector.extract_strided_slice %6 {offsets = [1, 0, 0], sizes = [16, 16, 4], strides = [1, 1, 1]} : vector<18x18x4xbf16> to vector<16x16x4xbf16>
    %25 = vector.shape_cast %24 : vector<16x16x4xbf16> to vector<256x4xbf16>
    %c3 = arith.constant 3 : index
    %c0_20 = arith.constant 0 : index
    %c0_21 = arith.constant 0 : index
    %26 = vector.load %arg5[%c3, %c0_20, %c0_21] : memref<9x4x128xbf16, #tpu.memory_space<vmem>>, vector<1x4x128xbf16>
    %27 = vector.shape_cast %26 : vector<1x4x128xbf16> to vector<4x128xbf16>
    %cst_22 = arith.constant dense<0.000000e+00> : vector<256x128xf32>
    %28 = tpu.matmul %25, %27, %cst_22 {dimension_numbers = #tpu.dot_dimension_numbers<[1], [0], [0], [1], [0, 0, 1, 1], [], []>} : vector<256x4xbf16>, vector<4x128xbf16>, vector<256x128xf32> -> vector<256x128xf32>
    %29 = arith.addf %23, %28 : vector<256x128xf32>
    %30 = vector.extract_strided_slice %6 {offsets = [1, 1, 0], sizes = [16, 16, 4], strides = [1, 1, 1]} : vector<18x18x4xbf16> to vector<16x16x4xbf16>
    %31 = vector.shape_cast %30 : vector<16x16x4xbf16> to vector<256x4xbf16>
    %c4 = arith.constant 4 : index
    %c0_23 = arith.constant 0 : index
    %c0_24 = arith.constant 0 : index
    %32 = vector.load %arg5[%c4, %c0_23, %c0_24] : memref<9x4x128xbf16, #tpu.memory_space<vmem>>, vector<1x4x128xbf16>
    %33 = vector.shape_cast %32 : vector<1x4x128xbf16> to vector<4x128xbf16>
    %cst_25 = arith.constant dense<0.000000e+00> : vector<256x128xf32>
    %34 = tpu.matmul %31, %33, %cst_25 {dimension_numbers = #tpu.dot_dimension_numbers<[1], [0], [0], [1], [0, 0, 1, 1], [], []>} : vector<256x4xbf16>, vector<4x128xbf16>, vector<256x128xf32> -> vector<256x128xf32>
    %35 = arith.addf %29, %34 : vector<256x128xf32>
    %36 = vector.extract_strided_slice %6 {offsets = [1, 2, 0], sizes = [16, 16, 4], strides = [1, 1, 1]} : vector<18x18x4xbf16> to vector<16x16x4xbf16>
    %37 = vector.shape_cast %36 : vector<16x16x4xbf16> to vector<256x4xbf16>
    %c5 = arith.constant 5 : index
    %c0_26 = arith.constant 0 : index
    %c0_27 = arith.constant 0 : index
    %38 = vector.load %arg5[%c5, %c0_26, %c0_27] : memref<9x4x128xbf16, #tpu.memory_space<vmem>>, vector<1x4x128xbf16>
    %39 = vector.shape_cast %38 : vector<1x4x128xbf16> to vector<4x128xbf16>
    %cst_28 = arith.constant dense<0.000000e+00> : vector<256x128xf32>
    %40 = tpu.matmul %37, %39, %cst_28 {dimension_numbers = #tpu.dot_dimension_numbers<[1], [0], [0], [1], [0, 0, 1, 1], [], []>} : vector<256x4xbf16>, vector<4x128xbf16>, vector<256x128xf32> -> vector<256x128xf32>
    %41 = arith.addf %35, %40 : vector<256x128xf32>
    %42 = vector.extract_strided_slice %6 {offsets = [2, 0, 0], sizes = [16, 16, 4], strides = [1, 1, 1]} : vector<18x18x4xbf16> to vector<16x16x4xbf16>
    %43 = vector.shape_cast %42 : vector<16x16x4xbf16> to vector<256x4xbf16>
    %c6 = arith.constant 6 : index
    %c0_29 = arith.constant 0 : index
    %c0_30 = arith.constant 0 : index
    %44 = vector.load %arg5[%c6, %c0_29, %c0_30] : memref<9x4x128xbf16, #tpu.memory_space<vmem>>, vector<1x4x128xbf16>
    %45 = vector.shape_cast %44 : vector<1x4x128xbf16> to vector<4x128xbf16>
    %cst_31 = arith.constant dense<0.000000e+00> : vector<256x128xf32>
    %46 = tpu.matmul %43, %45, %cst_31 {dimension_numbers = #tpu.dot_dimension_numbers<[1], [0], [0], [1], [0, 0, 1, 1], [], []>} : vector<256x4xbf16>, vector<4x128xbf16>, vector<256x128xf32> -> vector<256x128xf32>
    %47 = arith.addf %41, %46 : vector<256x128xf32>
    %48 = vector.extract_strided_slice %6 {offsets = [2, 1, 0], sizes = [16, 16, 4], strides = [1, 1, 1]} : vector<18x18x4xbf16> to vector<16x16x4xbf16>
    %49 = vector.shape_cast %48 : vector<16x16x4xbf16> to vector<256x4xbf16>
    %c7 = arith.constant 7 : index
    %c0_32 = arith.constant 0 : index
    %c0_33 = arith.constant 0 : index
    %50 = vector.load %arg5[%c7, %c0_32, %c0_33] : memref<9x4x128xbf16, #tpu.memory_space<vmem>>, vector<1x4x128xbf16>
    %51 = vector.shape_cast %50 : vector<1x4x128xbf16> to vector<4x128xbf16>
    %cst_34 = arith.constant dense<0.000000e+00> : vector<256x128xf32>
    %52 = tpu.matmul %49, %51, %cst_34 {dimension_numbers = #tpu.dot_dimension_numbers<[1], [0], [0], [1], [0, 0, 1, 1], [], []>} : vector<256x4xbf16>, vector<4x128xbf16>, vector<256x128xf32> -> vector<256x128xf32>
    %53 = arith.addf %47, %52 : vector<256x128xf32>
    %54 = vector.extract_strided_slice %6 {offsets = [2, 2, 0], sizes = [16, 16, 4], strides = [1, 1, 1]} : vector<18x18x4xbf16> to vector<16x16x4xbf16>
    %55 = vector.shape_cast %54 : vector<16x16x4xbf16> to vector<256x4xbf16>
    %c8 = arith.constant 8 : index
    %c0_35 = arith.constant 0 : index
    %c0_36 = arith.constant 0 : index
    %56 = vector.load %arg5[%c8, %c0_35, %c0_36] : memref<9x4x128xbf16, #tpu.memory_space<vmem>>, vector<1x4x128xbf16>
    %57 = vector.shape_cast %56 : vector<1x4x128xbf16> to vector<4x128xbf16>
    %cst_37 = arith.constant dense<0.000000e+00> : vector<256x128xf32>
    %58 = tpu.matmul %55, %57, %cst_37 {dimension_numbers = #tpu.dot_dimension_numbers<[1], [0], [0], [1], [0, 0, 1, 1], [], []>} : vector<256x4xbf16>, vector<4x128xbf16>, vector<256x128xf32> -> vector<256x128xf32>
    %59 = arith.addf %53, %58 : vector<256x128xf32>
    %c0_38 = arith.constant 0 : index
    %c0_39 = arith.constant 0 : index
    %60 = vector.load %arg6[%c0_38, %c0_39] : memref<1x128xf32, #tpu.memory_space<vmem>>, vector<1x128xf32>
    %61 = vector.broadcast %60 : vector<1x128xf32> to vector<256x128xf32>
    %62 = arith.addf %59, %61 : vector<256x128xf32>
    %63 = arith.truncf %62 : vector<256x128xf32> to vector<256x128xbf16>
    %c0_40 = arith.constant 0 : index
    %c0_41 = arith.constant 0 : index
    %64 = vector.load %arg7[%c0_40, %c0_41] : memref<256x128xbf16, #tpu.memory_space<vmem>>, vector<256x128xbf16>
    tpu.vector_store %arg7[%c0_40, %c0_41], %63 {strides = array<i32>} : memref<256x128xbf16, #tpu.memory_space<vmem>>, vector<256x128xbf16>,
    %cst_42 = arith.constant dense<0.000000e+00> : vector<128xf32>
    %65 = vector.multi_reduction <add>, %62, %cst_42 [0] : vector<256x128xf32> to vector<128xf32>
    %66 = vector.shape_cast %65 : vector<128xf32> to vector<1x128xf32>
    %c0_43 = arith.constant 0 : index
    %c0_44 = arith.constant 0 : index
    %c0_45 = arith.constant 0 : index
    %67 = vector.load %arg8[%c0_43, %c0_44, %c0_45] : memref<1x2x128xf32, #tpu.memory_space<vmem>>, vector<1x1x128xf32>
    %68 = vector.shape_cast %67 : vector<1x1x128xf32> to vector<1x128xf32>
    %69 = vector.shape_cast %66 : vector<1x128xf32> to vector<1x1x128xf32>
    tpu.vector_store %arg8[%c0_43, %c0_44, %c0_45], %69 {strides = array<i32>} : memref<1x2x128xf32, #tpu.memory_space<vmem>>, vector<1x1x128xf32>,
    %70 = arith.mulf %62, %62 : vector<256x128xf32>
    %cst_46 = arith.constant dense<0.000000e+00> : vector<128xf32>
    %71 = vector.multi_reduction <add>, %70, %cst_46 [0] : vector<256x128xf32> to vector<128xf32>
    %72 = vector.shape_cast %71 : vector<128xf32> to vector<1x128xf32>
    %c0_47 = arith.constant 0 : index
    %c1_48 = arith.constant 1 : index
    %c0_49 = arith.constant 0 : index
    %73 = vector.load %arg8[%c0_47, %c1_48, %c0_49] : memref<1x2x128xf32, #tpu.memory_space<vmem>>, vector<1x1x128xf32>
    %74 = vector.shape_cast %73 : vector<1x1x128xf32> to vector<1x128xf32>
    %75 = vector.shape_cast %72 : vector<1x128xf32> to vector<1x1x128xf32>
    tpu.vector_store %arg8[%c0_47, %c1_48, %c0_49], %75 {strides = array<i32>} : memref<1x2x128xf32, #tpu.memory_space<vmem>>, vector<1x1x128xf32>,
    return
  }
  func.func @transform_0(%arg0: i32, %arg1: i32) -> (i32, i32, i32, i32) {
    %c0_i32 = arith.constant 0 : i32
    %c0_i32_0 = arith.constant 0 : i32
    %c0_i32_1 = arith.constant 0 : i32
    return %arg0, %arg1, %c0_i32, %c0_i32_0 : i32, i32, i32, i32
  }
  func.func @transform_1(%arg0: i32, %arg1: i32) -> (i32, i32, i32, i32) {
    %c1_i32 = arith.constant 1 : i32
    %0 = arith.addi %arg1, %c1_i32 : i32
    %c16_i32 = arith.constant 16 : i32
    %1 = arith.muli %0, %c16_i32 : i32
    %c0_i32 = arith.constant 0 : i32
    %c0_i32_0 = arith.constant 0 : i32
    %c0_i32_1 = arith.constant 0 : i32
    return %arg0, %1, %c0_i32, %c0_i32_0 : i32, i32, i32, i32
  }
  func.func @transform_2(%arg0: i32, %arg1: i32) -> (i32, i32, i32, i32) {
    %c1_i32 = arith.constant 1 : i32
    %0 = arith.addi %arg1, %c1_i32 : i32
    %c16_i32 = arith.constant 16 : i32
    %1 = arith.muli %0, %c16_i32 : i32
    %c1_i32_0 = arith.constant 1 : i32
    %2 = arith.addi %1, %c1_i32_0 : i32
    %c0_i32 = arith.constant 0 : i32
    %c0_i32_1 = arith.constant 0 : i32
    %c0_i32_2 = arith.constant 0 : i32
    return %arg0, %2, %c0_i32, %c0_i32_1 : i32, i32, i32, i32
  }
  func.func @transform_3(%arg0: i32, %arg1: i32) -> (i32, i32, i32) {
    %c0_i32 = arith.constant 0 : i32
    %c0_i32_0 = arith.constant 0 : i32
    %c0_i32_1 = arith.constant 0 : i32
    %c0_i32_2 = arith.constant 0 : i32
    return %c0_i32, %c0_i32_0, %c0_i32_1 : i32, i32, i32
  }
  func.func @transform_4(%arg0: i32, %arg1: i32) -> (i32, i32) {
    %c0_i32 = arith.constant 0 : i32
    %c0_i32_0 = arith.constant 0 : i32
    %c0_i32_1 = arith.constant 0 : i32
    return %c0_i32, %c0_i32_0 : i32, i32
  }
  func.func @transform_5(%arg0: i32, %arg1: i32) -> (i32, i32) {
    %c1_i32 = arith.constant 1 : i32
    %0 = arith.muli %arg0, %c1_i32 : i32
    %1 = arith.addi %0, %arg1 : i32
    %c0_i32 = arith.constant 0 : i32
    %c0_i32_0 = arith.constant 0 : i32
    return %1, %c0_i32 : i32, i32
  }
  func.func @transform_6(%arg0: i32, %arg1: i32) -> (i32, i32, i32) {
    %c1_i32 = arith.constant 1 : i32
    %0 = arith.muli %arg0, %c1_i32 : i32
    %1 = arith.addi %0, %arg1 : i32
    %c0_i32 = arith.constant 0 : i32
    %c0_i32_0 = arith.constant 0 : i32
    %c0_i32_1 = arith.constant 0 : i32
    return %1, %c0_i32, %c0_i32_0 : i32, i32, i32
  }
}

module attributes {stable_mosaic.version = 11 : i64} {
  func.func @_conv3x3_stats_kernel(%arg0: i32, %arg1: i32, %arg2: memref<1x16x18x128xbf16, #tpu.memory_space<vmem>>, %arg3: memref<1x1x18x128xbf16, #tpu.memory_space<vmem>>, %arg4: memref<1x1x18x128xbf16, #tpu.memory_space<vmem>>, %arg5: memref<9x128x128xbf16, #tpu.memory_space<vmem>>, %arg6: memref<1x128xf32, #tpu.memory_space<vmem>>, %arg7: memref<256x128xbf16, #tpu.memory_space<vmem>>, %arg8: memref<1x2x128xf32, #tpu.memory_space<vmem>>) attributes {dimension_semantics = [#tpu.dimension_semantics<parallel>, #tpu.dimension_semantics<parallel>], iteration_bounds = array<i64: 2, 1>, scalar_prefetch = 0 : i64, scratch_operands = 0 : i64, tpu.core_type = #tpu.core_type<tc>, window_params = [{transform_indices = @transform_0, window_bounds = array<i64: 1, 16, 18, 128>}, {transform_indices = @transform_1, window_bounds = array<i64: 1, 1, 18, 128>}, {transform_indices = @transform_2, window_bounds = array<i64: 1, 1, 18, 128>}, {pipeline_mode = #tpu.pipeline_mode<synchronous>, transform_indices = @transform_3, window_bounds = array<i64: 9, 128, 128>}, {pipeline_mode = #tpu.pipeline_mode<synchronous>, transform_indices = @transform_4, window_bounds = array<i64: 1, 128>}, {transform_indices = @transform_5, window_bounds = array<i64: 256, 128>}, {transform_indices = @transform_6, window_bounds = array<i64: 1, 2, 128>}]} {
    %c0 = arith.constant 0 : index
    %c0_0 = arith.constant 0 : index
    %c0_1 = arith.constant 0 : index
    %c0_2 = arith.constant 0 : index
    %0 = vector.load %arg2[%c0, %c0_0, %c0_1, %c0_2] : memref<1x16x18x128xbf16, #tpu.memory_space<vmem>>, vector<1x16x18x128xbf16>
    %1 = vector.shape_cast %0 : vector<1x16x18x128xbf16> to vector<16x18x128xbf16>
    %c0_3 = arith.constant 0 : index
    %c0_4 = arith.constant 0 : index
    %c0_5 = arith.constant 0 : index
    %c0_6 = arith.constant 0 : index
    %2 = vector.load %arg3[%c0_3, %c0_4, %c0_5, %c0_6] : memref<1x1x18x128xbf16, #tpu.memory_space<vmem>>, vector<1x1x18x128xbf16>
    %3 = vector.shape_cast %2 : vector<1x1x18x128xbf16> to vector<1x18x128xbf16>
    %c0_7 = arith.constant 0 : index
    %c0_8 = arith.constant 0 : index
    %c0_9 = arith.constant 0 : index
    %c0_10 = arith.constant 0 : index
    %4 = vector.load %arg4[%c0_7, %c0_8, %c0_9, %c0_10] : memref<1x1x18x128xbf16, #tpu.memory_space<vmem>>, vector<1x1x18x128xbf16>
    %5 = vector.shape_cast %4 : vector<1x1x18x128xbf16> to vector<1x18x128xbf16>
    %6 = tpu.concatenate %1, %3, %5 in 0 : vector<16x18x128xbf16>, vector<1x18x128xbf16>, vector<1x18x128xbf16> -> vector<18x18x128xbf16>
    %7 = vector.extract_strided_slice %6 {offsets = [0, 0, 0], sizes = [16, 16, 128], strides = [1, 1, 1]} : vector<18x18x128xbf16> to vector<16x16x128xbf16>
    %8 = vector.shape_cast %7 : vector<16x16x128xbf16> to vector<256x128xbf16>
    %c0_11 = arith.constant 0 : index
    %c0_12 = arith.constant 0 : index
    %c0_13 = arith.constant 0 : index
    %9 = vector.load %arg5[%c0_11, %c0_12, %c0_13] : memref<9x128x128xbf16, #tpu.memory_space<vmem>>, vector<1x128x128xbf16>
    %10 = vector.shape_cast %9 : vector<1x128x128xbf16> to vector<128x128xbf16>
    %cst = arith.constant dense<0.000000e+00> : vector<256x128xf32>
    %11 = tpu.matmul %8, %10, %cst {dimension_numbers = #tpu.dot_dimension_numbers<[1], [0], [0], [1], [0, 0, 1, 1], [], []>} : vector<256x128xbf16>, vector<128x128xbf16>, vector<256x128xf32> -> vector<256x128xf32>
    %12 = vector.extract_strided_slice %6 {offsets = [0, 1, 0], sizes = [16, 16, 128], strides = [1, 1, 1]} : vector<18x18x128xbf16> to vector<16x16x128xbf16>
    %13 = vector.shape_cast %12 : vector<16x16x128xbf16> to vector<256x128xbf16>
    %c1 = arith.constant 1 : index
    %c0_14 = arith.constant 0 : index
    %c0_15 = arith.constant 0 : index
    %14 = vector.load %arg5[%c1, %c0_14, %c0_15] : memref<9x128x128xbf16, #tpu.memory_space<vmem>>, vector<1x128x128xbf16>
    %15 = vector.shape_cast %14 : vector<1x128x128xbf16> to vector<128x128xbf16>
    %cst_16 = arith.constant dense<0.000000e+00> : vector<256x128xf32>
    %16 = tpu.matmul %13, %15, %cst_16 {dimension_numbers = #tpu.dot_dimension_numbers<[1], [0], [0], [1], [0, 0, 1, 1], [], []>} : vector<256x128xbf16>, vector<128x128xbf16>, vector<256x128xf32> -> vector<256x128xf32>
    %17 = arith.addf %11, %16 : vector<256x128xf32>
    %18 = vector.extract_strided_slice %6 {offsets = [0, 2, 0], sizes = [16, 16, 128], strides = [1, 1, 1]} : vector<18x18x128xbf16> to vector<16x16x128xbf16>
    %19 = vector.shape_cast %18 : vector<16x16x128xbf16> to vector<256x128xbf16>
    %c2 = arith.constant 2 : index
    %c0_17 = arith.constant 0 : index
    %c0_18 = arith.constant 0 : index
    %20 = vector.load %arg5[%c2, %c0_17, %c0_18] : memref<9x128x128xbf16, #tpu.memory_space<vmem>>, vector<1x128x128xbf16>
    %21 = vector.shape_cast %20 : vector<1x128x128xbf16> to vector<128x128xbf16>
    %cst_19 = arith.constant dense<0.000000e+00> : vector<256x128xf32>
    %22 = tpu.matmul %19, %21, %cst_19 {dimension_numbers = #tpu.dot_dimension_numbers<[1], [0], [0], [1], [0, 0, 1, 1], [], []>} : vector<256x128xbf16>, vector<128x128xbf16>, vector<256x128xf32> -> vector<256x128xf32>
    %23 = arith.addf %17, %22 : vector<256x128xf32>
    %24 = vector.extract_strided_slice %6 {offsets = [1, 0, 0], sizes = [16, 16, 128], strides = [1, 1, 1]} : vector<18x18x128xbf16> to vector<16x16x128xbf16>
    %25 = vector.shape_cast %24 : vector<16x16x128xbf16> to vector<256x128xbf16>
    %c3 = arith.constant 3 : index
    %c0_20 = arith.constant 0 : index
    %c0_21 = arith.constant 0 : index
    %26 = vector.load %arg5[%c3, %c0_20, %c0_21] : memref<9x128x128xbf16, #tpu.memory_space<vmem>>, vector<1x128x128xbf16>
    %27 = vector.shape_cast %26 : vector<1x128x128xbf16> to vector<128x128xbf16>
    %cst_22 = arith.constant dense<0.000000e+00> : vector<256x128xf32>
    %28 = tpu.matmul %25, %27, %cst_22 {dimension_numbers = #tpu.dot_dimension_numbers<[1], [0], [0], [1], [0, 0, 1, 1], [], []>} : vector<256x128xbf16>, vector<128x128xbf16>, vector<256x128xf32> -> vector<256x128xf32>
    %29 = arith.addf %23, %28 : vector<256x128xf32>
    %30 = vector.extract_strided_slice %6 {offsets = [1, 1, 0], sizes = [16, 16, 128], strides = [1, 1, 1]} : vector<18x18x128xbf16> to vector<16x16x128xbf16>
    %31 = vector.shape_cast %30 : vector<16x16x128xbf16> to vector<256x128xbf16>
    %c4 = arith.constant 4 : index
    %c0_23 = arith.constant 0 : index
    %c0_24 = arith.constant 0 : index
    %32 = vector.load %arg5[%c4, %c0_23, %c0_24] : memref<9x128x128xbf16, #tpu.memory_space<vmem>>, vector<1x128x128xbf16>
    %33 = vector.shape_cast %32 : vector<1x128x128xbf16> to vector<128x128xbf16>
    %cst_25 = arith.constant dense<0.000000e+00> : vector<256x128xf32>
    %34 = tpu.matmul %31, %33, %cst_25 {dimension_numbers = #tpu.dot_dimension_numbers<[1], [0], [0], [1], [0, 0, 1, 1], [], []>} : vector<256x128xbf16>, vector<128x128xbf16>, vector<256x128xf32> -> vector<256x128xf32>
    %35 = arith.addf %29, %34 : vector<256x128xf32>
    %36 = vector.extract_strided_slice %6 {offsets = [1, 2, 0], sizes = [16, 16, 128], strides = [1, 1, 1]} : vector<18x18x128xbf16> to vector<16x16x128xbf16>
    %37 = vector.shape_cast %36 : vector<16x16x128xbf16> to vector<256x128xbf16>
    %c5 = arith.constant 5 : index
    %c0_26 = arith.constant 0 : index
    %c0_27 = arith.constant 0 : index
    %38 = vector.load %arg5[%c5, %c0_26, %c0_27] : memref<9x128x128xbf16, #tpu.memory_space<vmem>>, vector<1x128x128xbf16>
    %39 = vector.shape_cast %38 : vector<1x128x128xbf16> to vector<128x128xbf16>
    %cst_28 = arith.constant dense<0.000000e+00> : vector<256x128xf32>
    %40 = tpu.matmul %37, %39, %cst_28 {dimension_numbers = #tpu.dot_dimension_numbers<[1], [0], [0], [1], [0, 0, 1, 1], [], []>} : vector<256x128xbf16>, vector<128x128xbf16>, vector<256x128xf32> -> vector<256x128xf32>
    %41 = arith.addf %35, %40 : vector<256x128xf32>
    %42 = vector.extract_strided_slice %6 {offsets = [2, 0, 0], sizes = [16, 16, 128], strides = [1, 1, 1]} : vector<18x18x128xbf16> to vector<16x16x128xbf16>
    %43 = vector.shape_cast %42 : vector<16x16x128xbf16> to vector<256x128xbf16>
    %c6 = arith.constant 6 : index
    %c0_29 = arith.constant 0 : index
    %c0_30 = arith.constant 0 : index
    %44 = vector.load %arg5[%c6, %c0_29, %c0_30] : memref<9x128x128xbf16, #tpu.memory_space<vmem>>, vector<1x128x128xbf16>
    %45 = vector.shape_cast %44 : vector<1x128x128xbf16> to vector<128x128xbf16>
    %cst_31 = arith.constant dense<0.000000e+00> : vector<256x128xf32>
    %46 = tpu.matmul %43, %45, %cst_31 {dimension_numbers = #tpu.dot_dimension_numbers<[1], [0], [0], [1], [0, 0, 1, 1], [], []>} : vector<256x128xbf16>, vector<128x128xbf16>, vector<256x128xf32> -> vector<256x128xf32>
    %47 = arith.addf %41, %46 : vector<256x128xf32>
    %48 = vector.extract_strided_slice %6 {offsets = [2, 1, 0], sizes = [16, 16, 128], strides = [1, 1, 1]} : vector<18x18x128xbf16> to vector<16x16x128xbf16>
    %49 = vector.shape_cast %48 : vector<16x16x128xbf16> to vector<256x128xbf16>
    %c7 = arith.constant 7 : index
    %c0_32 = arith.constant 0 : index
    %c0_33 = arith.constant 0 : index
    %50 = vector.load %arg5[%c7, %c0_32, %c0_33] : memref<9x128x128xbf16, #tpu.memory_space<vmem>>, vector<1x128x128xbf16>
    %51 = vector.shape_cast %50 : vector<1x128x128xbf16> to vector<128x128xbf16>
    %cst_34 = arith.constant dense<0.000000e+00> : vector<256x128xf32>
    %52 = tpu.matmul %49, %51, %cst_34 {dimension_numbers = #tpu.dot_dimension_numbers<[1], [0], [0], [1], [0, 0, 1, 1], [], []>} : vector<256x128xbf16>, vector<128x128xbf16>, vector<256x128xf32> -> vector<256x128xf32>
    %53 = arith.addf %47, %52 : vector<256x128xf32>
    %54 = vector.extract_strided_slice %6 {offsets = [2, 2, 0], sizes = [16, 16, 128], strides = [1, 1, 1]} : vector<18x18x128xbf16> to vector<16x16x128xbf16>
    %55 = vector.shape_cast %54 : vector<16x16x128xbf16> to vector<256x128xbf16>
    %c8 = arith.constant 8 : index
    %c0_35 = arith.constant 0 : index
    %c0_36 = arith.constant 0 : index
    %56 = vector.load %arg5[%c8, %c0_35, %c0_36] : memref<9x128x128xbf16, #tpu.memory_space<vmem>>, vector<1x128x128xbf16>
    %57 = vector.shape_cast %56 : vector<1x128x128xbf16> to vector<128x128xbf16>
    %cst_37 = arith.constant dense<0.000000e+00> : vector<256x128xf32>
    %58 = tpu.matmul %55, %57, %cst_37 {dimension_numbers = #tpu.dot_dimension_numbers<[1], [0], [0], [1], [0, 0, 1, 1], [], []>} : vector<256x128xbf16>, vector<128x128xbf16>, vector<256x128xf32> -> vector<256x128xf32>
    %59 = arith.addf %53, %58 : vector<256x128xf32>
    %c0_38 = arith.constant 0 : index
    %c0_39 = arith.constant 0 : index
    %60 = vector.load %arg6[%c0_38, %c0_39] : memref<1x128xf32, #tpu.memory_space<vmem>>, vector<1x128xf32>
    %61 = vector.broadcast %60 : vector<1x128xf32> to vector<256x128xf32>
    %62 = arith.addf %59, %61 : vector<256x128xf32>
    %63 = arith.truncf %62 : vector<256x128xf32> to vector<256x128xbf16>
    %c0_40 = arith.constant 0 : index
    %c0_41 = arith.constant 0 : index
    %64 = vector.load %arg7[%c0_40, %c0_41] : memref<256x128xbf16, #tpu.memory_space<vmem>>, vector<256x128xbf16>
    tpu.vector_store %arg7[%c0_40, %c0_41], %63 {strides = array<i32>} : memref<256x128xbf16, #tpu.memory_space<vmem>>, vector<256x128xbf16>,
    %cst_42 = arith.constant dense<0.000000e+00> : vector<128xf32>
    %65 = vector.multi_reduction <add>, %62, %cst_42 [0] : vector<256x128xf32> to vector<128xf32>
    %66 = vector.shape_cast %65 : vector<128xf32> to vector<1x128xf32>
    %c0_43 = arith.constant 0 : index
    %c0_44 = arith.constant 0 : index
    %c0_45 = arith.constant 0 : index
    %67 = vector.load %arg8[%c0_43, %c0_44, %c0_45] : memref<1x2x128xf32, #tpu.memory_space<vmem>>, vector<1x1x128xf32>
    %68 = vector.shape_cast %67 : vector<1x1x128xf32> to vector<1x128xf32>
    %69 = vector.shape_cast %66 : vector<1x128xf32> to vector<1x1x128xf32>
    tpu.vector_store %arg8[%c0_43, %c0_44, %c0_45], %69 {strides = array<i32>} : memref<1x2x128xf32, #tpu.memory_space<vmem>>, vector<1x1x128xf32>,
    %70 = arith.mulf %62, %62 : vector<256x128xf32>
    %cst_46 = arith.constant dense<0.000000e+00> : vector<128xf32>
    %71 = vector.multi_reduction <add>, %70, %cst_46 [0] : vector<256x128xf32> to vector<128xf32>
    %72 = vector.shape_cast %71 : vector<128xf32> to vector<1x128xf32>
    %c0_47 = arith.constant 0 : index
    %c1_48 = arith.constant 1 : index
    %c0_49 = arith.constant 0 : index
    %73 = vector.load %arg8[%c0_47, %c1_48, %c0_49] : memref<1x2x128xf32, #tpu.memory_space<vmem>>, vector<1x1x128xf32>
    %74 = vector.shape_cast %73 : vector<1x1x128xf32> to vector<1x128xf32>
    %75 = vector.shape_cast %72 : vector<1x128xf32> to vector<1x1x128xf32>
    tpu.vector_store %arg8[%c0_47, %c1_48, %c0_49], %75 {strides = array<i32>} : memref<1x2x128xf32, #tpu.memory_space<vmem>>, vector<1x1x128xf32>,
    return
  }
  func.func @transform_0(%arg0: i32, %arg1: i32) -> (i32, i32, i32, i32) {
    %c0_i32 = arith.constant 0 : i32
    %c0_i32_0 = arith.constant 0 : i32
    %c0_i32_1 = arith.constant 0 : i32
    return %arg0, %arg1, %c0_i32, %c0_i32_0 : i32, i32, i32, i32
  }
  func.func @transform_1(%arg0: i32, %arg1: i32) -> (i32, i32, i32, i32) {
    %c1_i32 = arith.constant 1 : i32
    %0 = arith.addi %arg1, %c1_i32 : i32
    %c16_i32 = arith.constant 16 : i32
    %1 = arith.muli %0, %c16_i32 : i32
    %c0_i32 = arith.constant 0 : i32
    %c0_i32_0 = arith.constant 0 : i32
    %c0_i32_1 = arith.constant 0 : i32
    return %arg0, %1, %c0_i32, %c0_i32_0 : i32, i32, i32, i32
  }
  func.func @transform_2(%arg0: i32, %arg1: i32) -> (i32, i32, i32, i32) {
    %c1_i32 = arith.constant 1 : i32
    %0 = arith.addi %arg1, %c1_i32 : i32
    %c16_i32 = arith.constant 16 : i32
    %1 = arith.muli %0, %c16_i32 : i32
    %c1_i32_0 = arith.constant 1 : i32
    %2 = arith.addi %1, %c1_i32_0 : i32
    %c0_i32 = arith.constant 0 : i32
    %c0_i32_1 = arith.constant 0 : i32
    %c0_i32_2 = arith.constant 0 : i32
    return %arg0, %2, %c0_i32, %c0_i32_1 : i32, i32, i32, i32
  }
  func.func @transform_3(%arg0: i32, %arg1: i32) -> (i32, i32, i32) {
    %c0_i32 = arith.constant 0 : i32
    %c0_i32_0 = arith.constant 0 : i32
    %c0_i32_1 = arith.constant 0 : i32
    %c0_i32_2 = arith.constant 0 : i32
    return %c0_i32, %c0_i32_0, %c0_i32_1 : i32, i32, i32
  }
  func.func @transform_4(%arg0: i32, %arg1: i32) -> (i32, i32) {
    %c0_i32 = arith.constant 0 : i32
    %c0_i32_0 = arith.constant 0 : i32
    %c0_i32_1 = arith.constant 0 : i32
    return %c0_i32, %c0_i32_0 : i32, i32
  }
  func.func @transform_5(%arg0: i32, %arg1: i32) -> (i32, i32) {
    %c1_i32 = arith.constant 1 : i32
    %0 = arith.muli %arg0, %c1_i32 : i32
    %1 = arith.addi %0, %arg1 : i32
    %c0_i32 = arith.constant 0 : i32
    %c0_i32_0 = arith.constant 0 : i32
    return %1, %c0_i32 : i32, i32
  }
  func.func @transform_6(%arg0: i32, %arg1: i32) -> (i32, i32, i32) {
    %c1_i32 = arith.constant 1 : i32
    %0 = arith.muli %arg0, %c1_i32 : i32
    %1 = arith.addi %0, %arg1 : i32
    %c0_i32 = arith.constant 0 : i32
    %c0_i32_0 = arith.constant 0 : i32
    %c0_i32_1 = arith.constant 0 : i32
    return %1, %c0_i32, %c0_i32_0 : i32, i32, i32
  }
}

module attributes {stable_mosaic.version = 11 : i64} {
  func.func @_bn_lrelu_kernel(%arg0: i32, %arg1: memref<256x128xbf16, #tpu.memory_space<vmem>>, %arg2: memref<1x128xf32, #tpu.memory_space<vmem>>, %arg3: memref<1x128xf32, #tpu.memory_space<vmem>>, %arg4: memref<256x128xbf16, #tpu.memory_space<vmem>>) attributes {dimension_semantics = [#tpu.dimension_semantics<parallel>], iteration_bounds = array<i64: 2>, scalar_prefetch = 0 : i64, scratch_operands = 0 : i64, tpu.core_type = #tpu.core_type<tc>, window_params = [{transform_indices = @transform_0, window_bounds = array<i64: 256, 128>}, {pipeline_mode = #tpu.pipeline_mode<synchronous>, transform_indices = @transform_1, window_bounds = array<i64: 1, 128>}, {pipeline_mode = #tpu.pipeline_mode<synchronous>, transform_indices = @transform_2, window_bounds = array<i64: 1, 128>}, {transform_indices = @transform_3, window_bounds = array<i64: 256, 128>}]} {
    %c0 = arith.constant 0 : index
    %c0_0 = arith.constant 0 : index
    %0 = vector.load %arg1[%c0, %c0_0] : memref<256x128xbf16, #tpu.memory_space<vmem>>, vector<256x128xbf16>
    %1 = arith.extf %0 : vector<256x128xbf16> to vector<256x128xf32>
    %c0_1 = arith.constant 0 : index
    %c0_2 = arith.constant 0 : index
    %2 = vector.load %arg2[%c0_1, %c0_2] : memref<1x128xf32, #tpu.memory_space<vmem>>, vector<1x128xf32>
    %3 = vector.broadcast %2 : vector<1x128xf32> to vector<256x128xf32>
    %4 = arith.mulf %1, %3 : vector<256x128xf32>
    %c0_3 = arith.constant 0 : index
    %c0_4 = arith.constant 0 : index
    %5 = vector.load %arg3[%c0_3, %c0_4] : memref<1x128xf32, #tpu.memory_space<vmem>>, vector<1x128xf32>
    %6 = vector.broadcast %5 : vector<1x128xf32> to vector<256x128xf32>
    %7 = arith.addf %4, %6 : vector<256x128xf32>
    %cst = arith.constant 0.000000e+00 : f32
    %8 = vector.broadcast %cst : f32 to vector<256x128xf32>
    %9 = arith.cmpf ogt, %7, %8 : vector<256x128xf32>
    %cst_5 = arith.constant 0.00999999977 : f32
    %10 = vector.broadcast %cst_5 : f32 to vector<256x128xf32>
    %11 = arith.mulf %10, %7 : vector<256x128xf32>
    %12 = arith.select %9, %7, %11 : vector<256x128xi1>, vector<256x128xf32>
    %13 = arith.truncf %12 : vector<256x128xf32> to vector<256x128xbf16>
    %c0_6 = arith.constant 0 : index
    %c0_7 = arith.constant 0 : index
    %14 = vector.load %arg4[%c0_6, %c0_7] : memref<256x128xbf16, #tpu.memory_space<vmem>>, vector<256x128xbf16>
    tpu.vector_store %arg4[%c0_6, %c0_7], %13 {strides = array<i32>} : memref<256x128xbf16, #tpu.memory_space<vmem>>, vector<256x128xbf16>,
    return
  }
  func.func @transform_0(%arg0: i32) -> (i32, i32) {
    %c0_i32 = arith.constant 0 : i32
    %c0_i32_0 = arith.constant 0 : i32
    return %arg0, %c0_i32 : i32, i32
  }
  func.func @transform_1(%arg0: i32) -> (i32, i32) {
    %c0_i32 = arith.constant 0 : i32
    %c0_i32_0 = arith.constant 0 : i32
    %c0_i32_1 = arith.constant 0 : i32
    return %c0_i32, %c0_i32_0 : i32, i32
  }
  func.func @transform_2(%arg0: i32) -> (i32, i32) {
    %c0_i32 = arith.constant 0 : i32
    %c0_i32_0 = arith.constant 0 : i32
    %c0_i32_1 = arith.constant 0 : i32
    return %c0_i32, %c0_i32_0 : i32, i32
  }
  func.func @transform_3(%arg0: i32) -> (i32, i32) {
    %c0_i32 = arith.constant 0 : i32
    %c0_i32_0 = arith.constant 0 : i32
    return %arg0, %c0_i32 : i32, i32
  }
}

module attributes {stable_mosaic.version = 11 : i64} {
  func.func @_bn_lrelu_kernel(%arg0: i32, %arg1: memref<256x128xbf16, #tpu.memory_space<vmem>>, %arg2: memref<1x128xf32, #tpu.memory_space<vmem>>, %arg3: memref<1x128xf32, #tpu.memory_space<vmem>>, %arg4: memref<256x128xf32, #tpu.memory_space<vmem>>, %arg5: memref<256x128xf32, #tpu.memory_space<vmem>>) attributes {dimension_semantics = [#tpu.dimension_semantics<parallel>], iteration_bounds = array<i64: 2>, scalar_prefetch = 0 : i64, scratch_operands = 0 : i64, tpu.core_type = #tpu.core_type<tc>, window_params = [{transform_indices = @transform_0, window_bounds = array<i64: 256, 128>}, {pipeline_mode = #tpu.pipeline_mode<synchronous>, transform_indices = @transform_1, window_bounds = array<i64: 1, 128>}, {pipeline_mode = #tpu.pipeline_mode<synchronous>, transform_indices = @transform_2, window_bounds = array<i64: 1, 128>}, {transform_indices = @transform_3, window_bounds = array<i64: 256, 128>}, {transform_indices = @transform_4, window_bounds = array<i64: 256, 128>}]} {
    %c0 = arith.constant 0 : index
    %c0_0 = arith.constant 0 : index
    %0 = vector.load %arg1[%c0, %c0_0] : memref<256x128xbf16, #tpu.memory_space<vmem>>, vector<256x128xbf16>
    %1 = arith.extf %0 : vector<256x128xbf16> to vector<256x128xf32>
    %c0_1 = arith.constant 0 : index
    %c0_2 = arith.constant 0 : index
    %2 = vector.load %arg2[%c0_1, %c0_2] : memref<1x128xf32, #tpu.memory_space<vmem>>, vector<1x128xf32>
    %3 = vector.broadcast %2 : vector<1x128xf32> to vector<256x128xf32>
    %4 = arith.mulf %1, %3 : vector<256x128xf32>
    %c0_3 = arith.constant 0 : index
    %c0_4 = arith.constant 0 : index
    %5 = vector.load %arg3[%c0_3, %c0_4] : memref<1x128xf32, #tpu.memory_space<vmem>>, vector<1x128xf32>
    %6 = vector.broadcast %5 : vector<1x128xf32> to vector<256x128xf32>
    %7 = arith.addf %4, %6 : vector<256x128xf32>
    %cst = arith.constant 0.000000e+00 : f32
    %8 = vector.broadcast %cst : f32 to vector<256x128xf32>
    %9 = arith.cmpf ogt, %7, %8 : vector<256x128xf32>
    %cst_5 = arith.constant 0.00999999977 : f32
    %10 = vector.broadcast %cst_5 : f32 to vector<256x128xf32>
    %11 = arith.mulf %10, %7 : vector<256x128xf32>
    %12 = arith.select %9, %7, %11 : vector<256x128xi1>, vector<256x128xf32>
    %c0_6 = arith.constant 0 : index
    %c0_7 = arith.constant 0 : index
    %13 = vector.load %arg4[%c0_6, %c0_7] : memref<256x128xf32, #tpu.memory_space<vmem>>, vector<256x128xf32>
    %14 = arith.addf %12, %13 : vector<256x128xf32>
    %c0_8 = arith.constant 0 : index
    %c0_9 = arith.constant 0 : index
    %15 = vector.load %arg5[%c0_8, %c0_9] : memref<256x128xf32, #tpu.memory_space<vmem>>, vector<256x128xf32>
    tpu.vector_store %arg5[%c0_8, %c0_9], %14 {strides = array<i32>} : memref<256x128xf32, #tpu.memory_space<vmem>>, vector<256x128xf32>,
    return
  }
  func.func @transform_0(%arg0: i32) -> (i32, i32) {
    %c0_i32 = arith.constant 0 : i32
    %c0_i32_0 = arith.constant 0 : i32
    return %arg0, %c0_i32 : i32, i32
  }
  func.func @transform_1(%arg0: i32) -> (i32, i32) {
    %c0_i32 = arith.constant 0 : i32
    %c0_i32_0 = arith.constant 0 : i32
    %c0_i32_1 = arith.constant 0 : i32
    return %c0_i32, %c0_i32_0 : i32, i32
  }
  func.func @transform_2(%arg0: i32) -> (i32, i32) {
    %c0_i32 = arith.constant 0 : i32
    %c0_i32_0 = arith.constant 0 : i32
    %c0_i32_1 = arith.constant 0 : i32
    return %c0_i32, %c0_i32_0 : i32, i32
  }
  func.func @transform_3(%arg0: i32) -> (i32, i32) {
    %c0_i32 = arith.constant 0 : i32
    %c0_i32_0 = arith.constant 0 : i32
    return %arg0, %c0_i32 : i32, i32
  }
  func.func @transform_4(%arg0: i32) -> (i32, i32) {
    %c0_i32 = arith.constant 0 : i32
    %c0_i32_0 = arith.constant 0 : i32
    return %arg0, %c0_i32 : i32, i32
  }
}

</mosaic_0001>

<llo_original>
// kernel: double_conv_forward.12
$region0: #{double_conv_forward.12}
  #allocation0 [shape = 'u32[]', space=smem, size = 0x4, offset = 0x4, fixed_abs, tag = 'smem constant byte address 0x4 - core index']
  #allocation1 [shape = 'u32[144,128]{1,0:T(1,128)}', space=vmem, size = 0x12000, scoped, tag = 'internal scratch']
  %s0 = inlined_call_operand.vmem [shape: bf16[288,128], index: 0, kind: input, shape index: {}]
  %s1 = inlined_call_operand.vmem [shape: f32[1,128], index: 1, kind: input, shape index: {}]
  %s2 = inlined_call_operand.vmem [shape: f32[1,128], index: 2, kind: input, shape index: {}]
  %s3 = inlined_call_operand.vmem [shape: bf16[288,128], index: 3, kind: output, shape index: {}]
  %s4 = sld [smem:[#allocation0]]
  $region45: #{double_conv_forward.12} parent=0
    _
  %s6 = ssub.s32 1, %s4
  %s7 = scalar_select 0, %s6, %s4
  loop: start=0, step=1, limit=4
  $region2: #{double_conv_forward.12} parent=0 // loop_pre_header
    _
  $region3: #{double_conv_forward.12} parent=0 // loop_header
    %s9 = sphi 0, %s13
    %p10 = scmp.ge.s32.totalorder %s9, 4
    %s19 = sphi 0, %s21
    %s22 = sphi 0, %s19
    %s23 = sphi 0, %s22
    %s39 = sphi 0, %s23
    %s43 = sphi 0, %s43
    %s45 = sphi 0, %s43
    %s46 = sphi 0, %s45
    %s60 = sphi 0, %s46
    %s64 = sphi 0, %s64
    %s66 = sphi 0, %s64
    %s67 = sphi 0, %s66
    %s81 = sphi 0, %s67
    %s87 = sphi 0, %s89
    %s90 = sphi 0, %s87
    %s91 = sphi 0, %s90
    %s107 = sphi 0, %s91
  $region4: #{double_conv_forward.12} parent=0 // loop_header_branch
    %12 = sbr.rel (%p10) target = $region8
  $region5: #{double_conv_forward.12} parent=0 // loop_body
    %s14 = ssub.s32 %s9, 1
    %s15 = ssub.s32 %s9, 2
    %s16 = sadd.s32 %s9, 1
    %s17 = ssub.s32 %s9, %s16
    %p18 = scmp.eq.s32.totalorder %s17, 0
    %s20 = sadd.s32 %s19, 1
    %s21 = scalar_select %p18, %s19, %s20
    %p24 = pneg %p18
    %p25 = scmp.eq.s32.totalorder %s9, 1
    %p26 = por %p24, %p25
    %p27 = scmp.ne.s32.totalorder %s19, %s22
    %p28 = scmp.eq.s32.totalorder %s9, 0
    %p29 = por %p27, %p28
    %p30 = scmp.ne.s32.totalorder %s19, %s22
    %p31 = scmp.eq.s32.totalorder %s14, 1
    %p32 = por %p30, %p31
    %p33 = scmp.ne.s32.totalorder %s22, %s23
    %p34 = scmp.eq.s32.totalorder %s14, 0
    %p35 = por %p33, %p34
    %p36 = scmp.ne.s32.totalorder %s22, %s23
    %p37 = scmp.eq.s32.totalorder %s15, 1
    %p38 = por %p36, %p37
    %p40 = scmp.ne.s32.totalorder %s23, %s39
    %p41 = scmp.eq.s32.totalorder %s15, 0
    %p42 = por %p40, %p41
    %s44 = sadd.s32 %s43, 1
    %p47 = scmp.eq.s32.totalorder %s9, 1
    %p48 = scmp.ne.s32.totalorder %s43, %s45
    %p49 = scmp.eq.s32.totalorder %s9, 0
    %p50 = por %p48, %p49
    %p51 = scmp.ne.s32.totalorder %s43, %s45
    %p52 = scmp.eq.s32.totalorder %s14, 1
    %p53 = por %p51, %p52
    %p54 = scmp.ne.s32.totalorder %s45, %s46
    %p55 = scmp.eq.s32.totalorder %s14, 0
    %p56 = por %p54, %p55
    %p57 = scmp.ne.s32.totalorder %s45, %s46
    %p58 = scmp.eq.s32.totalorder %s15, 1
    %p59 = por %p57, %p58
    %p61 = scmp.ne.s32.totalorder %s46, %s60
    %p62 = scmp.eq.s32.totalorder %s15, 0
    %p63 = por %p61, %p62
    %s65 = sadd.s32 %s64, 1
    %p68 = scmp.eq.s32.totalorder %s9, 1
    %p69 = scmp.ne.s32.totalorder %s64, %s66
    %p70 = scmp.eq.s32.totalorder %s9, 0
    %p71 = por %p69, %p70
    %p72 = scmp.ne.s32.totalorder %s64, %s66
    %p73 = scmp.eq.s32.totalorder %s14, 1
    %p74 = por %p72, %p73
    %p75 = scmp.ne.s32.totalorder %s66, %s67
    %p76 = scmp.eq.s32.totalorder %s14, 0
    %p77 = por %p75, %p76
    %p78 = scmp.ne.s32.totalorder %s66, %s67
    %p79 = scmp.eq.s32.totalorder %s15, 1
    %p80 = por %p78, %p79
    %p82 = scmp.ne.s32.totalorder %s67, %s81
    %p83 = scmp.eq.s32.totalorder %s15, 0
    %p84 = por %p82, %p83
    %s85 = ssub.s32 %s9, %s16
    %p86 = scmp.eq.s32.totalorder %s85, 0
    %s88 = sadd.s32 %s87, 1
    %s89 = scalar_select %p86, %s87, %s88
    %p92 = pneg %p86
    %p93 = scmp.eq.s32.totalorder %s9, 1
    %p94 = por %p92, %p93
    %p95 = scmp.ne.s32.totalorder %s87, %s90
    %p96 = scmp.eq.s32.totalorder %s9, 0
    %p97 = por %p95, %p96
    %p98 = scmp.ne.s32.totalorder %s87, %s90
    %p99 = scmp.eq.s32.totalorder %s14, 1
    %p100 = por %p98, %p99
    %p101 = scmp.ne.s32.totalorder %s90, %s91
    %p102 = scmp.eq.s32.totalorder %s14, 0
    %p103 = por %p101, %p102
    %p104 = scmp.ne.s32.totalorder %s90, %s91
    %p105 = scmp.eq.s32.totalorder %s15, 1
    %p106 = por %p104, %p105
    %p108 = scmp.ne.s32.totalorder %s91, %s107
    %p109 = scmp.eq.s32.totalorder %s15, 0
    %p110 = por %p108, %p109
    %p111 = scmp.le.s32.totalorder 1, %s9
    %p112 = scmp.lt.s32.totalorder %s9, 3
    %p113 = pnand %p111, %p112
    %p114 = pneg %p113
    // Predicated region
    $region9: #{double_conv_forward.12} parent=5 // pred_check
      _
    $region10: #{double_conv_forward.12} parent=5 // pred_check_branch
      %116 = sbr.rel (%p113) target = $region12
    $region11: #{double_conv_forward.12} parent=5 // pred_region
      %s117 = ssub.s32 %s9, 1
      // Predicated region
      $region13: #{double_conv_forward.12} parent=11 // pred_check
        %p118 = pneg %p56
      $region14: #{double_conv_forward.12} parent=11 // pred_check_branch
        %120 = sbr.rel (%p118) target = $region16
      $region15: #{double_conv_forward.12} parent=11 // pred_region
        _
      $region16: #{double_conv_forward.12} parent=11 // pred_fallthru
        _
      // Predicated region
      $region17: #{double_conv_forward.12} parent=11 // pred_check
        %p121 = pneg %p77
      $region18: #{double_conv_forward.12} parent=11 // pred_check_branch
        %123 = sbr.rel (%p121) target = $region20
      $region19: #{double_conv_forward.12} parent=11 // pred_region
        _
      $region20: #{double_conv_forward.12} parent=11 // pred_fallthru
        _
    $region12: #{double_conv_forward.12} parent=5 // pred_fallthru
      _
    %p124 = scmp.lt.s32.totalorder %s9, 2
    // Predicated region
    $region21: #{double_conv_forward.12} parent=5 // pred_check
      %p125 = pneg %p124
    $region22: #{double_conv_forward.12} parent=5 // pred_check_branch
      %127 = sbr.rel (%p125) target = $region24
    $region23: #{double_conv_forward.12} parent=5 // pred_region
      // Predicated region
      $region25: #{double_conv_forward.12} parent=23 // pred_check
        %p128 = pneg %p29
      $region26: #{double_conv_forward.12} parent=23 // pred_check_branch
        %130 = sbr.rel (%p128) target = $region28
      $region27: #{double_conv_forward.12} parent=23 // pred_region
        %s131 = smul.u32 18, %s9
        %p132 = scmp.lt.s32.totalorder %s131, 35
        %s133 = scalar_select %p132, %s131, 35
        %s134 = smul.addr %s133, 4
        %s135 = scalar_lea.vmem %s0, %s134
        %s136 = smul.u32 18, %s9
      $region28: #{double_conv_forward.12} parent=23 // pred_fallthru
        _
    $region24: #{double_conv_forward.12} parent=5 // pred_fallthru
      _
    %p137 = scmp.le.s32.totalorder 1, %s9
    %p138 = scmp.lt.s32.totalorder %s9, 3
    %p139 = pnand %p137, %p138
    %p140 = pneg %p139
    // Predicated region
    $region29: #{double_conv_forward.12} parent=5 // pred_check
      _
    $region30: #{double_conv_forward.12} parent=5 // pred_check_branch
      %142 = sbr.rel (%p139) target = $region32
    $region31: #{double_conv_forward.12} parent=5 // pred_region
      %s143 = ssub.s32 %s9, 1
      %s144 = smul.u32 18, %s14
      %p145 = scmp.lt.s32.totalorder %s144, 35
      %s146 = scalar_select %p145, %s144, 35
      %s147 = smul.addr %s146, 4
      %s148 = scalar_lea.vmem %s0, %s147
      %p149 = pneg %p35
      %p150 = pneg %p32
      %p151 = pneg %p56
      %p152 = pneg %p53
      %p153 = pneg %p77
      %p154 = pneg %p74
      %p155 = pneg %p103
      %p156 = pneg %p100
      %s157 = smul.u32 18, %s14
      %p158 = scmp.lt.s32.totalorder %s157, 35
      %s159 = scalar_select %p158, %s157, 35
      %s160 = smul.addr %s159, 4
      %s161 = scalar_lea.vmem %s3, %s160
      %s162 = smul.u32 18, %s14
      %p163 = scmp.lt.s32.totalorder %s162, 35
      %s164 = scalar_select %p163, %s162, 35
      %s165 = smul.addr %s164, 4
      %s166 = scalar_lea.vmem %s0, %s165
      %s167 = smul.u32 18, %s14
      %s168 = smul.u32 18, %s14
      %p169 = scmp.lt.s32.totalorder %s168, 35
      %s170 = scalar_select %p169, %s168, 35
      %s171 = smul.addr %s170, 4
      %s172 = scalar_lea.vmem %s3, %s171
      %s173 = smul.u32 18, %s14
      %v174 = vld [vmem:[%s166] sm:$0xf]
      %v175 = vld [vmem:[%s166 + $0x4] sm:$0xf]
      %v176 = vld [vmem:[%s166 + $0x8] sm:$0xf]
      %v177 = vld [vmem:[%s166 + $0xc] sm:$0xf]
      %v178 = vld [vmem:[%s166 + $0x10] sm:$0xf]
      %v179 = vld [vmem:[%s166 + $0x14] sm:$0xf]
      %v180 = vld [vmem:[%s166 + $0x18] sm:$0xf]
      %v181 = vld [vmem:[%s166 + $0x1c] sm:$0xf]
      %v182 = vld [vmem:[%s166 + $0x20] sm:$0xf]
      %v183 = vld [vmem:[%s166 + $0x24] sm:$0xf]
      %v184 = vld [vmem:[%s166 + $0x28] sm:$0xf]
      %v185 = vld [vmem:[%s166 + $0x2c] sm:$0xf]
      %v186 = vld [vmem:[%s166 + $0x30] sm:$0xf]
      %v187 = vld [vmem:[%s166 + $0x34] sm:$0xf]
      %v188 = vld [vmem:[%s166 + $0x38] sm:$0xf]
      %v189 = vld [vmem:[%s166 + $0x3c] sm:$0xf]
      %v190 = vld [vmem:[%s166 + $0x40] sm:$0xf]
      %v191 = vld [vmem:[%s166 + $0x44] sm:$0xf]
      %v192 = vunpack.c.l.bf16 %v174
      %v193 = vunpack.c.l.bf16 %v175
      %v194 = vunpack.c.l.bf16 %v176
      %v195 = vunpack.c.l.bf16 %v177
      %v196 = vunpack.c.l.bf16 %v178
      %v197 = vunpack.c.l.bf16 %v179
      %v198 = vunpack.c.l.bf16 %v180
      %v199 = vunpack.c.l.bf16 %v181
      %v200 = vunpack.c.l.bf16 %v182
      %v201 = vunpack.c.l.bf16 %v183
      %v202 = vunpack.c.l.bf16 %v184
      %v203 = vunpack.c.l.bf16 %v185
      %v204 = vunpack.c.l.bf16 %v186
      %v205 = vunpack.c.l.bf16 %v187
      %v206 = vunpack.c.l.bf16 %v188
      %v207 = vunpack.c.l.bf16 %v189
      %v208 = vunpack.c.l.bf16 %v190
      %v209 = vunpack.c.l.bf16 %v191
      %v210 = vld [vmem:[%s1] sm:$0x1]
      %v212 = vlaneseq
      %v213 = vshrl.u32 %v212, 7
      %v214 = vsub.s32 0, %v213
      %v215 = vrot.slane %v210, %v214
      %v217 = vmul.f32 %v192, %v215
      %v218 = vmul.f32 %v193, %v215
      %v219 = vmul.f32 %v194, %v215
      %v220 = vmul.f32 %v195, %v215
      %v221 = vmul.f32 %v196, %v215
      %v222 = vmul.f32 %v197, %v215
      %v223 = vmul.f32 %v198, %v215
      %v224 = vmul.f32 %v199, %v215
      %v225 = vmul.f32 %v200, %v215
      %v226 = vmul.f32 %v201, %v215
      %v227 = vmul.f32 %v202, %v215
      %v228 = vmul.f32 %v203, %v215
      %v229 = vmul.f32 %v204, %v215
      %v230 = vmul.f32 %v205, %v215
      %v231 = vmul.f32 %v206, %v215
      %v232 = vmul.f32 %v207, %v215
      %v233 = vmul.f32 %v208, %v215
      %v234 = vmul.f32 %v209, %v215
      %v235 = vld [vmem:[%s2] sm:$0x1]
      %v237 = vlaneseq
      %v238 = vshrl.u32 %v237, 7
      %v239 = vsub.s32 0, %v238
      %v240 = vrot.slane %v235, %v239
      %v242 = vadd.f32 %v217, %v240
      %v243 = vadd.f32 %v218, %v240
      %v244 = vadd.f32 %v219, %v240
      %v245 = vadd.f32 %v220, %v240
      %v246 = vadd.f32 %v221, %v240
      %v247 = vadd.f32 %v222, %v240
      %v248 = vadd.f32 %v223, %v240
      %v249 = vadd.f32 %v224, %v240
      %v250 = vadd.f32 %v225, %v240
      %v251 = vadd.f32 %v226, %v240
      %v252 = vadd.f32 %v227, %v240
      %v253 = vadd.f32 %v228, %v240
      %v254 = vadd.f32 %v229, %v240
      %v255 = vadd.f32 %v230, %v240
      %v256 = vadd.f32 %v231, %v240
      %v257 = vadd.f32 %v232, %v240
      %v258 = vadd.f32 %v233, %v240
      %v259 = vadd.f32 %v234, %v240
      %vm260 = vcmp.gt.f32.partialorder %v242, 0.0
      %vm261 = vcmp.gt.f32.partialorder %v243, 0.0
      %vm262 = vcmp.gt.f32.partialorder %v244, 0.0
      %vm263 = vcmp.gt.f32.partialorder %v245, 0.0
      %vm264 = vcmp.gt.f32.partialorder %v246, 0.0
      %vm265 = vcmp.gt.f32.partialorder %v247, 0.0
      %vm266 = vcmp.gt.f32.partialorder %v248, 0.0
      %vm267 = vcmp.gt.f32.partialorder %v249, 0.0
      %vm268 = vcmp.gt.f32.partialorder %v250, 0.0
      %vm269 = vcmp.gt.f32.partialorder %v251, 0.0
      %vm270 = vcmp.gt.f32.partialorder %v252, 0.0
      %vm271 = vcmp.gt.f32.partialorder %v253, 0.0
      %vm272 = vcmp.gt.f32.partialorder %v254, 0.0
      %vm273 = vcmp.gt.f32.partialorder %v255, 0.0
      %vm274 = vcmp.gt.f32.partialorder %v256, 0.0
      %vm275 = vcmp.gt.f32.partialorder %v257, 0.0
      %vm276 = vcmp.gt.f32.partialorder %v258, 0.0
      %vm277 = vcmp.gt.f32.partialorder %v259, 0.0
      %v278 = vmul.f32 %v242, 0.01
      %v279 = vmul.f32 %v243, 0.01
      %v280 = vmul.f32 %v244, 0.01
      %v281 = vmul.f32 %v245, 0.01
      %v282 = vmul.f32 %v246, 0.01
      %v283 = vmul.f32 %v247, 0.01
      %v284 = vmul.f32 %v248, 0.01
      %v285 = vmul.f32 %v249, 0.01
      %v286 = vmul.f32 %v250, 0.01
      %v287 = vmul.f32 %v251, 0.01
      %v288 = vmul.f32 %v252, 0.01
      %v289 = vmul.f32 %v253, 0.01
      %v290 = vmul.f32 %v254, 0.01
      %v291 = vmul.f32 %v255, 0.01
      %v292 = vmul.f32 %v256, 0.01
      %v293 = vmul.f32 %v257, 0.01
      %v294 = vmul.f32 %v258, 0.01
      %v295 = vmul.f32 %v259, 0.01
      %v296 = vsel %vm260, %v242, %v278
      %v297 = vsel %vm261, %v243, %v279
      %v298 = vsel %vm262, %v244, %v280
      %v299 = vsel %vm263, %v245, %v281
      %v300 = vsel %vm264, %v246, %v282
      %v301 = vsel %vm265, %v247, %v283
      %v302 = vsel %vm266, %v248, %v284
      %v303 = vsel %vm267, %v249, %v285
      %v304 = vsel %vm268, %v250, %v286
      %v305 = vsel %vm269, %v251, %v287
      %v306 = vsel %vm270, %v252, %v288
      %v307 = vsel %vm271, %v253, %v289
      %v308 = vsel %vm272, %v254, %v290
      %v309 = vsel %vm273, %v255, %v291
      %v310 = vsel %vm274, %v256, %v292
      %v311 = vsel %vm275, %v257, %v293
      %v312 = vsel %vm276, %v258, %v294
      %v313 = vsel %vm277, %v259, %v295
      %v314 = vpack.c.bf16 %v297, %v296
      %v315 = vpack.c.bf16 %v299, %v298
      %v316 = vpack.c.bf16 %v301, %v300
      %v317 = vpack.c.bf16 %v303, %v302
      %v318 = vpack.c.bf16 %v305, %v304
      %v319 = vpack.c.bf16 %v307, %v306
      %v320 = vpack.c.bf16 %v309, %v308
      %v321 = vpack.c.bf16 %v311, %v310
      %v322 = vpack.c.bf16 %v313, %v312
      %v332 = vunpack.c.l.b16 %v314
      %v333 = vunpack.c.h.b16 %v314
      %v334 = vunpack.c.l.b16 %v315
      %v335 = vunpack.c.h.b16 %v315
      %v336 = vunpack.c.l.b16 %v316
      %v337 = vunpack.c.h.b16 %v316
      %v338 = vunpack.c.l.b16 %v317
      %v339 = vunpack.c.h.b16 %v317
      %v340 = vunpack.c.l.b16 %v318
      %v341 = vunpack.c.h.b16 %v318
      %v342 = vunpack.c.l.b16 %v319
      %v343 = vunpack.c.h.b16 %v319
      %v344 = vunpack.c.l.b16 %v320
      %v345 = vunpack.c.h.b16 %v320
      %v346 = vunpack.c.l.b16 %v321
      %v347 = vunpack.c.h.b16 %v321
      %v348 = vunpack.c.l.b16 %v322
      %v349 = vunpack.c.h.b16 %v322
      %v350 = vpack.c.b16 %v332, %v332
      %v351 = vpack.c.b16 %v333, %v333
      %v352 = vpack.c.b16 %v334, %v334
      %v353 = vpack.c.b16 %v335, %v335
      %v354 = vpack.c.b16 %v336, %v336
      %v355 = vpack.c.b16 %v337, %v337
      %v356 = vpack.c.b16 %v338, %v338
      %v357 = vpack.c.b16 %v339, %v339
      %v358 = vpack.c.b16 %v340, %v340
      %v359 = vpack.c.b16 %v341, %v341
      %v360 = vpack.c.b16 %v342, %v342
      %v361 = vpack.c.b16 %v343, %v343
      %v362 = vpack.c.b16 %v344, %v344
      %v363 = vpack.c.b16 %v345, %v345
      %v364 = vpack.c.b16 %v346, %v346
      %v365 = vpack.c.b16 %v347, %v347
      %v366 = vpack.c.b16 %v348, %v348
      %v367 = vpack.c.b16 %v349, %v349
      %386 = vst [vmem:[%s172] sm:$0xf] %v350
      %387 = vst [vmem:[%s172 + $0x4] sm:$0xf] %v351
      %388 = vst [vmem:[%s172 + $0x8] sm:$0xf] %v352
      %389 = vst [vmem:[%s172 + $0xc] sm:$0xf] %v353
      %390 = vst [vmem:[%s172 + $0x10] sm:$0xf] %v354
      %391 = vst [vmem:[%s172 + $0x14] sm:$0xf] %v355
      %392 = vst [vmem:[%s172 + $0x18] sm:$0xf] %v356
      %393 = vst [vmem:[%s172 + $0x1c] sm:$0xf] %v357
      %394 = vst [vmem:[%s172 + $0x20] sm:$0xf] %v358
      %395 = vst [vmem:[%s172 + $0x24] sm:$0xf] %v359
      %396 = vst [vmem:[%s172 + $0x28] sm:$0xf] %v360
      %397 = vst [vmem:[%s172 + $0x2c] sm:$0xf] %v361
      %398 = vst [vmem:[%s172 + $0x30] sm:$0xf] %v362
      %399 = vst [vmem:[%s172 + $0x34] sm:$0xf] %v363
      %400 = vst [vmem:[%s172 + $0x38] sm:$0xf] %v364
      %401 = vst [vmem:[%s172 + $0x3c] sm:$0xf] %v365
      %402 = vst [vmem:[%s172 + $0x40] sm:$0xf] %v366
      %403 = vst [vmem:[%s172 + $0x44] sm:$0xf] %v367
      %s404 = smul.u32 18, %s14
      %p405 = scmp.lt.s32.totalorder %s404, 35
      %s406 = scalar_select %p405, %s404, 35
      %s407 = smul.addr %s406, 4
      %s408 = scalar_lea.vmem %s3, %s407
      // Predicated region
      $region33: #{double_conv_forward.12} parent=31 // pred_check
        %p409 = pneg %p100
      $region34: #{double_conv_forward.12} parent=31 // pred_check_branch
        %411 = sbr.rel (%p409) target = $region36
      $region35: #{double_conv_forward.12} parent=31 // pred_region
        %s412 = smul.u32 18, %s14
      $region36: #{double_conv_forward.12} parent=31 // pred_fallthru
        _
    $region32: #{double_conv_forward.12} parent=5 // pred_fallthru
      _
    %p413 = scmp.le.s32.totalorder 2, %s9
    // Predicated region
    $region37: #{double_conv_forward.12} parent=5 // pred_check
      %p414 = pneg %p413
    $region38: #{double_conv_forward.12} parent=5 // pred_check_branch
      %416 = sbr.rel (%p414) target = $region40
    $region39: #{double_conv_forward.12} parent=5 // pred_region
      %s417 = ssub.s32 %s9, 2
      // Predicated region
      $region41: #{double_conv_forward.12} parent=39 // pred_check
        %p418 = pneg %p106
      $region42: #{double_conv_forward.12} parent=39 // pred_check_branch
        %420 = sbr.rel (%p418) target = $region44
      $region43: #{double_conv_forward.12} parent=39 // pred_region
        %s421 = smul.u32 18, %s15
        %p422 = scmp.lt.s32.totalorder %s421, 35
        %s423 = scalar_select %p422, %s421, 35
        %s424 = smul.addr %s423, 4
        %s425 = scalar_lea.vmem %s3, %s424
      $region44: #{double_conv_forward.12} parent=39 // pred_fallthru
        _
    $region40: #{double_conv_forward.12} parent=5 // pred_fallthru
      _
  $region6: #{double_conv_forward.12} parent=0 // loop_footer
    %s13 = sadd.s32 1, %s9
  $region7: #{double_conv_forward.12} parent=0 // loop_footer_branch
    %8 = sbr.rel target = $region3
  $region8: #{double_conv_forward.12} parent=0 // loop_exit
    _

// kernel: double_conv_forward.10
$region0: #{double_conv_forward.10}
  #allocation0 [shape = 'u32[]', space=smem, size = 0x4, offset = 0x4, fixed_abs, tag = 'smem constant byte address 0x4 - core index']
  #allocation1 [shape = 'u32[144,128]{1,0:T(1,128)}', space=vmem, size = 0x12000, scoped, tag = 'internal scratch']
  %s0 = inlined_call_operand.vmem [shape: bf16[288,8], index: 0, kind: input, shape index: {}]
  %s1 = inlined_call_operand.vmem [shape: bf16[8,128], index: 1, kind: input, shape index: {}]
  %s2 = inlined_call_operand.vmem [shape: f32[1,128], index: 2, kind: input, shape index: {}]
  %s3 = inlined_call_operand.vmem [shape: bf16[288,128], index: 3, kind: output, shape index: {0}]
  %s4 = inlined_call_operand.vmem [shape: f32[2,2,128], index: 4, kind: output, shape index: {1}]
  %5 = xla_tuple %s3, %s4
  %s6 = sld [smem:[#allocation0]]
  $region53: #{double_conv_forward.10} parent=0
    _
  %s8 = ssub.s32 1, %s6
  %s9 = scalar_select 0, %s8, %s6
  loop: start=0, step=1, limit=4
  $region2: #{double_conv_forward.10} parent=0 // loop_pre_header
    _
  $region3: #{double_conv_forward.10} parent=0 // loop_header
    %s11 = sphi 0, %s15
    %p12 = scmp.ge.s32.totalorder %s11, 4
    %s21 = sphi 0, %s23
    %s24 = sphi 0, %s21
    %s25 = sphi 0, %s24
    %s41 = sphi 0, %s25
    %s45 = sphi 0, %s45
    %s47 = sphi 0, %s45
    %s48 = sphi 0, %s47
    %s62 = sphi 0, %s48
    %s66 = sphi 0, %s66
    %s68 = sphi 0, %s66
    %s69 = sphi 0, %s68
    %s83 = sphi 0, %s69
    %s89 = sphi 0, %s91
    %s92 = sphi 0, %s89
    %s93 = sphi 0, %s92
    %s109 = sphi 0, %s93
    %s115 = sphi 0, %s117
    %s118 = sphi 0, %s115
    %s119 = sphi 0, %s118
    %s135 = sphi 0, %s119
  $region4: #{double_conv_forward.10} parent=0 // loop_header_branch
    %14 = sbr.rel (%p12) target = $region8
  $region5: #{double_conv_forward.10} parent=0 // loop_body
    %s16 = ssub.s32 %s11, 1
    %s17 = ssub.s32 %s11, 2
    %s18 = sadd.s32 %s11, 1
    %s19 = ssub.s32 %s11, %s18
    %p20 = scmp.eq.s32.totalorder %s19, 0
    %s22 = sadd.s32 %s21, 1
    %s23 = scalar_select %p20, %s21, %s22
    %p26 = pneg %p20
    %p27 = scmp.eq.s32.totalorder %s11, 1
    %p28 = por %p26, %p27
    %p29 = scmp.ne.s32.totalorder %s21, %s24
    %p30 = scmp.eq.s32.totalorder %s11, 0
    %p31 = por %p29, %p30
    %p32 = scmp.ne.s32.totalorder %s21, %s24
    %p33 = scmp.eq.s32.totalorder %s16, 1
    %p34 = por %p32, %p33
    %p35 = scmp.ne.s32.totalorder %s24, %s25
    %p36 = scmp.eq.s32.totalorder %s16, 0
    %p37 = por %p35, %p36
    %p38 = scmp.ne.s32.totalorder %s24, %s25
    %p39 = scmp.eq.s32.totalorder %s17, 1
    %p40 = por %p38, %p39
    %p42 = scmp.ne.s32.totalorder %s25, %s41
    %p43 = scmp.eq.s32.totalorder %s17, 0
    %p44 = por %p42, %p43
    %s46 = sadd.s32 %s45, 1
    %p49 = scmp.eq.s32.totalorder %s11, 1
    %p50 = scmp.ne.s32.totalorder %s45, %s47
    %p51 = scmp.eq.s32.totalorder %s11, 0
    %p52 = por %p50, %p51
    %p53 = scmp.ne.s32.totalorder %s45, %s47
    %p54 = scmp.eq.s32.totalorder %s16, 1
    %p55 = por %p53, %p54
    %p56 = scmp.ne.s32.totalorder %s47, %s48
    %p57 = scmp.eq.s32.totalorder %s16, 0
    %p58 = por %p56, %p57
    %p59 = scmp.ne.s32.totalorder %s47, %s48
    %p60 = scmp.eq.s32.totalorder %s17, 1
    %p61 = por %p59, %p60
    %p63 = scmp.ne.s32.totalorder %s48, %s62
    %p64 = scmp.eq.s32.totalorder %s17, 0
    %p65 = por %p63, %p64
    %s67 = sadd.s32 %s66, 1
    %p70 = scmp.eq.s32.totalorder %s11, 1
    %p71 = scmp.ne.s32.totalorder %s66, %s68
    %p72 = scmp.eq.s32.totalorder %s11, 0
    %p73 = por %p71, %p72
    %p74 = scmp.ne.s32.totalorder %s66, %s68
    %p75 = scmp.eq.s32.totalorder %s16, 1
    %p76 = por %p74, %p75
    %p77 = scmp.ne.s32.totalorder %s68, %s69
    %p78 = scmp.eq.s32.totalorder %s16, 0
    %p79 = por %p77, %p78
    %p80 = scmp.ne.s32.totalorder %s68, %s69
    %p81 = scmp.eq.s32.totalorder %s17, 1
    %p82 = por %p80, %p81
    %p84 = scmp.ne.s32.totalorder %s69, %s83
    %p85 = scmp.eq.s32.totalorder %s17, 0
    %p86 = por %p84, %p85
    %s87 = ssub.s32 %s11, %s18
    %p88 = scmp.eq.s32.totalorder %s87, 0
    %s90 = sadd.s32 %s89, 1
    %s91 = scalar_select %p88, %s89, %s90
    %p94 = pneg %p88
    %p95 = scmp.eq.s32.totalorder %s11, 1
    %p96 = por %p94, %p95
    %p97 = scmp.ne.s32.totalorder %s89, %s92
    %p98 = scmp.eq.s32.totalorder %s11, 0
    %p99 = por %p97, %p98
    %p100 = scmp.ne.s32.totalorder %s89, %s92
    %p101 = scmp.eq.s32.totalorder %s16, 1
    %p102 = por %p100, %p101
    %p103 = scmp.ne.s32.totalorder %s92, %s93
    %p104 = scmp.eq.s32.totalorder %s16, 0
    %p105 = por %p103, %p104
    %p106 = scmp.ne.s32.totalorder %s92, %s93
    %p107 = scmp.eq.s32.totalorder %s17, 1
    %p108 = por %p106, %p107
    %p110 = scmp.ne.s32.totalorder %s93, %s109
    %p111 = scmp.eq.s32.totalorder %s17, 0
    %p112 = por %p110, %p111
    %s113 = ssub.s32 %s11, %s18
    %p114 = scmp.eq.s32.totalorder %s113, 0
    %s116 = sadd.s32 %s115, 1
    %s117 = scalar_select %p114, %s115, %s116
    %p120 = pneg %p114
    %p121 = scmp.eq.s32.totalorder %s11, 1
    %p122 = por %p120, %p121
    %p123 = scmp.ne.s32.totalorder %s115, %s118
    %p124 = scmp.eq.s32.totalorder %s11, 0
    %p125 = por %p123, %p124
    %p126 = scmp.ne.s32.totalorder %s115, %s118
    %p127 = scmp.eq.s32.totalorder %s16, 1
    %p128 = por %p126, %p127
    %p129 = scmp.ne.s32.totalorder %s118, %s119
    %p130 = scmp.eq.s32.totalorder %s16, 0
    %p131 = por %p129, %p130
    %p132 = scmp.ne.s32.totalorder %s118, %s119
    %p133 = scmp.eq.s32.totalorder %s17, 1
    %p134 = por %p132, %p133
    %p136 = scmp.ne.s32.totalorder %s119, %s135
    %p137 = scmp.eq.s32.totalorder %s17, 0
    %p138 = por %p136, %p137
    %p139 = scmp.le.s32.totalorder 1, %s11
    %p140 = scmp.lt.s32.totalorder %s11, 3
    %p141 = pnand %p139, %p140
    %p142 = pneg %p141
    // Predicated region
    $region9: #{double_conv_forward.10} parent=5 // pred_check
      _
    $region10: #{double_conv_forward.10} parent=5 // pred_check_branch
      %144 = sbr.rel (%p141) target = $region12
    $region11: #{double_conv_forward.10} parent=5 // pred_region
      %s145 = ssub.s32 %s11, 1
      // Predicated region
      $region13: #{double_conv_forward.10} parent=11 // pred_check
        %p146 = pneg %p58
      $region14: #{double_conv_forward.10} parent=11 // pred_check_branch
        %148 = sbr.rel (%p146) target = $region16
      $region15: #{double_conv_forward.10} parent=11 // pred_region
        _
      $region16: #{double_conv_forward.10} parent=11 // pred_fallthru
        _
      // Predicated region
      $region17: #{double_conv_forward.10} parent=11 // pred_check
        %p149 = pneg %p79
      $region18: #{double_conv_forward.10} parent=11 // pred_check_branch
        %151 = sbr.rel (%p149) target = $region20
      $region19: #{double_conv_forward.10} parent=11 // pred_region
        _
      $region20: #{double_conv_forward.10} parent=11 // pred_fallthru
        _
    $region12: #{double_conv_forward.10} parent=5 // pred_fallthru
      _
    %p152 = scmp.lt.s32.totalorder %s11, 2
    // Predicated region
    $region21: #{double_conv_forward.10} parent=5 // pred_check
      %p153 = pneg %p152
    $region22: #{double_conv_forward.10} parent=5 // pred_check_branch
      %155 = sbr.rel (%p153) target = $region24
    $region23: #{double_conv_forward.10} parent=5 // pred_region
      // Predicated region
      $region25: #{double_conv_forward.10} parent=23 // pred_check
        %p156 = pneg %p31
      $region26: #{double_conv_forward.10} parent=23 // pred_check_branch
        %158 = sbr.rel (%p156) target = $region28
      $region27: #{double_conv_forward.10} parent=23 // pred_region
        %s159 = smul.u32 18, %s11
        %p160 = scmp.lt.s32.totalorder %s159, 35
        %s161 = scalar_select %p160, %s159, 35
        %s162 = smul.addr %s161, 4
        %s163 = scalar_lea.vmem %s0, %s162
        %s164 = smul.u32 18, %s11
      $region28: #{double_conv_forward.10} parent=23 // pred_fallthru
        _
    $region24: #{double_conv_forward.10} parent=5 // pred_fallthru
      _
    %p165 = scmp.le.s32.totalorder 1, %s11
    %p166 = scmp.lt.s32.totalorder %s11, 3
    %p167 = pnand %p165, %p166
    %p168 = pneg %p167
    // Predicated region
    $region29: #{double_conv_forward.10} parent=5 // pred_check
      _
    $region30: #{double_conv_forward.10} parent=5 // pred_check_branch
      %170 = sbr.rel (%p167) target = $region32
    $region31: #{double_conv_forward.10} parent=5 // pred_region
      %s171 = ssub.s32 %s11, 1
      %s172 = smul.u32 18, %s16
      %p173 = scmp.lt.s32.totalorder %s172, 35
      %s174 = scalar_select %p173, %s172, 35
      %s175 = smul.addr %s174, 4
      %s176 = scalar_lea.vmem %s0, %s175
      %p177 = pneg %p37
      %p178 = pneg %p34
      %p179 = pneg %p58
      %p180 = pneg %p55
      %p181 = pneg %p79
      %p182 = pneg %p76
      %p183 = pneg %p105
      %p184 = pneg %p102
      %s185 = smul.u32 18, %s16
      %p186 = scmp.lt.s32.totalorder %s185, 35
      %s187 = scalar_select %p186, %s185, 35
      %s188 = smul.addr %s187, 4
      %s189 = scalar_lea.vmem %s3, %s188
      %p190 = pneg %p131
      %p191 = pneg %p128
      %p192 = scmp.lt.s32.totalorder %s16, 1
      %s193 = scalar_select %p192, %s16, 1
      %s194 = smul.addr %s193, 2
      %s195 = scalar_lea.vmem %s4, %s194
      %s196 = smul.u32 18, %s16
      %p197 = scmp.lt.s32.totalorder %s196, 35
      %s198 = scalar_select %p197, %s196, 35
      %s199 = smul.addr %s198, 4
      %s200 = scalar_lea.vmem %s0, %s199
      %s201 = smul.u32 18, %s16
      %s202 = smul.u32 18, %s16
      %p203 = scmp.lt.s32.totalorder %s202, 35
      %s204 = scalar_select %p203, %s202, 35
      %s205 = smul.addr %s204, 4
      %s206 = scalar_lea.vmem %s3, %s205
      %s207 = smul.u32 18, %s16
      %p208 = scmp.lt.s32.totalorder %s16, 1
      %s209 = scalar_select %p208, %s16, 1
      %s210 = smul.addr %s209, 2
      %s211 = scalar_lea.vmem %s4, %s210
      %v213 = vld [vmem:[%s200] sm:$0xf]
      %v214 = vld [vmem:[%s200 + $0x4] sm:$0xf]
      %v215 = vld [vmem:[%s200 + $0x8] sm:$0xf]
      %v216 = vld [vmem:[%s200 + $0xc] sm:$0xf]
      %v217 = vld [vmem:[%s200 + $0x10] sm:$0xf]
      %v218 = vld [vmem:[%s200 + $0x14] sm:$0xf]
      %v219 = vld [vmem:[%s200 + $0x18] sm:$0xf]
      %v220 = vld [vmem:[%s200 + $0x1c] sm:$0xf]
      %v221 = vld [vmem:[%s200 + $0x20] sm:$0xf]
      %v222 = vld [vmem:[%s200 + $0x24] sm:$0xf]
      %v223 = vld [vmem:[%s200 + $0x28] sm:$0xf]
      %v224 = vld [vmem:[%s200 + $0x2c] sm:$0xf]
      %v225 = vld [vmem:[%s200 + $0x30] sm:$0xf]
      %v226 = vld [vmem:[%s200 + $0x34] sm:$0xf]
      %v227 = vld [vmem:[%s200 + $0x38] sm:$0xf]
      %v228 = vld [vmem:[%s200 + $0x3c] sm:$0xf]
      %v229 = vld [vmem:[%s200 + $0x40] sm:$0xf]
      %v230 = vld [vmem:[%s200 + $0x44] sm:$0xf]
      %v231 = vld [vmem:[%s1] sm:$0xf]
      %v232 = vld [vmem:[%s2] sm:$0x1]
      %v234 = vlaneseq
      %v235 = vshrl.u32 %v234, 7
      %v236 = vsub.s32 0, %v235
      %v237 = vrot.slane %v232, %v236
      %v257 = vunpack.c.l.b16 %v213
      %v258 = vunpack.c.l.b16 %v214
      %v259 = vunpack.c.l.b16 %v215
      %v260 = vunpack.c.l.b16 %v216
      %v261 = vunpack.c.l.b16 %v217
      %v262 = vunpack.c.l.b16 %v218
      %v263 = vunpack.c.l.b16 %v219
      %v264 = vunpack.c.l.b16 %v220
      %v265 = vunpack.c.l.b16 %v221
      %v266 = vunpack.c.l.b16 %v222
      %v267 = vunpack.c.l.b16 %v223
      %v268 = vunpack.c.l.b16 %v224
      %v269 = vunpack.c.l.b16 %v225
      %v270 = vunpack.c.l.b16 %v226
      %v271 = vunpack.c.l.b16 %v227
      %v272 = vunpack.c.l.b16 %v228
      %v273 = vunpack.c.l.b16 %v229
      %v274 = vunpack.c.l.b16 %v230
      %v275 = vpack.c.b16 %v258, %v257
      %v276 = vpack.c.b16 %v260, %v259
      %v277 = vpack.c.b16 %v262, %v261
      %v278 = vpack.c.b16 %v264, %v263
      %v279 = vpack.c.b16 %v266, %v265
      %v280 = vpack.c.b16 %v268, %v267
      %v281 = vpack.c.b16 %v270, %v269
      %v282 = vpack.c.b16 %v272, %v271
      %v283 = vpack.c.b16 %v274, %v273
      %vm284 = vcmask 64512
      %v286 = vsel %vm284, %v275, 0
      %v289 = vsel %vm284, %v276, 0
      %v292 = vsel %vm284, %v277, 0
      %v295 = vsel %vm284, %v278, 0
      %v298 = vsel %vm284, %v279, 0
      %v301 = vsel %vm284, %v280, 0
      %v304 = vsel %vm284, %v281, 0
      %v307 = vsel %vm284, %v282, 0
      %v310 = vsel %vm284, %v283, 0
      %vm312 = vcmask 1043456
      %v314 = vsel %vm312, %v231, 0
      %316 = vmatprep.subr.bf16.mxu0 0
      %317 = vmatpush1.bf16.msra.mxu0 %v314
      %318 = vmatprep.subr.bf16.mxu0 0
      %319 = vmatpush1.bf16.msra.mxu0 0
      %320 = vmatprep.subr.bf16.mxu0 0
      %321 = vmatpush1.bf16.msra.mxu0 0
      %322 = vmatprep.subr.bf16.mxu0 0
      %323 = vmatpush1.bf16.msra.mxu0 0
      %324 = vmatprep.subr.bf16.mxu0 0
      %325 = vmatpush1.bf16.msra.mxu0 0
      %326 = vmatprep.subr.bf16.mxu0 0
      %327 = vmatpush1.bf16.msra.mxu0 0
      %328 = vmatprep.subr.bf16.mxu0 0
      %329 = vmatpush1.bf16.msra.mxu0 0
      %330 = vmatprep.subr.bf16.mxu0 0
      %331 = vmatpush1.bf16.msra.mxu0 0
      %332 = vmatprep.subr.bf16.mxu0 0
      %333 = vmatpush1.bf16.msra.mxu0 0
      %334 = vmatprep.subr.bf16.mxu0 0
      %335 = vmatpush1.bf16.msra.mxu0 0
      %336 = vmatprep.subr.bf16.mxu0 0
      %337 = vmatpush1.bf16.msra.mxu0 0
      %338 = vmatprep.subr.bf16.mxu0 0
      %339 = vmatpush1.bf16.msra.mxu0 0
      %340 = vmatprep.subr.bf16.mxu0 0
      %341 = vmatpush1.bf16.msra.mxu0 0
      %342 = vmatprep.subr.bf16.mxu0 0
      %343 = vmatpush1.bf16.msra.mxu0 0
      %344 = vmatprep.subr.bf16.mxu0 0
      %345 = vmatpush1.bf16.msra.mxu0 0
      %346 = vmatprep.subr.bf16.mxu0 0
      %347 = vmatpush1.bf16.msra.mxu0 0
      %348 = vmatprep.mubr.bf16.mxu0 0
      %349 = vmatmul.mubr.bf16.gmra.mrb[0].mxu0 %v286
      %v350 = vpop.f32.mrb[0].mxu0
      %v351 = vadd.f32 %v237, %v350
      %v352 = vpop.f32.mrb[0].mxu0
      %v353 = vpop.f32.mrb[0].mxu0
      %v354 = vadd.f32 %v237, %v353
      %v355 = vpop.f32.mrb[0].mxu0
      %356 = vmatprep.mubr.bf16.mxu0 0
      %357 = vmatmul.mubr.bf16.gmra.mrb[0].mxu0 %v289
      %v358 = vpop.f32.mrb[0].mxu0
      %v359 = vadd.f32 %v237, %v358
      %v360 = vpop.f32.mrb[0].mxu0
      %v361 = vpop.f32.mrb[0].mxu0
      %v362 = vadd.f32 %v237, %v361
      %v363 = vpop.f32.mrb[0].mxu0
      %364 = vmatprep.mubr.bf16.mxu0 0
      %365 = vmatmul.mubr.bf16.gmra.mrb[0].mxu0 %v292
      %v366 = vpop.f32.mrb[0].mxu0
      %v367 = vadd.f32 %v237, %v366
      %v368 = vpop.f32.mrb[0].mxu0
      %v369 = vpop.f32.mrb[0].mxu0
      %v370 = vadd.f32 %v237, %v369
      %v371 = vpop.f32.mrb[0].mxu0
      %372 = vmatprep.mubr.bf16.mxu0 0
      %373 = vmatmul.mubr.bf16.gmra.mrb[0].mxu0 %v295
      %v374 = vpop.f32.mrb[0].mxu0
      %v375 = vadd.f32 %v237, %v374
      %v376 = vpop.f32.mrb[0].mxu0
      %v377 = vpop.f32.mrb[0].mxu0
      %v378 = vadd.f32 %v237, %v377
      %v379 = vpop.f32.mrb[0].mxu0
      %380 = vmatprep.mubr.bf16.mxu0 0
      %381 = vmatmul.mubr.bf16.gmra.mrb[0].mxu0 %v298
      %v382 = vpop.f32.mrb[0].mxu0
      %v383 = vadd.f32 %v237, %v382
      %v384 = vpop.f32.mrb[0].mxu0
      %v385 = vpop.f32.mrb[0].mxu0
      %v386 = vadd.f32 %v237, %v385
      %v387 = vpop.f32.mrb[0].mxu0
      %388 = vmatprep.mubr.bf16.mxu0 0
      %389 = vmatmul.mubr.bf16.gmra.mrb[0].mxu0 %v301
      %v390 = vpop.f32.mrb[0].mxu0
      %v391 = vadd.f32 %v237, %v390
      %v392 = vpop.f32.mrb[0].mxu0
      %v393 = vpop.f32.mrb[0].mxu0
      %v394 = vadd.f32 %v237, %v393
      %v395 = vpop.f32.mrb[0].mxu0
      %396 = vmatprep.mubr.bf16.mxu0 0
      %397 = vmatmul.mubr.bf16.gmra.mrb[0].mxu0 %v304
      %v398 = vpop.f32.mrb[0].mxu0
      %v399 = vadd.f32 %v237, %v398
      %v400 = vpop.f32.mrb[0].mxu0
      %v401 = vpop.f32.mrb[0].mxu0
      %v402 = vadd.f32 %v237, %v401
      %v403 = vpop.f32.mrb[0].mxu0
      %404 = vmatprep.mubr.bf16.mxu0 0
      %405 = vmatmul.mubr.bf16.gmra.mrb[0].mxu0 %v307
      %v406 = vpop.f32.mrb[0].mxu0
      %v407 = vadd.f32 %v237, %v406
      %v408 = vpop.f32.mrb[0].mxu0
      %v409 = vpop.f32.mrb[0].mxu0
      %v410 = vadd.f32 %v237, %v409
      %v411 = vpop.f32.mrb[0].mxu0
      %412 = vmatprep.mubr.bf16.mxu0 0
      %413 = vmatmul.mubr.bf16.gmra.mrb[0].mxu0 %v310
      %v414 = vpop.f32.mrb[0].mxu0
      %v415 = vadd.f32 %v237, %v414
      %v416 = vpop.f32.mrb[0].mxu0
      %v417 = vpop.f32.mrb[0].mxu0
      %v418 = vadd.f32 %v237, %v417
      %v419 = vpop.f32.mrb[0].mxu0
      %420 = vdwg.mxu0
      %v421 = vpack.c.bf16 %v354, %v351
      %v422 = vpack.c.bf16 %v362, %v359
      %v423 = vpack.c.bf16 %v370, %v367
      %v424 = vpack.c.bf16 %v378, %v375
      %v425 = vpack.c.bf16 %v386, %v383
      %v426 = vpack.c.bf16 %v394, %v391
      %v427 = vpack.c.bf16 %v402, %v399
      %v428 = vpack.c.bf16 %v410, %v407
      %v429 = vpack.c.bf16 %v418, %v415
      %v439 = vunpack.c.l.b16 %v421
      %v440 = vunpack.c.h.b16 %v421
      %v441 = vunpack.c.l.b16 %v422
      %v442 = vunpack.c.h.b16 %v422
      %v443 = vunpack.c.l.b16 %v423
      %v444 = vunpack.c.h.b16 %v423
      %v445 = vunpack.c.l.b16 %v424
      %v446 = vunpack.c.h.b16 %v424
      %v447 = vunpack.c.l.b16 %v425
      %v448 = vunpack.c.h.b16 %v425
      %v449 = vunpack.c.l.b16 %v426
      %v450 = vunpack.c.h.b16 %v426
      %v451 = vunpack.c.l.b16 %v427
      %v452 = vunpack.c.h.b16 %v427
      %v453 = vunpack.c.l.b16 %v428
      %v454 = vunpack.c.h.b16 %v428
      %v455 = vunpack.c.l.b16 %v429
      %v456 = vunpack.c.h.b16 %v429
      %v457 = vpack.c.b16 %v439, %v439
      %v458 = vpack.c.b16 %v440, %v440
      %v459 = vpack.c.b16 %v441, %v441
      %v460 = vpack.c.b16 %v442, %v442
      %v461 = vpack.c.b16 %v443, %v443
      %v462 = vpack.c.b16 %v444, %v444
      %v463 = vpack.c.b16 %v445, %v445
      %v464 = vpack.c.b16 %v446, %v446
      %v465 = vpack.c.b16 %v447, %v447
      %v466 = vpack.c.b16 %v448, %v448
      %v467 = vpack.c.b16 %v449, %v449
      %v468 = vpack.c.b16 %v450, %v450
      %v469 = vpack.c.b16 %v451, %v451
      %v470 = vpack.c.b16 %v452, %v452
      %v471 = vpack.c.b16 %v453, %v453
      %v472 = vpack.c.b16 %v454, %v454
      %v473 = vpack.c.b16 %v455, %v455
      %v474 = vpack.c.b16 %v456, %v456
      %493 = vst [vmem:[%s206] sm:$0xf] %v457
      %494 = vst [vmem:[%s206 + $0x4] sm:$0xf] %v458
      %495 = vst [vmem:[%s206 + $0x8] sm:$0xf] %v459
      %496 = vst [vmem:[%s206 + $0xc] sm:$0xf] %v460
      %497 = vst [vmem:[%s206 + $0x10] sm:$0xf] %v461
      %498 = vst [vmem:[%s206 + $0x14] sm:$0xf] %v462
      %499 = vst [vmem:[%s206 + $0x18] sm:$0xf] %v463
      %500 = vst [vmem:[%s206 + $0x1c] sm:$0xf] %v464
      %501 = vst [vmem:[%s206 + $0x20] sm:$0xf] %v465
      %502 = vst [vmem:[%s206 + $0x24] sm:$0xf] %v466
      %503 = vst [vmem:[%s206 + $0x28] sm:$0xf] %v467
      %504 = vst [vmem:[%s206 + $0x2c] sm:$0xf] %v468
      %505 = vst [vmem:[%s206 + $0x30] sm:$0xf] %v469
      %506 = vst [vmem:[%s206 + $0x34] sm:$0xf] %v470
      %507 = vst [vmem:[%s206 + $0x38] sm:$0xf] %v471
      %508 = vst [vmem:[%s206 + $0x3c] sm:$0xf] %v472
      %509 = vst [vmem:[%s206 + $0x40] sm:$0xf] %v473
      %510 = vst [vmem:[%s206 + $0x44] sm:$0xf] %v474
      %s511 = smul.u32 %s16, 144
      %v512 = vlaneseq
      %v513 = vshrl.u32 %v512, 7
      %v514 = vadd.s32 %v513, 8
      %v515 = vadd.s32 %v513, 16
      %v516 = vadd.s32 %v513, 24
      %v517 = vadd.s32 %v513, 32
      %v518 = vadd.s32 %v513, 40
      %v519 = vadd.s32 %v513, 48
      %v520 = vadd.s32 %v513, 56
      %v521 = vadd.s32 %v513, 64
      %v522 = vadd.s32 %v513, 72
      %v523 = vadd.s32 %v513, 80
      %v524 = vadd.s32 %v513, 88
      %v525 = vadd.s32 %v513, 96
      %v526 = vadd.s32 %v513, 104
      %v527 = vadd.s32 %v513, 112
      %v528 = vadd.s32 %v513, 120
      %v529 = vadd.s32 %v513, 128
      %v530 = vadd.s32 %v513, 136
      %v531 = vstv %s511
      %v532 = vadd.s32 %v531, %v513
      %v533 = vadd.s32 %v531, %v514
      %v534 = vadd.s32 %v531, %v515
      %v535 = vadd.s32 %v531, %v516
      %v536 = vadd.s32 %v531, %v517
      %v537 = vadd.s32 %v531, %v518
      %v538 = vadd.s32 %v531, %v519
      %v539 = vadd.s32 %v531, %v520
      %v540 = vadd.s32 %v531, %v521
      %v541 = vadd.s32 %v531, %v522
      %v542 = vadd.s32 %v531, %v523
      %v543 = vadd.s32 %v531, %v524
      %v544 = vadd.s32 %v531, %v525
      %v545 = vadd.s32 %v531, %v526
      %v546 = vadd.s32 %v531, %v527
      %v547 = vadd.s32 %v531, %v528
      %v548 = vadd.s32 %v531, %v529
      %v549 = vadd.s32 %v531, %v530
      %vm550 = vcmp.lt.s32.totalorder %v532, 288
      %vm551 = vcmp.lt.s32.totalorder %v533, 288
      %vm552 = vcmp.lt.s32.totalorder %v534, 288
      %vm553 = vcmp.lt.s32.totalorder %v535, 288
      %vm554 = vcmp.lt.s32.totalorder %v536, 288
      %vm555 = vcmp.lt.s32.totalorder %v537, 288
      %vm556 = vcmp.lt.s32.totalorder %v538, 288
      %vm557 = vcmp.lt.s32.totalorder %v539, 288
      %vm558 = vcmp.lt.s32.totalorder %v540, 288
      %vm559 = vcmp.lt.s32.totalorder %v541, 288
      %vm560 = vcmp.lt.s32.totalorder %v542, 288
      %vm561 = vcmp.lt.s32.totalorder %v543, 288
      %vm562 = vcmp.lt.s32.totalorder %v544, 288
      %vm563 = vcmp.lt.s32.totalorder %v545, 288
      %vm564 = vcmp.lt.s32.totalorder %v546, 288
      %vm565 = vcmp.lt.s32.totalorder %v547, 288
      %vm566 = vcmp.lt.s32.totalorder %v548, 288
      %vm567 = vcmp.lt.s32.totalorder %v549, 288
      %v568 = vsel %vm550, 1, 0
      %v569 = vsel %vm551, 1, 0
      %v570 = vsel %vm552, 1, 0
      %v571 = vsel %vm553, 1, 0
      %v572 = vsel %vm554, 1, 0
      %v573 = vsel %vm555, 1, 0
      %v574 = vsel %vm556, 1, 0
      %v575 = vsel %vm557, 1, 0
      %v576 = vsel %vm558, 1, 0
      %v577 = vsel %vm559, 1, 0
      %v578 = vsel %vm560, 1, 0
      %v579 = vsel %vm561, 1, 0
      %v580 = vsel %vm562, 1, 0
      %v581 = vsel %vm563, 1, 0
      %v582 = vsel %vm564, 1, 0
      %v583 = vsel %vm565, 1, 0
      %v584 = vsel %vm566, 1, 0
      %v585 = vsel %vm567, 1, 0
      %v586 = vcvt.s32.f32 %v568
      %v587 = vcvt.s32.f32 %v569
      %v588 = vcvt.s32.f32 %v570
      %v589 = vcvt.s32.f32 %v571
      %v590 = vcvt.s32.f32 %v572
      %v591 = vcvt.s32.f32 %v573
      %v592 = vcvt.s32.f32 %v574
      %v593 = vcvt.s32.f32 %v575
      %v594 = vcvt.s32.f32 %v576
      %v595 = vcvt.s32.f32 %v577
      %v596 = vcvt.s32.f32 %v578
      %v597 = vcvt.s32.f32 %v579
      %v598 = vcvt.s32.f32 %v580
      %v599 = vcvt.s32.f32 %v581
      %v600 = vcvt.s32.f32 %v582
      %v601 = vcvt.s32.f32 %v583
      %v602 = vcvt.s32.f32 %v584
      %v603 = vcvt.s32.f32 %v585
      %v604 = vmul.f32 %v351, %v586
      %v605 = vmul.f32 %v354, %v587
      %v606 = vmul.f32 %v359, %v588
      %v607 = vmul.f32 %v362, %v589
      %v608 = vmul.f32 %v367, %v590
      %v609 = vmul.f32 %v370, %v591
      %v610 = vmul.f32 %v375, %v592
      %v611 = vmul.f32 %v378, %v593
      %v612 = vmul.f32 %v383, %v594
      %v613 = vmul.f32 %v386, %v595
      %v614 = vmul.f32 %v391, %v596
      %v615 = vmul.f32 %v394, %v597
      %v616 = vmul.f32 %v399, %v598
      %v617 = vmul.f32 %v402, %v599
      %v618 = vmul.f32 %v407, %v600
      %v619 = vmul.f32 %v410, %v601
      %v620 = vmul.f32 %v415, %v602
      %v621 = vmul.f32 %v418, %v603
      %v622 = vadd.f32 %v604, %v605
      %v623 = vadd.f32 %v622, %v606
      %v624 = vadd.f32 %v623, %v607
      %v625 = vadd.f32 %v624, %v608
      %v626 = vadd.f32 %v625, %v609
      %v627 = vadd.f32 %v626, %v610
      %v628 = vadd.f32 %v627, %v611
      %v629 = vadd.f32 %v628, %v612
      %v630 = vadd.f32 %v629, %v613
      %v631 = vadd.f32 %v630, %v614
      %v632 = vadd.f32 %v631, %v615
      %v633 = vadd.f32 %v632, %v616
      %v634 = vadd.f32 %v633, %v617
      %v635 = vadd.f32 %v634, %v618
      %v636 = vadd.f32 %v635, %v619
      %v637 = vadd.f32 %v636, %v620
      %v638 = vadd.f32 %v637, %v621
      %v639 = vrot.slane %v638, 4
      %v640 = vadd.f32 %v638, %v639
      %v641 = vrot.slane %v640, 2
      %v642 = vadd.f32 %v640, %v641
      %v643 = vrot.slane %v642, 1
      %v644 = vadd.f32 %v642, %v643
      %645 = vst [vmem:[%s211] sm:$0x1] %v644
      %v646 = vmul.f32 %v604, %v351
      %v647 = vmul.f32 %v605, %v354
      %v648 = vmul.f32 %v606, %v359
      %v649 = vmul.f32 %v607, %v362
      %v650 = vmul.f32 %v608, %v367
      %v651 = vmul.f32 %v609, %v370
      %v652 = vmul.f32 %v610, %v375
      %v653 = vmul.f32 %v611, %v378
      %v654 = vmul.f32 %v612, %v383
      %v655 = vmul.f32 %v613, %v386
      %v656 = vmul.f32 %v614, %v391
      %v657 = vmul.f32 %v615, %v394
      %v658 = vmul.f32 %v616, %v399
      %v659 = vmul.f32 %v617, %v402
      %v660 = vmul.f32 %v618, %v407
      %v661 = vmul.f32 %v619, %v410
      %v662 = vmul.f32 %v620, %v415
      %v663 = vmul.f32 %v621, %v418
      %v664 = vadd.f32 %v646, %v647
      %v665 = vadd.f32 %v664, %v648
      %v666 = vadd.f32 %v665, %v649
      %v667 = vadd.f32 %v666, %v650
      %v668 = vadd.f32 %v667, %v651
      %v669 = vadd.f32 %v668, %v652
      %v670 = vadd.f32 %v669, %v653
      %v671 = vadd.f32 %v670, %v654
      %v672 = vadd.f32 %v671, %v655
      %v673 = vadd.f32 %v672, %v656
      %v674 = vadd.f32 %v673, %v657
      %v675 = vadd.f32 %v674, %v658
      %v676 = vadd.f32 %v675, %v659
      %v677 = vadd.f32 %v676, %v660
      %v678 = vadd.f32 %v677, %v661
      %v679 = vadd.f32 %v678, %v662
      %v680 = vadd.f32 %v679, %v663
      %v681 = vrot.slane %v680, 4
      %v682 = vadd.f32 %v680, %v681
      %v683 = vrot.slane %v682, 2
      %v684 = vadd.f32 %v682, %v683
      %v685 = vrot.slane %v684, 1
      %v686 = vadd.f32 %v684, %v685
      %687 = vst [vmem:[%s211 + $0x1] sm:$0x1] %v686
      %s688 = smul.u32 18, %s16
      %p689 = scmp.lt.s32.totalorder %s688, 35
      %s690 = scalar_select %p689, %s688, 35
      %s691 = smul.addr %s690, 4
      %s692 = scalar_lea.vmem %s3, %s691
      %p693 = scmp.lt.s32.totalorder %s16, 1
      %s694 = scalar_select %p693, %s16, 1
      %s695 = smul.addr %s694, 2
      %s696 = scalar_lea.vmem %s4, %s695
      // Predicated region
      $region33: #{double_conv_forward.10} parent=31 // pred_check
        %p697 = pneg %p102
      $region34: #{double_conv_forward.10} parent=31 // pred_check_branch
        %699 = sbr.rel (%p697) target = $region36
      $region35: #{double_conv_forward.10} parent=31 // pred_region
        %s700 = smul.u32 18, %s16
      $region36: #{double_conv_forward.10} parent=31 // pred_fallthru
        _
      // Predicated region
      $region37: #{double_conv_forward.10} parent=31 // pred_check
        %p701 = pneg %p128
      $region38: #{double_conv_forward.10} parent=31 // pred_check_branch
        %703 = sbr.rel (%p701) target = $region40
      $region39: #{double_conv_forward.10} parent=31 // pred_region
        _
      $region40: #{double_conv_forward.10} parent=31 // pred_fallthru
        _
    $region32: #{double_conv_forward.10} parent=5 // pred_fallthru
      _
    %p704 = scmp.le.s32.totalorder 2, %s11
    // Predicated region
    $region41: #{double_conv_forward.10} parent=5 // pred_check
      %p705 = pneg %p704
    $region42: #{double_conv_forward.10} parent=5 // pred_check_branch
      %707 = sbr.rel (%p705) target = $region44
    $region43: #{double_conv_forward.10} parent=5 // pred_region
      %s708 = ssub.s32 %s11, 2
      // Predicated region
      $region45: #{double_conv_forward.10} parent=43 // pred_check
        %p709 = pneg %p108
      $region46: #{double_conv_forward.10} parent=43 // pred_check_branch
        %711 = sbr.rel (%p709) target = $region48
      $region47: #{double_conv_forward.10} parent=43 // pred_region
        %s712 = smul.u32 18, %s17
        %p713 = scmp.lt.s32.totalorder %s712, 35
        %s714 = scalar_select %p713, %s712, 35
        %s715 = smul.addr %s714, 4
        %s716 = scalar_lea.vmem %s3, %s715
      $region48: #{double_conv_forward.10} parent=43 // pred_fallthru
        _
      // Predicated region
      $region49: #{double_conv_forward.10} parent=43 // pred_check
        %p717 = pneg %p134
      $region50: #{double_conv_forward.10} parent=43 // pred_check_branch
        %719 = sbr.rel (%p717) target = $region52
      $region51: #{double_conv_forward.10} parent=43 // pred_region
        %p720 = scmp.lt.s32.totalorder %s17, 1
        %s721 = scalar_select %p720, %s17, 1
        %s722 = smul.addr %s721, 2
        %s723 = scalar_lea.vmem %s4, %s722
      $region52: #{double_conv_forward.10} parent=43 // pred_fallthru
        _
    $region44: #{double_conv_forward.10} parent=5 // pred_fallthru
      _
  $region6: #{double_conv_forward.10} parent=0 // loop_footer
    %s15 = sadd.s32 1, %s11
  $region7: #{double_conv_forward.10} parent=0 // loop_footer_branch
    %10 = sbr.rel target = $region3
  $region8: #{double_conv_forward.10} parent=0 // loop_exit
    _

// kernel: double_conv_forward.11
$region0: #{double_conv_forward.11}
  #allocation0 [shape = 'u32[]', space=smem, size = 0x4, offset = 0x4, fixed_abs, tag = 'smem constant byte address 0x4 - core index']
  #allocation1 [shape = 'u32[144,128]{1,0:T(1,128)}', space=vmem, size = 0x12000, scoped, tag = 'internal scratch']
  %s0 = inlined_call_operand.vmem [shape: bf16[288,128], index: 0, kind: input, shape index: {}]
  %s1 = inlined_call_operand.vmem [shape: f32[1,128], index: 1, kind: input, shape index: {}]
  %s2 = inlined_call_operand.vmem [shape: f32[1,128], index: 2, kind: input, shape index: {}]
  %s3 = inlined_call_operand.vmem [shape: bf16[128,128], index: 3, kind: input, shape index: {}]
  %s4 = inlined_call_operand.vmem [shape: f32[1,128], index: 4, kind: input, shape index: {}]
  %s5 = inlined_call_operand.vmem [shape: bf16[288,128], index: 5, kind: output, shape index: {0}]
  %s6 = inlined_call_operand.vmem [shape: f32[2,2,128], index: 6, kind: output, shape index: {1}]
  %7 = xla_tuple %s5, %s6
  %s8 = sld [smem:[#allocation0]]
  $region61: #{double_conv_forward.11} parent=0
    _
  %s10 = ssub.s32 1, %s8
  %s11 = scalar_select 0, %s10, %s8
  loop: start=0, step=1, limit=4
  $region2: #{double_conv_forward.11} parent=0 // loop_pre_header
    _
  $region3: #{double_conv_forward.11} parent=0 // loop_header
    %s13 = sphi 0, %s17
    %p14 = scmp.ge.s32.totalorder %s13, 4
    %s23 = sphi 0, %s25
    %s26 = sphi 0, %s23
    %s27 = sphi 0, %s26
    %s43 = sphi 0, %s27
    %s47 = sphi 0, %s47
    %s49 = sphi 0, %s47
    %s50 = sphi 0, %s49
    %s64 = sphi 0, %s50
    %s68 = sphi 0, %s68
    %s70 = sphi 0, %s68
    %s71 = sphi 0, %s70
    %s85 = sphi 0, %s71
    %s89 = sphi 0, %s89
    %s91 = sphi 0, %s89
    %s92 = sphi 0, %s91
    %s106 = sphi 0, %s92
    %s110 = sphi 0, %s110
    %s112 = sphi 0, %s110
    %s113 = sphi 0, %s112
    %s127 = sphi 0, %s113
    %s133 = sphi 0, %s135
    %s136 = sphi 0, %s133
    %s137 = sphi 0, %s136
    %s153 = sphi 0, %s137
    %s159 = sphi 0, %s161
    %s162 = sphi 0, %s159
    %s163 = sphi 0, %s162
    %s179 = sphi 0, %s163
  $region4: #{double_conv_forward.11} parent=0 // loop_header_branch
    %16 = sbr.rel (%p14) target = $region8
  $region5: #{double_conv_forward.11} parent=0 // loop_body
    %s18 = ssub.s32 %s13, 1
    %s19 = ssub.s32 %s13, 2
    %s20 = sadd.s32 %s13, 1
    %s21 = ssub.s32 %s13, %s20
    %p22 = scmp.eq.s32.totalorder %s21, 0
    %s24 = sadd.s32 %s23, 1
    %s25 = scalar_select %p22, %s23, %s24
    %p28 = pneg %p22
    %p29 = scmp.eq.s32.totalorder %s13, 1
    %p30 = por %p28, %p29
    %p31 = scmp.ne.s32.totalorder %s23, %s26
    %p32 = scmp.eq.s32.totalorder %s13, 0
    %p33 = por %p31, %p32
    %p34 = scmp.ne.s32.totalorder %s23, %s26
    %p35 = scmp.eq.s32.totalorder %s18, 1
    %p36 = por %p34, %p35
    %p37 = scmp.ne.s32.totalorder %s26, %s27
    %p38 = scmp.eq.s32.totalorder %s18, 0
    %p39 = por %p37, %p38
    %p40 = scmp.ne.s32.totalorder %s26, %s27
    %p41 = scmp.eq.s32.totalorder %s19, 1
    %p42 = por %p40, %p41
    %p44 = scmp.ne.s32.totalorder %s27, %s43
    %p45 = scmp.eq.s32.totalorder %s19, 0
    %p46 = por %p44, %p45
    %s48 = sadd.s32 %s47, 1
    %p51 = scmp.eq.s32.totalorder %s13, 1
    %p52 = scmp.ne.s32.totalorder %s47, %s49
    %p53 = scmp.eq.s32.totalorder %s13, 0
    %p54 = por %p52, %p53
    %p55 = scmp.ne.s32.totalorder %s47, %s49
    %p56 = scmp.eq.s32.totalorder %s18, 1
    %p57 = por %p55, %p56
    %p58 = scmp.ne.s32.totalorder %s49, %s50
    %p59 = scmp.eq.s32.totalorder %s18, 0
    %p60 = por %p58, %p59
    %p61 = scmp.ne.s32.totalorder %s49, %s50
    %p62 = scmp.eq.s32.totalorder %s19, 1
    %p63 = por %p61, %p62
    %p65 = scmp.ne.s32.totalorder %s50, %s64
    %p66 = scmp.eq.s32.totalorder %s19, 0
    %p67 = por %p65, %p66
    %s69 = sadd.s32 %s68, 1
    %p72 = scmp.eq.s32.totalorder %s13, 1
    %p73 = scmp.ne.s32.totalorder %s68, %s70
    %p74 = scmp.eq.s32.totalorder %s13, 0
    %p75 = por %p73, %p74
    %p76 = scmp.ne.s32.totalorder %s68, %s70
    %p77 = scmp.eq.s32.totalorder %s18, 1
    %p78 = por %p76, %p77
    %p79 = scmp.ne.s32.totalorder %s70, %s71
    %p80 = scmp.eq.s32.totalorder %s18, 0
    %p81 = por %p79, %p80
    %p82 = scmp.ne.s32.totalorder %s70, %s71
    %p83 = scmp.eq.s32.totalorder %s19, 1
    %p84 = por %p82, %p83
    %p86 = scmp.ne.s32.totalorder %s71, %s85
    %p87 = scmp.eq.s32.totalorder %s19, 0
    %p88 = por %p86, %p87
    %s90 = sadd.s32 %s89, 1
    %p93 = scmp.eq.s32.totalorder %s13, 1
    %p94 = scmp.ne.s32.totalorder %s89, %s91
    %p95 = scmp.eq.s32.totalorder %s13, 0
    %p96 = por %p94, %p95
    %p97 = scmp.ne.s32.totalorder %s89, %s91
    %p98 = scmp.eq.s32.totalorder %s18, 1
    %p99 = por %p97, %p98
    %p100 = scmp.ne.s32.totalorder %s91, %s92
    %p101 = scmp.eq.s32.totalorder %s18, 0
    %p102 = por %p100, %p101
    %p103 = scmp.ne.s32.totalorder %s91, %s92
    %p104 = scmp.eq.s32.totalorder %s19, 1
    %p105 = por %p103, %p104
    %p107 = scmp.ne.s32.totalorder %s92, %s106
    %p108 = scmp.eq.s32.totalorder %s19, 0
    %p109 = por %p107, %p108
    %s111 = sadd.s32 %s110, 1
    %p114 = scmp.eq.s32.totalorder %s13, 1
    %p115 = scmp.ne.s32.totalorder %s110, %s112
    %p116 = scmp.eq.s32.totalorder %s13, 0
    %p117 = por %p115, %p116
    %p118 = scmp.ne.s32.totalorder %s110, %s112
    %p119 = scmp.eq.s32.totalorder %s18, 1
    %p120 = por %p118, %p119
    %p121 = scmp.ne.s32.totalorder %s112, %s113
    %p122 = scmp.eq.s32.totalorder %s18, 0
    %p123 = por %p121, %p122
    %p124 = scmp.ne.s32.totalorder %s112, %s113
    %p125 = scmp.eq.s32.totalorder %s19, 1
    %p126 = por %p124, %p125
    %p128 = scmp.ne.s32.totalorder %s113, %s127
    %p129 = scmp.eq.s32.totalorder %s19, 0
    %p130 = por %p128, %p129
    %s131 = ssub.s32 %s13, %s20
    %p132 = scmp.eq.s32.totalorder %s131, 0
    %s134 = sadd.s32 %s133, 1
    %s135 = scalar_select %p132, %s133, %s134
    %p138 = pneg %p132
    %p139 = scmp.eq.s32.totalorder %s13, 1
    %p140 = por %p138, %p139
    %p141 = scmp.ne.s32.totalorder %s133, %s136
    %p142 = scmp.eq.s32.totalorder %s13, 0
    %p143 = por %p141, %p142
    %p144 = scmp.ne.s32.totalorder %s133, %s136
    %p145 = scmp.eq.s32.totalorder %s18, 1
    %p146 = por %p144, %p145
    %p147 = scmp.ne.s32.totalorder %s136, %s137
    %p148 = scmp.eq.s32.totalorder %s18, 0
    %p149 = por %p147, %p148
    %p150 = scmp.ne.s32.totalorder %s136, %s137
    %p151 = scmp.eq.s32.totalorder %s19, 1
    %p152 = por %p150, %p151
    %p154 = scmp.ne.s32.totalorder %s137, %s153
    %p155 = scmp.eq.s32.totalorder %s19, 0
    %p156 = por %p154, %p155
    %s157 = ssub.s32 %s13, %s20
    %p158 = scmp.eq.s32.totalorder %s157, 0
    %s160 = sadd.s32 %s159, 1
    %s161 = scalar_select %p158, %s159, %s160
    %p164 = pneg %p158
    %p165 = scmp.eq.s32.totalorder %s13, 1
    %p166 = por %p164, %p165
    %p167 = scmp.ne.s32.totalorder %s159, %s162
    %p168 = scmp.eq.s32.totalorder %s13, 0
    %p169 = por %p167, %p168
    %p170 = scmp.ne.s32.totalorder %s159, %s162
    %p171 = scmp.eq.s32.totalorder %s18, 1
    %p172 = por %p170, %p171
    %p173 = scmp.ne.s32.totalorder %s162, %s163
    %p174 = scmp.eq.s32.totalorder %s18, 0
    %p175 = por %p173, %p174
    %p176 = scmp.ne.s32.totalorder %s162, %s163
    %p177 = scmp.eq.s32.totalorder %s19, 1
    %p178 = por %p176, %p177
    %p180 = scmp.ne.s32.totalorder %s163, %s179
    %p181 = scmp.eq.s32.totalorder %s19, 0
    %p182 = por %p180, %p181
    %p183 = scmp.le.s32.totalorder 1, %s13
    %p184 = scmp.lt.s32.totalorder %s13, 3
    %p185 = pnand %p183, %p184
    %p186 = pneg %p185
    // Predicated region
    $region9: #{double_conv_forward.11} parent=5 // pred_check
      _
    $region10: #{double_conv_forward.11} parent=5 // pred_check_branch
      %188 = sbr.rel (%p185) target = $region12
    $region11: #{double_conv_forward.11} parent=5 // pred_region
      %s189 = ssub.s32 %s13, 1
      // Predicated region
      $region13: #{double_conv_forward.11} parent=11 // pred_check
        %p190 = pneg %p60
      $region14: #{double_conv_forward.11} parent=11 // pred_check_branch
        %192 = sbr.rel (%p190) target = $region16
      $region15: #{double_conv_forward.11} parent=11 // pred_region
        _
      $region16: #{double_conv_forward.11} parent=11 // pred_fallthru
        _
      // Predicated region
      $region17: #{double_conv_forward.11} parent=11 // pred_check
        %p193 = pneg %p81
      $region18: #{double_conv_forward.11} parent=11 // pred_check_branch
        %195 = sbr.rel (%p193) target = $region20
      $region19: #{double_conv_forward.11} parent=11 // pred_region
        _
      $region20: #{double_conv_forward.11} parent=11 // pred_fallthru
        _
      // Predicated region
      $region21: #{double_conv_forward.11} parent=11 // pred_check
        %p196 = pneg %p102
      $region22: #{double_conv_forward.11} parent=11 // pred_check_branch
        %198 = sbr.rel (%p196) target = $region24
      $region23: #{double_conv_forward.11} parent=11 // pred_region
        _
      $region24: #{double_conv_forward.11} parent=11 // pred_fallthru
        _
      // Predicated region
      $region25: #{double_conv_forward.11} parent=11 // pred_check
        %p199 = pneg %p123
      $region26: #{double_conv_forward.11} parent=11 // pred_check_branch
        %201 = sbr.rel (%p199) target = $region28
      $region27: #{double_conv_forward.11} parent=11 // pred_region
        _
      $region28: #{double_conv_forward.11} parent=11 // pred_fallthru
        _
    $region12: #{double_conv_forward.11} parent=5 // pred_fallthru
      _
    %p202 = scmp.lt.s32.totalorder %s13, 2
    // Predicated region
    $region29: #{double_conv_forward.11} parent=5 // pred_check
      %p203 = pneg %p202
    $region30: #{double_conv_forward.11} parent=5 // pred_check_branch
      %205 = sbr.rel (%p203) target = $region32
    $region31: #{double_conv_forward.11} parent=5 // pred_region
      // Predicated region
      $region33: #{double_conv_forward.11} parent=31 // pred_check
        %p206 = pneg %p33
      $region34: #{double_conv_forward.11} parent=31 // pred_check_branch
        %208 = sbr.rel (%p206) target = $region36
      $region35: #{double_conv_forward.11} parent=31 // pred_region
        %s209 = smul.u32 18, %s13
        %p210 = scmp.lt.s32.totalorder %s209, 35
        %s211 = scalar_select %p210, %s209, 35
        %s212 = smul.addr %s211, 4
        %s213 = scalar_lea.vmem %s0, %s212
        %s214 = smul.u32 18, %s13
      $region36: #{double_conv_forward.11} parent=31 // pred_fallthru
        _
    $region32: #{double_conv_forward.11} parent=5 // pred_fallthru
      _
    %p215 = scmp.le.s32.totalorder 1, %s13
    %p216 = scmp.lt.s32.totalorder %s13, 3
    %p217 = pnand %p215, %p216
    %p218 = pneg %p217
    // Predicated region
    $region37: #{double_conv_forward.11} parent=5 // pred_check
      _
    $region38: #{double_conv_forward.11} parent=5 // pred_check_branch
      %220 = sbr.rel (%p217) target = $region40
    $region39: #{double_conv_forward.11} parent=5 // pred_region
      %s221 = ssub.s32 %s13, 1
      %s222 = smul.u32 18, %s18
      %p223 = scmp.lt.s32.totalorder %s222, 35
      %s224 = scalar_select %p223, %s222, 35
      %s225 = smul.addr %s224, 4
      %s226 = scalar_lea.vmem %s0, %s225
      %p227 = pneg %p39
      %p228 = pneg %p36
      %p229 = pneg %p60
      %p230 = pneg %p57
      %p231 = pneg %p81
      %p232 = pneg %p78
      %p233 = pneg %p102
      %p234 = pneg %p99
      %p235 = pneg %p123
      %p236 = pneg %p120
      %p237 = pneg %p149
      %p238 = pneg %p146
      %s239 = smul.u32 18, %s18
      %p240 = scmp.lt.s32.totalorder %s239, 35
      %s241 = scalar_select %p240, %s239, 35
      %s242 = smul.addr %s241, 4
      %s243 = scalar_lea.vmem %s5, %s242
      %p244 = pneg %p175
      %p245 = pneg %p172
      %p246 = scmp.lt.s32.totalorder %s18, 1
      %s247 = scalar_select %p246, %s18, 1
      %s248 = smul.addr %s247, 2
      %s249 = scalar_lea.vmem %s6, %s248
      %s250 = smul.u32 18, %s18
      %p251 = scmp.lt.s32.totalorder %s250, 35
      %s252 = scalar_select %p251, %s250, 35
      %s253 = smul.addr %s252, 4
      %s254 = scalar_lea.vmem %s0, %s253
      %s255 = smul.u32 18, %s18
      %s256 = smul.u32 18, %s18
      %p257 = scmp.lt.s32.totalorder %s256, 35
      %s258 = scalar_select %p257, %s256, 35
      %s259 = smul.addr %s258, 4
      %s260 = scalar_lea.vmem %s5, %s259
      %s261 = smul.u32 18, %s18
      %p262 = scmp.lt.s32.totalorder %s18, 1
      %s263 = scalar_select %p262, %s18, 1
      %s264 = smul.addr %s263, 2
      %s265 = scalar_lea.vmem %s6, %s264
      %v267 = vld [vmem:[%s254] sm:$0xf]
      %v268 = vld [vmem:[%s254 + $0x4] sm:$0xf]
      %v269 = vld [vmem:[%s254 + $0x8] sm:$0xf]
      %v270 = vld [vmem:[%s254 + $0xc] sm:$0xf]
      %v271 = vld [vmem:[%s254 + $0x10] sm:$0xf]
      %v272 = vld [vmem:[%s254 + $0x14] sm:$0xf]
      %v273 = vld [vmem:[%s254 + $0x18] sm:$0xf]
      %v274 = vld [vmem:[%s254 + $0x1c] sm:$0xf]
      %v275 = vld [vmem:[%s254 + $0x20] sm:$0xf]
      %v276 = vld [vmem:[%s254 + $0x24] sm:$0xf]
      %v277 = vld [vmem:[%s254 + $0x28] sm:$0xf]
      %v278 = vld [vmem:[%s254 + $0x2c] sm:$0xf]
      %v279 = vld [vmem:[%s254 + $0x30] sm:$0xf]
      %v280 = vld [vmem:[%s254 + $0x34] sm:$0xf]
      %v281 = vld [vmem:[%s254 + $0x38] sm:$0xf]
      %v282 = vld [vmem:[%s254 + $0x3c] sm:$0xf]
      %v283 = vld [vmem:[%s254 + $0x40] sm:$0xf]
      %v284 = vld [vmem:[%s254 + $0x44] sm:$0xf]
      %v285 = vunpack.c.l.bf16 %v267
      %v286 = vunpack.c.l.bf16 %v268
      %v287 = vunpack.c.l.bf16 %v269
      %v288 = vunpack.c.l.bf16 %v270
      %v289 = vunpack.c.l.bf16 %v271
      %v290 = vunpack.c.l.bf16 %v272
      %v291 = vunpack.c.l.bf16 %v273
      %v292 = vunpack.c.l.bf16 %v274
      %v293 = vunpack.c.l.bf16 %v275
      %v294 = vunpack.c.l.bf16 %v276
      %v295 = vunpack.c.l.bf16 %v277
      %v296 = vunpack.c.l.bf16 %v278
      %v297 = vunpack.c.l.bf16 %v279
      %v298 = vunpack.c.l.bf16 %v280
      %v299 = vunpack.c.l.bf16 %v281
      %v300 = vunpack.c.l.bf16 %v282
      %v301 = vunpack.c.l.bf16 %v283
      %v302 = vunpack.c.l.bf16 %v284
      %v303 = vld [vmem:[%s1] sm:$0x1]
      %v305 = vlaneseq
      %v306 = vshrl.u32 %v305, 7
      %v307 = vsub.s32 0, %v306
      %v308 = vrot.slane %v303, %v307
      %v310 = vmul.f32 %v285, %v308
      %v311 = vmul.f32 %v286, %v308
      %v312 = vmul.f32 %v287, %v308
      %v313 = vmul.f32 %v288, %v308
      %v314 = vmul.f32 %v289, %v308
      %v315 = vmul.f32 %v290, %v308
      %v316 = vmul.f32 %v291, %v308
      %v317 = vmul.f32 %v292, %v308
      %v318 = vmul.f32 %v293, %v308
      %v319 = vmul.f32 %v294, %v308
      %v320 = vmul.f32 %v295, %v308
      %v321 = vmul.f32 %v296, %v308
      %v322 = vmul.f32 %v297, %v308
      %v323 = vmul.f32 %v298, %v308
      %v324 = vmul.f32 %v299, %v308
      %v325 = vmul.f32 %v300, %v308
      %v326 = vmul.f32 %v301, %v308
      %v327 = vmul.f32 %v302, %v308
      %v328 = vld [vmem:[%s2] sm:$0x1]
      %v330 = vlaneseq
      %v331 = vshrl.u32 %v330, 7
      %v332 = vsub.s32 0, %v331
      %v333 = vrot.slane %v328, %v332
      %v335 = vadd.f32 %v310, %v333
      %v336 = vadd.f32 %v311, %v333
      %v337 = vadd.f32 %v312, %v333
      %v338 = vadd.f32 %v313, %v333
      %v339 = vadd.f32 %v314, %v333
      %v340 = vadd.f32 %v315, %v333
      %v341 = vadd.f32 %v316, %v333
      %v342 = vadd.f32 %v317, %v333
      %v343 = vadd.f32 %v318, %v333
      %v344 = vadd.f32 %v319, %v333
      %v345 = vadd.f32 %v320, %v333
      %v346 = vadd.f32 %v321, %v333
      %v347 = vadd.f32 %v322, %v333
      %v348 = vadd.f32 %v323, %v333
      %v349 = vadd.f32 %v324, %v333
      %v350 = vadd.f32 %v325, %v333
      %v351 = vadd.f32 %v326, %v333
      %v352 = vadd.f32 %v327, %v333
      %vm353 = vcmp.gt.f32.partialorder %v335, 0.0
      %vm354 = vcmp.gt.f32.partialorder %v336, 0.0
      %vm355 = vcmp.gt.f32.partialorder %v337, 0.0
      %vm356 = vcmp.gt.f32.partialorder %v338, 0.0
      %vm357 = vcmp.gt.f32.partialorder %v339, 0.0
      %vm358 = vcmp.gt.f32.partialorder %v340, 0.0
      %vm359 = vcmp.gt.f32.partialorder %v341, 0.0
      %vm360 = vcmp.gt.f32.partialorder %v342, 0.0
      %vm361 = vcmp.gt.f32.partialorder %v343, 0.0
      %vm362 = vcmp.gt.f32.partialorder %v344, 0.0
      %vm363 = vcmp.gt.f32.partialorder %v345, 0.0
      %vm364 = vcmp.gt.f32.partialorder %v346, 0.0
      %vm365 = vcmp.gt.f32.partialorder %v347, 0.0
      %vm366 = vcmp.gt.f32.partialorder %v348, 0.0
      %vm367 = vcmp.gt.f32.partialorder %v349, 0.0
      %vm368 = vcmp.gt.f32.partialorder %v350, 0.0
      %vm369 = vcmp.gt.f32.partialorder %v351, 0.0
      %vm370 = vcmp.gt.f32.partialorder %v352, 0.0
      %v371 = vmul.f32 %v335, 0.01
      %v372 = vmul.f32 %v336, 0.01
      %v373 = vmul.f32 %v337, 0.01
      %v374 = vmul.f32 %v338, 0.01
      %v375 = vmul.f32 %v339, 0.01
      %v376 = vmul.f32 %v340, 0.01
      %v377 = vmul.f32 %v341, 0.01
      %v378 = vmul.f32 %v342, 0.01
      %v379 = vmul.f32 %v343, 0.01
      %v380 = vmul.f32 %v344, 0.01
      %v381 = vmul.f32 %v345, 0.01
      %v382 = vmul.f32 %v346, 0.01
      %v383 = vmul.f32 %v347, 0.01
      %v384 = vmul.f32 %v348, 0.01
      %v385 = vmul.f32 %v349, 0.01
      %v386 = vmul.f32 %v350, 0.01
      %v387 = vmul.f32 %v351, 0.01
      %v388 = vmul.f32 %v352, 0.01
      %v389 = vsel %vm353, %v335, %v371
      %v390 = vsel %vm354, %v336, %v372
      %v391 = vsel %vm355, %v337, %v373
      %v392 = vsel %vm356, %v338, %v374
      %v393 = vsel %vm357, %v339, %v375
      %v394 = vsel %vm358, %v340, %v376
      %v395 = vsel %vm359, %v341, %v377
      %v396 = vsel %vm360, %v342, %v378
      %v397 = vsel %vm361, %v343, %v379
      %v398 = vsel %vm362, %v344, %v380
      %v399 = vsel %vm363, %v345, %v381
      %v400 = vsel %vm364, %v346, %v382
      %v401 = vsel %vm365, %v347, %v383
      %v402 = vsel %vm366, %v348, %v384
      %v403 = vsel %vm367, %v349, %v385
      %v404 = vsel %vm368, %v350, %v386
      %v405 = vsel %vm369, %v351, %v387
      %v406 = vsel %vm370, %v352, %v388
      %v407 = vpack.c.bf16 %v390, %v389
      %v408 = vpack.c.bf16 %v392, %v391
      %v409 = vpack.c.bf16 %v394, %v393
      %v410 = vpack.c.bf16 %v396, %v395
      %v411 = vpack.c.bf16 %v398, %v397
      %v412 = vpack.c.bf16 %v400, %v399
      %v413 = vpack.c.bf16 %v402, %v401
      %v414 = vpack.c.bf16 %v404, %v403
      %v415 = vpack.c.bf16 %v406, %v405
      %v416 = vld [vmem:[%s3] sm:$0xf]
      %v417 = vld [vmem:[%s3 + $0x4] sm:$0xf]
      %v418 = vld [vmem:[%s3 + $0x8] sm:$0xf]
      %v419 = vld [vmem:[%s3 + $0xc] sm:$0xf]
      %v420 = vld [vmem:[%s3 + $0x10] sm:$0xf]
      %v421 = vld [vmem:[%s3 + $0x14] sm:$0xf]
      %v422 = vld [vmem:[%s3 + $0x18] sm:$0xf]
      %v423 = vld [vmem:[%s3 + $0x1c] sm:$0xf]
      %v424 = vld [vmem:[%s3 + $0x20] sm:$0xf]
      %v425 = vld [vmem:[%s3 + $0x24] sm:$0xf]
      %v426 = vld [vmem:[%s3 + $0x28] sm:$0xf]
      %v427 = vld [vmem:[%s3 + $0x2c] sm:$0xf]
      %v428 = vld [vmem:[%s3 + $0x30] sm:$0xf]
      %v429 = vld [vmem:[%s3 + $0x34] sm:$0xf]
      %v430 = vld [vmem:[%s3 + $0x38] sm:$0xf]
      %v431 = vld [vmem:[%s3 + $0x3c] sm:$0xf]
      %v432 = vld [vmem:[%s4] sm:$0x1]
      %v434 = vlaneseq
      %v435 = vshrl.u32 %v434, 7
      %v436 = vsub.s32 0, %v435
      %v437 = vrot.slane %v432, %v436
      %v455 = vunpack.c.l.b16 %v416
      %v456 = vunpack.c.l.b16 %v417
      %v457 = vunpack.c.l.b16 %v418
      %v458 = vunpack.c.l.b16 %v419
      %v459 = vunpack.c.l.b16 %v420
      %v460 = vunpack.c.l.b16 %v421
      %v461 = vunpack.c.l.b16 %v422
      %v462 = vunpack.c.l.b16 %v423
      %v463 = vunpack.c.l.b16 %v424
      %v464 = vunpack.c.l.b16 %v425
      %v465 = vunpack.c.l.b16 %v426
      %v466 = vunpack.c.l.b16 %v427
      %v467 = vunpack.c.l.b16 %v428
      %v468 = vunpack.c.l.b16 %v429
      %v469 = vunpack.c.l.b16 %v430
      %v470 = vunpack.c.l.b16 %v431
      %v471 = vpack.c.b16 %v456, %v455
      %v472 = vpack.c.b16 %v458, %v457
      %v473 = vpack.c.b16 %v460, %v459
      %v474 = vpack.c.b16 %v462, %v461
      %v475 = vpack.c.b16 %v464, %v463
      %v476 = vpack.c.b16 %v466, %v465
      %v477 = vpack.c.b16 %v468, %v467
      %v478 = vpack.c.b16 %v470, %v469
      %487 = vmatprep.subr.bf16.mxu0 0
      %488 = vmatpush1.bf16.msra.mxu0 %v471
      %489 = vmatprep.subr.bf16.mxu0 0
      %490 = vmatpush1.bf16.msra.mxu0 %v472
      %491 = vmatprep.subr.bf16.mxu0 0
      %492 = vmatpush1.bf16.msra.mxu0 %v473
      %493 = vmatprep.subr.bf16.mxu0 0
      %494 = vmatpush1.bf16.msra.mxu0 %v474
      %495 = vmatprep.subr.bf16.mxu0 0
      %496 = vmatpush1.bf16.msra.mxu0 %v475
      %497 = vmatprep.subr.bf16.mxu0 0
      %498 = vmatpush1.bf16.msra.mxu0 %v476
      %499 = vmatprep.subr.bf16.mxu0 0
      %500 = vmatpush1.bf16.msra.mxu0 %v477
      %501 = vmatprep.subr.bf16.mxu0 0
      %502 = vmatpush1.bf16.msra.mxu0 %v478
      %503 = vmatprep.subr.bf16.mxu0 0
      %504 = vmatpush1.bf16.msra.mxu0 0
      %505 = vmatprep.subr.bf16.mxu0 0
      %506 = vmatpush1.bf16.msra.mxu0 0
      %507 = vmatprep.subr.bf16.mxu0 0
      %508 = vmatpush1.bf16.msra.mxu0 0
      %509 = vmatprep.subr.bf16.mxu0 0
      %510 = vmatpush1.bf16.msra.mxu0 0
      %511 = vmatprep.subr.bf16.mxu0 0
      %512 = vmatpush1.bf16.msra.mxu0 0
      %513 = vmatprep.subr.bf16.mxu0 0
      %514 = vmatpush1.bf16.msra.mxu0 0
      %515 = vmatprep.subr.bf16.mxu0 0
      %516 = vmatpush1.bf16.msra.mxu0 0
      %517 = vmatprep.subr.bf16.mxu0 0
      %518 = vmatpush1.bf16.msra.mxu0 0
      %519 = vmatprep.mubr.bf16.mxu0 0
      %520 = vmatmul.mubr.bf16.gmra.mrb[0].mxu0 %v407
      %v521 = vpop.f32.mrb[0].mxu0
      %v522 = vadd.f32 %v437, %v521
      %v523 = vpop.f32.mrb[0].mxu0
      %v524 = vpop.f32.mrb[0].mxu0
      %v525 = vadd.f32 %v437, %v524
      %v526 = vpop.f32.mrb[0].mxu0
      %527 = vmatprep.mubr.bf16.mxu0 0
      %528 = vmatmul.mubr.bf16.gmra.mrb[0].mxu0 %v408
      %v529 = vpop.f32.mrb[0].mxu0
      %v530 = vadd.f32 %v437, %v529
      %v531 = vpop.f32.mrb[0].mxu0
      %v532 = vpop.f32.mrb[0].mxu0
      %v533 = vadd.f32 %v437, %v532
      %v534 = vpop.f32.mrb[0].mxu0
      %535 = vmatprep.mubr.bf16.mxu0 0
      %536 = vmatmul.mubr.bf16.gmra.mrb[0].mxu0 %v409
      %v537 = vpop.f32.mrb[0].mxu0
      %v538 = vadd.f32 %v437, %v537
      %v539 = vpop.f32.mrb[0].mxu0
      %v540 = vpop.f32.mrb[0].mxu0
      %v541 = vadd.f32 %v437, %v540
      %v542 = vpop.f32.mrb[0].mxu0
      %543 = vmatprep.mubr.bf16.mxu0 0
      %544 = vmatmul.mubr.bf16.gmra.mrb[0].mxu0 %v410
      %v545 = vpop.f32.mrb[0].mxu0
      %v546 = vadd.f32 %v437, %v545
      %v547 = vpop.f32.mrb[0].mxu0
      %v548 = vpop.f32.mrb[0].mxu0
      %v549 = vadd.f32 %v437, %v548
      %v550 = vpop.f32.mrb[0].mxu0
      %551 = vmatprep.mubr.bf16.mxu0 0
      %552 = vmatmul.mubr.bf16.gmra.mrb[0].mxu0 %v411
      %v553 = vpop.f32.mrb[0].mxu0
      %v554 = vadd.f32 %v437, %v553
      %v555 = vpop.f32.mrb[0].mxu0
      %v556 = vpop.f32.mrb[0].mxu0
      %v557 = vadd.f32 %v437, %v556
      %v558 = vpop.f32.mrb[0].mxu0
      %559 = vmatprep.mubr.bf16.mxu0 0
      %560 = vmatmul.mubr.bf16.gmra.mrb[0].mxu0 %v412
      %v561 = vpop.f32.mrb[0].mxu0
      %v562 = vadd.f32 %v437, %v561
      %v563 = vpop.f32.mrb[0].mxu0
      %v564 = vpop.f32.mrb[0].mxu0
      %v565 = vadd.f32 %v437, %v564
      %v566 = vpop.f32.mrb[0].mxu0
      %567 = vmatprep.mubr.bf16.mxu0 0
      %568 = vmatmul.mubr.bf16.gmra.mrb[0].mxu0 %v413
      %v569 = vpop.f32.mrb[0].mxu0
      %v570 = vadd.f32 %v437, %v569
      %v571 = vpop.f32.mrb[0].mxu0
      %v572 = vpop.f32.mrb[0].mxu0
      %v573 = vadd.f32 %v437, %v572
      %v574 = vpop.f32.mrb[0].mxu0
      %575 = vmatprep.mubr.bf16.mxu0 0
      %576 = vmatmul.mubr.bf16.gmra.mrb[0].mxu0 %v414
      %v577 = vpop.f32.mrb[0].mxu0
      %v578 = vadd.f32 %v437, %v577
      %v579 = vpop.f32.mrb[0].mxu0
      %v580 = vpop.f32.mrb[0].mxu0
      %v581 = vadd.f32 %v437, %v580
      %v582 = vpop.f32.mrb[0].mxu0
      %583 = vmatprep.mubr.bf16.mxu0 0
      %584 = vmatmul.mubr.bf16.gmra.mrb[0].mxu0 %v415
      %v585 = vpop.f32.mrb[0].mxu0
      %v586 = vadd.f32 %v437, %v585
      %v587 = vpop.f32.mrb[0].mxu0
      %v588 = vpop.f32.mrb[0].mxu0
      %v589 = vadd.f32 %v437, %v588
      %v590 = vpop.f32.mrb[0].mxu0
      %591 = vdwg.mxu0
      %v592 = vpack.c.bf16 %v525, %v522
      %v593 = vpack.c.bf16 %v533, %v530
      %v594 = vpack.c.bf16 %v541, %v538
      %v595 = vpack.c.bf16 %v549, %v546
      %v596 = vpack.c.bf16 %v557, %v554
      %v597 = vpack.c.bf16 %v565, %v562
      %v598 = vpack.c.bf16 %v573, %v570
      %v599 = vpack.c.bf16 %v581, %v578
      %v600 = vpack.c.bf16 %v589, %v586
      %v610 = vunpack.c.l.b16 %v592
      %v611 = vunpack.c.h.b16 %v592
      %v612 = vunpack.c.l.b16 %v593
      %v613 = vunpack.c.h.b16 %v593
      %v614 = vunpack.c.l.b16 %v594
      %v615 = vunpack.c.h.b16 %v594
      %v616 = vunpack.c.l.b16 %v595
      %v617 = vunpack.c.h.b16 %v595
      %v618 = vunpack.c.l.b16 %v596
      %v619 = vunpack.c.h.b16 %v596
      %v620 = vunpack.c.l.b16 %v597
      %v621 = vunpack.c.h.b16 %v597
      %v622 = vunpack.c.l.b16 %v598
      %v623 = vunpack.c.h.b16 %v598
      %v624 = vunpack.c.l.b16 %v599
      %v625 = vunpack.c.h.b16 %v599
      %v626 = vunpack.c.l.b16 %v600
      %v627 = vunpack.c.h.b16 %v600
      %v628 = vpack.c.b16 %v610, %v610
      %v629 = vpack.c.b16 %v611, %v611
      %v630 = vpack.c.b16 %v612, %v612
      %v631 = vpack.c.b16 %v613, %v613
      %v632 = vpack.c.b16 %v614, %v614
      %v633 = vpack.c.b16 %v615, %v615
      %v634 = vpack.c.b16 %v616, %v616
      %v635 = vpack.c.b16 %v617, %v617
      %v636 = vpack.c.b16 %v618, %v618
      %v637 = vpack.c.b16 %v619, %v619
      %v638 = vpack.c.b16 %v620, %v620
      %v639 = vpack.c.b16 %v621, %v621
      %v640 = vpack.c.b16 %v622, %v622
      %v641 = vpack.c.b16 %v623, %v623
      %v642 = vpack.c.b16 %v624, %v624
      %v643 = vpack.c.b16 %v625, %v625
      %v644 = vpack.c.b16 %v626, %v626
      %v645 = vpack.c.b16 %v627, %v627
      %664 = vst [vmem:[%s260] sm:$0xf] %v628
      %665 = vst [vmem:[%s260 + $0x4] sm:$0xf] %v629
      %666 = vst [vmem:[%s260 + $0x8] sm:$0xf] %v630
      %667 = vst [vmem:[%s260 + $0xc] sm:$0xf] %v631
      %668 = vst [vmem:[%s260 + $0x10] sm:$0xf] %v632
      %669 = vst [vmem:[%s260 + $0x14] sm:$0xf] %v633
      %670 = vst [vmem:[%s260 + $0x18] sm:$0xf] %v634
      %671 = vst [vmem:[%s260 + $0x1c] sm:$0xf] %v635
      %672 = vst [vmem:[%s260 + $0x20] sm:$0xf] %v636
      %673 = vst [vmem:[%s260 + $0x24] sm:$0xf] %v637
      %674 = vst [vmem:[%s260 + $0x28] sm:$0xf] %v638
      %675 = vst [vmem:[%s260 + $0x2c] sm:$0xf] %v639
      %676 = vst [vmem:[%s260 + $0x30] sm:$0xf] %v640
      %677 = vst [vmem:[%s260 + $0x34] sm:$0xf] %v641
      %678 = vst [vmem:[%s260 + $0x38] sm:$0xf] %v642
      %679 = vst [vmem:[%s260 + $0x3c] sm:$0xf] %v643
      %680 = vst [vmem:[%s260 + $0x40] sm:$0xf] %v644
      %681 = vst [vmem:[%s260 + $0x44] sm:$0xf] %v645
      %s682 = smul.u32 %s18, 144
      %v683 = vlaneseq
      %v684 = vshrl.u32 %v683, 7
      %v685 = vadd.s32 %v684, 8
      %v686 = vadd.s32 %v684, 16
      %v687 = vadd.s32 %v684, 24
      %v688 = vadd.s32 %v684, 32
      %v689 = vadd.s32 %v684, 40
      %v690 = vadd.s32 %v684, 48
      %v691 = vadd.s32 %v684, 56
      %v692 = vadd.s32 %v684, 64
      %v693 = vadd.s32 %v684, 72
      %v694 = vadd.s32 %v684, 80
      %v695 = vadd.s32 %v684, 88
      %v696 = vadd.s32 %v684, 96
      %v697 = vadd.s32 %v684, 104
      %v698 = vadd.s32 %v684, 112
      %v699 = vadd.s32 %v684, 120
      %v700 = vadd.s32 %v684, 128
      %v701 = vadd.s32 %v684, 136
      %v702 = vstv %s682
      %v703 = vadd.s32 %v702, %v684
      %v704 = vadd.s32 %v702, %v685
      %v705 = vadd.s32 %v702, %v686
      %v706 = vadd.s32 %v702, %v687
      %v707 = vadd.s32 %v702, %v688
      %v708 = vadd.s32 %v702, %v689
      %v709 = vadd.s32 %v702, %v690
      %v710 = vadd.s32 %v702, %v691
      %v711 = vadd.s32 %v702, %v692
      %v712 = vadd.s32 %v702, %v693
      %v713 = vadd.s32 %v702, %v694
      %v714 = vadd.s32 %v702, %v695
      %v715 = vadd.s32 %v702, %v696
      %v716 = vadd.s32 %v702, %v697
      %v717 = vadd.s32 %v702, %v698
      %v718 = vadd.s32 %v702, %v699
      %v719 = vadd.s32 %v702, %v700
      %v720 = vadd.s32 %v702, %v701
      %vm721 = vcmp.lt.s32.totalorder %v703, 288
      %vm722 = vcmp.lt.s32.totalorder %v704, 288
      %vm723 = vcmp.lt.s32.totalorder %v705, 288
      %vm724 = vcmp.lt.s32.totalorder %v706, 288
      %vm725 = vcmp.lt.s32.totalorder %v707, 288
      %vm726 = vcmp.lt.s32.totalorder %v708, 288
      %vm727 = vcmp.lt.s32.totalorder %v709, 288
      %vm728 = vcmp.lt.s32.totalorder %v710, 288
      %vm729 = vcmp.lt.s32.totalorder %v711, 288
      %vm730 = vcmp.lt.s32.totalorder %v712, 288
      %vm731 = vcmp.lt.s32.totalorder %v713, 288
      %vm732 = vcmp.lt.s32.totalorder %v714, 288
      %vm733 = vcmp.lt.s32.totalorder %v715, 288
      %vm734 = vcmp.lt.s32.totalorder %v716, 288
      %vm735 = vcmp.lt.s32.totalorder %v717, 288
      %vm736 = vcmp.lt.s32.totalorder %v718, 288
      %vm737 = vcmp.lt.s32.totalorder %v719, 288
      %vm738 = vcmp.lt.s32.totalorder %v720, 288
      %v739 = vsel %vm721, 1, 0
      %v740 = vsel %vm722, 1, 0
      %v741 = vsel %vm723, 1, 0
      %v742 = vsel %vm724, 1, 0
      %v743 = vsel %vm725, 1, 0
      %v744 = vsel %vm726, 1, 0
      %v745 = vsel %vm727, 1, 0
      %v746 = vsel %vm728, 1, 0
      %v747 = vsel %vm729, 1, 0
      %v748 = vsel %vm730, 1, 0
      %v749 = vsel %vm731, 1, 0
      %v750 = vsel %vm732, 1, 0
      %v751 = vsel %vm733, 1, 0
      %v752 = vsel %vm734, 1, 0
      %v753 = vsel %vm735, 1, 0
      %v754 = vsel %vm736, 1, 0
      %v755 = vsel %vm737, 1, 0
      %v756 = vsel %vm738, 1, 0
      %v757 = vcvt.s32.f32 %v739
      %v758 = vcvt.s32.f32 %v740
      %v759 = vcvt.s32.f32 %v741
      %v760 = vcvt.s32.f32 %v742
      %v761 = vcvt.s32.f32 %v743
      %v762 = vcvt.s32.f32 %v744
      %v763 = vcvt.s32.f32 %v745
      %v764 = vcvt.s32.f32 %v746
      %v765 = vcvt.s32.f32 %v747
      %v766 = vcvt.s32.f32 %v748
      %v767 = vcvt.s32.f32 %v749
      %v768 = vcvt.s32.f32 %v750
      %v769 = vcvt.s32.f32 %v751
      %v770 = vcvt.s32.f32 %v752
      %v771 = vcvt.s32.f32 %v753
      %v772 = vcvt.s32.f32 %v754
      %v773 = vcvt.s32.f32 %v755
      %v774 = vcvt.s32.f32 %v756
      %v775 = vmul.f32 %v522, %v757
      %v776 = vmul.f32 %v525, %v758
      %v777 = vmul.f32 %v530, %v759
      %v778 = vmul.f32 %v533, %v760
      %v779 = vmul.f32 %v538, %v761
      %v780 = vmul.f32 %v541, %v762
      %v781 = vmul.f32 %v546, %v763
      %v782 = vmul.f32 %v549, %v764
      %v783 = vmul.f32 %v554, %v765
      %v784 = vmul.f32 %v557, %v766
      %v785 = vmul.f32 %v562, %v767
      %v786 = vmul.f32 %v565, %v768
      %v787 = vmul.f32 %v570, %v769
      %v788 = vmul.f32 %v573, %v770
      %v789 = vmul.f32 %v578, %v771
      %v790 = vmul.f32 %v581, %v772
      %v791 = vmul.f32 %v586, %v773
      %v792 = vmul.f32 %v589, %v774
      %v793 = vadd.f32 %v775, %v776
      %v794 = vadd.f32 %v793, %v777
      %v795 = vadd.f32 %v794, %v778
      %v796 = vadd.f32 %v795, %v779
      %v797 = vadd.f32 %v796, %v780
      %v798 = vadd.f32 %v797, %v781
      %v799 = vadd.f32 %v798, %v782
      %v800 = vadd.f32 %v799, %v783
      %v801 = vadd.f32 %v800, %v784
      %v802 = vadd.f32 %v801, %v785
      %v803 = vadd.f32 %v802, %v786
      %v804 = vadd.f32 %v803, %v787
      %v805 = vadd.f32 %v804, %v788
      %v806 = vadd.f32 %v805, %v789
      %v807 = vadd.f32 %v806, %v790
      %v808 = vadd.f32 %v807, %v791
      %v809 = vadd.f32 %v808, %v792
      %v810 = vrot.slane %v809, 4
      %v811 = vadd.f32 %v809, %v810
      %v812 = vrot.slane %v811, 2
      %v813 = vadd.f32 %v811, %v812
      %v814 = vrot.slane %v813, 1
      %v815 = vadd.f32 %v813, %v814
      %816 = vst [vmem:[%s265] sm:$0x1] %v815
      %v817 = vmul.f32 %v775, %v522
      %v818 = vmul.f32 %v776, %v525
      %v819 = vmul.f32 %v777, %v530
      %v820 = vmul.f32 %v778, %v533
      %v821 = vmul.f32 %v779, %v538
      %v822 = vmul.f32 %v780, %v541
      %v823 = vmul.f32 %v781, %v546
      %v824 = vmul.f32 %v782, %v549
      %v825 = vmul.f32 %v783, %v554
      %v826 = vmul.f32 %v784, %v557
      %v827 = vmul.f32 %v785, %v562
      %v828 = vmul.f32 %v786, %v565
      %v829 = vmul.f32 %v787, %v570
      %v830 = vmul.f32 %v788, %v573
      %v831 = vmul.f32 %v789, %v578
      %v832 = vmul.f32 %v790, %v581
      %v833 = vmul.f32 %v791, %v586
      %v834 = vmul.f32 %v792, %v589
      %v835 = vadd.f32 %v817, %v818
      %v836 = vadd.f32 %v835, %v819
      %v837 = vadd.f32 %v836, %v820
      %v838 = vadd.f32 %v837, %v821
      %v839 = vadd.f32 %v838, %v822
      %v840 = vadd.f32 %v839, %v823
      %v841 = vadd.f32 %v840, %v824
      %v842 = vadd.f32 %v841, %v825
      %v843 = vadd.f32 %v842, %v826
      %v844 = vadd.f32 %v843, %v827
      %v845 = vadd.f32 %v844, %v828
      %v846 = vadd.f32 %v845, %v829
      %v847 = vadd.f32 %v846, %v830
      %v848 = vadd.f32 %v847, %v831
      %v849 = vadd.f32 %v848, %v832
      %v850 = vadd.f32 %v849, %v833
      %v851 = vadd.f32 %v850, %v834
      %v852 = vrot.slane %v851, 4
      %v853 = vadd.f32 %v851, %v852
      %v854 = vrot.slane %v853, 2
      %v855 = vadd.f32 %v853, %v854
      %v856 = vrot.slane %v855, 1
      %v857 = vadd.f32 %v855, %v856
      %858 = vst [vmem:[%s265 + $0x1] sm:$0x1] %v857
      %s859 = smul.u32 18, %s18
      %p860 = scmp.lt.s32.totalorder %s859, 35
      %s861 = scalar_select %p860, %s859, 35
      %s862 = smul.addr %s861, 4
      %s863 = scalar_lea.vmem %s5, %s862
      %p864 = scmp.lt.s32.totalorder %s18, 1
      %s865 = scalar_select %p864, %s18, 1
      %s866 = smul.addr %s865, 2
      %s867 = scalar_lea.vmem %s6, %s866
      // Predicated region
      $region41: #{double_conv_forward.11} parent=39 // pred_check
        %p868 = pneg %p146
      $region42: #{double_conv_forward.11} parent=39 // pred_check_branch
        %870 = sbr.rel (%p868) target = $region44
      $region43: #{double_conv_forward.11} parent=39 // pred_region
        %s871 = smul.u32 18, %s18
      $region44: #{double_conv_forward.11} parent=39 // pred_fallthru
        _
      // Predicated region
      $region45: #{double_conv_forward.11} parent=39 // pred_check
        %p872 = pneg %p172
      $region46: #{double_conv_forward.11} parent=39 // pred_check_branch
        %874 = sbr.rel (%p872) target = $region48
      $region47: #{double_conv_forward.11} parent=39 // pred_region
        _
      $region48: #{double_conv_forward.11} parent=39 // pred_fallthru
        _
    $region40: #{double_conv_forward.11} parent=5 // pred_fallthru
      _
    %p875 = scmp.le.s32.totalorder 2, %s13
    // Predicated region
    $region49: #{double_conv_forward.11} parent=5 // pred_check
      %p876 = pneg %p875
    $region50: #{double_conv_forward.11} parent=5 // pred_check_branch
      %878 = sbr.rel (%p876) target = $region52
    $region51: #{double_conv_forward.11} parent=5 // pred_region
      %s879 = ssub.s32 %s13, 2
      // Predicated region
      $region53: #{double_conv_forward.11} parent=51 // pred_check
        %p880 = pneg %p152
      $region54: #{double_conv_forward.11} parent=51 // pred_check_branch
        %882 = sbr.rel (%p880) target = $region56
      $region55: #{double_conv_forward.11} parent=51 // pred_region
        %s883 = smul.u32 18, %s19
        %p884 = scmp.lt.s32.totalorder %s883, 35
        %s885 = scalar_select %p884, %s883, 35
        %s886 = smul.addr %s885, 4
        %s887 = scalar_lea.vmem %s5, %s886
      $region56: #{double_conv_forward.11} parent=51 // pred_fallthru
        _
      // Predicated region
      $region57: #{double_conv_forward.11} parent=51 // pred_check
        %p888 = pneg %p178
      $region58: #{double_conv_forward.11} parent=51 // pred_check_branch
        %890 = sbr.rel (%p888) target = $region60
      $region59: #{double_conv_forward.11} parent=51 // pred_region
        %p891 = scmp.lt.s32.totalorder %s19, 1
        %s892 = scalar_select %p891, %s19, 1
        %s893 = smul.addr %s892, 2
        %s894 = scalar_lea.vmem %s6, %s893
      $region60: #{double_conv_forward.11} parent=51 // pred_fallthru
        _
    $region52: #{double_conv_forward.11} parent=5 // pred_fallthru
      _
  $region6: #{double_conv_forward.11} parent=0 // loop_footer
    %s17 = sadd.s32 1, %s13
  $region7: #{double_conv_forward.11} parent=0 // loop_footer_branch
    %12 = sbr.rel target = $region3
  $region8: #{double_conv_forward.11} parent=0 // loop_exit
    _

// kernel: reverse.0
$region0: #{reverse.0}
  %s0 = inlined_call_operand.vmem [shape: f32[2,8,16,7], index: 0, kind: input, shape index: {}]
  %s1 = inlined_call_operand.vmem [shape: f32[2,8,16,7], index: 1, kind: output, shape index: {}]
  $region1: #{reverse.0} parent=0
    #allocation0 [shape = 'u8[131072]{0}', space=vmem, size = 0x20000, scoped, tag = 'operand span for operand 0']
    #allocation1 [shape = 'u8[65536]{0}', space=vmem, size = 0x10000, scoped, tag = 'operand span for operand 1']
    %s2 = scalar_lea.vmem [#allocation0], 8
    // Predicated region
    $region2: #{reverse.0} parent=1 // pred_check
      _
    $region3: #{reverse.0} parent=1 // pred_check_branch
      %4 = sbr.rel (0) target = $region5
    $region4: #{reverse.0} parent=1 // pred_region
      // Predicated region
      $region6: #{reverse.0} parent=4 // pred_check
        _
      $region7: #{reverse.0} parent=4 // pred_check_branch
        %6 = sbr.rel (0) target = $region9
      $region8: #{reverse.0} parent=4 // pred_region
        // Predicated region
        $region21: #{reverse.0} parent=8 // pred_check
          _
        $region22: #{reverse.0} parent=8 // pred_check_branch
          %51 = sbr.rel (0) target = $region24
        $region23: #{reverse.0} parent=8 // pred_region
          loop: start=0, step=1, limit=1
          $region25: #{reverse.0} parent=23 // loop_pre_header
            _
          $region26: #{reverse.0} parent=23 // loop_header
            %s53 = sphi 0, %s57
            %p54 = scmp.ge.s32.totalorder %s53, 1
            %s58 = sphi %s0, %s0
            %s59 = sphi %s2, %s2
          $region27: #{reverse.0} parent=23 // loop_header_branch
            %56 = sbr.rel (%p54) target = $region31
          $region28: #{reverse.0} parent=23 // loop_body
            %v60 = vld [vmem:[%s58] sm:$0xff]
            %61 = vst [vmem:[%s59] sm:$0xff] %v60
            %v62 = vld [vmem:[%s58 + $0x8] sm:$0xff]
            %63 = vst [vmem:[%s59 + $0x10] sm:$0xff] %v62
            %v64 = vld [vmem:[%s58 + $0x10] sm:$0xff]
            %65 = vst [vmem:[%s59 + $0x20] sm:$0xff] %v64
            %v66 = vld [vmem:[%s58 + $0x18] sm:$0xff]
            %67 = vst [vmem:[%s59 + $0x30] sm:$0xff] %v66
            %v68 = vld [vmem:[%s58 + $0x20] sm:$0xff]
            %69 = vst [vmem:[%s59 + $0x40] sm:$0xff] %v68
            %v70 = vld [vmem:[%s58 + $0x28] sm:$0xff]
            %71 = vst [vmem:[%s59 + $0x50] sm:$0xff] %v70
            %v72 = vld [vmem:[%s58 + $0x30] sm:$0xff]
            %73 = vst [vmem:[%s59 + $0x60] sm:$0xff] %v72
            %v74 = vld [vmem:[%s58 + $0x38] sm:$0xff]
            %75 = vst [vmem:[%s59 + $0x70] sm:$0xff] %v74
            %v76 = vld [vmem:[%s58 + $0x40] sm:$0xff]
            %77 = vst [vmem:[%s59 + $0x80] sm:$0xff] %v76
            %v78 = vld [vmem:[%s58 + $0x48] sm:$0xff]
            %79 = vst [vmem:[%s59 + $0x90] sm:$0xff] %v78
            %v80 = vld [vmem:[%s58 + $0x50] sm:$0xff]
            %81 = vst [vmem:[%s59 + $0xa0] sm:$0xff] %v80
            %v82 = vld [vmem:[%s58 + $0x58] sm:$0xff]
            %83 = vst [vmem:[%s59 + $0xb0] sm:$0xff] %v82
            %v84 = vld [vmem:[%s58 + $0x60] sm:$0xff]
            %85 = vst [vmem:[%s59 + $0xc0] sm:$0xff] %v84
            %v86 = vld [vmem:[%s58 + $0x68] sm:$0xff]
            %87 = vst [vmem:[%s59 + $0xd0] sm:$0xff] %v86
            %v88 = vld [vmem:[%s58 + $0x70] sm:$0xff]
            %89 = vst [vmem:[%s59 + $0xe0] sm:$0xff] %v88
            %v90 = vld [vmem:[%s58 + $0x78] sm:$0xff]
            %91 = vst [vmem:[%s59 + $0xf0] sm:$0xff] %v90
          $region29: #{reverse.0} parent=23 // loop_footer
            %s57 = sadd.s32 1, %s53
          $region30: #{reverse.0} parent=23 // loop_footer_branch
            %52 = sbr.rel target = $region26
          $region31: #{reverse.0} parent=23 // loop_exit
            _
        $region24: #{reverse.0} parent=8 // pred_fallthru
          _
        // Predicated region
        $region32: #{reverse.0} parent=8 // pred_check
          _
        $region33: #{reverse.0} parent=8 // pred_check_branch
          %93 = sbr.rel target = $region35
        $region34: #{reverse.0} parent=8 // pred_region
          _
        $region35: #{reverse.0} parent=8 // pred_fallthru
          _
      $region9: #{reverse.0} parent=4 // pred_fallthru
        _
      // Predicated region
      $region10: #{reverse.0} parent=4 // pred_check
        _
      $region11: #{reverse.0} parent=4 // pred_check_branch
        %8 = sbr.rel target = $region13
      $region12: #{reverse.0} parent=4 // pred_region
        loop: start=0, step=1, limit=1
        $region14: #{reverse.0} parent=12 // loop_pre_header
          _
        $region15: #{reverse.0} parent=12 // loop_header
          %s11 = sphi 0, %s15
          %p12 = scmp.ge.s32.totalorder %s11, 1
          %s16 = sphi %s0, %s0
          %s17 = sphi %s2, %s2
        $region16: #{reverse.0} parent=12 // loop_header_branch
          %14 = sbr.rel (%p12) target = $region20
        $region17: #{reverse.0} parent=12 // loop_body
          %v18 = vld [vmem:[%s16] sm:$0xff]
          %19 = vst [vmem:[%s17] sm:$0xff] %v18
          %v20 = vld [vmem:[%s16 + $0x8] sm:$0xff]
          %21 = vst [vmem:[%s17 + $0x10] sm:$0xff] %v20
          %v22 = vld [vmem:[%s16 + $0x10] sm:$0xff]
          %23 = vst [vmem:[%s17 + $0x20] sm:$0xff] %v22
          %v24 = vld [vmem:[%s16 + $0x18] sm:$0xff]
          %25 = vst [vmem:[%s17 + $0x30] sm:$0xff] %v24
          %v26 = vld [vmem:[%s16 + $0x20] sm:$0xff]
          %27 = vst [vmem:[%s17 + $0x40] sm:$0xff] %v26
          %v28 = vld [vmem:[%s16 + $0x28] sm:$0xff]
          %29 = vst [vmem:[%s17 + $0x50] sm:$0xff] %v28
          %v30 = vld [vmem:[%s16 + $0x30] sm:$0xff]
          %31 = vst [vmem:[%s17 + $0x60] sm:$0xff] %v30
          %v32 = vld [vmem:[%s16 + $0x38] sm:$0xff]
          %33 = vst [vmem:[%s17 + $0x70] sm:$0xff] %v32
          %v34 = vld [vmem:[%s16 + $0x40] sm:$0xff]
          %35 = vst [vmem:[%s17 + $0x80] sm:$0xff] %v34
          %v36 = vld [vmem:[%s16 + $0x48] sm:$0xff]
          %37 = vst [vmem:[%s17 + $0x90] sm:$0xff] %v36
          %v38 = vld [vmem:[%s16 + $0x50] sm:$0xff]
          %39 = vst [vmem:[%s17 + $0xa0] sm:$0xff] %v38
          %v40 = vld [vmem:[%s16 + $0x58] sm:$0xff]
          %41 = vst [vmem:[%s17 + $0xb0] sm:$0xff] %v40
          %v42 = vld [vmem:[%s16 + $0x60] sm:$0xff]
          %43 = vst [vmem:[%s17 + $0xc0] sm:$0xff] %v42
          %v44 = vld [vmem:[%s16 + $0x68] sm:$0xff]
          %45 = vst [vmem:[%s17 + $0xd0] sm:$0xff] %v44
          %v46 = vld [vmem:[%s16 + $0x70] sm:$0xff]
          %47 = vst [vmem:[%s17 + $0xe0] sm:$0xff] %v46
          %v48 = vld [vmem:[%s16 + $0x78] sm:$0xff]
          %49 = vst [vmem:[%s17 + $0xf0] sm:$0xff] %v48
        $region18: #{reverse.0} parent=12 // loop_footer
          %s15 = sadd.s32 1, %s11
        $region19: #{reverse.0} parent=12 // loop_footer_branch
          %10 = sbr.rel target = $region15
        $region20: #{reverse.0} parent=12 // loop_exit
          _
      $region13: #{reverse.0} parent=4 // pred_fallthru
        _
    $region5: #{reverse.0} parent=1 // pred_fallthru
      _
    %94 = vnop
    %s95 = scalar_lea.vmem [#allocation0], 7
    %v96 = vld [vmem:[%s95] ss:$-1 sm:$0xff]
    %v97 = vrot.slane %v96, 1
    %98 = vst [vmem:[#allocation1] sm:$0xff] %v97
    %s99 = scalar_lea.vmem [#allocation0], 8
    %s100 = scalar_lea.vmem %s99, 7 [#allocation0]
    %v101 = vld [vmem:[%s100] ss:$-1 sm:$0xff]
    %v102 = vrot.slane %v101, 1
    %v103 = vlaneseq
    %v104 = vshrl.u32 %v103, 7
    %vm105 = vcmp.lt.s32.totalorder %v104, 7
    %106 = vst.msk [vmem:[#allocation1] sm:$0xff] %vm105, %v102
    %s107 = scalar_lea.vmem [#allocation1], 8
    %s108 = scalar_lea.vmem [#allocation0], 16
    %s109 = scalar_lea.vmem %s108, 7 [#allocation0]
    %v110 = vld [vmem:[%s109] ss:$-1 sm:$0xff]
    %v111 = vrot.slane %v110, 1
    %112 = vst [vmem:[%s107] sm:$0xff] %v111
    %s113 = scalar_lea.vmem %s108, 8 [#allocation0]
    %s114 = scalar_lea.vmem %s113, 7 [#allocation0]
    %v115 = vld [vmem:[%s114] ss:$-1 sm:$0xff]
    %v116 = vrot.slane %v115, 1
    %v117 = vlaneseq
    %v118 = vshrl.u32 %v117, 7
    %vm119 = vcmp.lt.s32.totalorder %v118, 7
    %120 = vst.msk [vmem:[%s107] sm:$0xff] %vm119, %v116
    %s121 = scalar_lea.vmem [#allocation1], 16
    %s122 = scalar_lea.vmem [#allocation0], 32
    %s123 = scalar_lea.vmem %s122, 7 [#allocation0]
    %v124 = vld [vmem:[%s123] ss:$-1 sm:$0xff]
    %v125 = vrot.slane %v124, 1
    %126 = vst [vmem:[%s121] sm:$0xff] %v125
    %s127 = scalar_lea.vmem %s122, 8 [#allocation0]
    %s128 = scalar_lea.vmem %s127, 7 [#allocation0]
    %v129 = vld [vmem:[%s128] ss:$-1 sm:$0xff]
    %v130 = vrot.slane %v129, 1
    %v131 = vlaneseq
    %v132 = vshrl.u32 %v131, 7
    %vm133 = vcmp.lt.s32.totalorder %v132, 7
    %134 = vst.msk [vmem:[%s121] sm:$0xff] %vm133, %v130
    %s135 = scalar_lea.vmem [#allocation1], 24
    %s136 = scalar_lea.vmem [#allocation0], 48
    %s137 = scalar_lea.vmem %s136, 7 [#allocation0]
    %v138 = vld [vmem:[%s137] ss:$-1 sm:$0xff]
    %v139 = vrot.slane %v138, 1
    %140 = vst [vmem:[%s135] sm:$0xff] %v139
    %s141 = scalar_lea.vmem %s136, 8 [#allocation0]
    %s142 = scalar_lea.vmem %s141, 7 [#allocation0]
    %v143 = vld [vmem:[%s142] ss:$-1 sm:$0xff]
    %v144 = vrot.slane %v143, 1
    %v145 = vlaneseq
    %v146 = vshrl.u32 %v145, 7
    %vm147 = vcmp.lt.s32.totalorder %v146, 7
    %148 = vst.msk [vmem:[%s135] sm:$0xff] %vm147, %v144
    %s149 = scalar_lea.vmem [#allocation1], 32
    %s150 = scalar_lea.vmem [#allocation0], 64
    %s151 = scalar_lea.vmem %s150, 7 [#allocation0]
    %v152 = vld [vmem:[%s151] ss:$-1 sm:$0xff]
    %v153 = vrot.slane %v152, 1
    %154 = vst [vmem:[%s149] sm:$0xff] %v153
    %s155 = scalar_lea.vmem %s150, 8 [#allocation0]
    %s156 = scalar_lea.vmem %s155, 7 [#allocation0]
    %v157 = vld [vmem:[%s156] ss:$-1 sm:$0xff]
    %v158 = vrot.slane %v157, 1
    %v159 = vlaneseq
    %v160 = vshrl.u32 %v159, 7
    %vm161 = vcmp.lt.s32.totalorder %v160, 7
    %162 = vst.msk [vmem:[%s149] sm:$0xff] %vm161, %v158
    %s163 = scalar_lea.vmem [#allocation1], 40
    %s164 = scalar_lea.vmem [#allocation0], 80
    %s165 = scalar_lea.vmem %s164, 7 [#allocation0]
    %v166 = vld [vmem:[%s165] ss:$-1 sm:$0xff]
    %v167 = vrot.slane %v166, 1
    %168 = vst [vmem:[%s163] sm:$0xff] %v167
    %s169 = scalar_lea.vmem %s164, 8 [#allocation0]
    %s170 = scalar_lea.vmem %s169, 7 [#allocation0]
    %v171 = vld [vmem:[%s170] ss:$-1 sm:$0xff]
    %v172 = vrot.slane %v171, 1
    %v173 = vlaneseq
    %v174 = vshrl.u32 %v173, 7
    %vm175 = vcmp.lt.s32.totalorder %v174, 7
    %176 = vst.msk [vmem:[%s163] sm:$0xff] %vm175, %v172
    %s177 = scalar_lea.vmem [#allocation1], 48
    %s178 = scalar_lea.vmem [#allocation0], 96
    %s179 = scalar_lea.vmem %s178, 7 [#allocation0]
    %v180 = vld [vmem:[%s179] ss:$-1 sm:$0xff]
    %v181 = vrot.slane %v180, 1
    %182 = vst [vmem:[%s177] sm:$0xff] %v181
    %s183 = scalar_lea.vmem %s178, 8 [#allocation0]
    %s184 = scalar_lea.vmem %s183, 7 [#allocation0]
    %v185 = vld [vmem:[%s184] ss:$-1 sm:$0xff]
    %v186 = vrot.slane %v185, 1
    %v187 = vlaneseq
    %v188 = vshrl.u32 %v187, 7
    %vm189 = vcmp.lt.s32.totalorder %v188, 7
    %190 = vst.msk [vmem:[%s177] sm:$0xff] %vm189, %v186
    %s191 = scalar_lea.vmem [#allocation1], 56
    %s192 = scalar_lea.vmem [#allocation0], 112
    %s193 = scalar_lea.vmem %s192, 7 [#allocation0]
    %v194 = vld [vmem:[%s193] ss:$-1 sm:$0xff]
    %v195 = vrot.slane %v194, 1
    %196 = vst [vmem:[%s191] sm:$0xff] %v195
    %s197 = scalar_lea.vmem %s192, 8 [#allocation0]
    %s198 = scalar_lea.vmem %s197, 7 [#allocation0]
    %v199 = vld [vmem:[%s198] ss:$-1 sm:$0xff]
    %v200 = vrot.slane %v199, 1
    %v201 = vlaneseq
    %v202 = vshrl.u32 %v201, 7
    %vm203 = vcmp.lt.s32.totalorder %v202, 7
    %204 = vst.msk [vmem:[%s191] sm:$0xff] %vm203, %v200
    %s205 = scalar_lea.vmem [#allocation1], 64
    %s206 = scalar_lea.vmem [#allocation0], 128
    %s207 = scalar_lea.vmem %s206, 7 [#allocation0]
    %v208 = vld [vmem:[%s207] ss:$-1 sm:$0xff]
    %v209 = vrot.slane %v208, 1
    %210 = vst [vmem:[%s205] sm:$0xff] %v209
    %s211 = scalar_lea.vmem %s206, 8 [#allocation0]
    %s212 = scalar_lea.vmem %s211, 7 [#allocation0]
    %v213 = vld [vmem:[%s212] ss:$-1 sm:$0xff]
    %v214 = vrot.slane %v213, 1
    %v215 = vlaneseq
    %v216 = vshrl.u32 %v215, 7
    %vm217 = vcmp.lt.s32.totalorder %v216, 7
    %218 = vst.msk [vmem:[%s205] sm:$0xff] %vm217, %v214
    %s219 = scalar_lea.vmem [#allocation1], 72
    %s220 = scalar_lea.vmem [#allocation0], 144
    %s221 = scalar_lea.vmem %s220, 7 [#allocation0]
    %v222 = vld [vmem:[%s221] ss:$-1 sm:$0xff]
    %v223 = vrot.slane %v222, 1
    %224 = vst [vmem:[%s219] sm:$0xff] %v223
    %s225 = scalar_lea.vmem %s220, 8 [#allocation0]
    %s226 = scalar_lea.vmem %s225, 7 [#allocation0]
    %v227 = vld [vmem:[%s226] ss:$-1 sm:$0xff]
    %v228 = vrot.slane %v227, 1
    %v229 = vlaneseq
    %v230 = vshrl.u32 %v229, 7
    %vm231 = vcmp.lt.s32.totalorder %v230, 7
    %232 = vst.msk [vmem:[%s219] sm:$0xff] %vm231, %v228
    %s233 = scalar_lea.vmem [#allocation1], 80
    %s234 = scalar_lea.vmem [#allocation0], 160
    %s235 = scalar_lea.vmem %s234, 7 [#allocation0]
    %v236 = vld [vmem:[%s235] ss:$-1 sm:$0xff]
    %v237 = vrot.slane %v236, 1
    %238 = vst [vmem:[%s233] sm:$0xff] %v237
    %s239 = scalar_lea.vmem %s234, 8 [#allocation0]
    %s240 = scalar_lea.vmem %s239, 7 [#allocation0]
    %v241 = vld [vmem:[%s240] ss:$-1 sm:$0xff]
    %v242 = vrot.slane %v241, 1
    %v243 = vlaneseq
    %v244 = vshrl.u32 %v243, 7
    %vm245 = vcmp.lt.s32.totalorder %v244, 7
    %246 = vst.msk [vmem:[%s233] sm:$0xff] %vm245, %v242
    %s247 = scalar_lea.vmem [#allocation1], 88
    %s248 = scalar_lea.vmem [#allocation0], 176
    %s249 = scalar_lea.vmem %s248, 7 [#allocation0]
    %v250 = vld [vmem:[%s249] ss:$-1 sm:$0xff]
    %v251 = vrot.slane %v250, 1
    %252 = vst [vmem:[%s247] sm:$0xff] %v251
    %s253 = scalar_lea.vmem %s248, 8 [#allocation0]
    %s254 = scalar_lea.vmem %s253, 7 [#allocation0]
    %v255 = vld [vmem:[%s254] ss:$-1 sm:$0xff]
    %v256 = vrot.slane %v255, 1
    %v257 = vlaneseq
    %v258 = vshrl.u32 %v257, 7
    %vm259 = vcmp.lt.s32.totalorder %v258, 7
    %260 = vst.msk [vmem:[%s247] sm:$0xff] %vm259, %v256
    %s261 = scalar_lea.vmem [#allocation1], 96
    %s262 = scalar_lea.vmem [#allocation0], 192
    %s263 = scalar_lea.vmem %s262, 7 [#allocation0]
    %v264 = vld [vmem:[%s263] ss:$-1 sm:$0xff]
    %v265 = vrot.slane %v264, 1
    %266 = vst [vmem:[%s261] sm:$0xff] %v265
    %s267 = scalar_lea.vmem %s262, 8 [#allocation0]
    %s268 = scalar_lea.vmem %s267, 7 [#allocation0]
    %v269 = vld [vmem:[%s268] ss:$-1 sm:$0xff]
    %v270 = vrot.slane %v269, 1
    %v271 = vlaneseq
    %v272 = vshrl.u32 %v271, 7
    %vm273 = vcmp.lt.s32.totalorder %v272, 7
    %274 = vst.msk [vmem:[%s261] sm:$0xff] %vm273, %v270
    %s275 = scalar_lea.vmem [#allocation1], 104
    %s276 = scalar_lea.vmem [#allocation0], 208
    %s277 = scalar_lea.vmem %s276, 7 [#allocation0]
    %v278 = vld [vmem:[%s277] ss:$-1 sm:$0xff]
    %v279 = vrot.slane %v278, 1
    %280 = vst [vmem:[%s275] sm:$0xff] %v279
    %s281 = scalar_lea.vmem %s276, 8 [#allocation0]
    %s282 = scalar_lea.vmem %s281, 7 [#allocation0]
    %v283 = vld [vmem:[%s282] ss:$-1 sm:$0xff]
    %v284 = vrot.slane %v283, 1
    %v285 = vlaneseq
    %v286 = vshrl.u32 %v285, 7
    %vm287 = vcmp.lt.s32.totalorder %v286, 7
    %288 = vst.msk [vmem:[%s275] sm:$0xff] %vm287, %v284
    %s289 = scalar_lea.vmem [#allocation1], 112
    %s290 = scalar_lea.vmem [#allocation0], 224
    %s291 = scalar_lea.vmem %s290, 7 [#allocation0]
    %v292 = vld [vmem:[%s291] ss:$-1 sm:$0xff]
    %v293 = vrot.slane %v292, 1
    %294 = vst [vmem:[%s289] sm:$0xff] %v293
    %s295 = scalar_lea.vmem %s290, 8 [#allocation0]
    %s296 = scalar_lea.vmem %s295, 7 [#allocation0]
    %v297 = vld [vmem:[%s296] ss:$-1 sm:$0xff]
    %v298 = vrot.slane %v297, 1
    %v299 = vlaneseq
    %v300 = vshrl.u32 %v299, 7
    %vm301 = vcmp.lt.s32.totalorder %v300, 7
    %302 = vst.msk [vmem:[%s289] sm:$0xff] %vm301, %v298
    %s303 = scalar_lea.vmem [#allocation1], 120
    %s304 = scalar_lea.vmem [#allocation0], 240
    %s305 = scalar_lea.vmem %s304, 7 [#allocation0]
    %v306 = vld [vmem:[%s305] ss:$-1 sm:$0xff]
    %v307 = vrot.slane %v306, 1
    %308 = vst [vmem:[%s303] sm:$0xff] %v307
    %s309 = scalar_lea.vmem %s304, 8 [#allocation0]
    %s310 = scalar_lea.vmem %s309, 7 [#allocation0]
    %v311 = vld [vmem:[%s310] ss:$-1 sm:$0xff]
    %v312 = vrot.slane %v311, 1
    %v313 = vlaneseq
    %v314 = vshrl.u32 %v313, 7
    %vm315 = vcmp.lt.s32.totalorder %v314, 7
    %316 = vst.msk [vmem:[%s303] sm:$0xff] %vm315, %v312
    // Predicated region
    $region36: #{reverse.0} parent=1 // pred_check
      _
    $region37: #{reverse.0} parent=1 // pred_check_branch
      %318 = sbr.rel (0) target = $region39
    $region38: #{reverse.0} parent=1 // pred_region
      // Predicated region
      $region40: #{reverse.0} parent=38 // pred_check
        _
      $region41: #{reverse.0} parent=38 // pred_check_branch
        %320 = sbr.rel (0) target = $region43
      $region42: #{reverse.0} parent=38 // pred_region
        // Predicated region
        $region55: #{reverse.0} parent=42 // pred_check
          _
        $region56: #{reverse.0} parent=42 // pred_check_branch
          %365 = sbr.rel (0) target = $region58
        $region57: #{reverse.0} parent=42 // pred_region
          loop: start=0, step=1, limit=1
          $region59: #{reverse.0} parent=57 // loop_pre_header
            _
          $region60: #{reverse.0} parent=57 // loop_header
            %s367 = sphi 0, %s371
            %p368 = scmp.ge.s32.totalorder %s367, 1
            %s372 = sphi [#allocation1], [#allocation1]
            %s373 = sphi %s1, %s1
          $region61: #{reverse.0} parent=57 // loop_header_branch
            %370 = sbr.rel (%p368) target = $region65
          $region62: #{reverse.0} parent=57 // loop_body
            %v374 = vld [vmem:[%s372] sm:$0xff]
            %375 = vst [vmem:[%s373] sm:$0xff] %v374
            %v376 = vld [vmem:[%s372 + $0x8] sm:$0xff]
            %377 = vst [vmem:[%s373 + $0x8] sm:$0xff] %v376
            %v378 = vld [vmem:[%s372 + $0x10] sm:$0xff]
            %379 = vst [vmem:[%s373 + $0x10] sm:$0xff] %v378
            %v380 = vld [vmem:[%s372 + $0x18] sm:$0xff]
            %381 = vst [vmem:[%s373 + $0x18] sm:$0xff] %v380
            %v382 = vld [vmem:[%s372 + $0x20] sm:$0xff]
            %383 = vst [vmem:[%s373 + $0x20] sm:$0xff] %v382
            %v384 = vld [vmem:[%s372 + $0x28] sm:$0xff]
            %385 = vst [vmem:[%s373 + $0x28] sm:$0xff] %v384
            %v386 = vld [vmem:[%s372 + $0x30] sm:$0xff]
            %387 = vst [vmem:[%s373 + $0x30] sm:$0xff] %v386
            %v388 = vld [vmem:[%s372 + $0x38] sm:$0xff]
            %389 = vst [vmem:[%s373 + $0x38] sm:$0xff] %v388
            %v390 = vld [vmem:[%s372 + $0x40] sm:$0xff]
            %391 = vst [vmem:[%s373 + $0x40] sm:$0xff] %v390
            %v392 = vld [vmem:[%s372 + $0x48] sm:$0xff]
            %393 = vst [vmem:[%s373 + $0x48] sm:$0xff] %v392
            %v394 = vld [vmem:[%s372 + $0x50] sm:$0xff]
            %395 = vst [vmem:[%s373 + $0x50] sm:$0xff] %v394
            %v396 = vld [vmem:[%s372 + $0x58] sm:$0xff]
            %397 = vst [vmem:[%s373 + $0x58] sm:$0xff] %v396
            %v398 = vld [vmem:[%s372 + $0x60] sm:$0xff]
            %399 = vst [vmem:[%s373 + $0x60] sm:$0xff] %v398
            %v400 = vld [vmem:[%s372 + $0x68] sm:$0xff]
            %401 = vst [vmem:[%s373 + $0x68] sm:$0xff] %v400
            %v402 = vld [vmem:[%s372 + $0x70] sm:$0xff]
            %403 = vst [vmem:[%s373 + $0x70] sm:$0xff] %v402
            %v404 = vld [vmem:[%s372 + $0x78] sm:$0xff]
            %405 = vst [vmem:[%s373 + $0x78] sm:$0xff] %v404
          $region63: #{reverse.0} parent=57 // loop_footer
            %s371 = sadd.s32 1, %s367
          $region64: #{reverse.0} parent=57 // loop_footer_branch
            %366 = sbr.rel target = $region60
          $region65: #{reverse.0} parent=57 // loop_exit
            _
        $region58: #{reverse.0} parent=42 // pred_fallthru
          _
        // Predicated region
        $region66: #{reverse.0} parent=42 // pred_check
          _
        $region67: #{reverse.0} parent=42 // pred_check_branch
          %407 = sbr.rel target = $region69
        $region68: #{reverse.0} parent=42 // pred_region
          _
        $region69: #{reverse.0} parent=42 // pred_fallthru
          _
      $region43: #{reverse.0} parent=38 // pred_fallthru
        _
      // Predicated region
      $region44: #{reverse.0} parent=38 // pred_check
        _
      $region45: #{reverse.0} parent=38 // pred_check_branch
        %322 = sbr.rel target = $region47
      $region46: #{reverse.0} parent=38 // pred_region
        loop: start=0, step=1, limit=1
        $region48: #{reverse.0} parent=46 // loop_pre_header
          _
        $region49: #{reverse.0} parent=46 // loop_header
          %s325 = sphi 0, %s329
          %p326 = scmp.ge.s32.totalorder %s325, 1
          %s330 = sphi [#allocation1], [#allocation1]
          %s331 = sphi %s1, %s1
        $region50: #{reverse.0} parent=46 // loop_header_branch
          %328 = sbr.rel (%p326) target = $region54
        $region51: #{reverse.0} parent=46 // loop_body
          %v332 = vld [vmem:[%s330] sm:$0xff]
          %333 = vst [vmem:[%s331] sm:$0xff] %v332
          %v334 = vld [vmem:[%s330 + $0x8] sm:$0xff]
          %335 = vst [vmem:[%s331 + $0x8] sm:$0xff] %v334
          %v336 = vld [vmem:[%s330 + $0x10] sm:$0xff]
          %337 = vst [vmem:[%s331 + $0x10] sm:$0xff] %v336
          %v338 = vld [vmem:[%s330 + $0x18] sm:$0xff]
          %339 = vst [vmem:[%s331 + $0x18] sm:$0xff] %v338
          %v340 = vld [vmem:[%s330 + $0x20] sm:$0xff]
          %341 = vst [vmem:[%s331 + $0x20] sm:$0xff] %v340
          %v342 = vld [vmem:[%s330 + $0x28] sm:$0xff]
          %343 = vst [vmem:[%s331 + $0x28] sm:$0xff] %v342
          %v344 = vld [vmem:[%s330 + $0x30] sm:$0xff]
          %345 = vst [vmem:[%s331 + $0x30] sm:$0xff] %v344
          %v346 = vld [vmem:[%s330 + $0x38] sm:$0xff]
          %347 = vst [vmem:[%s331 + $0x38] sm:$0xff] %v346
          %v348 = vld [vmem:[%s330 + $0x40] sm:$0xff]
          %349 = vst [vmem:[%s331 + $0x40] sm:$0xff] %v348
          %v350 = vld [vmem:[%s330 + $0x48] sm:$0xff]
          %351 = vst [vmem:[%s331 + $0x48] sm:$0xff] %v350
          %v352 = vld [vmem:[%s330 + $0x50] sm:$0xff]
          %353 = vst [vmem:[%s331 + $0x50] sm:$0xff] %v352
          %v354 = vld [vmem:[%s330 + $0x58] sm:$0xff]
          %355 = vst [vmem:[%s331 + $0x58] sm:$0xff] %v354
          %v356 = vld [vmem:[%s330 + $0x60] sm:$0xff]
          %357 = vst [vmem:[%s331 + $0x60] sm:$0xff] %v356
          %v358 = vld [vmem:[%s330 + $0x68] sm:$0xff]
          %359 = vst [vmem:[%s331 + $0x68] sm:$0xff] %v358
          %v360 = vld [vmem:[%s330 + $0x70] sm:$0xff]
          %361 = vst [vmem:[%s331 + $0x70] sm:$0xff] %v360
          %v362 = vld [vmem:[%s330 + $0x78] sm:$0xff]
          %363 = vst [vmem:[%s331 + $0x78] sm:$0xff] %v362
        $region52: #{reverse.0} parent=46 // loop_footer
          %s329 = sadd.s32 1, %s325
        $region53: #{reverse.0} parent=46 // loop_footer_branch
          %324 = sbr.rel target = $region49
        $region54: #{reverse.0} parent=46 // loop_exit
          _
      $region47: #{reverse.0} parent=38 // pred_fallthru
        _
    $region39: #{reverse.0} parent=1 // pred_fallthru
      _
    %408 = vnop

// kernel: double_conv_forward.8
$region0: #{double_conv_forward.8}
  #allocation0 [shape = 'u32[]', space=smem, size = 0x4, offset = 0x4, fixed_abs, tag = 'smem constant byte address 0x4 - core index']
  #allocation1 [shape = 'u32[144,128]{1,0:T(1,128)}', space=vmem, size = 0x12000, scoped, tag = 'internal scratch']
  %s0 = inlined_call_operand.vmem [shape: bf16[512,128], index: 0, kind: input, shape index: {}]
  %s1 = inlined_call_operand.vmem [shape: f32[1,128], index: 1, kind: input, shape index: {}]
  %s2 = inlined_call_operand.vmem [shape: f32[1,128], index: 2, kind: input, shape index: {}]
  %s3 = inlined_call_operand.vmem [shape: bf16[512,128], index: 3, kind: output, shape index: {}]
  %s4 = sld [smem:[#allocation0]]
  $region45: #{double_conv_forward.8} parent=0
    _
  %s6 = ssub.s32 1, %s4
  %s7 = scalar_select 0, %s6, %s4
  loop: start=0, step=1, limit=4
  $region2: #{double_conv_forward.8} parent=0 // loop_pre_header
    _
  $region3: #{double_conv_forward.8} parent=0 // loop_header
    %s9 = sphi 0, %s13
    %p10 = scmp.ge.s32.totalorder %s9, 4
    %s19 = sphi 0, %s21
    %s22 = sphi 0, %s19
    %s23 = sphi 0, %s22
    %s39 = sphi 0, %s23
    %s43 = sphi 0, %s43
    %s45 = sphi 0, %s43
    %s46 = sphi 0, %s45
    %s60 = sphi 0, %s46
    %s64 = sphi 0, %s64
    %s66 = sphi 0, %s64
    %s67 = sphi 0, %s66
    %s81 = sphi 0, %s67
    %s87 = sphi 0, %s89
    %s90 = sphi 0, %s87
    %s91 = sphi 0, %s90
    %s107 = sphi 0, %s91
  $region4: #{double_conv_forward.8} parent=0 // loop_header_branch
    %12 = sbr.rel (%p10) target = $region8
  $region5: #{double_conv_forward.8} parent=0 // loop_body
    %s14 = ssub.s32 %s9, 1
    %s15 = ssub.s32 %s9, 2
    %s16 = sadd.s32 %s9, 1
    %s17 = ssub.s32 %s9, %s16
    %p18 = scmp.eq.s32.totalorder %s17, 0
    %s20 = sadd.s32 %s19, 1
    %s21 = scalar_select %p18, %s19, %s20
    %p24 = pneg %p18
    %p25 = scmp.eq.s32.totalorder %s9, 1
    %p26 = por %p24, %p25
    %p27 = scmp.ne.s32.totalorder %s19, %s22
    %p28 = scmp.eq.s32.totalorder %s9, 0
    %p29 = por %p27, %p28
    %p30 = scmp.ne.s32.totalorder %s19, %s22
    %p31 = scmp.eq.s32.totalorder %s14, 1
    %p32 = por %p30, %p31
    %p33 = scmp.ne.s32.totalorder %s22, %s23
    %p34 = scmp.eq.s32.totalorder %s14, 0
    %p35 = por %p33, %p34
    %p36 = scmp.ne.s32.totalorder %s22, %s23
    %p37 = scmp.eq.s32.totalorder %s15, 1
    %p38 = por %p36, %p37
    %p40 = scmp.ne.s32.totalorder %s23, %s39
    %p41 = scmp.eq.s32.totalorder %s15, 0
    %p42 = por %p40, %p41
    %s44 = sadd.s32 %s43, 1
    %p47 = scmp.eq.s32.totalorder %s9, 1
    %p48 = scmp.ne.s32.totalorder %s43, %s45
    %p49 = scmp.eq.s32.totalorder %s9, 0
    %p50 = por %p48, %p49
    %p51 = scmp.ne.s32.totalorder %s43, %s45
    %p52 = scmp.eq.s32.totalorder %s14, 1
    %p53 = por %p51, %p52
    %p54 = scmp.ne.s32.totalorder %s45, %s46
    %p55 = scmp.eq.s32.totalorder %s14, 0
    %p56 = por %p54, %p55
    %p57 = scmp.ne.s32.totalorder %s45, %s46
    %p58 = scmp.eq.s32.totalorder %s15, 1
    %p59 = por %p57, %p58
    %p61 = scmp.ne.s32.totalorder %s46, %s60
    %p62 = scmp.eq.s32.totalorder %s15, 0
    %p63 = por %p61, %p62
    %s65 = sadd.s32 %s64, 1
    %p68 = scmp.eq.s32.totalorder %s9, 1
    %p69 = scmp.ne.s32.totalorder %s64, %s66
    %p70 = scmp.eq.s32.totalorder %s9, 0
    %p71 = por %p69, %p70
    %p72 = scmp.ne.s32.totalorder %s64, %s66
    %p73 = scmp.eq.s32.totalorder %s14, 1
    %p74 = por %p72, %p73
    %p75 = scmp.ne.s32.totalorder %s66, %s67
    %p76 = scmp.eq.s32.totalorder %s14, 0
    %p77 = por %p75, %p76
    %p78 = scmp.ne.s32.totalorder %s66, %s67
    %p79 = scmp.eq.s32.totalorder %s15, 1
    %p80 = por %p78, %p79
    %p82 = scmp.ne.s32.totalorder %s67, %s81
    %p83 = scmp.eq.s32.totalorder %s15, 0
    %p84 = por %p82, %p83
    %s85 = ssub.s32 %s9, %s16
    %p86 = scmp.eq.s32.totalorder %s85, 0
    %s88 = sadd.s32 %s87, 1
    %s89 = scalar_select %p86, %s87, %s88
    %p92 = pneg %p86
    %p93 = scmp.eq.s32.totalorder %s9, 1
    %p94 = por %p92, %p93
    %p95 = scmp.ne.s32.totalorder %s87, %s90
    %p96 = scmp.eq.s32.totalorder %s9, 0
    %p97 = por %p95, %p96
    %p98 = scmp.ne.s32.totalorder %s87, %s90
    %p99 = scmp.eq.s32.totalorder %s14, 1
    %p100 = por %p98, %p99
    %p101 = scmp.ne.s32.totalorder %s90, %s91
    %p102 = scmp.eq.s32.totalorder %s14, 0
    %p103 = por %p101, %p102
    %p104 = scmp.ne.s32.totalorder %s90, %s91
    %p105 = scmp.eq.s32.totalorder %s15, 1
    %p106 = por %p104, %p105
    %p108 = scmp.ne.s32.totalorder %s91, %s107
    %p109 = scmp.eq.s32.totalorder %s15, 0
    %p110 = por %p108, %p109
    %p111 = scmp.le.s32.totalorder 1, %s9
    %p112 = scmp.lt.s32.totalorder %s9, 3
    %p113 = pnand %p111, %p112
    %p114 = pneg %p113
    // Predicated region
    $region9: #{double_conv_forward.8} parent=5 // pred_check
      _
    $region10: #{double_conv_forward.8} parent=5 // pred_check_branch
      %116 = sbr.rel (%p113) target = $region12
    $region11: #{double_conv_forward.8} parent=5 // pred_region
      %s117 = ssub.s32 %s9, 1
      // Predicated region
      $region13: #{double_conv_forward.8} parent=11 // pred_check
        %p118 = pneg %p56
      $region14: #{double_conv_forward.8} parent=11 // pred_check_branch
        %120 = sbr.rel (%p118) target = $region16
      $region15: #{double_conv_forward.8} parent=11 // pred_region
        _
      $region16: #{double_conv_forward.8} parent=11 // pred_fallthru
        _
      // Predicated region
      $region17: #{double_conv_forward.8} parent=11 // pred_check
        %p121 = pneg %p77
      $region18: #{double_conv_forward.8} parent=11 // pred_check_branch
        %123 = sbr.rel (%p121) target = $region20
      $region19: #{double_conv_forward.8} parent=11 // pred_region
        _
      $region20: #{double_conv_forward.8} parent=11 // pred_fallthru
        _
    $region12: #{double_conv_forward.8} parent=5 // pred_fallthru
      _
    %p124 = scmp.lt.s32.totalorder %s9, 2
    // Predicated region
    $region21: #{double_conv_forward.8} parent=5 // pred_check
      %p125 = pneg %p124
    $region22: #{double_conv_forward.8} parent=5 // pred_check_branch
      %127 = sbr.rel (%p125) target = $region24
    $region23: #{double_conv_forward.8} parent=5 // pred_region
      // Predicated region
      $region25: #{double_conv_forward.8} parent=23 // pred_check
        %p128 = pneg %p29
      $region26: #{double_conv_forward.8} parent=23 // pred_check_branch
        %130 = sbr.rel (%p128) target = $region28
      $region27: #{double_conv_forward.8} parent=23 // pred_region
        %s131 = smul.u32 32, %s9
        %p132 = scmp.lt.s32.totalorder %s131, 63
        %s133 = scalar_select %p132, %s131, 63
        %s134 = smul.addr %s133, 4
        %s135 = scalar_lea.vmem %s0, %s134
        %s136 = smul.u32 32, %s9
      $region28: #{double_conv_forward.8} parent=23 // pred_fallthru
        _
    $region24: #{double_conv_forward.8} parent=5 // pred_fallthru
      _
    %p137 = scmp.le.s32.totalorder 1, %s9
    %p138 = scmp.lt.s32.totalorder %s9, 3
    %p139 = pnand %p137, %p138
    %p140 = pneg %p139
    // Predicated region
    $region29: #{double_conv_forward.8} parent=5 // pred_check
      _
    $region30: #{double_conv_forward.8} parent=5 // pred_check_branch
      %142 = sbr.rel (%p139) target = $region32
    $region31: #{double_conv_forward.8} parent=5 // pred_region
      %s143 = ssub.s32 %s9, 1
      %s144 = smul.u32 32, %s14
      %p145 = scmp.lt.s32.totalorder %s144, 63
      %s146 = scalar_select %p145, %s144, 63
      %s147 = smul.addr %s146, 4
      %s148 = scalar_lea.vmem %s0, %s147
      %p149 = pneg %p35
      %p150 = pneg %p32
      %p151 = pneg %p56
      %p152 = pneg %p53
      %p153 = pneg %p77
      %p154 = pneg %p74
      %p155 = pneg %p103
      %p156 = pneg %p100
      %s157 = smul.u32 32, %s14
      %p158 = scmp.lt.s32.totalorder %s157, 63
      %s159 = scalar_select %p158, %s157, 63
      %s160 = smul.addr %s159, 4
      %s161 = scalar_lea.vmem %s3, %s160
      %s162 = smul.u32 32, %s14
      %p163 = scmp.lt.s32.totalorder %s162, 63
      %s164 = scalar_select %p163, %s162, 63
      %s165 = smul.addr %s164, 4
      %s166 = scalar_lea.vmem %s0, %s165
      %s167 = smul.u32 32, %s14
      %s168 = smul.u32 32, %s14
      %p169 = scmp.lt.s32.totalorder %s168, 63
      %s170 = scalar_select %p169, %s168, 63
      %s171 = smul.addr %s170, 4
      %s172 = scalar_lea.vmem %s3, %s171
      %s173 = smul.u32 32, %s14
      %v174 = vld [vmem:[%s166] sm:$0xf]
      %v175 = vld [vmem:[%s166 + $0x4] sm:$0xf]
      %v176 = vld [vmem:[%s166 + $0x8] sm:$0xf]
      %v177 = vld [vmem:[%s166 + $0xc] sm:$0xf]
      %v178 = vld [vmem:[%s166 + $0x10] sm:$0xf]
      %v179 = vld [vmem:[%s166 + $0x14] sm:$0xf]
      %v180 = vld [vmem:[%s166 + $0x18] sm:$0xf]
      %v181 = vld [vmem:[%s166 + $0x1c] sm:$0xf]
      %v182 = vld [vmem:[%s166 + $0x20] sm:$0xf]
      %v183 = vld [vmem:[%s166 + $0x24] sm:$0xf]
      %v184 = vld [vmem:[%s166 + $0x28] sm:$0xf]
      %v185 = vld [vmem:[%s166 + $0x2c] sm:$0xf]
      %v186 = vld [vmem:[%s166 + $0x30] sm:$0xf]
      %v187 = vld [vmem:[%s166 + $0x34] sm:$0xf]
      %v188 = vld [vmem:[%s166 + $0x38] sm:$0xf]
      %v189 = vld [vmem:[%s166 + $0x3c] sm:$0xf]
      %v190 = vld [vmem:[%s166 + $0x40] sm:$0xf]
      %v191 = vld [vmem:[%s166 + $0x44] sm:$0xf]
      %v192 = vld [vmem:[%s166 + $0x48] sm:$0xf]
      %v193 = vld [vmem:[%s166 + $0x4c] sm:$0xf]
      %v194 = vld [vmem:[%s166 + $0x50] sm:$0xf]
      %v195 = vld [vmem:[%s166 + $0x54] sm:$0xf]
      %v196 = vld [vmem:[%s166 + $0x58] sm:$0xf]
      %v197 = vld [vmem:[%s166 + $0x5c] sm:$0xf]
      %v198 = vld [vmem:[%s166 + $0x60] sm:$0xf]
      %v199 = vld [vmem:[%s166 + $0x64] sm:$0xf]
      %v200 = vld [vmem:[%s166 + $0x68] sm:$0xf]
      %v201 = vld [vmem:[%s166 + $0x6c] sm:$0xf]
      %v202 = vld [vmem:[%s166 + $0x70] sm:$0xf]
      %v203 = vld [vmem:[%s166 + $0x74] sm:$0xf]
      %v204 = vld [vmem:[%s166 + $0x78] sm:$0xf]
      %v205 = vld [vmem:[%s166 + $0x7c] sm:$0xf]
      %v206 = vunpack.c.l.bf16 %v174
      %v207 = vunpack.c.l.bf16 %v175
      %v208 = vunpack.c.l.bf16 %v176
      %v209 = vunpack.c.l.bf16 %v177
      %v210 = vunpack.c.l.bf16 %v178
      %v211 = vunpack.c.l.bf16 %v179
      %v212 = vunpack.c.l.bf16 %v180
      %v213 = vunpack.c.l.bf16 %v181
      %v214 = vunpack.c.l.bf16 %v182
      %v215 = vunpack.c.l.bf16 %v183
      %v216 = vunpack.c.l.bf16 %v184
      %v217 = vunpack.c.l.bf16 %v185
      %v218 = vunpack.c.l.bf16 %v186
      %v219 = vunpack.c.l.bf16 %v187
      %v220 = vunpack.c.l.bf16 %v188
      %v221 = vunpack.c.l.bf16 %v189
      %v222 = vunpack.c.l.bf16 %v190
      %v223 = vunpack.c.l.bf16 %v191
      %v224 = vunpack.c.l.bf16 %v192
      %v225 = vunpack.c.l.bf16 %v193
      %v226 = vunpack.c.l.bf16 %v194
      %v227 = vunpack.c.l.bf16 %v195
      %v228 = vunpack.c.l.bf16 %v196
      %v229 = vunpack.c.l.bf16 %v197
      %v230 = vunpack.c.l.bf16 %v198
      %v231 = vunpack.c.l.bf16 %v199
      %v232 = vunpack.c.l.bf16 %v200
      %v233 = vunpack.c.l.bf16 %v201
      %v234 = vunpack.c.l.bf16 %v202
      %v235 = vunpack.c.l.bf16 %v203
      %v236 = vunpack.c.l.bf16 %v204
      %v237 = vunpack.c.l.bf16 %v205
      %v238 = vld [vmem:[%s1] sm:$0x1]
      %v240 = vlaneseq
      %v241 = vshrl.u32 %v240, 7
      %v242 = vsub.s32 0, %v241
      %v243 = vrot.slane %v238, %v242
      %v245 = vmul.f32 %v206, %v243
      %v246 = vmul.f32 %v207, %v243
      %v247 = vmul.f32 %v208, %v243
      %v248 = vmul.f32 %v209, %v243
      %v249 = vmul.f32 %v210, %v243
      %v250 = vmul.f32 %v211, %v243
      %v251 = vmul.f32 %v212, %v243
      %v252 = vmul.f32 %v213, %v243
      %v253 = vmul.f32 %v214, %v243
      %v254 = vmul.f32 %v215, %v243
      %v255 = vmul.f32 %v216, %v243
      %v256 = vmul.f32 %v217, %v243
      %v257 = vmul.f32 %v218, %v243
      %v258 = vmul.f32 %v219, %v243
      %v259 = vmul.f32 %v220, %v243
      %v260 = vmul.f32 %v221, %v243
      %v261 = vmul.f32 %v222, %v243
      %v262 = vmul.f32 %v223, %v243
      %v263 = vmul.f32 %v224, %v243
      %v264 = vmul.f32 %v225, %v243
      %v265 = vmul.f32 %v226, %v243
      %v266 = vmul.f32 %v227, %v243
      %v267 = vmul.f32 %v228, %v243
      %v268 = vmul.f32 %v229, %v243
      %v269 = vmul.f32 %v230, %v243
      %v270 = vmul.f32 %v231, %v243
      %v271 = vmul.f32 %v232, %v243
      %v272 = vmul.f32 %v233, %v243
      %v273 = vmul.f32 %v234, %v243
      %v274 = vmul.f32 %v235, %v243
      %v275 = vmul.f32 %v236, %v243
      %v276 = vmul.f32 %v237, %v243
      %v277 = vld [vmem:[%s2] sm:$0x1]
      %v279 = vlaneseq
      %v280 = vshrl.u32 %v279, 7
      %v281 = vsub.s32 0, %v280
      %v282 = vrot.slane %v277, %v281
      %v284 = vadd.f32 %v245, %v282
      %v285 = vadd.f32 %v246, %v282
      %v286 = vadd.f32 %v247, %v282
      %v287 = vadd.f32 %v248, %v282
      %v288 = vadd.f32 %v249, %v282
      %v289 = vadd.f32 %v250, %v282
      %v290 = vadd.f32 %v251, %v282
      %v291 = vadd.f32 %v252, %v282
      %v292 = vadd.f32 %v253, %v282
      %v293 = vadd.f32 %v254, %v282
      %v294 = vadd.f32 %v255, %v282
      %v295 = vadd.f32 %v256, %v282
      %v296 = vadd.f32 %v257, %v282
      %v297 = vadd.f32 %v258, %v282
      %v298 = vadd.f32 %v259, %v282
      %v299 = vadd.f32 %v260, %v282
      %v300 = vadd.f32 %v261, %v282
      %v301 = vadd.f32 %v262, %v282
      %v302 = vadd.f32 %v263, %v282
      %v303 = vadd.f32 %v264, %v282
      %v304 = vadd.f32 %v265, %v282
      %v305 = vadd.f32 %v266, %v282
      %v306 = vadd.f32 %v267, %v282
      %v307 = vadd.f32 %v268, %v282
      %v308 = vadd.f32 %v269, %v282
      %v309 = vadd.f32 %v270, %v282
      %v310 = vadd.f32 %v271, %v282
      %v311 = vadd.f32 %v272, %v282
      %v312 = vadd.f32 %v273, %v282
      %v313 = vadd.f32 %v274, %v282
      %v314 = vadd.f32 %v275, %v282
      %v315 = vadd.f32 %v276, %v282
      %vm316 = vcmp.gt.f32.partialorder %v284, 0.0
      %vm317 = vcmp.gt.f32.partialorder %v285, 0.0
      %vm318 = vcmp.gt.f32.partialorder %v286, 0.0
      %vm319 = vcmp.gt.f32.partialorder %v287, 0.0
      %vm320 = vcmp.gt.f32.partialorder %v288, 0.0
      %vm321 = vcmp.gt.f32.partialorder %v289, 0.0
      %vm322 = vcmp.gt.f32.partialorder %v290, 0.0
      %vm323 = vcmp.gt.f32.partialorder %v291, 0.0
      %vm324 = vcmp.gt.f32.partialorder %v292, 0.0
      %vm325 = vcmp.gt.f32.partialorder %v293, 0.0
      %vm326 = vcmp.gt.f32.partialorder %v294, 0.0
      %vm327 = vcmp.gt.f32.partialorder %v295, 0.0
      %vm328 = vcmp.gt.f32.partialorder %v296, 0.0
      %vm329 = vcmp.gt.f32.partialorder %v297, 0.0
      %vm330 = vcmp.gt.f32.partialorder %v298, 0.0
      %vm331 = vcmp.gt.f32.partialorder %v299, 0.0
      %vm332 = vcmp.gt.f32.partialorder %v300, 0.0
      %vm333 = vcmp.gt.f32.partialorder %v301, 0.0
      %vm334 = vcmp.gt.f32.partialorder %v302, 0.0
      %vm335 = vcmp.gt.f32.partialorder %v303, 0.0
      %vm336 = vcmp.gt.f32.partialorder %v304, 0.0
      %vm337 = vcmp.gt.f32.partialorder %v305, 0.0
      %vm338 = vcmp.gt.f32.partialorder %v306, 0.0
      %vm339 = vcmp.gt.f32.partialorder %v307, 0.0
      %vm340 = vcmp.gt.f32.partialorder %v308, 0.0
      %vm341 = vcmp.gt.f32.partialorder %v309, 0.0
      %vm342 = vcmp.gt.f32.partialorder %v310, 0.0
      %vm343 = vcmp.gt.f32.partialorder %v311, 0.0
      %vm344 = vcmp.gt.f32.partialorder %v312, 0.0
      %vm345 = vcmp.gt.f32.partialorder %v313, 0.0
      %vm346 = vcmp.gt.f32.partialorder %v314, 0.0
      %vm347 = vcmp.gt.f32.partialorder %v315, 0.0
      %v348 = vmul.f32 %v284, 0.01
      %v349 = vmul.f32 %v285, 0.01
      %v350 = vmul.f32 %v286, 0.01
      %v351 = vmul.f32 %v287, 0.01
      %v352 = vmul.f32 %v288, 0.01
      %v353 = vmul.f32 %v289, 0.01
      %v354 = vmul.f32 %v290, 0.01
      %v355 = vmul.f32 %v291, 0.01
      %v356 = vmul.f32 %v292, 0.01
      %v357 = vmul.f32 %v293, 0.01
      %v358 = vmul.f32 %v294, 0.01
      %v359 = vmul.f32 %v295, 0.01
      %v360 = vmul.f32 %v296, 0.01
      %v361 = vmul.f32 %v297, 0.01
      %v362 = vmul.f32 %v298, 0.01
      %v363 = vmul.f32 %v299, 0.01
      %v364 = vmul.f32 %v300, 0.01
      %v365 = vmul.f32 %v301, 0.01
      %v366 = vmul.f32 %v302, 0.01
      %v367 = vmul.f32 %v303, 0.01
      %v368 = vmul.f32 %v304, 0.01
      %v369 = vmul.f32 %v305, 0.01
      %v370 = vmul.f32 %v306, 0.01
      %v371 = vmul.f32 %v307, 0.01
      %v372 = vmul.f32 %v308, 0.01
      %v373 = vmul.f32 %v309, 0.01
      %v374 = vmul.f32 %v310, 0.01
      %v375 = vmul.f32 %v311, 0.01
      %v376 = vmul.f32 %v312, 0.01
      %v377 = vmul.f32 %v313, 0.01
      %v378 = vmul.f32 %v314, 0.01
      %v379 = vmul.f32 %v315, 0.01
      %v380 = vsel %vm316, %v284, %v348
      %v381 = vsel %vm317, %v285, %v349
      %v382 = vsel %vm318, %v286, %v350
      %v383 = vsel %vm319, %v287, %v351
      %v384 = vsel %vm320, %v288, %v352
      %v385 = vsel %vm321, %v289, %v353
      %v386 = vsel %vm322, %v290, %v354
      %v387 = vsel %vm323, %v291, %v355
      %v388 = vsel %vm324, %v292, %v356
      %v389 = vsel %vm325, %v293, %v357
      %v390 = vsel %vm326, %v294, %v358
      %v391 = vsel %vm327, %v295, %v359
      %v392 = vsel %vm328, %v296, %v360
      %v393 = vsel %vm329, %v297, %v361
      %v394 = vsel %vm330, %v298, %v362
      %v395 = vsel %vm331, %v299, %v363
      %v396 = vsel %vm332, %v300, %v364
      %v397 = vsel %vm333, %v301, %v365
      %v398 = vsel %vm334, %v302, %v366
      %v399 = vsel %vm335, %v303, %v367
      %v400 = vsel %vm336, %v304, %v368
      %v401 = vsel %vm337, %v305, %v369
      %v402 = vsel %vm338, %v306, %v370
      %v403 = vsel %vm339, %v307, %v371
      %v404 = vsel %vm340, %v308, %v372
      %v405 = vsel %vm341, %v309, %v373
      %v406 = vsel %vm342, %v310, %v374
      %v407 = vsel %vm343, %v311, %v375
      %v408 = vsel %vm344, %v312, %v376
      %v409 = vsel %vm345, %v313, %v377
      %v410 = vsel %vm346, %v314, %v378
      %v411 = vsel %vm347, %v315, %v379
      %v412 = vpack.c.bf16 %v381, %v380
      %v413 = vpack.c.bf16 %v383, %v382
      %v414 = vpack.c.bf16 %v385, %v384
      %v415 = vpack.c.bf16 %v387, %v386
      %v416 = vpack.c.bf16 %v389, %v388
      %v417 = vpack.c.bf16 %v391, %v390
      %v418 = vpack.c.bf16 %v393, %v392
      %v419 = vpack.c.bf16 %v395, %v394
      %v420 = vpack.c.bf16 %v397, %v396
      %v421 = vpack.c.bf16 %v399, %v398
      %v422 = vpack.c.bf16 %v401, %v400
      %v423 = vpack.c.bf16 %v403, %v402
      %v424 = vpack.c.bf16 %v405, %v404
      %v425 = vpack.c.bf16 %v407, %v406
      %v426 = vpack.c.bf16 %v409, %v408
      %v427 = vpack.c.bf16 %v411, %v410
      %v444 = vunpack.c.l.b16 %v412
      %v445 = vunpack.c.h.b16 %v412
      %v446 = vunpack.c.l.b16 %v413
      %v447 = vunpack.c.h.b16 %v413
      %v448 = vunpack.c.l.b16 %v414
      %v449 = vunpack.c.h.b16 %v414
      %v450 = vunpack.c.l.b16 %v415
      %v451 = vunpack.c.h.b16 %v415
      %v452 = vunpack.c.l.b16 %v416
      %v453 = vunpack.c.h.b16 %v416
      %v454 = vunpack.c.l.b16 %v417
      %v455 = vunpack.c.h.b16 %v417
      %v456 = vunpack.c.l.b16 %v418
      %v457 = vunpack.c.h.b16 %v418
      %v458 = vunpack.c.l.b16 %v419
      %v459 = vunpack.c.h.b16 %v419
      %v460 = vunpack.c.l.b16 %v420
      %v461 = vunpack.c.h.b16 %v420
      %v462 = vunpack.c.l.b16 %v421
      %v463 = vunpack.c.h.b16 %v421
      %v464 = vunpack.c.l.b16 %v422
      %v465 = vunpack.c.h.b16 %v422
      %v466 = vunpack.c.l.b16 %v423
      %v467 = vunpack.c.h.b16 %v423
      %v468 = vunpack.c.l.b16 %v424
      %v469 = vunpack.c.h.b16 %v424
      %v470 = vunpack.c.l.b16 %v425
      %v471 = vunpack.c.h.b16 %v425
      %v472 = vunpack.c.l.b16 %v426
      %v473 = vunpack.c.h.b16 %v426
      %v474 = vunpack.c.l.b16 %v427
      %v475 = vunpack.c.h.b16 %v427
      %v476 = vpack.c.b16 %v444, %v444
      %v477 = vpack.c.b16 %v445, %v445
      %v478 = vpack.c.b16 %v446, %v446
      %v479 = vpack.c.b16 %v447, %v447
      %v480 = vpack.c.b16 %v448, %v448
      %v481 = vpack.c.b16 %v449, %v449
      %v482 = vpack.c.b16 %v450, %v450
      %v483 = vpack.c.b16 %v451, %v451
      %v484 = vpack.c.b16 %v452, %v452
      %v485 = vpack.c.b16 %v453, %v453
      %v486 = vpack.c.b16 %v454, %v454
      %v487 = vpack.c.b16 %v455, %v455
      %v488 = vpack.c.b16 %v456, %v456
      %v489 = vpack.c.b16 %v457, %v457
      %v490 = vpack.c.b16 %v458, %v458
      %v491 = vpack.c.b16 %v459, %v459
      %v492 = vpack.c.b16 %v460, %v460
      %v493 = vpack.c.b16 %v461, %v461
      %v494 = vpack.c.b16 %v462, %v462
      %v495 = vpack.c.b16 %v463, %v463
      %v496 = vpack.c.b16 %v464, %v464
      %v497 = vpack.c.b16 %v465, %v465
      %v498 = vpack.c.b16 %v466, %v466
      %v499 = vpack.c.b16 %v467, %v467
      %v500 = vpack.c.b16 %v468, %v468
      %v501 = vpack.c.b16 %v469, %v469
      %v502 = vpack.c.b16 %v470, %v470
      %v503 = vpack.c.b16 %v471, %v471
      %v504 = vpack.c.b16 %v472, %v472
      %v505 = vpack.c.b16 %v473, %v473
      %v506 = vpack.c.b16 %v474, %v474
      %v507 = vpack.c.b16 %v475, %v475
      %540 = vst [vmem:[%s172] sm:$0xf] %v476
      %541 = vst [vmem:[%s172 + $0x4] sm:$0xf] %v477
      %542 = vst [vmem:[%s172 + $0x8] sm:$0xf] %v478
      %543 = vst [vmem:[%s172 + $0xc] sm:$0xf] %v479
      %544 = vst [vmem:[%s172 + $0x10] sm:$0xf] %v480
      %545 = vst [vmem:[%s172 + $0x14] sm:$0xf] %v481
      %546 = vst [vmem:[%s172 + $0x18] sm:$0xf] %v482
      %547 = vst [vmem:[%s172 + $0x1c] sm:$0xf] %v483
      %548 = vst [vmem:[%s172 + $0x20] sm:$0xf] %v484
      %549 = vst [vmem:[%s172 + $0x24] sm:$0xf] %v485
      %550 = vst [vmem:[%s172 + $0x28] sm:$0xf] %v486
      %551 = vst [vmem:[%s172 + $0x2c] sm:$0xf] %v487
      %552 = vst [vmem:[%s172 + $0x30] sm:$0xf] %v488
      %553 = vst [vmem:[%s172 + $0x34] sm:$0xf] %v489
      %554 = vst [vmem:[%s172 + $0x38] sm:$0xf] %v490
      %555 = vst [vmem:[%s172 + $0x3c] sm:$0xf] %v491
      %556 = vst [vmem:[%s172 + $0x40] sm:$0xf] %v492
      %557 = vst [vmem:[%s172 + $0x44] sm:$0xf] %v493
      %558 = vst [vmem:[%s172 + $0x48] sm:$0xf] %v494
      %559 = vst [vmem:[%s172 + $0x4c] sm:$0xf] %v495
      %560 = vst [vmem:[%s172 + $0x50] sm:$0xf] %v496
      %561 = vst [vmem:[%s172 + $0x54] sm:$0xf] %v497
      %562 = vst [vmem:[%s172 + $0x58] sm:$0xf] %v498
      %563 = vst [vmem:[%s172 + $0x5c] sm:$0xf] %v499
      %564 = vst [vmem:[%s172 + $0x60] sm:$0xf] %v500
      %565 = vst [vmem:[%s172 + $0x64] sm:$0xf] %v501
      %566 = vst [vmem:[%s172 + $0x68] sm:$0xf] %v502
      %567 = vst [vmem:[%s172 + $0x6c] sm:$0xf] %v503
      %568 = vst [vmem:[%s172 + $0x70] sm:$0xf] %v504
      %569 = vst [vmem:[%s172 + $0x74] sm:$0xf] %v505
      %570 = vst [vmem:[%s172 + $0x78] sm:$0xf] %v506
      %571 = vst [vmem:[%s172 + $0x7c] sm:$0xf] %v507
      %s572 = smul.u32 32, %s14
      %p573 = scmp.lt.s32.totalorder %s572, 63
      %s574 = scalar_select %p573, %s572, 63
      %s575 = smul.addr %s574, 4
      %s576 = scalar_lea.vmem %s3, %s575
      // Predicated region
      $region33: #{double_conv_forward.8} parent=31 // pred_check
        %p577 = pneg %p100
      $region34: #{double_conv_forward.8} parent=31 // pred_check_branch
        %579 = sbr.rel (%p577) target = $region36
      $region35: #{double_conv_forward.8} parent=31 // pred_region
        %s580 = smul.u32 32, %s14
      $region36: #{double_conv_forward.8} parent=31 // pred_fallthru
        _
    $region32: #{double_conv_forward.8} parent=5 // pred_fallthru
      _
    %p581 = scmp.le.s32.totalorder 2, %s9
    // Predicated region
    $region37: #{double_conv_forward.8} parent=5 // pred_check
      %p582 = pneg %p581
    $region38: #{double_conv_forward.8} parent=5 // pred_check_branch
      %584 = sbr.rel (%p582) target = $region40
    $region39: #{double_conv_forward.8} parent=5 // pred_region
      %s585 = ssub.s32 %s9, 2
      // Predicated region
      $region41: #{double_conv_forward.8} parent=39 // pred_check
        %p586 = pneg %p106
      $region42: #{double_conv_forward.8} parent=39 // pred_check_branch
        %588 = sbr.rel (%p586) target = $region44
      $region43: #{double_conv_forward.8} parent=39 // pred_region
        %s589 = smul.u32 32, %s15
        %p590 = scmp.lt.s32.totalorder %s589, 63
        %s591 = scalar_select %p590, %s589, 63
        %s592 = smul.addr %s591, 4
        %s593 = scalar_lea.vmem %s3, %s592
      $region44: #{double_conv_forward.8} parent=39 // pred_fallthru
        _
    $region40: #{double_conv_forward.8} parent=5 // pred_fallthru
      _
  $region6: #{double_conv_forward.8} parent=0 // loop_footer
    %s13 = sadd.s32 1, %s9
  $region7: #{double_conv_forward.8} parent=0 // loop_footer_branch
    %8 = sbr.rel target = $region3
  $region8: #{double_conv_forward.8} parent=0 // loop_exit
    _

// kernel: double_conv_forward.13
$region0: #{double_conv_forward.13}
  #allocation0 [shape = 'u32[]', space=smem, size = 0x4, offset = 0x4, fixed_abs, tag = 'smem constant byte address 0x4 - core index']
  #allocation1 [shape = 'u32[144,128]{1,0:T(1,128)}', space=vmem, size = 0x12000, scoped, tag = 'internal scratch']
  %s0 = inlined_call_operand.vmem [shape: bf16[512,128], index: 0, kind: input, shape index: {}]
  %s1 = inlined_call_operand.vmem [shape: f32[1,128], index: 1, kind: input, shape index: {}]
  %s2 = inlined_call_operand.vmem [shape: f32[1,128], index: 2, kind: input, shape index: {}]
  %s3 = inlined_call_operand.vmem [shape: f32[512,128], index: 3, kind: input, shape index: {}]
  %s4 = inlined_call_operand.vmem [shape: f32[512,128], index: 4, kind: output, shape index: {}]
  %s5 = sld [smem:[#allocation0]]
  $region49: #{double_conv_forward.13} parent=0
    _
  %s7 = ssub.s32 1, %s5
  %s8 = scalar_select 0, %s7, %s5
  loop: start=0, step=1, limit=4
  $region2: #{double_conv_forward.13} parent=0 // loop_pre_header
    _
  $region3: #{double_conv_forward.13} parent=0 // loop_header
    %s10 = sphi 0, %s14
    %p11 = scmp.ge.s32.totalorder %s10, 4
    %s20 = sphi 0, %s22
    %s23 = sphi 0, %s20
    %s24 = sphi 0, %s23
    %s40 = sphi 0, %s24
    %s44 = sphi 0, %s44
    %s46 = sphi 0, %s44
    %s47 = sphi 0, %s46
    %s61 = sphi 0, %s47
    %s65 = sphi 0, %s65
    %s67 = sphi 0, %s65
    %s68 = sphi 0, %s67
    %s82 = sphi 0, %s68
    %s88 = sphi 0, %s90
    %s91 = sphi 0, %s88
    %s92 = sphi 0, %s91
    %s108 = sphi 0, %s92
    %s114 = sphi 0, %s116
    %s117 = sphi 0, %s114
    %s118 = sphi 0, %s117
    %s134 = sphi 0, %s118
  $region4: #{double_conv_forward.13} parent=0 // loop_header_branch
    %13 = sbr.rel (%p11) target = $region8
  $region5: #{double_conv_forward.13} parent=0 // loop_body
    %s15 = ssub.s32 %s10, 1
    %s16 = ssub.s32 %s10, 2
    %s17 = sadd.s32 %s10, 1
    %s18 = ssub.s32 %s10, %s17
    %p19 = scmp.eq.s32.totalorder %s18, 0
    %s21 = sadd.s32 %s20, 1
    %s22 = scalar_select %p19, %s20, %s21
    %p25 = pneg %p19
    %p26 = scmp.eq.s32.totalorder %s10, 1
    %p27 = por %p25, %p26
    %p28 = scmp.ne.s32.totalorder %s20, %s23
    %p29 = scmp.eq.s32.totalorder %s10, 0
    %p30 = por %p28, %p29
    %p31 = scmp.ne.s32.totalorder %s20, %s23
    %p32 = scmp.eq.s32.totalorder %s15, 1
    %p33 = por %p31, %p32
    %p34 = scmp.ne.s32.totalorder %s23, %s24
    %p35 = scmp.eq.s32.totalorder %s15, 0
    %p36 = por %p34, %p35
    %p37 = scmp.ne.s32.totalorder %s23, %s24
    %p38 = scmp.eq.s32.totalorder %s16, 1
    %p39 = por %p37, %p38
    %p41 = scmp.ne.s32.totalorder %s24, %s40
    %p42 = scmp.eq.s32.totalorder %s16, 0
    %p43 = por %p41, %p42
    %s45 = sadd.s32 %s44, 1
    %p48 = scmp.eq.s32.totalorder %s10, 1
    %p49 = scmp.ne.s32.totalorder %s44, %s46
    %p50 = scmp.eq.s32.totalorder %s10, 0
    %p51 = por %p49, %p50
    %p52 = scmp.ne.s32.totalorder %s44, %s46
    %p53 = scmp.eq.s32.totalorder %s15, 1
    %p54 = por %p52, %p53
    %p55 = scmp.ne.s32.totalorder %s46, %s47
    %p56 = scmp.eq.s32.totalorder %s15, 0
    %p57 = por %p55, %p56
    %p58 = scmp.ne.s32.totalorder %s46, %s47
    %p59 = scmp.eq.s32.totalorder %s16, 1
    %p60 = por %p58, %p59
    %p62 = scmp.ne.s32.totalorder %s47, %s61
    %p63 = scmp.eq.s32.totalorder %s16, 0
    %p64 = por %p62, %p63
    %s66 = sadd.s32 %s65, 1
    %p69 = scmp.eq.s32.totalorder %s10, 1
    %p70 = scmp.ne.s32.totalorder %s65, %s67
    %p71 = scmp.eq.s32.totalorder %s10, 0
    %p72 = por %p70, %p71
    %p73 = scmp.ne.s32.totalorder %s65, %s67
    %p74 = scmp.eq.s32.totalorder %s15, 1
    %p75 = por %p73, %p74
    %p76 = scmp.ne.s32.totalorder %s67, %s68
    %p77 = scmp.eq.s32.totalorder %s15, 0
    %p78 = por %p76, %p77
    %p79 = scmp.ne.s32.totalorder %s67, %s68
    %p80 = scmp.eq.s32.totalorder %s16, 1
    %p81 = por %p79, %p80
    %p83 = scmp.ne.s32.totalorder %s68, %s82
    %p84 = scmp.eq.s32.totalorder %s16, 0
    %p85 = por %p83, %p84
    %s86 = ssub.s32 %s10, %s17
    %p87 = scmp.eq.s32.totalorder %s86, 0
    %s89 = sadd.s32 %s88, 1
    %s90 = scalar_select %p87, %s88, %s89
    %p93 = pneg %p87
    %p94 = scmp.eq.s32.totalorder %s10, 1
    %p95 = por %p93, %p94
    %p96 = scmp.ne.s32.totalorder %s88, %s91
    %p97 = scmp.eq.s32.totalorder %s10, 0
    %p98 = por %p96, %p97
    %p99 = scmp.ne.s32.totalorder %s88, %s91
    %p100 = scmp.eq.s32.totalorder %s15, 1
    %p101 = por %p99, %p100
    %p102 = scmp.ne.s32.totalorder %s91, %s92
    %p103 = scmp.eq.s32.totalorder %s15, 0
    %p104 = por %p102, %p103
    %p105 = scmp.ne.s32.totalorder %s91, %s92
    %p106 = scmp.eq.s32.totalorder %s16, 1
    %p107 = por %p105, %p106
    %p109 = scmp.ne.s32.totalorder %s92, %s108
    %p110 = scmp.eq.s32.totalorder %s16, 0
    %p111 = por %p109, %p110
    %s112 = ssub.s32 %s10, %s17
    %p113 = scmp.eq.s32.totalorder %s112, 0
    %s115 = sadd.s32 %s114, 1
    %s116 = scalar_select %p113, %s114, %s115
    %p119 = pneg %p113
    %p120 = scmp.eq.s32.totalorder %s10, 1
    %p121 = por %p119, %p120
    %p122 = scmp.ne.s32.totalorder %s114, %s117
    %p123 = scmp.eq.s32.totalorder %s10, 0
    %p124 = por %p122, %p123
    %p125 = scmp.ne.s32.totalorder %s114, %s117
    %p126 = scmp.eq.s32.totalorder %s15, 1
    %p127 = por %p125, %p126
    %p128 = scmp.ne.s32.totalorder %s117, %s118
    %p129 = scmp.eq.s32.totalorder %s15, 0
    %p130 = por %p128, %p129
    %p131 = scmp.ne.s32.totalorder %s117, %s118
    %p132 = scmp.eq.s32.totalorder %s16, 1
    %p133 = por %p131, %p132
    %p135 = scmp.ne.s32.totalorder %s118, %s134
    %p136 = scmp.eq.s32.totalorder %s16, 0
    %p137 = por %p135, %p136
    %p138 = scmp.le.s32.totalorder 1, %s10
    %p139 = scmp.lt.s32.totalorder %s10, 3
    %p140 = pnand %p138, %p139
    %p141 = pneg %p140
    // Predicated region
    $region9: #{double_conv_forward.13} parent=5 // pred_check
      _
    $region10: #{double_conv_forward.13} parent=5 // pred_check_branch
      %143 = sbr.rel (%p140) target = $region12
    $region11: #{double_conv_forward.13} parent=5 // pred_region
      %s144 = ssub.s32 %s10, 1
      // Predicated region
      $region13: #{double_conv_forward.13} parent=11 // pred_check
        %p145 = pneg %p57
      $region14: #{double_conv_forward.13} parent=11 // pred_check_branch
        %147 = sbr.rel (%p145) target = $region16
      $region15: #{double_conv_forward.13} parent=11 // pred_region
        _
      $region16: #{double_conv_forward.13} parent=11 // pred_fallthru
        _
      // Predicated region
      $region17: #{double_conv_forward.13} parent=11 // pred_check
        %p148 = pneg %p78
      $region18: #{double_conv_forward.13} parent=11 // pred_check_branch
        %150 = sbr.rel (%p148) target = $region20
      $region19: #{double_conv_forward.13} parent=11 // pred_region
        _
      $region20: #{double_conv_forward.13} parent=11 // pred_fallthru
        _
    $region12: #{double_conv_forward.13} parent=5 // pred_fallthru
      _
    %p151 = scmp.lt.s32.totalorder %s10, 2
    // Predicated region
    $region21: #{double_conv_forward.13} parent=5 // pred_check
      %p152 = pneg %p151
    $region22: #{double_conv_forward.13} parent=5 // pred_check_branch
      %154 = sbr.rel (%p152) target = $region24
    $region23: #{double_conv_forward.13} parent=5 // pred_region
      // Predicated region
      $region25: #{double_conv_forward.13} parent=23 // pred_check
        %p155 = pneg %p30
      $region26: #{double_conv_forward.13} parent=23 // pred_check_branch
        %157 = sbr.rel (%p155) target = $region28
      $region27: #{double_conv_forward.13} parent=23 // pred_region
        %s158 = smul.u32 32, %s10
        %p159 = scmp.lt.s32.totalorder %s158, 63
        %s160 = scalar_select %p159, %s158, 63
        %s161 = smul.addr %s160, 4
        %s162 = scalar_lea.vmem %s0, %s161
        %s163 = smul.u32 32, %s10
      $region28: #{double_conv_forward.13} parent=23 // pred_fallthru
        _
      // Predicated region
      $region29: #{double_conv_forward.13} parent=23 // pred_check
        %p164 = pneg %p98
      $region30: #{double_conv_forward.13} parent=23 // pred_check_branch
        %166 = sbr.rel (%p164) target = $region32
      $region31: #{double_conv_forward.13} parent=23 // pred_region
        %s167 = smul.u32 32, %s10
        %p168 = scmp.lt.s32.totalorder %s167, 63
        %s169 = scalar_select %p168, %s167, 63
        %s170 = smul.addr %s169, 8
        %s171 = scalar_lea.vmem %s3, %s170
        %s172 = smul.u32 32, %s10
      $region32: #{double_conv_forward.13} parent=23 // pred_fallthru
        _
    $region24: #{double_conv_forward.13} parent=5 // pred_fallthru
      _
    %p173 = scmp.le.s32.totalorder 1, %s10
    %p174 = scmp.lt.s32.totalorder %s10, 3
    %p175 = pnand %p173, %p174
    %p176 = pneg %p175
    // Predicated region
    $region33: #{double_conv_forward.13} parent=5 // pred_check
      _
    $region34: #{double_conv_forward.13} parent=5 // pred_check_branch
      %178 = sbr.rel (%p175) target = $region36
    $region35: #{double_conv_forward.13} parent=5 // pred_region
      %s179 = ssub.s32 %s10, 1
      %s180 = smul.u32 32, %s15
      %p181 = scmp.lt.s32.totalorder %s180, 63
      %s182 = scalar_select %p181, %s180, 63
      %s183 = smul.addr %s182, 4
      %s184 = scalar_lea.vmem %s0, %s183
      %p185 = pneg %p36
      %p186 = pneg %p33
      %p187 = pneg %p57
      %p188 = pneg %p54
      %p189 = pneg %p78
      %p190 = pneg %p75
      %s191 = smul.u32 32, %s15
      %p192 = scmp.lt.s32.totalorder %s191, 63
      %s193 = scalar_select %p192, %s191, 63
      %s194 = smul.addr %s193, 8
      %s195 = scalar_lea.vmem %s3, %s194
      %p196 = pneg %p104
      %p197 = pneg %p101
      %p198 = pneg %p130
      %p199 = pneg %p127
      %s200 = smul.u32 32, %s15
      %p201 = scmp.lt.s32.totalorder %s200, 63
      %s202 = scalar_select %p201, %s200, 63
      %s203 = smul.addr %s202, 8
      %s204 = scalar_lea.vmem %s4, %s203
      %s205 = smul.u32 32, %s15
      %p206 = scmp.lt.s32.totalorder %s205, 63
      %s207 = scalar_select %p206, %s205, 63
      %s208 = smul.addr %s207, 4
      %s209 = scalar_lea.vmem %s0, %s208
      %s210 = smul.u32 32, %s15
      %s211 = smul.u32 32, %s15
      %p212 = scmp.lt.s32.totalorder %s211, 63
      %s213 = scalar_select %p212, %s211, 63
      %s214 = smul.addr %s213, 8
      %s215 = scalar_lea.vmem %s3, %s214
      %s216 = smul.u32 32, %s15
      %s217 = smul.u32 32, %s15
      %p218 = scmp.lt.s32.totalorder %s217, 63
      %s219 = scalar_select %p218, %s217, 63
      %s220 = smul.addr %s219, 8
      %s221 = scalar_lea.vmem %s4, %s220
      %s222 = smul.u32 32, %s15
      %v223 = vld [vmem:[%s209] sm:$0xf]
      %v224 = vld [vmem:[%s209 + $0x4] sm:$0xf]
      %v225 = vld [vmem:[%s209 + $0x8] sm:$0xf]
      %v226 = vld [vmem:[%s209 + $0xc] sm:$0xf]
      %v227 = vld [vmem:[%s209 + $0x10] sm:$0xf]
      %v228 = vld [vmem:[%s209 + $0x14] sm:$0xf]
      %v229 = vld [vmem:[%s209 + $0x18] sm:$0xf]
      %v230 = vld [vmem:[%s209 + $0x1c] sm:$0xf]
      %v231 = vld [vmem:[%s209 + $0x20] sm:$0xf]
      %v232 = vld [vmem:[%s209 + $0x24] sm:$0xf]
      %v233 = vld [vmem:[%s209 + $0x28] sm:$0xf]
      %v234 = vld [vmem:[%s209 + $0x2c] sm:$0xf]
      %v235 = vld [vmem:[%s209 + $0x30] sm:$0xf]
      %v236 = vld [vmem:[%s209 + $0x34] sm:$0xf]
      %v237 = vld [vmem:[%s209 + $0x38] sm:$0xf]
      %v238 = vld [vmem:[%s209 + $0x3c] sm:$0xf]
      %v239 = vld [vmem:[%s209 + $0x40] sm:$0xf]
      %v240 = vld [vmem:[%s209 + $0x44] sm:$0xf]
      %v241 = vld [vmem:[%s209 + $0x48] sm:$0xf]
      %v242 = vld [vmem:[%s209 + $0x4c] sm:$0xf]
      %v243 = vld [vmem:[%s209 + $0x50] sm:$0xf]
      %v244 = vld [vmem:[%s209 + $0x54] sm:$0xf]
      %v245 = vld [vmem:[%s209 + $0x58] sm:$0xf]
      %v246 = vld [vmem:[%s209 + $0x5c] sm:$0xf]
      %v247 = vld [vmem:[%s209 + $0x60] sm:$0xf]
      %v248 = vld [vmem:[%s209 + $0x64] sm:$0xf]
      %v249 = vld [vmem:[%s209 + $0x68] sm:$0xf]
      %v250 = vld [vmem:[%s209 + $0x6c] sm:$0xf]
      %v251 = vld [vmem:[%s209 + $0x70] sm:$0xf]
      %v252 = vld [vmem:[%s209 + $0x74] sm:$0xf]
      %v253 = vld [vmem:[%s209 + $0x78] sm:$0xf]
      %v254 = vld [vmem:[%s209 + $0x7c] sm:$0xf]
      %v255 = vunpack.c.l.bf16 %v223
      %v256 = vunpack.c.l.bf16 %v224
      %v257 = vunpack.c.l.bf16 %v225
      %v258 = vunpack.c.l.bf16 %v226
      %v259 = vunpack.c.l.bf16 %v227
      %v260 = vunpack.c.l.bf16 %v228
      %v261 = vunpack.c.l.bf16 %v229
      %v262 = vunpack.c.l.bf16 %v230
      %v263 = vunpack.c.l.bf16 %v231
      %v264 = vunpack.c.l.bf16 %v232
      %v265 = vunpack.c.l.bf16 %v233
      %v266 = vunpack.c.l.bf16 %v234
      %v267 = vunpack.c.l.bf16 %v235
      %v268 = vunpack.c.l.bf16 %v236
      %v269 = vunpack.c.l.bf16 %v237
      %v270 = vunpack.c.l.bf16 %v238
      %v271 = vunpack.c.l.bf16 %v239
      %v272 = vunpack.c.l.bf16 %v240
      %v273 = vunpack.c.l.bf16 %v241
      %v274 = vunpack.c.l.bf16 %v242
      %v275 = vunpack.c.l.bf16 %v243
      %v276 = vunpack.c.l.bf16 %v244
      %v277 = vunpack.c.l.bf16 %v245
      %v278 = vunpack.c.l.bf16 %v246
      %v279 = vunpack.c.l.bf16 %v247
      %v280 = vunpack.c.l.bf16 %v248
      %v281 = vunpack.c.l.bf16 %v249
      %v282 = vunpack.c.l.bf16 %v250
      %v283 = vunpack.c.l.bf16 %v251
      %v284 = vunpack.c.l.bf16 %v252
      %v285 = vunpack.c.l.bf16 %v253
      %v286 = vunpack.c.l.bf16 %v254
      %v287 = vld [vmem:[%s1] sm:$0x1]
      %v289 = vlaneseq
      %v290 = vshrl.u32 %v289, 7
      %v291 = vsub.s32 0, %v290
      %v292 = vrot.slane %v287, %v291
      %v294 = vmul.f32 %v255, %v292
      %v295 = vmul.f32 %v256, %v292
      %v296 = vmul.f32 %v257, %v292
      %v297 = vmul.f32 %v258, %v292
      %v298 = vmul.f32 %v259, %v292
      %v299 = vmul.f32 %v260, %v292
      %v300 = vmul.f32 %v261, %v292
      %v301 = vmul.f32 %v262, %v292
      %v302 = vmul.f32 %v263, %v292
      %v303 = vmul.f32 %v264, %v292
      %v304 = vmul.f32 %v265, %v292
      %v305 = vmul.f32 %v266, %v292
      %v306 = vmul.f32 %v267, %v292
      %v307 = vmul.f32 %v268, %v292
      %v308 = vmul.f32 %v269, %v292
      %v309 = vmul.f32 %v270, %v292
      %v310 = vmul.f32 %v271, %v292
      %v311 = vmul.f32 %v272, %v292
      %v312 = vmul.f32 %v273, %v292
      %v313 = vmul.f32 %v274, %v292
      %v314 = vmul.f32 %v275, %v292
      %v315 = vmul.f32 %v276, %v292
      %v316 = vmul.f32 %v277, %v292
      %v317 = vmul.f32 %v278, %v292
      %v318 = vmul.f32 %v279, %v292
      %v319 = vmul.f32 %v280, %v292
      %v320 = vmul.f32 %v281, %v292
      %v321 = vmul.f32 %v282, %v292
      %v322 = vmul.f32 %v283, %v292
      %v323 = vmul.f32 %v284, %v292
      %v324 = vmul.f32 %v285, %v292
      %v325 = vmul.f32 %v286, %v292
      %v326 = vld [vmem:[%s2] sm:$0x1]
      %v328 = vlaneseq
      %v329 = vshrl.u32 %v328, 7
      %v330 = vsub.s32 0, %v329
      %v331 = vrot.slane %v326, %v330
      %v333 = vadd.f32 %v294, %v331
      %v334 = vadd.f32 %v295, %v331
      %v335 = vadd.f32 %v296, %v331
      %v336 = vadd.f32 %v297, %v331
      %v337 = vadd.f32 %v298, %v331
      %v338 = vadd.f32 %v299, %v331
      %v339 = vadd.f32 %v300, %v331
      %v340 = vadd.f32 %v301, %v331
      %v341 = vadd.f32 %v302, %v331
      %v342 = vadd.f32 %v303, %v331
      %v343 = vadd.f32 %v304, %v331
      %v344 = vadd.f32 %v305, %v331
      %v345 = vadd.f32 %v306, %v331
      %v346 = vadd.f32 %v307, %v331
      %v347 = vadd.f32 %v308, %v331
      %v348 = vadd.f32 %v309, %v331
      %v349 = vadd.f32 %v310, %v331
      %v350 = vadd.f32 %v311, %v331
      %v351 = vadd.f32 %v312, %v331
      %v352 = vadd.f32 %v313, %v331
      %v353 = vadd.f32 %v314, %v331
      %v354 = vadd.f32 %v315, %v331
      %v355 = vadd.f32 %v316, %v331
      %v356 = vadd.f32 %v317, %v331
      %v357 = vadd.f32 %v318, %v331
      %v358 = vadd.f32 %v319, %v331
      %v359 = vadd.f32 %v320, %v331
      %v360 = vadd.f32 %v321, %v331
      %v361 = vadd.f32 %v322, %v331
      %v362 = vadd.f32 %v323, %v331
      %v363 = vadd.f32 %v324, %v331
      %v364 = vadd.f32 %v325, %v331
      %vm365 = vcmp.gt.f32.partialorder %v333, 0.0
      %vm366 = vcmp.gt.f32.partialorder %v334, 0.0
      %vm367 = vcmp.gt.f32.partialorder %v335, 0.0
      %vm368 = vcmp.gt.f32.partialorder %v336, 0.0
      %vm369 = vcmp.gt.f32.partialorder %v337, 0.0
      %vm370 = vcmp.gt.f32.partialorder %v338, 0.0
      %vm371 = vcmp.gt.f32.partialorder %v339, 0.0
      %vm372 = vcmp.gt.f32.partialorder %v340, 0.0
      %vm373 = vcmp.gt.f32.partialorder %v341, 0.0
      %vm374 = vcmp.gt.f32.partialorder %v342, 0.0
      %vm375 = vcmp.gt.f32.partialorder %v343, 0.0
      %vm376 = vcmp.gt.f32.partialorder %v344, 0.0
      %vm377 = vcmp.gt.f32.partialorder %v345, 0.0
      %vm378 = vcmp.gt.f32.partialorder %v346, 0.0
      %vm379 = vcmp.gt.f32.partialorder %v347, 0.0
      %vm380 = vcmp.gt.f32.partialorder %v348, 0.0
      %vm381 = vcmp.gt.f32.partialorder %v349, 0.0
      %vm382 = vcmp.gt.f32.partialorder %v350, 0.0
      %vm383 = vcmp.gt.f32.partialorder %v351, 0.0
      %vm384 = vcmp.gt.f32.partialorder %v352, 0.0
      %vm385 = vcmp.gt.f32.partialorder %v353, 0.0
      %vm386 = vcmp.gt.f32.partialorder %v354, 0.0
      %vm387 = vcmp.gt.f32.partialorder %v355, 0.0
      %vm388 = vcmp.gt.f32.partialorder %v356, 0.0
      %vm389 = vcmp.gt.f32.partialorder %v357, 0.0
      %vm390 = vcmp.gt.f32.partialorder %v358, 0.0
      %vm391 = vcmp.gt.f32.partialorder %v359, 0.0
      %vm392 = vcmp.gt.f32.partialorder %v360, 0.0
      %vm393 = vcmp.gt.f32.partialorder %v361, 0.0
      %vm394 = vcmp.gt.f32.partialorder %v362, 0.0
      %vm395 = vcmp.gt.f32.partialorder %v363, 0.0
      %vm396 = vcmp.gt.f32.partialorder %v364, 0.0
      %v397 = vmul.f32 %v333, 0.01
      %v398 = vmul.f32 %v334, 0.01
      %v399 = vmul.f32 %v335, 0.01
      %v400 = vmul.f32 %v336, 0.01
      %v401 = vmul.f32 %v337, 0.01
      %v402 = vmul.f32 %v338, 0.01
      %v403 = vmul.f32 %v339, 0.01
      %v404 = vmul.f32 %v340, 0.01
      %v405 = vmul.f32 %v341, 0.01
      %v406 = vmul.f32 %v342, 0.01
      %v407 = vmul.f32 %v343, 0.01
      %v408 = vmul.f32 %v344, 0.01
      %v409 = vmul.f32 %v345, 0.01
      %v410 = vmul.f32 %v346, 0.01
      %v411 = vmul.f32 %v347, 0.01
      %v412 = vmul.f32 %v348, 0.01
      %v413 = vmul.f32 %v349, 0.01
      %v414 = vmul.f32 %v350, 0.01
      %v415 = vmul.f32 %v351, 0.01
      %v416 = vmul.f32 %v352, 0.01
      %v417 = vmul.f32 %v353, 0.01
      %v418 = vmul.f32 %v354, 0.01
      %v419 = vmul.f32 %v355, 0.01
      %v420 = vmul.f32 %v356, 0.01
      %v421 = vmul.f32 %v357, 0.01
      %v422 = vmul.f32 %v358, 0.01
      %v423 = vmul.f32 %v359, 0.01
      %v424 = vmul.f32 %v360, 0.01
      %v425 = vmul.f32 %v361, 0.01
      %v426 = vmul.f32 %v362, 0.01
      %v427 = vmul.f32 %v363, 0.01
      %v428 = vmul.f32 %v364, 0.01
      %v429 = vsel %vm365, %v333, %v397
      %v430 = vsel %vm366, %v334, %v398
      %v431 = vsel %vm367, %v335, %v399
      %v432 = vsel %vm368, %v336, %v400
      %v433 = vsel %vm369, %v337, %v401
      %v434 = vsel %vm370, %v338, %v402
      %v435 = vsel %vm371, %v339, %v403
      %v436 = vsel %vm372, %v340, %v404
      %v437 = vsel %vm373, %v341, %v405
      %v438 = vsel %vm374, %v342, %v406
      %v439 = vsel %vm375, %v343, %v407
      %v440 = vsel %vm376, %v344, %v408
      %v441 = vsel %vm377, %v345, %v409
      %v442 = vsel %vm378, %v346, %v410
      %v443 = vsel %vm379, %v347, %v411
      %v444 = vsel %vm380, %v348, %v412
      %v445 = vsel %vm381, %v349, %v413
      %v446 = vsel %vm382, %v350, %v414
      %v447 = vsel %vm383, %v351, %v415
      %v448 = vsel %vm384, %v352, %v416
      %v449 = vsel %vm385, %v353, %v417
      %v450 = vsel %vm386, %v354, %v418
      %v451 = vsel %vm387, %v355, %v419
      %v452 = vsel %vm388, %v356, %v420
      %v453 = vsel %vm389, %v357, %v421
      %v454 = vsel %vm390, %v358, %v422
      %v455 = vsel %vm391, %v359, %v423
      %v456 = vsel %vm392, %v360, %v424
      %v457 = vsel %vm393, %v361, %v425
      %v458 = vsel %vm394, %v362, %v426
      %v459 = vsel %vm395, %v363, %v427
      %v460 = vsel %vm396, %v364, %v428
      %v461 = vld [vmem:[%s215] sm:$0xff]
      %v462 = vld [vmem:[%s215 + $0x8] sm:$0xff]
      %v463 = vld [vmem:[%s215 + $0x10] sm:$0xff]
      %v464 = vld [vmem:[%s215 + $0x18] sm:$0xff]
      %v465 = vld [vmem:[%s215 + $0x20] sm:$0xff]
      %v466 = vld [vmem:[%s215 + $0x28] sm:$0xff]
      %v467 = vld [vmem:[%s215 + $0x30] sm:$0xff]
      %v468 = vld [vmem:[%s215 + $0x38] sm:$0xff]
      %v469 = vld [vmem:[%s215 + $0x40] sm:$0xff]
      %v470 = vld [vmem:[%s215 + $0x48] sm:$0xff]
      %v471 = vld [vmem:[%s215 + $0x50] sm:$0xff]
      %v472 = vld [vmem:[%s215 + $0x58] sm:$0xff]
      %v473 = vld [vmem:[%s215 + $0x60] sm:$0xff]
      %v474 = vld [vmem:[%s215 + $0x68] sm:$0xff]
      %v475 = vld [vmem:[%s215 + $0x70] sm:$0xff]
      %v476 = vld [vmem:[%s215 + $0x78] sm:$0xff]
      %v477 = vld [vmem:[%s215 + $0x80] sm:$0xff]
      %v478 = vld [vmem:[%s215 + $0x88] sm:$0xff]
      %v479 = vld [vmem:[%s215 + $0x90] sm:$0xff]
      %v480 = vld [vmem:[%s215 + $0x98] sm:$0xff]
      %v481 = vld [vmem:[%s215 + $0xa0] sm:$0xff]
      %v482 = vld [vmem:[%s215 + $0xa8] sm:$0xff]
      %v483 = vld [vmem:[%s215 + $0xb0] sm:$0xff]
      %v484 = vld [vmem:[%s215 + $0xb8] sm:$0xff]
      %v485 = vld [vmem:[%s215 + $0xc0] sm:$0xff]
      %v486 = vld [vmem:[%s215 + $0xc8] sm:$0xff]
      %v487 = vld [vmem:[%s215 + $0xd0] sm:$0xff]
      %v488 = vld [vmem:[%s215 + $0xd8] sm:$0xff]
      %v489 = vld [vmem:[%s215 + $0xe0] sm:$0xff]
      %v490 = vld [vmem:[%s215 + $0xe8] sm:$0xff]
      %v491 = vld [vmem:[%s215 + $0xf0] sm:$0xff]
      %v492 = vld [vmem:[%s215 + $0xf8] sm:$0xff]
      %v493 = vadd.f32 %v429, %v461
      %v494 = vadd.f32 %v430, %v462
      %v495 = vadd.f32 %v431, %v463
      %v496 = vadd.f32 %v432, %v464
      %v497 = vadd.f32 %v433, %v465
      %v498 = vadd.f32 %v434, %v466
      %v499 = vadd.f32 %v435, %v467
      %v500 = vadd.f32 %v436, %v468
      %v501 = vadd.f32 %v437, %v469
      %v502 = vadd.f32 %v438, %v470
      %v503 = vadd.f32 %v439, %v471
      %v504 = vadd.f32 %v440, %v472
      %v505 = vadd.f32 %v441, %v473
      %v506 = vadd.f32 %v442, %v474
      %v507 = vadd.f32 %v443, %v475
      %v508 = vadd.f32 %v444, %v476
      %v509 = vadd.f32 %v445, %v477
      %v510 = vadd.f32 %v446, %v478
      %v511 = vadd.f32 %v447, %v479
      %v512 = vadd.f32 %v448, %v480
      %v513 = vadd.f32 %v449, %v481
      %v514 = vadd.f32 %v450, %v482
      %v515 = vadd.f32 %v451, %v483
      %v516 = vadd.f32 %v452, %v484
      %v517 = vadd.f32 %v453, %v485
      %v518 = vadd.f32 %v454, %v486
      %v519 = vadd.f32 %v455, %v487
      %v520 = vadd.f32 %v456, %v488
      %v521 = vadd.f32 %v457, %v489
      %v522 = vadd.f32 %v458, %v490
      %v523 = vadd.f32 %v459, %v491
      %v524 = vadd.f32 %v460, %v492
      %525 = vst [vmem:[%s221] sm:$0xff] %v493
      %526 = vst [vmem:[%s221 + $0x8] sm:$0xff] %v494
      %527 = vst [vmem:[%s221 + $0x10] sm:$0xff] %v495
      %528 = vst [vmem:[%s221 + $0x18] sm:$0xff] %v496
      %529 = vst [vmem:[%s221 + $0x20] sm:$0xff] %v497
      %530 = vst [vmem:[%s221 + $0x28] sm:$0xff] %v498
      %531 = vst [vmem:[%s221 + $0x30] sm:$0xff] %v499
      %532 = vst [vmem:[%s221 + $0x38] sm:$0xff] %v500
      %533 = vst [vmem:[%s221 + $0x40] sm:$0xff] %v501
      %534 = vst [vmem:[%s221 + $0x48] sm:$0xff] %v502
      %535 = vst [vmem:[%s221 + $0x50] sm:$0xff] %v503
      %536 = vst [vmem:[%s221 + $0x58] sm:$0xff] %v504
      %537 = vst [vmem:[%s221 + $0x60] sm:$0xff] %v505
      %538 = vst [vmem:[%s221 + $0x68] sm:$0xff] %v506
      %539 = vst [vmem:[%s221 + $0x70] sm:$0xff] %v507
      %540 = vst [vmem:[%s221 + $0x78] sm:$0xff] %v508
      %541 = vst [vmem:[%s221 + $0x80] sm:$0xff] %v509
      %542 = vst [vmem:[%s221 + $0x88] sm:$0xff] %v510
      %543 = vst [vmem:[%s221 + $0x90] sm:$0xff] %v511
      %544 = vst [vmem:[%s221 + $0x98] sm:$0xff] %v512
      %545 = vst [vmem:[%s221 + $0xa0] sm:$0xff] %v513
      %546 = vst [vmem:[%s221 + $0xa8] sm:$0xff] %v514
      %547 = vst [vmem:[%s221 + $0xb0] sm:$0xff] %v515
      %548 = vst [vmem:[%s221 + $0xb8] sm:$0xff] %v516
      %549 = vst [vmem:[%s221 + $0xc0] sm:$0xff] %v517
      %550 = vst [vmem:[%s221 + $0xc8] sm:$0xff] %v518
      %551 = vst [vmem:[%s221 + $0xd0] sm:$0xff] %v519
      %552 = vst [vmem:[%s221 + $0xd8] sm:$0xff] %v520
      %553 = vst [vmem:[%s221 + $0xe0] sm:$0xff] %v521
      %554 = vst [vmem:[%s221 + $0xe8] sm:$0xff] %v522
      %555 = vst [vmem:[%s221 + $0xf0] sm:$0xff] %v523
      %556 = vst [vmem:[%s221 + $0xf8] sm:$0xff] %v524
      %s557 = smul.u32 32, %s15
      %p558 = scmp.lt.s32.totalorder %s557, 63
      %s559 = scalar_select %p558, %s557, 63
      %s560 = smul.addr %s559, 8
      %s561 = scalar_lea.vmem %s4, %s560
      // Predicated region
      $region37: #{double_conv_forward.13} parent=35 // pred_check
        %p562 = pneg %p127
      $region38: #{double_conv_forward.13} parent=35 // pred_check_branch
        %564 = sbr.rel (%p562) target = $region40
      $region39: #{double_conv_forward.13} parent=35 // pred_region
        %s565 = smul.u32 32, %s15
      $region40: #{double_conv_forward.13} parent=35 // pred_fallthru
        _
    $region36: #{double_conv_forward.13} parent=5 // pred_fallthru
      _
    %p566 = scmp.le.s32.totalorder 2, %s10
    // Predicated region
    $region41: #{double_conv_forward.13} parent=5 // pred_check
      %p567 = pneg %p566
    $region42: #{double_conv_forward.13} parent=5 // pred_check_branch
      %569 = sbr.rel (%p567) target = $region44
    $region43: #{double_conv_forward.13} parent=5 // pred_region
      %s570 = ssub.s32 %s10, 2
      // Predicated region
      $region45: #{double_conv_forward.13} parent=43 // pred_check
        %p571 = pneg %p133
      $region46: #{double_conv_forward.13} parent=43 // pred_check_branch
        %573 = sbr.rel (%p571) target = $region48
      $region47: #{double_conv_forward.13} parent=43 // pred_region
        %s574 = smul.u32 32, %s16
        %p575 = scmp.lt.s32.totalorder %s574, 63
        %s576 = scalar_select %p575, %s574, 63
        %s577 = smul.addr %s576, 8
        %s578 = scalar_lea.vmem %s4, %s577
      $region48: #{double_conv_forward.13} parent=43 // pred_fallthru
        _
    $region44: #{double_conv_forward.13} parent=5 // pred_fallthru
      _
  $region6: #{double_conv_forward.13} parent=0 // loop_footer
    %s14 = sadd.s32 1, %s10
  $region7: #{double_conv_forward.13} parent=0 // loop_footer_branch
    %9 = sbr.rel target = $region3
  $region8: #{double_conv_forward.13} parent=0 // loop_exit
    _

// kernel: double_conv_forward.7
$region0: #{double_conv_forward.7}
  #allocation0 [shape = 'u32[]', space=smem, size = 0x4, offset = 0x4, fixed_abs, tag = 'smem constant byte address 0x4 - core index']
  #allocation1 [shape = 'u32[144,128]{1,0:T(1,128)}', space=vmem, size = 0x12000, scoped, tag = 'internal scratch']
  %s0 = inlined_call_operand.vmem [shape: bf16[2,18,18,4], index: 0, kind: input, shape index: {}, may-alias: {0,1,2}]
  %s1 = inlined_call_operand.vmem [shape: bf16[2,18,18,4], index: 1, kind: input, shape index: {}, may-alias: {0,1,2}]
  %s2 = inlined_call_operand.vmem [shape: bf16[2,18,18,4], index: 2, kind: input, shape index: {}, may-alias: {0,1,2}]
  %s3 = inlined_call_operand.vmem [shape: bf16[9,4,128], index: 3, kind: input, shape index: {}]
  %s4 = inlined_call_operand.vmem [shape: f32[1,128], index: 4, kind: input, shape index: {}]
  %s5 = inlined_call_operand.vmem [shape: bf16[512,128], index: 5, kind: output, shape index: {0}]
  %s6 = inlined_call_operand.vmem [shape: f32[2,2,128], index: 6, kind: output, shape index: {1}]
  %7 = xla_tuple %s5, %s6
  %s8 = sld [smem:[#allocation0]]
  $region61: #{double_conv_forward.7} parent=0
    _
  %s10 = ssub.s32 1, %s8
  %s11 = scalar_select 0, %s10, %s8
  loop: start=0, step=1, limit=4
  $region2: #{double_conv_forward.7} parent=0 // loop_pre_header
    _
  $region3: #{double_conv_forward.7} parent=0 // loop_header
    %s13 = sphi 0, %s17
    %p14 = scmp.ge.s32.totalorder %s13, 4
    %s20 = sphi 0, %s32
    %s21 = sphi 0, %s28
    %s22 = sphi 0, %s20
    %s23 = sphi 0, %s21
    %s24 = sphi 0, %s22
    %s25 = sphi 0, %s23
    %s37 = sphi 0, %s39
    %s40 = sphi 0, %s37
    %s41 = sphi 0, %s40
    %s57 = sphi 0, %s41
    %s69 = sphi 0, %s71
    %s72 = sphi 0, %s69
    %s73 = sphi 0, %s72
    %s89 = sphi 0, %s73
    %s103 = sphi 0, %s105
    %s106 = sphi 0, %s103
    %s107 = sphi 0, %s106
    %s123 = sphi 0, %s107
    %s127 = sphi 0, %s127
    %s129 = sphi 0, %s127
    %s130 = sphi 0, %s129
    %s144 = sphi 0, %s130
    %s148 = sphi 0, %s148
    %s150 = sphi 0, %s148
    %s151 = sphi 0, %s150
    %s165 = sphi 0, %s151
    %s173 = sphi 0, %s175
    %s176 = sphi 0, %s173
    %s177 = sphi 0, %s176
    %s193 = sphi 0, %s177
    %s201 = sphi 0, %s203
    %s204 = sphi 0, %s201
    %s205 = sphi 0, %s204
    %s221 = sphi 0, %s205
  $region4: #{double_conv_forward.7} parent=0 // loop_header_branch
    %16 = sbr.rel (%p14) target = $region8
  $region5: #{double_conv_forward.7} parent=0 // loop_body
    %s18 = ssub.s32 %s13, 1
    %s19 = ssub.s32 %s13, 2
    %s26 = sadd.s32 1, %s21
    %p27 = scmp.ge.s32.totalorder %s26, 1
    %s28 = scalar_select %p27, 0, %s26
    %s29 = sadd.s32 1, %s20
    %s30 = scalar_select %p27, %s29, %s20
    %p31 = scmp.ge.s32.totalorder %s30, 2
    %s32 = scalar_select %p31, 0, %s30
    %s33 = ssub.s32 %s20, %s32
    %s34 = ssub.s32 %s21, %s28
    %s35 = sor.u32 %s33, %s34
    %p36 = scmp.eq.s32.totalorder %s35, 0
    %s38 = sadd.s32 %s37, 1
    %s39 = scalar_select %p36, %s37, %s38
    %p42 = pneg %p36
    %p43 = scmp.eq.s32.totalorder %s13, 1
    %p44 = por %p42, %p43
    %p45 = scmp.ne.s32.totalorder %s37, %s40
    %p46 = scmp.eq.s32.totalorder %s13, 0
    %p47 = por %p45, %p46
    %p48 = scmp.ne.s32.totalorder %s37, %s40
    %p49 = scmp.eq.s32.totalorder %s18, 1
    %p50 = por %p48, %p49
    %p51 = scmp.ne.s32.totalorder %s40, %s41
    %p52 = scmp.eq.s32.totalorder %s18, 0
    %p53 = por %p51, %p52
    %p54 = scmp.ne.s32.totalorder %s40, %s41
    %p55 = scmp.eq.s32.totalorder %s19, 1
    %p56 = por %p54, %p55
    %p58 = scmp.ne.s32.totalorder %s41, %s57
    %p59 = scmp.eq.s32.totalorder %s19, 0
    %p60 = por %p58, %p59
    %s61 = sadd.s32 %s21, 1
    %s62 = smul.u32 %s61, 16
    %s63 = sadd.s32 %s28, 1
    %s64 = smul.u32 %s63, 16
    %s65 = ssub.s32 %s20, %s32
    %s66 = ssub.s32 %s62, %s64
    %s67 = sor.u32 %s65, %s66
    %p68 = scmp.eq.s32.totalorder %s67, 0
    %s70 = sadd.s32 %s69, 1
    %s71 = scalar_select %p68, %s69, %s70
    %p74 = pneg %p68
    %p75 = scmp.eq.s32.totalorder %s13, 1
    %p76 = por %p74, %p75
    %p77 = scmp.ne.s32.totalorder %s69, %s72
    %p78 = scmp.eq.s32.totalorder %s13, 0
    %p79 = por %p77, %p78
    %p80 = scmp.ne.s32.totalorder %s69, %s72
    %p81 = scmp.eq.s32.totalorder %s18, 1
    %p82 = por %p80, %p81
    %p83 = scmp.ne.s32.totalorder %s72, %s73
    %p84 = scmp.eq.s32.totalorder %s18, 0
    %p85 = por %p83, %p84
    %p86 = scmp.ne.s32.totalorder %s72, %s73
    %p87 = scmp.eq.s32.totalorder %s19, 1
    %p88 = por %p86, %p87
    %p90 = scmp.ne.s32.totalorder %s73, %s89
    %p91 = scmp.eq.s32.totalorder %s19, 0
    %p92 = por %p90, %p91
    %s93 = sadd.s32 %s21, 1
    %s94 = smul.u32 %s93, 16
    %s95 = sadd.s32 %s94, 1
    %s96 = sadd.s32 %s28, 1
    %s97 = smul.u32 %s96, 16
    %s98 = sadd.s32 %s97, 1
    %s99 = ssub.s32 %s20, %s32
    %s100 = ssub.s32 %s95, %s98
    %s101 = sor.u32 %s99, %s100
    %p102 = scmp.eq.s32.totalorder %s101, 0
    %s104 = sadd.s32 %s103, 1
    %s105 = scalar_select %p102, %s103, %s104
    %p108 = pneg %p102
    %p109 = scmp.eq.s32.totalorder %s13, 1
    %p110 = por %p108, %p109
    %p111 = scmp.ne.s32.totalorder %s103, %s106
    %p112 = scmp.eq.s32.totalorder %s13, 0
    %p113 = por %p111, %p112
    %p114 = scmp.ne.s32.totalorder %s103, %s106
    %p115 = scmp.eq.s32.totalorder %s18, 1
    %p116 = por %p114, %p115
    %p117 = scmp.ne.s32.totalorder %s106, %s107
    %p118 = scmp.eq.s32.totalorder %s18, 0
    %p119 = por %p117, %p118
    %p120 = scmp.ne.s32.totalorder %s106, %s107
    %p121 = scmp.eq.s32.totalorder %s19, 1
    %p122 = por %p120, %p121
    %p124 = scmp.ne.s32.totalorder %s107, %s123
    %p125 = scmp.eq.s32.totalorder %s19, 0
    %p126 = por %p124, %p125
    %s128 = sadd.s32 %s127, 1
    %p131 = scmp.eq.s32.totalorder %s13, 1
    %p132 = scmp.ne.s32.totalorder %s127, %s129
    %p133 = scmp.eq.s32.totalorder %s13, 0
    %p134 = por %p132, %p133
    %p135 = scmp.ne.s32.totalorder %s127, %s129
    %p136 = scmp.eq.s32.totalorder %s18, 1
    %p137 = por %p135, %p136
    %p138 = scmp.ne.s32.totalorder %s129, %s130
    %p139 = scmp.eq.s32.totalorder %s18, 0
    %p140 = por %p138, %p139
    %p141 = scmp.ne.s32.totalorder %s129, %s130
    %p142 = scmp.eq.s32.totalorder %s19, 1
    %p143 = por %p141, %p142
    %p145 = scmp.ne.s32.totalorder %s130, %s144
    %p146 = scmp.eq.s32.totalorder %s19, 0
    %p147 = por %p145, %p146
    %s149 = sadd.s32 %s148, 1
    %p152 = scmp.eq.s32.totalorder %s13, 1
    %p153 = scmp.ne.s32.totalorder %s148, %s150
    %p154 = scmp.eq.s32.totalorder %s13, 0
    %p155 = por %p153, %p154
    %p156 = scmp.ne.s32.totalorder %s148, %s150
    %p157 = scmp.eq.s32.totalorder %s18, 1
    %p158 = por %p156, %p157
    %p159 = scmp.ne.s32.totalorder %s150, %s151
    %p160 = scmp.eq.s32.totalorder %s18, 0
    %p161 = por %p159, %p160
    %p162 = scmp.ne.s32.totalorder %s150, %s151
    %p163 = scmp.eq.s32.totalorder %s19, 1
    %p164 = por %p162, %p163
    %p166 = scmp.ne.s32.totalorder %s151, %s165
    %p167 = scmp.eq.s32.totalorder %s19, 0
    %p168 = por %p166, %p167
    %s169 = sadd.s32 %s20, %s21
    %s170 = sadd.s32 %s32, %s28
    %s171 = ssub.s32 %s169, %s170
    %p172 = scmp.eq.s32.totalorder %s171, 0
    %s174 = sadd.s32 %s173, 1
    %s175 = scalar_select %p172, %s173, %s174
    %p178 = pneg %p172
    %p179 = scmp.eq.s32.totalorder %s13, 1
    %p180 = por %p178, %p179
    %p181 = scmp.ne.s32.totalorder %s173, %s176
    %p182 = scmp.eq.s32.totalorder %s13, 0
    %p183 = por %p181, %p182
    %p184 = scmp.ne.s32.totalorder %s173, %s176
    %p185 = scmp.eq.s32.totalorder %s18, 1
    %p186 = por %p184, %p185
    %p187 = scmp.ne.s32.totalorder %s176, %s177
    %p188 = scmp.eq.s32.totalorder %s18, 0
    %p189 = por %p187, %p188
    %p190 = scmp.ne.s32.totalorder %s176, %s177
    %p191 = scmp.eq.s32.totalorder %s19, 1
    %p192 = por %p190, %p191
    %p194 = scmp.ne.s32.totalorder %s177, %s193
    %p195 = scmp.eq.s32.totalorder %s19, 0
    %p196 = por %p194, %p195
    %s197 = sadd.s32 %s20, %s21
    %s198 = sadd.s32 %s32, %s28
    %s199 = ssub.s32 %s197, %s198
    %p200 = scmp.eq.s32.totalorder %s199, 0
    %s202 = sadd.s32 %s201, 1
    %s203 = scalar_select %p200, %s201, %s202
    %p206 = pneg %p200
    %p207 = scmp.eq.s32.totalorder %s13, 1
    %p208 = por %p206, %p207
    %p209 = scmp.ne.s32.totalorder %s201, %s204
    %p210 = scmp.eq.s32.totalorder %s13, 0
    %p211 = por %p209, %p210
    %p212 = scmp.ne.s32.totalorder %s201, %s204
    %p213 = scmp.eq.s32.totalorder %s18, 1
    %p214 = por %p212, %p213
    %p215 = scmp.ne.s32.totalorder %s204, %s205
    %p216 = scmp.eq.s32.totalorder %s18, 0
    %p217 = por %p215, %p216
    %p218 = scmp.ne.s32.totalorder %s204, %s205
    %p219 = scmp.eq.s32.totalorder %s19, 1
    %p220 = por %p218, %p219
    %p222 = scmp.ne.s32.totalorder %s205, %s221
    %p223 = scmp.eq.s32.totalorder %s19, 0
    %p224 = por %p222, %p223
    %p225 = scmp.le.s32.totalorder 1, %s13
    %p226 = scmp.lt.s32.totalorder %s13, 3
    %p227 = pnand %p225, %p226
    %p228 = pneg %p227
    // Predicated region
    $region9: #{double_conv_forward.7} parent=5 // pred_check
      _
    $region10: #{double_conv_forward.7} parent=5 // pred_check_branch
      %230 = sbr.rel (%p227) target = $region12
    $region11: #{double_conv_forward.7} parent=5 // pred_region
      %s231 = ssub.s32 %s13, 1
      // Predicated region
      $region13: #{double_conv_forward.7} parent=11 // pred_check
        %p232 = pneg %p140
      $region14: #{double_conv_forward.7} parent=11 // pred_check_branch
        %234 = sbr.rel (%p232) target = $region16
      $region15: #{double_conv_forward.7} parent=11 // pred_region
        _
      $region16: #{double_conv_forward.7} parent=11 // pred_fallthru
        _
      // Predicated region
      $region17: #{double_conv_forward.7} parent=11 // pred_check
        %p235 = pneg %p161
      $region18: #{double_conv_forward.7} parent=11 // pred_check_branch
        %237 = sbr.rel (%p235) target = $region20
      $region19: #{double_conv_forward.7} parent=11 // pred_region
        _
      $region20: #{double_conv_forward.7} parent=11 // pred_fallthru
        _
    $region12: #{double_conv_forward.7} parent=5 // pred_fallthru
      _
    %p238 = scmp.lt.s32.totalorder %s13, 2
    // Predicated region
    $region21: #{double_conv_forward.7} parent=5 // pred_check
      %p239 = pneg %p238
    $region22: #{double_conv_forward.7} parent=5 // pred_check_branch
      %241 = sbr.rel (%p239) target = $region24
    $region23: #{double_conv_forward.7} parent=5 // pred_region
      // Predicated region
      $region25: #{double_conv_forward.7} parent=23 // pred_check
        %p242 = pneg %p47
      $region26: #{double_conv_forward.7} parent=23 // pred_check_branch
        %244 = sbr.rel (%p242) target = $region28
      $region27: #{double_conv_forward.7} parent=23 // pred_region
        %s245 = smul.u32 16, %s21
        %s246 = ssub.s32 18, %s245
        %p247 = scmp.lt.s32.totalorder %s246, 16
        %s248 = scalar_select %p247, %s246, 16
        %s249 = smul.u32 64, %s248
        %s250 = smul.u32 %s249, 3
        %p251 = scmp.lt.s32.totalorder %s20, 1
        %s252 = scalar_select %p251, %s20, 1
        %p253 = scmp.lt.s32.totalorder %s245, 17
        %s254 = scalar_select %p253, %s245, 17
        %s255 = smul.addr %s254, 3
        %s256 = smul.addr %s252, 54
        %s257 = sadd.s32 %s255, %s256
        %s258 = smul.addr %s257, 4
        %s259 = scalar_lea.vmem %s0, %s258
        %s260 = smul.u32 16, %s21
        %s261 = ssub.s32 18, %s260
        %p262 = scmp.lt.s32.totalorder %s261, 16
        %s263 = scalar_select %p262, %s261, 16
        %s264 = smul.u32 64, %s263
        %s265 = smul.u32 %s264, 3
      $region28: #{double_conv_forward.7} parent=23 // pred_fallthru
        _
      // Predicated region
      $region29: #{double_conv_forward.7} parent=23 // pred_check
        %p266 = pneg %p79
      $region30: #{double_conv_forward.7} parent=23 // pred_check_branch
        %268 = sbr.rel (%p266) target = $region32
      $region31: #{double_conv_forward.7} parent=23 // pred_region
        %s269 = sadd.s32 %s21, 1
        %s270 = smul.u32 %s269, 16
        %p271 = scmp.lt.s32.totalorder %s20, 1
        %s272 = scalar_select %p271, %s20, 1
        %p273 = scmp.lt.s32.totalorder %s270, 17
        %s274 = scalar_select %p273, %s270, 17
        %s275 = smul.addr %s274, 3
        %s276 = smul.addr %s272, 54
        %s277 = sadd.s32 %s275, %s276
        %s278 = smul.addr %s277, 4
        %s279 = scalar_lea.vmem %s1, %s278
        %s280 = sadd.s32 %s21, 1
        %s281 = smul.u32 %s280, 16
      $region32: #{double_conv_forward.7} parent=23 // pred_fallthru
        _
      // Predicated region
      $region33: #{double_conv_forward.7} parent=23 // pred_check
        %p282 = pneg %p113
      $region34: #{double_conv_forward.7} parent=23 // pred_check_branch
        %284 = sbr.rel (%p282) target = $region36
      $region35: #{double_conv_forward.7} parent=23 // pred_region
        %s285 = sadd.s32 %s21, 1
        %s286 = smul.u32 %s285, 16
        %s287 = sadd.s32 %s286, 1
        %p288 = scmp.lt.s32.totalorder %s20, 1
        %s289 = scalar_select %p288, %s20, 1
        %p290 = scmp.lt.s32.totalorder %s287, 17
        %s291 = scalar_select %p290, %s287, 17
        %s292 = smul.addr %s291, 3
        %s293 = smul.addr %s289, 54
        %s294 = sadd.s32 %s292, %s293
        %s295 = smul.addr %s294, 4
        %s296 = scalar_lea.vmem %s2, %s295
        %s297 = sadd.s32 %s21, 1
        %s298 = smul.u32 %s297, 16
        %s299 = sadd.s32 %s298, 1
      $region36: #{double_conv_forward.7} parent=23 // pred_fallthru
        _
    $region24: #{double_conv_forward.7} parent=5 // pred_fallthru
      _
    %p300 = scmp.le.s32.totalorder 1, %s13
    %p301 = scmp.lt.s32.totalorder %s13, 3
    %p302 = pnand %p300, %p301
    %p303 = pneg %p302
    // Predicated region
    $region37: #{double_conv_forward.7} parent=5 // pred_check
      _
    $region38: #{double_conv_forward.7} parent=5 // pred_check_branch
      %305 = sbr.rel (%p302) target = $region40
    $region39: #{double_conv_forward.7} parent=5 // pred_region
      %s306 = ssub.s32 %s13, 1
      %s307 = smul.u32 16, %s23
      %s308 = ssub.s32 18, %s307
      %p309 = scmp.lt.s32.totalorder %s308, 16
      %s310 = scalar_select %p309, %s308, 16
      %s311 = smul.u32 64, %s310
      %s312 = smul.u32 %s311, 3
      %p313 = scmp.lt.s32.totalorder %s22, 1
      %s314 = scalar_select %p313, %s22, 1
      %p315 = scmp.lt.s32.totalorder %s307, 17
      %s316 = scalar_select %p315, %s307, 17
      %s317 = smul.addr %s316, 3
      %s318 = smul.addr %s314, 54
      %s319 = sadd.s32 %s317, %s318
      %s320 = smul.addr %s319, 4
      %s321 = scalar_lea.vmem %s0, %s320
      %p322 = pneg %p53
      %p323 = pneg %p50
      %s324 = sadd.s32 %s23, 1
      %s325 = smul.u32 %s324, 16
      %p326 = scmp.lt.s32.totalorder %s22, 1
      %s327 = scalar_select %p326, %s22, 1
      %p328 = scmp.lt.s32.totalorder %s325, 17
      %s329 = scalar_select %p328, %s325, 17
      %s330 = smul.addr %s329, 3
      %s331 = smul.addr %s327, 54
      %s332 = sadd.s32 %s330, %s331
      %s333 = smul.addr %s332, 4
      %s334 = scalar_lea.vmem %s1, %s333
      %p335 = pneg %p85
      %p336 = pneg %p82
      %s337 = sadd.s32 %s23, 1
      %s338 = smul.u32 %s337, 16
      %s339 = sadd.s32 %s338, 1
      %p340 = scmp.lt.s32.totalorder %s22, 1
      %s341 = scalar_select %p340, %s22, 1
      %p342 = scmp.lt.s32.totalorder %s339, 17
      %s343 = scalar_select %p342, %s339, 17
      %s344 = smul.addr %s343, 3
      %s345 = smul.addr %s341, 54
      %s346 = sadd.s32 %s344, %s345
      %s347 = smul.addr %s346, 4
      %s348 = scalar_lea.vmem %s2, %s347
      %p349 = pneg %p119
      %p350 = pneg %p116
      %p351 = pneg %p140
      %p352 = pneg %p137
      %p353 = pneg %p161
      %p354 = pneg %p158
      %p355 = pneg %p189
      %p356 = pneg %p186
      %s357 = sadd.s32 %s22, %s23
      %s358 = smul.u32 32, %s357
      %p359 = scmp.lt.s32.totalorder %s358, 63
      %s360 = scalar_select %p359, %s358, 63
      %s361 = smul.addr %s360, 4
      %s362 = scalar_lea.vmem %s5, %s361
      %p363 = pneg %p217
      %p364 = pneg %p214
      %s365 = sadd.s32 %s22, %s23
      %p366 = scmp.lt.s32.totalorder %s365, 1
      %s367 = scalar_select %p366, %s365, 1
      %s368 = smul.addr %s367, 2
      %s369 = scalar_lea.vmem %s6, %s368
      %s370 = smul.u32 16, %s23
      %s371 = ssub.s32 18, %s370
      %p372 = scmp.lt.s32.totalorder %s371, 16
      %s373 = scalar_select %p372, %s371, 16
      %s374 = smul.u32 64, %s373
      %s375 = smul.u32 %s374, 3
      %p376 = scmp.lt.s32.totalorder %s22, 1
      %s377 = scalar_select %p376, %s22, 1
      %p378 = scmp.lt.s32.totalorder %s370, 17
      %s379 = scalar_select %p378, %s370, 17
      %s380 = smul.addr %s379, 3
      %s381 = smul.addr %s377, 54
      %s382 = sadd.s32 %s380, %s381
      %s383 = smul.addr %s382, 4
      %s384 = scalar_lea.vmem %s0, %s383
      %s385 = smul.u32 16, %s23
      %s386 = ssub.s32 18, %s385
      %p387 = scmp.lt.s32.totalorder %s386, 16
      %s388 = scalar_select %p387, %s386, 16
      %s389 = smul.u32 64, %s388
      %s390 = smul.u32 %s389, 3
      %s391 = sadd.s32 %s23, 1
      %s392 = smul.u32 %s391, 16
      %p393 = scmp.lt.s32.totalorder %s22, 1
      %s394 = scalar_select %p393, %s22, 1
      %p395 = scmp.lt.s32.totalorder %s392, 17
      %s396 = scalar_select %p395, %s392, 17
      %s397 = smul.addr %s396, 3
      %s398 = smul.addr %s394, 54
      %s399 = sadd.s32 %s397, %s398
      %s400 = smul.addr %s399, 4
      %s401 = scalar_lea.vmem %s1, %s400
      %s402 = sadd.s32 %s23, 1
      %s403 = smul.u32 %s402, 16
      %s404 = sadd.s32 %s23, 1
      %s405 = smul.u32 %s404, 16
      %s406 = sadd.s32 %s405, 1
      %p407 = scmp.lt.s32.totalorder %s22, 1
      %s408 = scalar_select %p407, %s22, 1
      %p409 = scmp.lt.s32.totalorder %s406, 17
      %s410 = scalar_select %p409, %s406, 17
      %s411 = smul.addr %s410, 3
      %s412 = smul.addr %s408, 54
      %s413 = sadd.s32 %s411, %s412
      %s414 = smul.addr %s413, 4
      %s415 = scalar_lea.vmem %s2, %s414
      %s416 = sadd.s32 %s23, 1
      %s417 = smul.u32 %s416, 16
      %s418 = sadd.s32 %s417, 1
      %s419 = sadd.s32 %s22, %s23
      %s420 = smul.u32 32, %s419
      %p421 = scmp.lt.s32.totalorder %s420, 63
      %s422 = scalar_select %p421, %s420, 63
      %s423 = smul.addr %s422, 4
      %s424 = scalar_lea.vmem %s5, %s423
      %s425 = sadd.s32 %s22, %s23
      %s426 = smul.u32 32, %s425
      %s427 = sadd.s32 %s22, %s23
      %p428 = scmp.lt.s32.totalorder %s427, 1
      %s429 = scalar_select %p428, %s427, 1
      %s430 = smul.addr %s429, 2
      %s431 = scalar_lea.vmem %s6, %s430
      %s432 = sadd.s32 %s22, %s23
      %v434 = vld [vmem:[%s384] sm:$0xf]
      %v435 = vld [vmem:[%s384 + $0x4] sm:$0xf]
      %v436 = vld [vmem:[%s384 + $0x8] sm:$0x1]
      %v437 = vld [vmem:[%s384 + $0xc] sm:$0xf]
      %v438 = vld [vmem:[%s384 + $0x10] sm:$0xf]
      %v439 = vld [vmem:[%s384 + $0x14] sm:$0x1]
      %v440 = vld [vmem:[%s384 + $0x18] sm:$0xf]
      %v441 = vld [vmem:[%s384 + $0x1c] sm:$0xf]
      %v442 = vld [vmem:[%s384 + $0x20] sm:$0x1]
      %v443 = vld [vmem:[%s384 + $0x24] sm:$0xf]
      %v444 = vld [vmem:[%s384 + $0x28] sm:$0xf]
      %v445 = vld [vmem:[%s384 + $0x2c] sm:$0x1]
      %v446 = vld [vmem:[%s384 + $0x30] sm:$0xf]
      %v447 = vld [vmem:[%s384 + $0x34] sm:$0xf]
      %v448 = vld [vmem:[%s384 + $0x38] sm:$0x1]
      %v449 = vld [vmem:[%s384 + $0x3c] sm:$0xf]
      %v450 = vld [vmem:[%s384 + $0x40] sm:$0xf]
      %v451 = vld [vmem:[%s384 + $0x44] sm:$0x1]
      %v452 = vld [vmem:[%s384 + $0x48] sm:$0xf]
      %v453 = vld [vmem:[%s384 + $0x4c] sm:$0xf]
      %v454 = vld [vmem:[%s384 + $0x50] sm:$0x1]
      %v455 = vld [vmem:[%s384 + $0x54] sm:$0xf]
      %v456 = vld [vmem:[%s384 + $0x58] sm:$0xf]
      %v457 = vld [vmem:[%s384 + $0x5c] sm:$0x1]
      %v458 = vld [vmem:[%s384 + $0x60] sm:$0xf]
      %v459 = vld [vmem:[%s384 + $0x64] sm:$0xf]
      %v460 = vld [vmem:[%s384 + $0x68] sm:$0x1]
      %v461 = vld [vmem:[%s384 + $0x6c] sm:$0xf]
      %v462 = vld [vmem:[%s384 + $0x70] sm:$0xf]
      %v463 = vld [vmem:[%s384 + $0x74] sm:$0x1]
      %v464 = vld [vmem:[%s384 + $0x78] sm:$0xf]
      %v465 = vld [vmem:[%s384 + $0x7c] sm:$0xf]
      %v466 = vld [vmem:[%s384 + $0x80] sm:$0x1]
      %v467 = vld [vmem:[%s384 + $0x84] sm:$0xf]
      %v468 = vld [vmem:[%s384 + $0x88] sm:$0xf]
      %v469 = vld [vmem:[%s384 + $0x8c] sm:$0x1]
      %v470 = vld [vmem:[%s384 + $0x90] sm:$0xf]
      %v471 = vld [vmem:[%s384 + $0x94] sm:$0xf]
      %v472 = vld [vmem:[%s384 + $0x98] sm:$0x1]
      %v473 = vld [vmem:[%s384 + $0x9c] sm:$0xf]
      %v474 = vld [vmem:[%s384 + $0xa0] sm:$0xf]
      %v475 = vld [vmem:[%s384 + $0xa4] sm:$0x1]
      %v476 = vld [vmem:[%s384 + $0xa8] sm:$0xf]
      %v477 = vld [vmem:[%s384 + $0xac] sm:$0xf]
      %v478 = vld [vmem:[%s384 + $0xb0] sm:$0x1]
      %v479 = vld [vmem:[%s384 + $0xb4] sm:$0xf]
      %v480 = vld [vmem:[%s384 + $0xb8] sm:$0xf]
      %v481 = vld [vmem:[%s384 + $0xbc] sm:$0x1]
      %v482 = vld [vmem:[%s401] sm:$0xf]
      %v483 = vld [vmem:[%s401 + $0x4] sm:$0xf]
      %v484 = vld [vmem:[%s401 + $0x8] sm:$0x1]
      %v485 = vld [vmem:[%s415] sm:$0xf]
      %v486 = vld [vmem:[%s415 + $0x4] sm:$0xf]
      %v487 = vld [vmem:[%s415 + $0x8] sm:$0x1]
      %v488 = vld [vmem:[%s3] sm:$0x3]
      %vm489 = vsmask.f32 3328
      %vm490 = vsmask.f32 7440
      %vm491 = vmor %vm489, %vm490
      %v493 = vshrl.u32 %v434, 16
      %v495 = vrot.slane %v493, 4
      %v496 = vshll.u32 %v434, 16
      %v498 = vrot.slane %v496, 5
      %v499 = vor.u32 %v495, %v498
      %v500 = vrot.slane %v499, 4
      %v502 = vshll.u32 %v435, 16
      %v504 = vrot.slane %v502, 5
      %v505 = vsel %vm491, %v500, %v504
      %v506 = vshrl.u32 %v435, 16
      %v508 = vrot.slane %v506, 4
      %v509 = vor.u32 %v508, %v504
      %v510 = vrot.slane %v509, 4
      %v512 = vshll.u32 %v436, 16
      %v514 = vrot.slane %v512, 5
      %v515 = vsel %vm491, %v510, %v514
      %v517 = vshrl.u32 %v437, 16
      %v519 = vrot.slane %v517, 4
      %v520 = vshll.u32 %v437, 16
      %v522 = vrot.slane %v520, 5
      %v523 = vor.u32 %v519, %v522
      %v524 = vrot.slane %v523, 4
      %v526 = vshll.u32 %v438, 16
      %v528 = vrot.slane %v526, 5
      %v529 = vsel %vm491, %v524, %v528
      %v530 = vshrl.u32 %v438, 16
      %v532 = vrot.slane %v530, 4
      %v533 = vor.u32 %v532, %v528
      %v534 = vrot.slane %v533, 4
      %v536 = vshll.u32 %v439, 16
      %v538 = vrot.slane %v536, 5
      %v539 = vsel %vm491, %v534, %v538
      %v541 = vshrl.u32 %v440, 16
      %v543 = vrot.slane %v541, 4
      %v544 = vshll.u32 %v440, 16
      %v546 = vrot.slane %v544, 5
      %v547 = vor.u32 %v543, %v546
      %v548 = vrot.slane %v547, 4
      %v550 = vshll.u32 %v441, 16
      %v552 = vrot.slane %v550, 5
      %v553 = vsel %vm491, %v548, %v552
      %v554 = vshrl.u32 %v441, 16
      %v556 = vrot.slane %v554, 4
      %v557 = vor.u32 %v556, %v552
      %v558 = vrot.slane %v557, 4
      %v560 = vshll.u32 %v442, 16
      %v562 = vrot.slane %v560, 5
      %v563 = vsel %vm491, %v558, %v562
      %v565 = vshrl.u32 %v443, 16
      %v567 = vrot.slane %v565, 4
      %v568 = vshll.u32 %v443, 16
      %v570 = vrot.slane %v568, 5
      %v571 = vor.u32 %v567, %v570
      %v572 = vrot.slane %v571, 4
      %v574 = vshll.u32 %v444, 16
      %v576 = vrot.slane %v574, 5
      %v577 = vsel %vm491, %v572, %v576
      %v578 = vshrl.u32 %v444, 16
      %v580 = vrot.slane %v578, 4
      %v581 = vor.u32 %v580, %v576
      %v582 = vrot.slane %v581, 4
      %v584 = vshll.u32 %v445, 16
      %v586 = vrot.slane %v584, 5
      %v587 = vsel %vm491, %v582, %v586
      %v589 = vshrl.u32 %v446, 16
      %v591 = vrot.slane %v589, 4
      %v592 = vshll.u32 %v446, 16
      %v594 = vrot.slane %v592, 5
      %v595 = vor.u32 %v591, %v594
      %v596 = vrot.slane %v595, 4
      %v598 = vshll.u32 %v447, 16
      %v600 = vrot.slane %v598, 5
      %v601 = vsel %vm491, %v596, %v600
      %v602 = vshrl.u32 %v447, 16
      %v604 = vrot.slane %v602, 4
      %v605 = vor.u32 %v604, %v600
      %v606 = vrot.slane %v605, 4
      %v608 = vshll.u32 %v448, 16
      %v610 = vrot.slane %v608, 5
      %v611 = vsel %vm491, %v606, %v610
      %v613 = vshrl.u32 %v449, 16
      %v615 = vrot.slane %v613, 4
      %v616 = vshll.u32 %v449, 16
      %v618 = vrot.slane %v616, 5
      %v619 = vor.u32 %v615, %v618
      %v620 = vrot.slane %v619, 4
      %v622 = vshll.u32 %v450, 16
      %v624 = vrot.slane %v622, 5
      %v625 = vsel %vm491, %v620, %v624
      %v626 = vshrl.u32 %v450, 16
      %v628 = vrot.slane %v626, 4
      %v629 = vor.u32 %v628, %v624
      %v630 = vrot.slane %v629, 4
      %v632 = vshll.u32 %v451, 16
      %v634 = vrot.slane %v632, 5
      %v635 = vsel %vm491, %v630, %v634
      %v637 = vshrl.u32 %v452, 16
      %v639 = vrot.slane %v637, 4
      %v640 = vshll.u32 %v452, 16
      %v642 = vrot.slane %v640, 5
      %v643 = vor.u32 %v639, %v642
      %v644 = vrot.slane %v643, 4
      %v646 = vshll.u32 %v453, 16
      %v648 = vrot.slane %v646, 5
      %v649 = vsel %vm491, %v644, %v648
      %v650 = vshrl.u32 %v453, 16
      %v652 = vrot.slane %v650, 4
      %v653 = vor.u32 %v652, %v648
      %v654 = vrot.slane %v653, 4
      %v656 = vshll.u32 %v454, 16
      %v658 = vrot.slane %v656, 5
      %v659 = vsel %vm491, %v654, %v658
      %v661 = vshrl.u32 %v455, 16
      %v663 = vrot.slane %v661, 4
      %v664 = vshll.u32 %v455, 16
      %v666 = vrot.slane %v664, 5
      %v667 = vor.u32 %v663, %v666
      %v668 = vrot.slane %v667, 4
      %v670 = vshll.u32 %v456, 16
      %v672 = vrot.slane %v670, 5
      %v673 = vsel %vm491, %v668, %v672
      %v674 = vshrl.u32 %v456, 16
      %v676 = vrot.slane %v674, 4
      %v677 = vor.u32 %v676, %v672
      %v678 = vrot.slane %v677, 4
      %v680 = vshll.u32 %v457, 16
      %v682 = vrot.slane %v680, 5
      %v683 = vsel %vm491, %v678, %v682
      %v685 = vshrl.u32 %v458, 16
      %v687 = vrot.slane %v685, 4
      %v688 = vshll.u32 %v458, 16
      %v690 = vrot.slane %v688, 5
      %v691 = vor.u32 %v687, %v690
      %v692 = vrot.slane %v691, 4
      %v694 = vshll.u32 %v459, 16
      %v696 = vrot.slane %v694, 5
      %v697 = vsel %vm491, %v692, %v696
      %v698 = vshrl.u32 %v459, 16
      %v700 = vrot.slane %v698, 4
      %v701 = vor.u32 %v700, %v696
      %v702 = vrot.slane %v701, 4
      %v704 = vshll.u32 %v460, 16
      %v706 = vrot.slane %v704, 5
      %v707 = vsel %vm491, %v702, %v706
      %v709 = vshrl.u32 %v461, 16
      %v711 = vrot.slane %v709, 4
      %v712 = vshll.u32 %v461, 16
      %v714 = vrot.slane %v712, 5
      %v715 = vor.u32 %v711, %v714
      %v716 = vrot.slane %v715, 4
      %v718 = vshll.u32 %v462, 16
      %v720 = vrot.slane %v718, 5
      %v721 = vsel %vm491, %v716, %v720
      %v722 = vshrl.u32 %v462, 16
      %v724 = vrot.slane %v722, 4
      %v725 = vor.u32 %v724, %v720
      %v726 = vrot.slane %v725, 4
      %v728 = vshll.u32 %v463, 16
      %v730 = vrot.slane %v728, 5
      %v731 = vsel %vm491, %v726, %v730
      %v733 = vshrl.u32 %v464, 16
      %v735 = vrot.slane %v733, 4
      %v736 = vshll.u32 %v464, 16
      %v738 = vrot.slane %v736, 5
      %v739 = vor.u32 %v735, %v738
      %v740 = vrot.slane %v739, 4
      %v742 = vshll.u32 %v465, 16
      %v744 = vrot.slane %v742, 5
      %v745 = vsel %vm491, %v740, %v744
      %v746 = vshrl.u32 %v465, 16
      %v748 = vrot.slane %v746, 4
      %v749 = vor.u32 %v748, %v744
      %v750 = vrot.slane %v749, 4
      %v752 = vshll.u32 %v466, 16
      %v754 = vrot.slane %v752, 5
      %v755 = vsel %vm491, %v750, %v754
      %v757 = vshrl.u32 %v467, 16
      %v759 = vrot.slane %v757, 4
      %v760 = vshll.u32 %v467, 16
      %v762 = vrot.slane %v760, 5
      %v763 = vor.u32 %v759, %v762
      %v764 = vrot.slane %v763, 4
      %v766 = vshll.u32 %v468, 16
      %v768 = vrot.slane %v766, 5
      %v769 = vsel %vm491, %v764, %v768
      %v770 = vshrl.u32 %v468, 16
      %v772 = vrot.slane %v770, 4
      %v773 = vor.u32 %v772, %v768
      %v774 = vrot.slane %v773, 4
      %v776 = vshll.u32 %v469, 16
      %v778 = vrot.slane %v776, 5
      %v779 = vsel %vm491, %v774, %v778
      %v781 = vshrl.u32 %v470, 16
      %v783 = vrot.slane %v781, 4
      %v784 = vshll.u32 %v470, 16
      %v786 = vrot.slane %v784, 5
      %v787 = vor.u32 %v783, %v786
      %v788 = vrot.slane %v787, 4
      %v790 = vshll.u32 %v471, 16
      %v792 = vrot.slane %v790, 5
      %v793 = vsel %vm491, %v788, %v792
      %v794 = vshrl.u32 %v471, 16
      %v796 = vrot.slane %v794, 4
      %v797 = vor.u32 %v796, %v792
      %v798 = vrot.slane %v797, 4
      %v800 = vshll.u32 %v472, 16
      %v802 = vrot.slane %v800, 5
      %v803 = vsel %vm491, %v798, %v802
      %v805 = vshrl.u32 %v473, 16
      %v807 = vrot.slane %v805, 4
      %v808 = vshll.u32 %v473, 16
      %v810 = vrot.slane %v808, 5
      %v811 = vor.u32 %v807, %v810
      %v812 = vrot.slane %v811, 4
      %v814 = vshll.u32 %v474, 16
      %v816 = vrot.slane %v814, 5
      %v817 = vsel %vm491, %v812, %v816
      %v818 = vshrl.u32 %v474, 16
      %v820 = vrot.slane %v818, 4
      %v821 = vor.u32 %v820, %v816
      %v822 = vrot.slane %v821, 4
      %v824 = vshll.u32 %v475, 16
      %v826 = vrot.slane %v824, 5
      %v827 = vsel %vm491, %v822, %v826
      %v829 = vshrl.u32 %v476, 16
      %v831 = vrot.slane %v829, 4
      %v832 = vshll.u32 %v476, 16
      %v834 = vrot.slane %v832, 5
      %v835 = vor.u32 %v831, %v834
      %v836 = vrot.slane %v835, 4
      %v838 = vshll.u32 %v477, 16
      %v840 = vrot.slane %v838, 5
      %v841 = vsel %vm491, %v836, %v840
      %v842 = vshrl.u32 %v477, 16
      %v844 = vrot.slane %v842, 4
      %v845 = vor.u32 %v844, %v840
      %v846 = vrot.slane %v845, 4
      %v848 = vshll.u32 %v478, 16
      %v850 = vrot.slane %v848, 5
      %v851 = vsel %vm491, %v846, %v850
      %v853 = vshrl.u32 %v479, 16
      %v855 = vrot.slane %v853, 4
      %v856 = vshll.u32 %v479, 16
      %v858 = vrot.slane %v856, 5
      %v859 = vor.u32 %v855, %v858
      %v860 = vrot.slane %v859, 4
      %v862 = vshll.u32 %v480, 16
      %v864 = vrot.slane %v862, 5
      %v865 = vsel %vm491, %v860, %v864
      %v866 = vshrl.u32 %v480, 16
      %v868 = vrot.slane %v866, 4
      %v869 = vor.u32 %v868, %v864
      %v870 = vrot.slane %v869, 4
      %v872 = vshll.u32 %v481, 16
      %v874 = vrot.slane %v872, 5
      %v875 = vsel %vm491, %v870, %v874
      %s876 = scalar_lea.vmem %s3, 2
      %v877 = vld [vmem:[%s876] sm:$0x3]
      %v878 = vunpack.c.l.b16 %v505
      %v879 = vunpack.c.l.b16 %v515
      %v880 = vunpack.c.l.b16 %v529
      %v881 = vunpack.c.l.b16 %v539
      %v882 = vunpack.c.l.b16 %v553
      %v883 = vunpack.c.l.b16 %v563
      %v884 = vunpack.c.l.b16 %v577
      %v885 = vunpack.c.l.b16 %v587
      %v886 = vunpack.c.l.b16 %v601
      %v887 = vunpack.c.l.b16 %v611
      %v888 = vunpack.c.l.b16 %v625
      %v889 = vunpack.c.l.b16 %v635
      %v890 = vunpack.c.l.b16 %v649
      %v891 = vunpack.c.l.b16 %v659
      %v892 = vunpack.c.l.b16 %v673
      %v893 = vunpack.c.l.b16 %v683
      %v894 = vunpack.c.l.b16 %v697
      %v895 = vunpack.c.l.b16 %v707
      %v896 = vunpack.c.l.b16 %v721
      %v897 = vunpack.c.l.b16 %v731
      %v898 = vunpack.c.l.b16 %v745
      %v899 = vunpack.c.l.b16 %v755
      %v900 = vunpack.c.l.b16 %v769
      %v901 = vunpack.c.l.b16 %v779
      %v902 = vunpack.c.l.b16 %v793
      %v903 = vunpack.c.l.b16 %v803
      %v904 = vunpack.c.l.b16 %v817
      %v905 = vunpack.c.l.b16 %v827
      %v906 = vunpack.c.l.b16 %v841
      %v907 = vunpack.c.l.b16 %v851
      %v908 = vunpack.c.l.b16 %v865
      %v909 = vunpack.c.l.b16 %v875
      %v910 = vpack.c.b16 %v879, %v878
      %v911 = vpack.c.b16 %v881, %v880
      %v912 = vpack.c.b16 %v883, %v882
      %v913 = vpack.c.b16 %v885, %v884
      %v914 = vpack.c.b16 %v887, %v886
      %v915 = vpack.c.b16 %v889, %v888
      %v916 = vpack.c.b16 %v891, %v890
      %v917 = vpack.c.b16 %v893, %v892
      %v918 = vpack.c.b16 %v895, %v894
      %v919 = vpack.c.b16 %v897, %v896
      %v920 = vpack.c.b16 %v899, %v898
      %v921 = vpack.c.b16 %v901, %v900
      %v922 = vpack.c.b16 %v903, %v902
      %v923 = vpack.c.b16 %v905, %v904
      %v924 = vpack.c.b16 %v907, %v906
      %v925 = vpack.c.b16 %v909, %v908
      %vm926 = vcmask 31744
      %v928 = vsel %vm926, %v910, 0
      %v931 = vsel %vm926, %v911, 0
      %v934 = vsel %vm926, %v912, 0
      %v937 = vsel %vm926, %v913, 0
      %v940 = vsel %vm926, %v914, 0
      %v943 = vsel %vm926, %v915, 0
      %v946 = vsel %vm926, %v916, 0
      %v949 = vsel %vm926, %v917, 0
      %v952 = vsel %vm926, %v918, 0
      %v955 = vsel %vm926, %v919, 0
      %v958 = vsel %vm926, %v920, 0
      %v961 = vsel %vm926, %v921, 0
      %v964 = vsel %vm926, %v922, 0
      %v967 = vsel %vm926, %v923, 0
      %v970 = vsel %vm926, %v924, 0
      %v973 = vsel %vm926, %v925, 0
      %vm975 = vcmask 1041408
      %v977 = vsel %vm975, %v877, 0
      %979 = vmatprep.subr.bf16.mxu0 0
      %980 = vmatpush1.bf16.msra.mxu0 %v977
      %981 = vmatprep.subr.bf16.mxu0 0
      %982 = vmatpush1.bf16.msra.mxu0 0
      %983 = vmatprep.subr.bf16.mxu0 0
      %984 = vmatpush1.bf16.msra.mxu0 0
      %985 = vmatprep.subr.bf16.mxu0 0
      %986 = vmatpush1.bf16.msra.mxu0 0
      %987 = vmatprep.subr.bf16.mxu0 0
      %988 = vmatpush1.bf16.msra.mxu0 0
      %989 = vmatprep.subr.bf16.mxu0 0
      %990 = vmatpush1.bf16.msra.mxu0 0
      %991 = vmatprep.subr.bf16.mxu0 0
      %992 = vmatpush1.bf16.msra.mxu0 0
      %993 = vmatprep.subr.bf16.mxu0 0
      %994 = vmatpush1.bf16.msra.mxu0 0
      %995 = vmatprep.subr.bf16.mxu0 0
      %996 = vmatpush1.bf16.msra.mxu0 0
      %997 = vmatprep.subr.bf16.mxu0 0
      %998 = vmatpush1.bf16.msra.mxu0 0
      %999 = vmatprep.subr.bf16.mxu0 0
      %1000 = vmatpush1.bf16.msra.mxu0 0
      %1001 = vmatprep.subr.bf16.mxu0 0
      %1002 = vmatpush1.bf16.msra.mxu0 0
      %1003 = vmatprep.subr.bf16.mxu0 0
      %1004 = vmatpush1.bf16.msra.mxu0 0
      %1005 = vmatprep.subr.bf16.mxu0 0
      %1006 = vmatpush1.bf16.msra.mxu0 0
      %1007 = vmatprep.subr.bf16.mxu0 0
      %1008 = vmatpush1.bf16.msra.mxu0 0
      %1009 = vmatprep.subr.bf16.mxu0 0
      %1010 = vmatpush1.bf16.msra.mxu0 0
      %1011 = vmatprep.mubr.bf16.mxu0 0
      %1012 = vmatmul.mubr.bf16.gmra.mrb[0].mxu0 %v928
      %v1013 = vpop.f32.mrb[0].mxu0
      %v1014 = vadd.f32 0.0, %v1013
      %v1015 = vpop.f32.mrb[0].mxu0
      %v1016 = vpop.f32.mrb[0].mxu0
      %v1017 = vadd.f32 0.0, %v1016
      %v1018 = vpop.f32.mrb[0].mxu0
      %1019 = vmatprep.mubr.bf16.mxu0 0
      %1020 = vmatmul.mubr.bf16.gmra.mrb[0].mxu0 %v931
      %v1021 = vpop.f32.mrb[0].mxu0
      %v1022 = vadd.f32 0.0, %v1021
      %v1023 = vpop.f32.mrb[0].mxu0
      %v1024 = vpop.f32.mrb[0].mxu0
      %v1025 = vadd.f32 0.0, %v1024
      %v1026 = vpop.f32.mrb[0].mxu0
      %1027 = vmatprep.mubr.bf16.mxu0 0
      %1028 = vmatmul.mubr.bf16.gmra.mrb[0].mxu0 %v934
      %v1029 = vpop.f32.mrb[0].mxu0
      %v1030 = vadd.f32 0.0, %v1029
      %v1031 = vpop.f32.mrb[0].mxu0
      %v1032 = vpop.f32.mrb[0].mxu0
      %v1033 = vadd.f32 0.0, %v1032
      %v1034 = vpop.f32.mrb[0].mxu0
      %1035 = vmatprep.mubr.bf16.mxu0 0
      %1036 = vmatmul.mubr.bf16.gmra.mrb[0].mxu0 %v937
      %v1037 = vpop.f32.mrb[0].mxu0
      %v1038 = vadd.f32 0.0, %v1037
      %v1039 = vpop.f32.mrb[0].mxu0
      %v1040 = vpop.f32.mrb[0].mxu0
      %v1041 = vadd.f32 0.0, %v1040
      %v1042 = vpop.f32.mrb[0].mxu0
      %1043 = vmatprep.mubr.bf16.mxu0 0
      %1044 = vmatmul.mubr.bf16.gmra.mrb[0].mxu0 %v940
      %v1045 = vpop.f32.mrb[0].mxu0
      %v1046 = vadd.f32 0.0, %v1045
      %v1047 = vpop.f32.mrb[0].mxu0
      %v1048 = vpop.f32.mrb[0].mxu0
      %v1049 = vadd.f32 0.0, %v1048
      %v1050 = vpop.f32.mrb[0].mxu0
      %1051 = vmatprep.mubr.bf16.mxu0 0
      %1052 = vmatmul.mubr.bf16.gmra.mrb[0].mxu0 %v943
      %v1053 = vpop.f32.mrb[0].mxu0
      %v1054 = vadd.f32 0.0, %v1053
      %v1055 = vpop.f32.mrb[0].mxu0
      %v1056 = vpop.f32.mrb[0].mxu0
      %v1057 = vadd.f32 0.0, %v1056
      %v1058 = vpop.f32.mrb[0].mxu0
      %1059 = vmatprep.mubr.bf16.mxu0 0
      %1060 = vmatmul.mubr.bf16.gmra.mrb[0].mxu0 %v946
      %v1061 = vpop.f32.mrb[0].mxu0
      %v1062 = vadd.f32 0.0, %v1061
      %v1063 = vpop.f32.mrb[0].mxu0
      %v1064 = vpop.f32.mrb[0].mxu0
      %v1065 = vadd.f32 0.0, %v1064
      %v1066 = vpop.f32.mrb[0].mxu0
      %1067 = vmatprep.mubr.bf16.mxu0 0
      %1068 = vmatmul.mubr.bf16.gmra.mrb[0].mxu0 %v949
      %v1069 = vpop.f32.mrb[0].mxu0
      %v1070 = vadd.f32 0.0, %v1069
      %v1071 = vpop.f32.mrb[0].mxu0
      %v1072 = vpop.f32.mrb[0].mxu0
      %v1073 = vadd.f32 0.0, %v1072
      %v1074 = vpop.f32.mrb[0].mxu0
      %1075 = vmatprep.mubr.bf16.mxu0 0
      %1076 = vmatmul.mubr.bf16.gmra.mrb[0].mxu0 %v952
      %v1077 = vpop.f32.mrb[0].mxu0
      %v1078 = vadd.f32 0.0, %v1077
      %v1079 = vpop.f32.mrb[0].mxu0
      %v1080 = vpop.f32.mrb[0].mxu0
      %v1081 = vadd.f32 0.0, %v1080
      %v1082 = vpop.f32.mrb[0].mxu0
      %1083 = vmatprep.mubr.bf16.mxu0 0
      %1084 = vmatmul.mubr.bf16.gmra.mrb[0].mxu0 %v955
      %v1085 = vpop.f32.mrb[0].mxu0
      %v1086 = vadd.f32 0.0, %v1085
      %v1087 = vpop.f32.mrb[0].mxu0
      %v1088 = vpop.f32.mrb[0].mxu0
      %v1089 = vadd.f32 0.0, %v1088
      %v1090 = vpop.f32.mrb[0].mxu0
      %1091 = vmatprep.mubr.bf16.mxu0 0
      %1092 = vmatmul.mubr.bf16.gmra.mrb[0].mxu0 %v958
      %v1093 = vpop.f32.mrb[0].mxu0
      %v1094 = vadd.f32 0.0, %v1093
      %v1095 = vpop.f32.mrb[0].mxu0
      %v1096 = vpop.f32.mrb[0].mxu0
      %v1097 = vadd.f32 0.0, %v1096
      %v1098 = vpop.f32.mrb[0].mxu0
      %1099 = vmatprep.mubr.bf16.mxu0 0
      %1100 = vmatmul.mubr.bf16.gmra.mrb[0].mxu0 %v961
      %v1101 = vpop.f32.mrb[0].mxu0
      %v1102 = vadd.f32 0.0, %v1101
      %v1103 = vpop.f32.mrb[0].mxu0
      %v1104 = vpop.f32.mrb[0].mxu0
      %v1105 = vadd.f32 0.0, %v1104
      %v1106 = vpop.f32.mrb[0].mxu0
      %1107 = vmatprep.mubr.bf16.mxu0 0
      %1108 = vmatmul.mubr.bf16.gmra.mrb[0].mxu0 %v964
      %v1109 = vpop.f32.mrb[0].mxu0
      %v1110 = vadd.f32 0.0, %v1109
      %v1111 = vpop.f32.mrb[0].mxu0
      %v1112 = vpop.f32.mrb[0].mxu0
      %v1113 = vadd.f32 0.0, %v1112
      %v1114 = vpop.f32.mrb[0].mxu0
      %1115 = vmatprep.mubr.bf16.mxu0 0
      %1116 = vmatmul.mubr.bf16.gmra.mrb[0].mxu0 %v967
      %v1117 = vpop.f32.mrb[0].mxu0
      %v1118 = vadd.f32 0.0, %v1117
      %v1119 = vpop.f32.mrb[0].mxu0
      %v1120 = vpop.f32.mrb[0].mxu0
      %v1121 = vadd.f32 0.0, %v1120
      %v1122 = vpop.f32.mrb[0].mxu0
      %1123 = vmatprep.mubr.bf16.mxu0 0
      %1124 = vmatmul.mubr.bf16.gmra.mrb[0].mxu0 %v970
      %v1125 = vpop.f32.mrb[0].mxu0
      %v1126 = vadd.f32 0.0, %v1125
      %v1127 = vpop.f32.mrb[0].mxu0
      %v1128 = vpop.f32.mrb[0].mxu0
      %v1129 = vadd.f32 0.0, %v1128
      %v1130 = vpop.f32.mrb[0].mxu0
      %1131 = vmatprep.mubr.bf16.mxu0 0
      %1132 = vmatmul.mubr.bf16.gmra.mrb[0].mxu0 %v973
      %v1133 = vpop.f32.mrb[0].mxu0
      %v1134 = vadd.f32 0.0, %v1133
      %v1135 = vpop.f32.mrb[0].mxu0
      %v1136 = vpop.f32.mrb[0].mxu0
      %v1137 = vadd.f32 0.0, %v1136
      %v1138 = vpop.f32.mrb[0].mxu0
      %1139 = vdwg.mxu0
      %v1172 = vunpack.c.l.b16 %v434
      %v1173 = vunpack.c.l.b16 %v435
      %v1174 = vunpack.c.l.b16 %v437
      %v1175 = vunpack.c.l.b16 %v438
      %v1176 = vunpack.c.l.b16 %v440
      %v1177 = vunpack.c.l.b16 %v441
      %v1178 = vunpack.c.l.b16 %v443
      %v1179 = vunpack.c.l.b16 %v444
      %v1180 = vunpack.c.l.b16 %v446
      %v1181 = vunpack.c.l.b16 %v447
      %v1182 = vunpack.c.l.b16 %v449
      %v1183 = vunpack.c.l.b16 %v450
      %v1184 = vunpack.c.l.b16 %v452
      %v1185 = vunpack.c.l.b16 %v453
      %v1186 = vunpack.c.l.b16 %v455
      %v1187 = vunpack.c.l.b16 %v456
      %v1188 = vunpack.c.l.b16 %v458
      %v1189 = vunpack.c.l.b16 %v459
      %v1190 = vunpack.c.l.b16 %v461
      %v1191 = vunpack.c.l.b16 %v462
      %v1192 = vunpack.c.l.b16 %v464
      %v1193 = vunpack.c.l.b16 %v465
      %v1194 = vunpack.c.l.b16 %v467
      %v1195 = vunpack.c.l.b16 %v468
      %v1196 = vunpack.c.l.b16 %v470
      %v1197 = vunpack.c.l.b16 %v471
      %v1198 = vunpack.c.l.b16 %v473
      %v1199 = vunpack.c.l.b16 %v474
      %v1200 = vunpack.c.l.b16 %v476
      %v1201 = vunpack.c.l.b16 %v477
      %v1202 = vunpack.c.l.b16 %v479
      %v1203 = vunpack.c.l.b16 %v480
      %v1204 = vpack.c.b16 %v1173, %v1172
      %v1205 = vpack.c.b16 %v1175, %v1174
      %v1206 = vpack.c.b16 %v1177, %v1176
      %v1207 = vpack.c.b16 %v1179, %v1178
      %v1208 = vpack.c.b16 %v1181, %v1180
      %v1209 = vpack.c.b16 %v1183, %v1182
      %v1210 = vpack.c.b16 %v1185, %v1184
      %v1211 = vpack.c.b16 %v1187, %v1186
      %v1212 = vpack.c.b16 %v1189, %v1188
      %v1213 = vpack.c.b16 %v1191, %v1190
      %v1214 = vpack.c.b16 %v1193, %v1192
      %v1215 = vpack.c.b16 %v1195, %v1194
      %v1216 = vpack.c.b16 %v1197, %v1196
      %v1217 = vpack.c.b16 %v1199, %v1198
      %v1218 = vpack.c.b16 %v1201, %v1200
      %v1219 = vpack.c.b16 %v1203, %v1202
      %v1221 = vsel %vm926, %v1204, 0
      %v1224 = vsel %vm926, %v1205, 0
      %v1227 = vsel %vm926, %v1206, 0
      %v1230 = vsel %vm926, %v1207, 0
      %v1233 = vsel %vm926, %v1208, 0
      %v1236 = vsel %vm926, %v1209, 0
      %v1239 = vsel %vm926, %v1210, 0
      %v1242 = vsel %vm926, %v1211, 0
      %v1245 = vsel %vm926, %v1212, 0
      %v1248 = vsel %vm926, %v1213, 0
      %v1251 = vsel %vm926, %v1214, 0
      %v1254 = vsel %vm926, %v1215, 0
      %v1257 = vsel %vm926, %v1216, 0
      %v1260 = vsel %vm926, %v1217, 0
      %v1263 = vsel %vm926, %v1218, 0
      %v1266 = vsel %vm926, %v1219, 0
      %v1269 = vsel %vm975, %v488, 0
      %1271 = vmatprep.subr.bf16.mxu0 0
      %1272 = vmatpush1.bf16.msra.mxu0 %v1269
      %1273 = vmatprep.subr.bf16.mxu0 0
      %1274 = vmatpush1.bf16.msra.mxu0 0
      %1275 = vmatprep.subr.bf16.mxu0 0
      %1276 = vmatpush1.bf16.msra.mxu0 0
      %1277 = vmatprep.subr.bf16.mxu0 0
      %1278 = vmatpush1.bf16.msra.mxu0 0
      %1279 = vmatprep.subr.bf16.mxu0 0
      %1280 = vmatpush1.bf16.msra.mxu0 0
      %1281 = vmatprep.subr.bf16.mxu0 0
      %1282 = vmatpush1.bf16.msra.mxu0 0
      %1283 = vmatprep.subr.bf16.mxu0 0
      %1284 = vmatpush1.bf16.msra.mxu0 0
      %1285 = vmatprep.subr.bf16.mxu0 0
      %1286 = vmatpush1.bf16.msra.mxu0 0
      %1287 = vmatprep.subr.bf16.mxu0 0
      %1288 = vmatpush1.bf16.msra.mxu0 0
      %1289 = vmatprep.subr.bf16.mxu0 0
      %1290 = vmatpush1.bf16.msra.mxu0 0
      %1291 = vmatprep.subr.bf16.mxu0 0
      %1292 = vmatpush1.bf16.msra.mxu0 0
      %1293 = vmatprep.subr.bf16.mxu0 0
      %1294 = vmatpush1.bf16.msra.mxu0 0
      %1295 = vmatprep.subr.bf16.mxu0 0
      %1296 = vmatpush1.bf16.msra.mxu0 0
      %1297 = vmatprep.subr.bf16.mxu0 0
      %1298 = vmatpush1.bf16.msra.mxu0 0
      %1299 = vmatprep.subr.bf16.mxu0 0
      %1300 = vmatpush1.bf16.msra.mxu0 0
      %1301 = vmatprep.subr.bf16.mxu0 0
      %1302 = vmatpush1.bf16.msra.mxu0 0
      %1303 = vmatprep.mubr.bf16.mxu0 0
      %1304 = vmatmul.mubr.bf16.gmra.mrb[0].mxu0 %v1221
      %v1305 = vpop.f32.mrb[0].mxu0
      %v1306 = vadd.f32 %v1014, %v1305
      %v1307 = vpop.f32.mrb[0].mxu0
      %v1308 = vpop.f32.mrb[0].mxu0
      %v1309 = vadd.f32 %v1017, %v1308
      %v1310 = vpop.f32.mrb[0].mxu0
      %1311 = vmatprep.mubr.bf16.mxu0 0
      %1312 = vmatmul.mubr.bf16.gmra.mrb[0].mxu0 %v1224
      %v1313 = vpop.f32.mrb[0].mxu0
      %v1314 = vadd.f32 %v1022, %v1313
      %v1315 = vpop.f32.mrb[0].mxu0
      %v1316 = vpop.f32.mrb[0].mxu0
      %v1317 = vadd.f32 %v1025, %v1316
      %v1318 = vpop.f32.mrb[0].mxu0
      %1319 = vmatprep.mubr.bf16.mxu0 0
      %1320 = vmatmul.mubr.bf16.gmra.mrb[0].mxu0 %v1227
      %v1321 = vpop.f32.mrb[0].mxu0
      %v1322 = vadd.f32 %v1030, %v1321
      %v1323 = vpop.f32.mrb[0].mxu0
      %v1324 = vpop.f32.mrb[0].mxu0
      %v1325 = vadd.f32 %v1033, %v1324
      %v1326 = vpop.f32.mrb[0].mxu0
      %1327 = vmatprep.mubr.bf16.mxu0 0
      %1328 = vmatmul.mubr.bf16.gmra.mrb[0].mxu0 %v1230
      %v1329 = vpop.f32.mrb[0].mxu0
      %v1330 = vadd.f32 %v1038, %v1329
      %v1331 = vpop.f32.mrb[0].mxu0
      %v1332 = vpop.f32.mrb[0].mxu0
      %v1333 = vadd.f32 %v1041, %v1332
      %v1334 = vpop.f32.mrb[0].mxu0
      %1335 = vmatprep.mubr.bf16.mxu0 0
      %1336 = vmatmul.mubr.bf16.gmra.mrb[0].mxu0 %v1233
      %v1337 = vpop.f32.mrb[0].mxu0
      %v1338 = vadd.f32 %v1046, %v1337
      %v1339 = vpop.f32.mrb[0].mxu0
      %v1340 = vpop.f32.mrb[0].mxu0
      %v1341 = vadd.f32 %v1049, %v1340
      %v1342 = vpop.f32.mrb[0].mxu0
      %1343 = vmatprep.mubr.bf16.mxu0 0
      %1344 = vmatmul.mubr.bf16.gmra.mrb[0].mxu0 %v1236
      %v1345 = vpop.f32.mrb[0].mxu0
      %v1346 = vadd.f32 %v1054, %v1345
      %v1347 = vpop.f32.mrb[0].mxu0
      %v1348 = vpop.f32.mrb[0].mxu0
      %v1349 = vadd.f32 %v1057, %v1348
      %v1350 = vpop.f32.mrb[0].mxu0
      %1351 = vmatprep.mubr.bf16.mxu0 0
      %1352 = vmatmul.mubr.bf16.gmra.mrb[0].mxu0 %v1239
      %v1353 = vpop.f32.mrb[0].mxu0
      %v1354 = vadd.f32 %v1062, %v1353
      %v1355 = vpop.f32.mrb[0].mxu0
      %v1356 = vpop.f32.mrb[0].mxu0
      %v1357 = vadd.f32 %v1065, %v1356
      %v1358 = vpop.f32.mrb[0].mxu0
      %1359 = vmatprep.mubr.bf16.mxu0 0
      %1360 = vmatmul.mubr.bf16.gmra.mrb[0].mxu0 %v1242
      %v1361 = vpop.f32.mrb[0].mxu0
      %v1362 = vadd.f32 %v1070, %v1361
      %v1363 = vpop.f32.mrb[0].mxu0
      %v1364 = vpop.f32.mrb[0].mxu0
      %v1365 = vadd.f32 %v1073, %v1364
      %v1366 = vpop.f32.mrb[0].mxu0
      %1367 = vmatprep.mubr.bf16.mxu0 0
      %1368 = vmatmul.mubr.bf16.gmra.mrb[0].mxu0 %v1245
      %v1369 = vpop.f32.mrb[0].mxu0
      %v1370 = vadd.f32 %v1078, %v1369
      %v1371 = vpop.f32.mrb[0].mxu0
      %v1372 = vpop.f32.mrb[0].mxu0
      %v1373 = vadd.f32 %v1081, %v1372
      %v1374 = vpop.f32.mrb[0].mxu0
      %1375 = vmatprep.mubr.bf16.mxu0 0
      %1376 = vmatmul.mubr.bf16.gmra.mrb[0].mxu0 %v1248
      %v1377 = vpop.f32.mrb[0].mxu0
      %v1378 = vadd.f32 %v1086, %v1377
      %v1379 = vpop.f32.mrb[0].mxu0
      %v1380 = vpop.f32.mrb[0].mxu0
      %v1381 = vadd.f32 %v1089, %v1380
      %v1382 = vpop.f32.mrb[0].mxu0
      %1383 = vmatprep.mubr.bf16.mxu0 0
      %1384 = vmatmul.mubr.bf16.gmra.mrb[0].mxu0 %v1251
      %v1385 = vpop.f32.mrb[0].mxu0
      %v1386 = vadd.f32 %v1094, %v1385
      %v1387 = vpop.f32.mrb[0].mxu0
      %v1388 = vpop.f32.mrb[0].mxu0
      %v1389 = vadd.f32 %v1097, %v1388
      %v1390 = vpop.f32.mrb[0].mxu0
      %1391 = vmatprep.mubr.bf16.mxu0 0
      %1392 = vmatmul.mubr.bf16.gmra.mrb[0].mxu0 %v1254
      %v1393 = vpop.f32.mrb[0].mxu0
      %v1394 = vadd.f32 %v1102, %v1393
      %v1395 = vpop.f32.mrb[0].mxu0
      %v1396 = vpop.f32.mrb[0].mxu0
      %v1397 = vadd.f32 %v1105, %v1396
      %v1398 = vpop.f32.mrb[0].mxu0
      %1399 = vmatprep.mubr.bf16.mxu0 0
      %1400 = vmatmul.mubr.bf16.gmra.mrb[0].mxu0 %v1257
      %v1401 = vpop.f32.mrb[0].mxu0
      %v1402 = vadd.f32 %v1110, %v1401
      %v1403 = vpop.f32.mrb[0].mxu0
      %v1404 = vpop.f32.mrb[0].mxu0
      %v1405 = vadd.f32 %v1113, %v1404
      %v1406 = vpop.f32.mrb[0].mxu0
      %1407 = vmatprep.mubr.bf16.mxu0 0
      %1408 = vmatmul.mubr.bf16.gmra.mrb[0].mxu0 %v1260
      %v1409 = vpop.f32.mrb[0].mxu0
      %v1410 = vadd.f32 %v1118, %v1409
      %v1411 = vpop.f32.mrb[0].mxu0
      %v1412 = vpop.f32.mrb[0].mxu0
      %v1413 = vadd.f32 %v1121, %v1412
      %v1414 = vpop.f32.mrb[0].mxu0
      %1415 = vmatprep.mubr.bf16.mxu0 0
      %1416 = vmatmul.mubr.bf16.gmra.mrb[0].mxu0 %v1263
      %v1417 = vpop.f32.mrb[0].mxu0
      %v1418 = vadd.f32 %v1126, %v1417
      %v1419 = vpop.f32.mrb[0].mxu0
      %v1420 = vpop.f32.mrb[0].mxu0
      %v1421 = vadd.f32 %v1129, %v1420
      %v1422 = vpop.f32.mrb[0].mxu0
      %1423 = vmatprep.mubr.bf16.mxu0 0
      %1424 = vmatmul.mubr.bf16.gmra.mrb[0].mxu0 %v1266
      %v1425 = vpop.f32.mrb[0].mxu0
      %v1426 = vadd.f32 %v1134, %v1425
      %v1427 = vpop.f32.mrb[0].mxu0
      %v1428 = vpop.f32.mrb[0].mxu0
      %v1429 = vadd.f32 %v1137, %v1428
      %v1430 = vpop.f32.mrb[0].mxu0
      %1431 = vdwg.mxu0
      %vm1448 = vcmask 1042432
      %vm1449 = vcmask 1046532
      %vm1450 = vmor %vm1448, %vm1449
      %v1451 = vrot.slane %v434, 5
      %v1452 = vrot.slane %v1451, 4
      %v1453 = vrot.slane %v435, 5
      %v1454 = vsel %vm1450, %v1452, %v1453
      %v1455 = vrot.slane %v1453, 4
      %v1456 = vrot.slane %v436, 5
      %v1457 = vsel %vm1450, %v1455, %v1456
      %v1458 = vrot.slane %v437, 5
      %v1459 = vrot.slane %v1458, 4
      %v1460 = vrot.slane %v438, 5
      %v1461 = vsel %vm1450, %v1459, %v1460
      %v1462 = vrot.slane %v1460, 4
      %v1463 = vrot.slane %v439, 5
      %v1464 = vsel %vm1450, %v1462, %v1463
      %v1465 = vrot.slane %v440, 5
      %v1466 = vrot.slane %v1465, 4
      %v1467 = vrot.slane %v441, 5
      %v1468 = vsel %vm1450, %v1466, %v1467
      %v1469 = vrot.slane %v1467, 4
      %v1470 = vrot.slane %v442, 5
      %v1471 = vsel %vm1450, %v1469, %v1470
      %v1472 = vrot.slane %v443, 5
      %v1473 = vrot.slane %v1472, 4
      %v1474 = vrot.slane %v444, 5
      %v1475 = vsel %vm1450, %v1473, %v1474
      %v1476 = vrot.slane %v1474, 4
      %v1477 = vrot.slane %v445, 5
      %v1478 = vsel %vm1450, %v1476, %v1477
      %v1479 = vrot.slane %v446, 5
      %v1480 = vrot.slane %v1479, 4
      %v1481 = vrot.slane %v447, 5
      %v1482 = vsel %vm1450, %v1480, %v1481
      %v1483 = vrot.slane %v1481, 4
      %v1484 = vrot.slane %v448, 5
      %v1485 = vsel %vm1450, %v1483, %v1484
      %v1486 = vrot.slane %v449, 5
      %v1487 = vrot.slane %v1486, 4
      %v1488 = vrot.slane %v450, 5
      %v1489 = vsel %vm1450, %v1487, %v1488
      %v1490 = vrot.slane %v1488, 4
      %v1491 = vrot.slane %v451, 5
      %v1492 = vsel %vm1450, %v1490, %v1491
      %v1493 = vrot.slane %v452, 5
      %v1494 = vrot.slane %v1493, 4
      %v1495 = vrot.slane %v453, 5
      %v1496 = vsel %vm1450, %v1494, %v1495
      %v1497 = vrot.slane %v1495, 4
      %v1498 = vrot.slane %v454, 5
      %v1499 = vsel %vm1450, %v1497, %v1498
      %v1500 = vrot.slane %v455, 5
      %v1501 = vrot.slane %v1500, 4
      %v1502 = vrot.slane %v456, 5
      %v1503 = vsel %vm1450, %v1501, %v1502
      %v1504 = vrot.slane %v1502, 4
      %v1505 = vrot.slane %v457, 5
      %v1506 = vsel %vm1450, %v1504, %v1505
      %v1507 = vrot.slane %v458, 5
      %v1508 = vrot.slane %v1507, 4
      %v1509 = vrot.slane %v459, 5
      %v1510 = vsel %vm1450, %v1508, %v1509
      %v1511 = vrot.slane %v1509, 4
      %v1512 = vrot.slane %v460, 5
      %v1513 = vsel %vm1450, %v1511, %v1512
      %v1514 = vrot.slane %v461, 5
      %v1515 = vrot.slane %v1514, 4
      %v1516 = vrot.slane %v462, 5
      %v1517 = vsel %vm1450, %v1515, %v1516
      %v1518 = vrot.slane %v1516, 4
      %v1519 = vrot.slane %v463, 5
      %v1520 = vsel %vm1450, %v1518, %v1519
      %v1521 = vrot.slane %v464, 5
      %v1522 = vrot.slane %v1521, 4
      %v1523 = vrot.slane %v465, 5
      %v1524 = vsel %vm1450, %v1522, %v1523
      %v1525 = vrot.slane %v1523, 4
      %v1526 = vrot.slane %v466, 5
      %v1527 = vsel %vm1450, %v1525, %v1526
      %v1528 = vrot.slane %v467, 5
      %v1529 = vrot.slane %v1528, 4
      %v1530 = vrot.slane %v468, 5
      %v1531 = vsel %vm1450, %v1529, %v1530
      %v1532 = vrot.slane %v1530, 4
      %v1533 = vrot.slane %v469, 5
      %v1534 = vsel %vm1450, %v1532, %v1533
      %v1535 = vrot.slane %v470, 5
      %v1536 = vrot.slane %v1535, 4
      %v1537 = vrot.slane %v471, 5
      %v1538 = vsel %vm1450, %v1536, %v1537
      %v1539 = vrot.slane %v1537, 4
      %v1540 = vrot.slane %v472, 5
      %v1541 = vsel %vm1450, %v1539, %v1540
      %v1542 = vrot.slane %v473, 5
      %v1543 = vrot.slane %v1542, 4
      %v1544 = vrot.slane %v474, 5
      %v1545 = vsel %vm1450, %v1543, %v1544
      %v1546 = vrot.slane %v1544, 4
      %v1547 = vrot.slane %v475, 5
      %v1548 = vsel %vm1450, %v1546, %v1547
      %v1549 = vrot.slane %v476, 5
      %v1550 = vrot.slane %v1549, 4
      %v1551 = vrot.slane %v477, 5
      %v1552 = vsel %vm1450, %v1550, %v1551
      %v1553 = vrot.slane %v1551, 4
      %v1554 = vrot.slane %v478, 5
      %v1555 = vsel %vm1450, %v1553, %v1554
      %v1556 = vrot.slane %v479, 5
      %v1557 = vrot.slane %v1556, 4
      %v1558 = vrot.slane %v480, 5
      %v1559 = vsel %vm1450, %v1557, %v1558
      %v1560 = vrot.slane %v1558, 4
      %v1561 = vrot.slane %v481, 5
      %v1562 = vsel %vm1450, %v1560, %v1561
      %s1563 = scalar_lea.vmem %s3, 4
      %v1564 = vld [vmem:[%s1563] sm:$0x3]
      %v1565 = vunpack.c.l.b16 %v1454
      %v1566 = vunpack.c.l.b16 %v1457
      %v1567 = vunpack.c.l.b16 %v1461
      %v1568 = vunpack.c.l.b16 %v1464
      %v1569 = vunpack.c.l.b16 %v1468
      %v1570 = vunpack.c.l.b16 %v1471
      %v1571 = vunpack.c.l.b16 %v1475
      %v1572 = vunpack.c.l.b16 %v1478
      %v1573 = vunpack.c.l.b16 %v1482
      %v1574 = vunpack.c.l.b16 %v1485
      %v1575 = vunpack.c.l.b16 %v1489
      %v1576 = vunpack.c.l.b16 %v1492
      %v1577 = vunpack.c.l.b16 %v1496
      %v1578 = vunpack.c.l.b16 %v1499
      %v1579 = vunpack.c.l.b16 %v1503
      %v1580 = vunpack.c.l.b16 %v1506
      %v1581 = vunpack.c.l.b16 %v1510
      %v1582 = vunpack.c.l.b16 %v1513
      %v1583 = vunpack.c.l.b16 %v1517
      %v1584 = vunpack.c.l.b16 %v1520
      %v1585 = vunpack.c.l.b16 %v1524
      %v1586 = vunpack.c.l.b16 %v1527
      %v1587 = vunpack.c.l.b16 %v1531
      %v1588 = vunpack.c.l.b16 %v1534
      %v1589 = vunpack.c.l.b16 %v1538
      %v1590 = vunpack.c.l.b16 %v1541
      %v1591 = vunpack.c.l.b16 %v1545
      %v1592 = vunpack.c.l.b16 %v1548
      %v1593 = vunpack.c.l.b16 %v1552
      %v1594 = vunpack.c.l.b16 %v1555
      %v1595 = vunpack.c.l.b16 %v1559
      %v1596 = vunpack.c.l.b16 %v1562
      %v1597 = vpack.c.b16 %v1566, %v1565
      %v1598 = vpack.c.b16 %v1568, %v1567
      %v1599 = vpack.c.b16 %v1570, %v1569
      %v1600 = vpack.c.b16 %v1572, %v1571
      %v1601 = vpack.c.b16 %v1574, %v1573
      %v1602 = vpack.c.b16 %v1576, %v1575
      %v1603 = vpack.c.b16 %v1578, %v1577
      %v1604 = vpack.c.b16 %v1580, %v1579
      %v1605 = vpack.c.b16 %v1582, %v1581
      %v1606 = vpack.c.b16 %v1584, %v1583
      %v1607 = vpack.c.b16 %v1586, %v1585
      %v1608 = vpack.c.b16 %v1588, %v1587
      %v1609 = vpack.c.b16 %v1590, %v1589
      %v1610 = vpack.c.b16 %v1592, %v1591
      %v1611 = vpack.c.b16 %v1594, %v1593
      %v1612 = vpack.c.b16 %v1596, %v1595
      %v1614 = vsel %vm926, %v1597, 0
      %v1617 = vsel %vm926, %v1598, 0
      %v1620 = vsel %vm926, %v1599, 0
      %v1623 = vsel %vm926, %v1600, 0
      %v1626 = vsel %vm926, %v1601, 0
      %v1629 = vsel %vm926, %v1602, 0
      %v1632 = vsel %vm926, %v1603, 0
      %v1635 = vsel %vm926, %v1604, 0
      %v1638 = vsel %vm926, %v1605, 0
      %v1641 = vsel %vm926, %v1606, 0
      %v1644 = vsel %vm926, %v1607, 0
      %v1647 = vsel %vm926, %v1608, 0
      %v1650 = vsel %vm926, %v1609, 0
      %v1653 = vsel %vm926, %v1610, 0
      %v1656 = vsel %vm926, %v1611, 0
      %v1659 = vsel %vm926, %v1612, 0
      %v1662 = vsel %vm975, %v1564, 0
      %1664 = vmatprep.subr.bf16.mxu0 0
      %1665 = vmatpush1.bf16.msra.mxu0 %v1662
      %1666 = vmatprep.subr.bf16.mxu0 0
      %1667 = vmatpush1.bf16.msra.mxu0 0
      %1668 = vmatprep.subr.bf16.mxu0 0
      %1669 = vmatpush1.bf16.msra.mxu0 0
      %1670 = vmatprep.subr.bf16.mxu0 0
      %1671 = vmatpush1.bf16.msra.mxu0 0
      %1672 = vmatprep.subr.bf16.mxu0 0
      %1673 = vmatpush1.bf16.msra.mxu0 0
      %1674 = vmatprep.subr.bf16.mxu0 0
      %1675 = vmatpush1.bf16.msra.mxu0 0
      %1676 = vmatprep.subr.bf16.mxu0 0
      %1677 = vmatpush1.bf16.msra.mxu0 0
      %1678 = vmatprep.subr.bf16.mxu0 0
      %1679 = vmatpush1.bf16.msra.mxu0 0
      %1680 = vmatprep.subr.bf16.mxu0 0
      %1681 = vmatpush1.bf16.msra.mxu0 0
      %1682 = vmatprep.subr.bf16.mxu0 0
      %1683 = vmatpush1.bf16.msra.mxu0 0
      %1684 = vmatprep.subr.bf16.mxu0 0
      %1685 = vmatpush1.bf16.msra.mxu0 0
      %1686 = vmatprep.subr.bf16.mxu0 0
      %1687 = vmatpush1.bf16.msra.mxu0 0
      %1688 = vmatprep.subr.bf16.mxu0 0
      %1689 = vmatpush1.bf16.msra.mxu0 0
      %1690 = vmatprep.subr.bf16.mxu0 0
      %1691 = vmatpush1.bf16.msra.mxu0 0
      %1692 = vmatprep.subr.bf16.mxu0 0
      %1693 = vmatpush1.bf16.msra.mxu0 0
      %1694 = vmatprep.subr.bf16.mxu0 0
      %1695 = vmatpush1.bf16.msra.mxu0 0
      %1696 = vmatprep.mubr.bf16.mxu0 0
      %1697 = vmatmul.mubr.bf16.gmra.mrb[0].mxu0 %v1614
      %v1698 = vpop.f32.mrb[0].mxu0
      %v1699 = vadd.f32 0.0, %v1698
      %v1700 = vpop.f32.mrb[0].mxu0
      %v1701 = vpop.f32.mrb[0].mxu0
      %v1702 = vadd.f32 0.0, %v1701
      %v1703 = vpop.f32.mrb[0].mxu0
      %1704 = vmatprep.mubr.bf16.mxu0 0
      %1705 = vmatmul.mubr.bf16.gmra.mrb[0].mxu0 %v1617
      %v1706 = vpop.f32.mrb[0].mxu0
      %v1707 = vadd.f32 0.0, %v1706
      %v1708 = vpop.f32.mrb[0].mxu0
      %v1709 = vpop.f32.mrb[0].mxu0
      %v1710 = vadd.f32 0.0, %v1709
      %v1711 = vpop.f32.mrb[0].mxu0
      %1712 = vmatprep.mubr.bf16.mxu0 0
      %1713 = vmatmul.mubr.bf16.gmra.mrb[0].mxu0 %v1620
      %v1714 = vpop.f32.mrb[0].mxu0
      %v1715 = vadd.f32 0.0, %v1714
      %v1716 = vpop.f32.mrb[0].mxu0
      %v1717 = vpop.f32.mrb[0].mxu0
      %v1718 = vadd.f32 0.0, %v1717
      %v1719 = vpop.f32.mrb[0].mxu0
      %1720 = vmatprep.mubr.bf16.mxu0 0
      %1721 = vmatmul.mubr.bf16.gmra.mrb[0].mxu0 %v1623
      %v1722 = vpop.f32.mrb[0].mxu0
      %v1723 = vadd.f32 0.0, %v1722
      %v1724 = vpop.f32.mrb[0].mxu0
      %v1725 = vpop.f32.mrb[0].mxu0
      %v1726 = vadd.f32 0.0, %v1725
      %v1727 = vpop.f32.mrb[0].mxu0
      %1728 = vmatprep.mubr.bf16.mxu0 0
      %1729 = vmatmul.mubr.bf16.gmra.mrb[0].mxu0 %v1626
      %v1730 = vpop.f32.mrb[0].mxu0
      %v1731 = vadd.f32 0.0, %v1730
      %v1732 = vpop.f32.mrb[0].mxu0
      %v1733 = vpop.f32.mrb[0].mxu0
      %v1734 = vadd.f32 0.0, %v1733
      %v1735 = vpop.f32.mrb[0].mxu0
      %1736 = vmatprep.mubr.bf16.mxu0 0
      %1737 = vmatmul.mubr.bf16.gmra.mrb[0].mxu0 %v1629
      %v1738 = vpop.f32.mrb[0].mxu0
      %v1739 = vadd.f32 0.0, %v1738
      %v1740 = vpop.f32.mrb[0].mxu0
      %v1741 = vpop.f32.mrb[0].mxu0
      %v1742 = vadd.f32 0.0, %v1741
      %v1743 = vpop.f32.mrb[0].mxu0
      %1744 = vmatprep.mubr.bf16.mxu0 0
      %1745 = vmatmul.mubr.bf16.gmra.mrb[0].mxu0 %v1632
      %v1746 = vpop.f32.mrb[0].mxu0
      %v1747 = vadd.f32 0.0, %v1746
      %v1748 = vpop.f32.mrb[0].mxu0
      %v1749 = vpop.f32.mrb[0].mxu0
      %v1750 = vadd.f32 0.0, %v1749
      %v1751 = vpop.f32.mrb[0].mxu0
      %1752 = vmatprep.mubr.bf16.mxu0 0
      %1753 = vmatmul.mubr.bf16.gmra.mrb[0].mxu0 %v1635
      %v1754 = vpop.f32.mrb[0].mxu0
      %v1755 = vadd.f32 0.0, %v1754
      %v1756 = vpop.f32.mrb[0].mxu0
      %v1757 = vpop.f32.mrb[0].mxu0
      %v1758 = vadd.f32 0.0, %v1757
      %v1759 = vpop.f32.mrb[0].mxu0
      %1760 = vmatprep.mubr.bf16.mxu0 0
      %1761 = vmatmul.mubr.bf16.gmra.mrb[0].mxu0 %v1638
      %v1762 = vpop.f32.mrb[0].mxu0
      %v1763 = vadd.f32 0.0, %v1762
      %v1764 = vpop.f32.mrb[0].mxu0
      %v1765 = vpop.f32.mrb[0].mxu0
      %v1766 = vadd.f32 0.0, %v1765
      %v1767 = vpop.f32.mrb[0].mxu0
      %1768 = vmatprep.mubr.bf16.mxu0 0
      %1769 = vmatmul.mubr.bf16.gmra.mrb[0].mxu0 %v1641
      %v1770 = vpop.f32.mrb[0].mxu0
      %v1771 = vadd.f32 0.0, %v1770
      %v1772 = vpop.f32.mrb[0].mxu0
      %v1773 = vpop.f32.mrb[0].mxu0
      %v1774 = vadd.f32 0.0, %v1773
      %v1775 = vpop.f32.mrb[0].mxu0
      %1776 = vmatprep.mubr.bf16.mxu0 0
      %1777 = vmatmul.mubr.bf16.gmra.mrb[0].mxu0 %v1644
      %v1778 = vpop.f32.mrb[0].mxu0
      %v1779 = vadd.f32 0.0, %v1778
      %v1780 = vpop.f32.mrb[0].mxu0
      %v1781 = vpop.f32.mrb[0].mxu0
      %v1782 = vadd.f32 0.0, %v1781
      %v1783 = vpop.f32.mrb[0].mxu0
      %1784 = vmatprep.mubr.bf16.mxu0 0
      %1785 = vmatmul.mubr.bf16.gmra.mrb[0].mxu0 %v1647
      %v1786 = vpop.f32.mrb[0].mxu0
      %v1787 = vadd.f32 0.0, %v1786
      %v1788 = vpop.f32.mrb[0].mxu0
      %v1789 = vpop.f32.mrb[0].mxu0
      %v1790 = vadd.f32 0.0, %v1789
      %v1791 = vpop.f32.mrb[0].mxu0
      %1792 = vmatprep.mubr.bf16.mxu0 0
      %1793 = vmatmul.mubr.bf16.gmra.mrb[0].mxu0 %v1650
      %v1794 = vpop.f32.mrb[0].mxu0
      %v1795 = vadd.f32 0.0, %v1794
      %v1796 = vpop.f32.mrb[0].mxu0
      %v1797 = vpop.f32.mrb[0].mxu0
      %v1798 = vadd.f32 0.0, %v1797
      %v1799 = vpop.f32.mrb[0].mxu0
      %1800 = vmatprep.mubr.bf16.mxu0 0
      %1801 = vmatmul.mubr.bf16.gmra.mrb[0].mxu0 %v1653
      %v1802 = vpop.f32.mrb[0].mxu0
      %v1803 = vadd.f32 0.0, %v1802
      %v1804 = vpop.f32.mrb[0].mxu0
      %v1805 = vpop.f32.mrb[0].mxu0
      %v1806 = vadd.f32 0.0, %v1805
      %v1807 = vpop.f32.mrb[0].mxu0
      %1808 = vmatprep.mubr.bf16.mxu0 0
      %1809 = vmatmul.mubr.bf16.gmra.mrb[0].mxu0 %v1656
      %v1810 = vpop.f32.mrb[0].mxu0
      %v1811 = vadd.f32 0.0, %v1810
      %v1812 = vpop.f32.mrb[0].mxu0
      %v1813 = vpop.f32.mrb[0].mxu0
      %v1814 = vadd.f32 0.0, %v1813
      %v1815 = vpop.f32.mrb[0].mxu0
      %1816 = vmatprep.mubr.bf16.mxu0 0
      %1817 = vmatmul.mubr.bf16.gmra.mrb[0].mxu0 %v1659
      %v1818 = vpop.f32.mrb[0].mxu0
      %v1819 = vadd.f32 0.0, %v1818
      %v1820 = vpop.f32.mrb[0].mxu0
      %v1821 = vpop.f32.mrb[0].mxu0
      %v1822 = vadd.f32 0.0, %v1821
      %v1823 = vpop.f32.mrb[0].mxu0
      %1824 = vdwg.mxu0
      %v1825 = vadd.f32 %v1306, %v1699
      %v1826 = vadd.f32 %v1309, %v1702
      %v1827 = vadd.f32 %v1314, %v1707
      %v1828 = vadd.f32 %v1317, %v1710
      %v1829 = vadd.f32 %v1322, %v1715
      %v1830 = vadd.f32 %v1325, %v1718
      %v1831 = vadd.f32 %v1330, %v1723
      %v1832 = vadd.f32 %v1333, %v1726
      %v1833 = vadd.f32 %v1338, %v1731
      %v1834 = vadd.f32 %v1341, %v1734
      %v1835 = vadd.f32 %v1346, %v1739
      %v1836 = vadd.f32 %v1349, %v1742
      %v1837 = vadd.f32 %v1354, %v1747
      %v1838 = vadd.f32 %v1357, %v1750
      %v1839 = vadd.f32 %v1362, %v1755
      %v1840 = vadd.f32 %v1365, %v1758
      %v1841 = vadd.f32 %v1370, %v1763
      %v1842 = vadd.f32 %v1373, %v1766
      %v1843 = vadd.f32 %v1378, %v1771
      %v1844 = vadd.f32 %v1381, %v1774
      %v1845 = vadd.f32 %v1386, %v1779
      %v1846 = vadd.f32 %v1389, %v1782
      %v1847 = vadd.f32 %v1394, %v1787
      %v1848 = vadd.f32 %v1397, %v1790
      %v1849 = vadd.f32 %v1402, %v1795
      %v1850 = vadd.f32 %v1405, %v1798
      %v1851 = vadd.f32 %v1410, %v1803
      %v1852 = vadd.f32 %v1413, %v1806
      %v1853 = vadd.f32 %v1418, %v1811
      %v1854 = vadd.f32 %v1421, %v1814
      %v1855 = vadd.f32 %v1426, %v1819
      %v1856 = vadd.f32 %v1429, %v1822
      %s1857 = scalar_lea.vmem %s3, 6
      %v1858 = vld [vmem:[%s1857] sm:$0x3]
      %v1861 = vunpack.c.l.b16 %v482
      %v1862 = vunpack.c.l.b16 %v483
      %v1863 = vpack.c.b16 %v1862, %v1861
      %v1865 = vsel %vm926, %v1863, 0
      %v1868 = vsel %vm975, %v1858, 0
      %1870 = vmatprep.subr.bf16.mxu0 0
      %1871 = vmatpush1.bf16.msra.mxu0 %v1868
      %1872 = vmatprep.subr.bf16.mxu0 0
      %1873 = vmatpush1.bf16.msra.mxu0 0
      %1874 = vmatprep.subr.bf16.mxu0 0
      %1875 = vmatpush1.bf16.msra.mxu0 0
      %1876 = vmatprep.subr.bf16.mxu0 0
      %1877 = vmatpush1.bf16.msra.mxu0 0
      %1878 = vmatprep.subr.bf16.mxu0 0
      %1879 = vmatpush1.bf16.msra.mxu0 0
      %1880 = vmatprep.subr.bf16.mxu0 0
      %1881 = vmatpush1.bf16.msra.mxu0 0
      %1882 = vmatprep.subr.bf16.mxu0 0
      %1883 = vmatpush1.bf16.msra.mxu0 0
      %1884 = vmatprep.subr.bf16.mxu0 0
      %1885 = vmatpush1.bf16.msra.mxu0 0
      %1886 = vmatprep.subr.bf16.mxu0 0
      %1887 = vmatpush1.bf16.msra.mxu0 0
      %1888 = vmatprep.subr.bf16.mxu0 0
      %1889 = vmatpush1.bf16.msra.mxu0 0
      %1890 = vmatprep.subr.bf16.mxu0 0
      %1891 = vmatpush1.bf16.msra.mxu0 0
      %1892 = vmatprep.subr.bf16.mxu0 0
      %1893 = vmatpush1.bf16.msra.mxu0 0
      %1894 = vmatprep.subr.bf16.mxu0 0
      %1895 = vmatpush1.bf16.msra.mxu0 0
      %1896 = vmatprep.subr.bf16.mxu0 0
      %1897 = vmatpush1.bf16.msra.mxu0 0
      %1898 = vmatprep.subr.bf16.mxu0 0
      %1899 = vmatpush1.bf16.msra.mxu0 0
      %1900 = vmatprep.subr.bf16.mxu0 0
      %1901 = vmatpush1.bf16.msra.mxu0 0
      %1902 = vmatprep.mubr.bf16.mxu0 0
      %1903 = vmatmul.mubr.bf16.gmra.mrb[0].mxu0 %v1224
      %v1904 = vpop.f32.mrb[0].mxu0
      %v1905 = vadd.f32 0.0, %v1904
      %v1906 = vpop.f32.mrb[0].mxu0
      %v1907 = vpop.f32.mrb[0].mxu0
      %v1908 = vadd.f32 0.0, %v1907
      %v1909 = vpop.f32.mrb[0].mxu0
      %1910 = vmatprep.mubr.bf16.mxu0 0
      %1911 = vmatmul.mubr.bf16.gmra.mrb[0].mxu0 %v1227
      %v1912 = vpop.f32.mrb[0].mxu0
      %v1913 = vadd.f32 0.0, %v1912
      %v1914 = vpop.f32.mrb[0].mxu0
      %v1915 = vpop.f32.mrb[0].mxu0
      %v1916 = vadd.f32 0.0, %v1915
      %v1917 = vpop.f32.mrb[0].mxu0
      %1918 = vmatprep.mubr.bf16.mxu0 0
      %1919 = vmatmul.mubr.bf16.gmra.mrb[0].mxu0 %v1230
      %v1920 = vpop.f32.mrb[0].mxu0
      %v1921 = vadd.f32 0.0, %v1920
      %v1922 = vpop.f32.mrb[0].mxu0
      %v1923 = vpop.f32.mrb[0].mxu0
      %v1924 = vadd.f32 0.0, %v1923
      %v1925 = vpop.f32.mrb[0].mxu0
      %1926 = vmatprep.mubr.bf16.mxu0 0
      %1927 = vmatmul.mubr.bf16.gmra.mrb[0].mxu0 %v1233
      %v1928 = vpop.f32.mrb[0].mxu0
      %v1929 = vadd.f32 0.0, %v1928
      %v1930 = vpop.f32.mrb[0].mxu0
      %v1931 = vpop.f32.mrb[0].mxu0
      %v1932 = vadd.f32 0.0, %v1931
      %v1933 = vpop.f32.mrb[0].mxu0
      %1934 = vmatprep.mubr.bf16.mxu0 0
      %1935 = vmatmul.mubr.bf16.gmra.mrb[0].mxu0 %v1236
      %v1936 = vpop.f32.mrb[0].mxu0
      %v1937 = vadd.f32 0.0, %v1936
      %v1938 = vpop.f32.mrb[0].mxu0
      %v1939 = vpop.f32.mrb[0].mxu0
      %v1940 = vadd.f32 0.0, %v1939
      %v1941 = vpop.f32.mrb[0].mxu0
      %1942 = vmatprep.mubr.bf16.mxu0 0
      %1943 = vmatmul.mubr.bf16.gmra.mrb[0].mxu0 %v1239
      %v1944 = vpop.f32.mrb[0].mxu0
      %v1945 = vadd.f32 0.0, %v1944
      %v1946 = vpop.f32.mrb[0].mxu0
      %v1947 = vpop.f32.mrb[0].mxu0
      %v1948 = vadd.f32 0.0, %v1947
      %v1949 = vpop.f32.mrb[0].mxu0
      %1950 = vmatprep.mubr.bf16.mxu0 0
      %1951 = vmatmul.mubr.bf16.gmra.mrb[0].mxu0 %v1242
      %v1952 = vpop.f32.mrb[0].mxu0
      %v1953 = vadd.f32 0.0, %v1952
      %v1954 = vpop.f32.mrb[0].mxu0
      %v1955 = vpop.f32.mrb[0].mxu0
      %v1956 = vadd.f32 0.0, %v1955
      %v1957 = vpop.f32.mrb[0].mxu0
      %1958 = vmatprep.mubr.bf16.mxu0 0
      %1959 = vmatmul.mubr.bf16.gmra.mrb[0].mxu0 %v1245
      %v1960 = vpop.f32.mrb[0].mxu0
      %v1961 = vadd.f32 0.0, %v1960
      %v1962 = vpop.f32.mrb[0].mxu0
      %v1963 = vpop.f32.mrb[0].mxu0
      %v1964 = vadd.f32 0.0, %v1963
      %v1965 = vpop.f32.mrb[0].mxu0
      %1966 = vmatprep.mubr.bf16.mxu0 0
      %1967 = vmatmul.mubr.bf16.gmra.mrb[0].mxu0 %v1248
      %v1968 = vpop.f32.mrb[0].mxu0
      %v1969 = vadd.f32 0.0, %v1968
      %v1970 = vpop.f32.mrb[0].mxu0
      %v1971 = vpop.f32.mrb[0].mxu0
      %v1972 = vadd.f32 0.0, %v1971
      %v1973 = vpop.f32.mrb[0].mxu0
      %1974 = vmatprep.mubr.bf16.mxu0 0
      %1975 = vmatmul.mubr.bf16.gmra.mrb[0].mxu0 %v1251
      %v1976 = vpop.f32.mrb[0].mxu0
      %v1977 = vadd.f32 0.0, %v1976
      %v1978 = vpop.f32.mrb[0].mxu0
      %v1979 = vpop.f32.mrb[0].mxu0
      %v1980 = vadd.f32 0.0, %v1979
      %v1981 = vpop.f32.mrb[0].mxu0
      %1982 = vmatprep.mubr.bf16.mxu0 0
      %1983 = vmatmul.mubr.bf16.gmra.mrb[0].mxu0 %v1254
      %v1984 = vpop.f32.mrb[0].mxu0
      %v1985 = vadd.f32 0.0, %v1984
      %v1986 = vpop.f32.mrb[0].mxu0
      %v1987 = vpop.f32.mrb[0].mxu0
      %v1988 = vadd.f32 0.0, %v1987
      %v1989 = vpop.f32.mrb[0].mxu0
      %1990 = vmatprep.mubr.bf16.mxu0 0
      %1991 = vmatmul.mubr.bf16.gmra.mrb[0].mxu0 %v1257
      %v1992 = vpop.f32.mrb[0].mxu0
      %v1993 = vadd.f32 0.0, %v1992
      %v1994 = vpop.f32.mrb[0].mxu0
      %v1995 = vpop.f32.mrb[0].mxu0
      %v1996 = vadd.f32 0.0, %v1995
      %v1997 = vpop.f32.mrb[0].mxu0
      %1998 = vmatprep.mubr.bf16.mxu0 0
      %1999 = vmatmul.mubr.bf16.gmra.mrb[0].mxu0 %v1260
      %v2000 = vpop.f32.mrb[0].mxu0
      %v2001 = vadd.f32 0.0, %v2000
      %v2002 = vpop.f32.mrb[0].mxu0
      %v2003 = vpop.f32.mrb[0].mxu0
      %v2004 = vadd.f32 0.0, %v2003
      %v2005 = vpop.f32.mrb[0].mxu0
      %2006 = vmatprep.mubr.bf16.mxu0 0
      %2007 = vmatmul.mubr.bf16.gmra.mrb[0].mxu0 %v1263
      %v2008 = vpop.f32.mrb[0].mxu0
      %v2009 = vadd.f32 0.0, %v2008
      %v2010 = vpop.f32.mrb[0].mxu0
      %v2011 = vpop.f32.mrb[0].mxu0
      %v2012 = vadd.f32 0.0, %v2011
      %v2013 = vpop.f32.mrb[0].mxu0
      %2014 = vmatprep.mubr.bf16.mxu0 0
      %2015 = vmatmul.mubr.bf16.gmra.mrb[0].mxu0 %v1266
      %v2016 = vpop.f32.mrb[0].mxu0
      %v2017 = vadd.f32 0.0, %v2016
      %v2018 = vpop.f32.mrb[0].mxu0
      %v2019 = vpop.f32.mrb[0].mxu0
      %v2020 = vadd.f32 0.0, %v2019
      %v2021 = vpop.f32.mrb[0].mxu0
      %2022 = vmatprep.mubr.bf16.mxu0 0
      %2023 = vmatmul.mubr.bf16.gmra.mrb[0].mxu0 %v1865
      %v2024 = vpop.f32.mrb[0].mxu0
      %v2025 = vadd.f32 0.0, %v2024
      %v2026 = vpop.f32.mrb[0].mxu0
      %v2027 = vpop.f32.mrb[0].mxu0
      %v2028 = vadd.f32 0.0, %v2027
      %v2029 = vpop.f32.mrb[0].mxu0
      %2030 = vdwg.mxu0
      %v2031 = vadd.f32 %v1825, %v1905
      %v2032 = vadd.f32 %v1826, %v1908
      %v2033 = vadd.f32 %v1827, %v1913
      %v2034 = vadd.f32 %v1828, %v1916
      %v2035 = vadd.f32 %v1829, %v1921
      %v2036 = vadd.f32 %v1830, %v1924
      %v2037 = vadd.f32 %v1831, %v1929
      %v2038 = vadd.f32 %v1832, %v1932
      %v2039 = vadd.f32 %v1833, %v1937
      %v2040 = vadd.f32 %v1834, %v1940
      %v2041 = vadd.f32 %v1835, %v1945
      %v2042 = vadd.f32 %v1836, %v1948
      %v2043 = vadd.f32 %v1837, %v1953
      %v2044 = vadd.f32 %v1838, %v1956
      %v2045 = vadd.f32 %v1839, %v1961
      %v2046 = vadd.f32 %v1840, %v1964
      %v2047 = vadd.f32 %v1841, %v1969
      %v2048 = vadd.f32 %v1842, %v1972
      %v2049 = vadd.f32 %v1843, %v1977
      %v2050 = vadd.f32 %v1844, %v1980
      %v2051 = vadd.f32 %v1845, %v1985
      %v2052 = vadd.f32 %v1846, %v1988
      %v2053 = vadd.f32 %v1847, %v1993
      %v2054 = vadd.f32 %v1848, %v1996
      %v2055 = vadd.f32 %v1849, %v2001
      %v2056 = vadd.f32 %v1850, %v2004
      %v2057 = vadd.f32 %v1851, %v2009
      %v2058 = vadd.f32 %v1852, %v2012
      %v2059 = vadd.f32 %v1853, %v2017
      %v2060 = vadd.f32 %v1854, %v2020
      %v2061 = vadd.f32 %v1855, %v2025
      %v2062 = vadd.f32 %v1856, %v2028
      %v2064 = vshrl.u32 %v482, 16
      %v2066 = vrot.slane %v2064, 4
      %v2067 = vshll.u32 %v482, 16
      %v2069 = vrot.slane %v2067, 5
      %v2070 = vor.u32 %v2066, %v2069
      %v2071 = vrot.slane %v2070, 4
      %v2073 = vshll.u32 %v483, 16
      %v2075 = vrot.slane %v2073, 5
      %v2076 = vsel %vm491, %v2071, %v2075
      %v2077 = vshrl.u32 %v483, 16
      %v2079 = vrot.slane %v2077, 4
      %v2080 = vor.u32 %v2079, %v2075
      %v2081 = vrot.slane %v2080, 4
      %v2083 = vshll.u32 %v484, 16
      %v2085 = vrot.slane %v2083, 5
      %v2086 = vsel %vm491, %v2081, %v2085
      %s2087 = scalar_lea.vmem %s3, 8
      %v2088 = vld [vmem:[%s2087] sm:$0x3]
      %v2089 = vunpack.c.l.b16 %v2076
      %v2090 = vunpack.c.l.b16 %v2086
      %v2091 = vpack.c.b16 %v2090, %v2089
      %v2093 = vsel %vm926, %v2091, 0
      %v2096 = vsel %vm975, %v2088, 0
      %2098 = vmatprep.subr.bf16.mxu0 0
      %2099 = vmatpush1.bf16.msra.mxu0 %v2096
      %2100 = vmatprep.subr.bf16.mxu0 0
      %2101 = vmatpush1.bf16.msra.mxu0 0
      %2102 = vmatprep.subr.bf16.mxu0 0
      %2103 = vmatpush1.bf16.msra.mxu0 0
      %2104 = vmatprep.subr.bf16.mxu0 0
      %2105 = vmatpush1.bf16.msra.mxu0 0
      %2106 = vmatprep.subr.bf16.mxu0 0
      %2107 = vmatpush1.bf16.msra.mxu0 0
      %2108 = vmatprep.subr.bf16.mxu0 0
      %2109 = vmatpush1.bf16.msra.mxu0 0
      %2110 = vmatprep.subr.bf16.mxu0 0
      %2111 = vmatpush1.bf16.msra.mxu0 0
      %2112 = vmatprep.subr.bf16.mxu0 0
      %2113 = vmatpush1.bf16.msra.mxu0 0
      %2114 = vmatprep.subr.bf16.mxu0 0
      %2115 = vmatpush1.bf16.msra.mxu0 0
      %2116 = vmatprep.subr.bf16.mxu0 0
      %2117 = vmatpush1.bf16.msra.mxu0 0
      %2118 = vmatprep.subr.bf16.mxu0 0
      %2119 = vmatpush1.bf16.msra.mxu0 0
      %2120 = vmatprep.subr.bf16.mxu0 0
      %2121 = vmatpush1.bf16.msra.mxu0 0
      %2122 = vmatprep.subr.bf16.mxu0 0
      %2123 = vmatpush1.bf16.msra.mxu0 0
      %2124 = vmatprep.subr.bf16.mxu0 0
      %2125 = vmatpush1.bf16.msra.mxu0 0
      %2126 = vmatprep.subr.bf16.mxu0 0
      %2127 = vmatpush1.bf16.msra.mxu0 0
      %2128 = vmatprep.subr.bf16.mxu0 0
      %2129 = vmatpush1.bf16.msra.mxu0 0
      %2130 = vmatprep.mubr.bf16.mxu0 0
      %2131 = vmatmul.mubr.bf16.gmra.mrb[0].mxu0 %v931
      %v2132 = vpop.f32.mrb[0].mxu0
      %v2133 = vadd.f32 0.0, %v2132
      %v2134 = vpop.f32.mrb[0].mxu0
      %v2135 = vpop.f32.mrb[0].mxu0
      %v2136 = vadd.f32 0.0, %v2135
      %v2137 = vpop.f32.mrb[0].mxu0
      %2138 = vmatprep.mubr.bf16.mxu0 0
      %2139 = vmatmul.mubr.bf16.gmra.mrb[0].mxu0 %v934
      %v2140 = vpop.f32.mrb[0].mxu0
      %v2141 = vadd.f32 0.0, %v2140
      %v2142 = vpop.f32.mrb[0].mxu0
      %v2143 = vpop.f32.mrb[0].mxu0
      %v2144 = vadd.f32 0.0, %v2143
      %v2145 = vpop.f32.mrb[0].mxu0
      %2146 = vmatprep.mubr.bf16.mxu0 0
      %2147 = vmatmul.mubr.bf16.gmra.mrb[0].mxu0 %v937
      %v2148 = vpop.f32.mrb[0].mxu0
      %v2149 = vadd.f32 0.0, %v2148
      %v2150 = vpop.f32.mrb[0].mxu0
      %v2151 = vpop.f32.mrb[0].mxu0
      %v2152 = vadd.f32 0.0, %v2151
      %v2153 = vpop.f32.mrb[0].mxu0
      %2154 = vmatprep.mubr.bf16.mxu0 0
      %2155 = vmatmul.mubr.bf16.gmra.mrb[0].mxu0 %v940
      %v2156 = vpop.f32.mrb[0].mxu0
      %v2157 = vadd.f32 0.0, %v2156
      %v2158 = vpop.f32.mrb[0].mxu0
      %v2159 = vpop.f32.mrb[0].mxu0
      %v2160 = vadd.f32 0.0, %v2159
      %v2161 = vpop.f32.mrb[0].mxu0
      %2162 = vmatprep.mubr.bf16.mxu0 0
      %2163 = vmatmul.mubr.bf16.gmra.mrb[0].mxu0 %v943
      %v2164 = vpop.f32.mrb[0].mxu0
      %v2165 = vadd.f32 0.0, %v2164
      %v2166 = vpop.f32.mrb[0].mxu0
      %v2167 = vpop.f32.mrb[0].mxu0
      %v2168 = vadd.f32 0.0, %v2167
      %v2169 = vpop.f32.mrb[0].mxu0
      %2170 = vmatprep.mubr.bf16.mxu0 0
      %2171 = vmatmul.mubr.bf16.gmra.mrb[0].mxu0 %v946
      %v2172 = vpop.f32.mrb[0].mxu0
      %v2173 = vadd.f32 0.0, %v2172
      %v2174 = vpop.f32.mrb[0].mxu0
      %v2175 = vpop.f32.mrb[0].mxu0
      %v2176 = vadd.f32 0.0, %v2175
      %v2177 = vpop.f32.mrb[0].mxu0
      %2178 = vmatprep.mubr.bf16.mxu0 0
      %2179 = vmatmul.mubr.bf16.gmra.mrb[0].mxu0 %v949
      %v2180 = vpop.f32.mrb[0].mxu0
      %v2181 = vadd.f32 0.0, %v2180
      %v2182 = vpop.f32.mrb[0].mxu0
      %v2183 = vpop.f32.mrb[0].mxu0
      %v2184 = vadd.f32 0.0, %v2183
      %v2185 = vpop.f32.mrb[0].mxu0
      %2186 = vmatprep.mubr.bf16.mxu0 0
      %2187 = vmatmul.mubr.bf16.gmra.mrb[0].mxu0 %v952
      %v2188 = vpop.f32.mrb[0].mxu0
      %v2189 = vadd.f32 0.0, %v2188
      %v2190 = vpop.f32.mrb[0].mxu0
      %v2191 = vpop.f32.mrb[0].mxu0
      %v2192 = vadd.f32 0.0, %v2191
      %v2193 = vpop.f32.mrb[0].mxu0
      %2194 = vmatprep.mubr.bf16.mxu0 0
      %2195 = vmatmul.mubr.bf16.gmra.mrb[0].mxu0 %v955
      %v2196 = vpop.f32.mrb[0].mxu0
      %v2197 = vadd.f32 0.0, %v2196
      %v2198 = vpop.f32.mrb[0].mxu0
      %v2199 = vpop.f32.mrb[0].mxu0
      %v2200 = vadd.f32 0.0, %v2199
      %v2201 = vpop.f32.mrb[0].mxu0
      %2202 = vmatprep.mubr.bf16.mxu0 0
      %2203 = vmatmul.mubr.bf16.gmra.mrb[0].mxu0 %v958
      %v2204 = vpop.f32.mrb[0].mxu0
      %v2205 = vadd.f32 0.0, %v2204
      %v2206 = vpop.f32.mrb[0].mxu0
      %v2207 = vpop.f32.mrb[0].mxu0
      %v2208 = vadd.f32 0.0, %v2207
      %v2209 = vpop.f32.mrb[0].mxu0
      %2210 = vmatprep.mubr.bf16.mxu0 0
      %2211 = vmatmul.mubr.bf16.gmra.mrb[0].mxu0 %v961
      %v2212 = vpop.f32.mrb[0].mxu0
      %v2213 = vadd.f32 0.0, %v2212
      %v2214 = vpop.f32.mrb[0].mxu0
      %v2215 = vpop.f32.mrb[0].mxu0
      %v2216 = vadd.f32 0.0, %v2215
      %v2217 = vpop.f32.mrb[0].mxu0
      %2218 = vmatprep.mubr.bf16.mxu0 0
      %2219 = vmatmul.mubr.bf16.gmra.mrb[0].mxu0 %v964
      %v2220 = vpop.f32.mrb[0].mxu0
      %v2221 = vadd.f32 0.0, %v2220
      %v2222 = vpop.f32.mrb[0].mxu0
      %v2223 = vpop.f32.mrb[0].mxu0
      %v2224 = vadd.f32 0.0, %v2223
      %v2225 = vpop.f32.mrb[0].mxu0
      %2226 = vmatprep.mubr.bf16.mxu0 0
      %2227 = vmatmul.mubr.bf16.gmra.mrb[0].mxu0 %v967
      %v2228 = vpop.f32.mrb[0].mxu0
      %v2229 = vadd.f32 0.0, %v2228
      %v2230 = vpop.f32.mrb[0].mxu0
      %v2231 = vpop.f32.mrb[0].mxu0
      %v2232 = vadd.f32 0.0, %v2231
      %v2233 = vpop.f32.mrb[0].mxu0
      %2234 = vmatprep.mubr.bf16.mxu0 0
      %2235 = vmatmul.mubr.bf16.gmra.mrb[0].mxu0 %v970
      %v2236 = vpop.f32.mrb[0].mxu0
      %v2237 = vadd.f32 0.0, %v2236
      %v2238 = vpop.f32.mrb[0].mxu0
      %v2239 = vpop.f32.mrb[0].mxu0
      %v2240 = vadd.f32 0.0, %v2239
      %v2241 = vpop.f32.mrb[0].mxu0
      %2242 = vmatprep.mubr.bf16.mxu0 0
      %2243 = vmatmul.mubr.bf16.gmra.mrb[0].mxu0 %v973
      %v2244 = vpop.f32.mrb[0].mxu0
      %v2245 = vadd.f32 0.0, %v2244
      %v2246 = vpop.f32.mrb[0].mxu0
      %v2247 = vpop.f32.mrb[0].mxu0
      %v2248 = vadd.f32 0.0, %v2247
      %v2249 = vpop.f32.mrb[0].mxu0
      %2250 = vmatprep.mubr.bf16.mxu0 0
      %2251 = vmatmul.mubr.bf16.gmra.mrb[0].mxu0 %v2093
      %v2252 = vpop.f32.mrb[0].mxu0
      %v2253 = vadd.f32 0.0, %v2252
      %v2254 = vpop.f32.mrb[0].mxu0
      %v2255 = vpop.f32.mrb[0].mxu0
      %v2256 = vadd.f32 0.0, %v2255
      %v2257 = vpop.f32.mrb[0].mxu0
      %2258 = vdwg.mxu0
      %v2259 = vadd.f32 %v2031, %v2133
      %v2260 = vadd.f32 %v2032, %v2136
      %v2261 = vadd.f32 %v2033, %v2141
      %v2262 = vadd.f32 %v2034, %v2144
      %v2263 = vadd.f32 %v2035, %v2149
      %v2264 = vadd.f32 %v2036, %v2152
      %v2265 = vadd.f32 %v2037, %v2157
      %v2266 = vadd.f32 %v2038, %v2160
      %v2267 = vadd.f32 %v2039, %v2165
      %v2268 = vadd.f32 %v2040, %v2168
      %v2269 = vadd.f32 %v2041, %v2173
      %v2270 = vadd.f32 %v2042, %v2176
      %v2271 = vadd.f32 %v2043, %v2181
      %v2272 = vadd.f32 %v2044, %v2184
      %v2273 = vadd.f32 %v2045, %v2189
      %v2274 = vadd.f32 %v2046, %v2192
      %v2275 = vadd.f32 %v2047, %v2197
      %v2276 = vadd.f32 %v2048, %v2200
      %v2277 = vadd.f32 %v2049, %v2205
      %v2278 = vadd.f32 %v2050, %v2208
      %v2279 = vadd.f32 %v2051, %v2213
      %v2280 = vadd.f32 %v2052, %v2216
      %v2281 = vadd.f32 %v2053, %v2221
      %v2282 = vadd.f32 %v2054, %v2224
      %v2283 = vadd.f32 %v2055, %v2229
      %v2284 = vadd.f32 %v2056, %v2232
      %v2285 = vadd.f32 %v2057, %v2237
      %v2286 = vadd.f32 %v2058, %v2240
      %v2287 = vadd.f32 %v2059, %v2245
      %v2288 = vadd.f32 %v2060, %v2248
      %v2289 = vadd.f32 %v2061, %v2253
      %v2290 = vadd.f32 %v2062, %v2256
      %v2292 = vrot.slane %v482, 5
      %v2293 = vrot.slane %v2292, 4
      %v2294 = vrot.slane %v483, 5
      %v2295 = vsel %vm1450, %v2293, %v2294
      %v2296 = vrot.slane %v2294, 4
      %v2297 = vrot.slane %v484, 5
      %v2298 = vsel %vm1450, %v2296, %v2297
      %s2299 = scalar_lea.vmem %s3, 10
      %v2300 = vld [vmem:[%s2299] sm:$0x3]
      %v2301 = vunpack.c.l.b16 %v2295
      %v2302 = vunpack.c.l.b16 %v2298
      %v2303 = vpack.c.b16 %v2302, %v2301
      %v2305 = vsel %vm926, %v2303, 0
      %v2308 = vsel %vm975, %v2300, 0
      %2310 = vmatprep.subr.bf16.mxu0 0
      %2311 = vmatpush1.bf16.msra.mxu0 %v2308
      %2312 = vmatprep.subr.bf16.mxu0 0
      %2313 = vmatpush1.bf16.msra.mxu0 0
      %2314 = vmatprep.subr.bf16.mxu0 0
      %2315 = vmatpush1.bf16.msra.mxu0 0
      %2316 = vmatprep.subr.bf16.mxu0 0
      %2317 = vmatpush1.bf16.msra.mxu0 0
      %2318 = vmatprep.subr.bf16.mxu0 0
      %2319 = vmatpush1.bf16.msra.mxu0 0
      %2320 = vmatprep.subr.bf16.mxu0 0
      %2321 = vmatpush1.bf16.msra.mxu0 0
      %2322 = vmatprep.subr.bf16.mxu0 0
      %2323 = vmatpush1.bf16.msra.mxu0 0
      %2324 = vmatprep.subr.bf16.mxu0 0
      %2325 = vmatpush1.bf16.msra.mxu0 0
      %2326 = vmatprep.subr.bf16.mxu0 0
      %2327 = vmatpush1.bf16.msra.mxu0 0
      %2328 = vmatprep.subr.bf16.mxu0 0
      %2329 = vmatpush1.bf16.msra.mxu0 0
      %2330 = vmatprep.subr.bf16.mxu0 0
      %2331 = vmatpush1.bf16.msra.mxu0 0
      %2332 = vmatprep.subr.bf16.mxu0 0
      %2333 = vmatpush1.bf16.msra.mxu0 0
      %2334 = vmatprep.subr.bf16.mxu0 0
      %2335 = vmatpush1.bf16.msra.mxu0 0
      %2336 = vmatprep.subr.bf16.mxu0 0
      %2337 = vmatpush1.bf16.msra.mxu0 0
      %2338 = vmatprep.subr.bf16.mxu0 0
      %2339 = vmatpush1.bf16.msra.mxu0 0
      %2340 = vmatprep.subr.bf16.mxu0 0
      %2341 = vmatpush1.bf16.msra.mxu0 0
      %2342 = vmatprep.mubr.bf16.mxu0 0
      %2343 = vmatmul.mubr.bf16.gmra.mrb[0].mxu0 %v1617
      %v2344 = vpop.f32.mrb[0].mxu0
      %v2345 = vadd.f32 0.0, %v2344
      %v2346 = vpop.f32.mrb[0].mxu0
      %v2347 = vpop.f32.mrb[0].mxu0
      %v2348 = vadd.f32 0.0, %v2347
      %v2349 = vpop.f32.mrb[0].mxu0
      %2350 = vmatprep.mubr.bf16.mxu0 0
      %2351 = vmatmul.mubr.bf16.gmra.mrb[0].mxu0 %v1620
      %v2352 = vpop.f32.mrb[0].mxu0
      %v2353 = vadd.f32 0.0, %v2352
      %v2354 = vpop.f32.mrb[0].mxu0
      %v2355 = vpop.f32.mrb[0].mxu0
      %v2356 = vadd.f32 0.0, %v2355
      %v2357 = vpop.f32.mrb[0].mxu0
      %2358 = vmatprep.mubr.bf16.mxu0 0
      %2359 = vmatmul.mubr.bf16.gmra.mrb[0].mxu0 %v1623
      %v2360 = vpop.f32.mrb[0].mxu0
      %v2361 = vadd.f32 0.0, %v2360
      %v2362 = vpop.f32.mrb[0].mxu0
      %v2363 = vpop.f32.mrb[0].mxu0
      %v2364 = vadd.f32 0.0, %v2363
      %v2365 = vpop.f32.mrb[0].mxu0
      %2366 = vmatprep.mubr.bf16.mxu0 0
      %2367 = vmatmul.mubr.bf16.gmra.mrb[0].mxu0 %v1626
      %v2368 = vpop.f32.mrb[0].mxu0
      %v2369 = vadd.f32 0.0, %v2368
      %v2370 = vpop.f32.mrb[0].mxu0
      %v2371 = vpop.f32.mrb[0].mxu0
      %v2372 = vadd.f32 0.0, %v2371
      %v2373 = vpop.f32.mrb[0].mxu0
      %2374 = vmatprep.mubr.bf16.mxu0 0
      %2375 = vmatmul.mubr.bf16.gmra.mrb[0].mxu0 %v1629
      %v2376 = vpop.f32.mrb[0].mxu0
      %v2377 = vadd.f32 0.0, %v2376
      %v2378 = vpop.f32.mrb[0].mxu0
      %v2379 = vpop.f32.mrb[0].mxu0
      %v2380 = vadd.f32 0.0, %v2379
      %v2381 = vpop.f32.mrb[0].mxu0
      %2382 = vmatprep.mubr.bf16.mxu0 0
      %2383 = vmatmul.mubr.bf16.gmra.mrb[0].mxu0 %v1632
      %v2384 = vpop.f32.mrb[0].mxu0
      %v2385 = vadd.f32 0.0, %v2384
      %v2386 = vpop.f32.mrb[0].mxu0
      %v2387 = vpop.f32.mrb[0].mxu0
      %v2388 = vadd.f32 0.0, %v2387
      %v2389 = vpop.f32.mrb[0].mxu0
      %2390 = vmatprep.mubr.bf16.mxu0 0
      %2391 = vmatmul.mubr.bf16.gmra.mrb[0].mxu0 %v1635
      %v2392 = vpop.f32.mrb[0].mxu0
      %v2393 = vadd.f32 0.0, %v2392
      %v2394 = vpop.f32.mrb[0].mxu0
      %v2395 = vpop.f32.mrb[0].mxu0
      %v2396 = vadd.f32 0.0, %v2395
      %v2397 = vpop.f32.mrb[0].mxu0
      %2398 = vmatprep.mubr.bf16.mxu0 0
      %2399 = vmatmul.mubr.bf16.gmra.mrb[0].mxu0 %v1638
      %v2400 = vpop.f32.mrb[0].mxu0
      %v2401 = vadd.f32 0.0, %v2400
      %v2402 = vpop.f32.mrb[0].mxu0
      %v2403 = vpop.f32.mrb[0].mxu0
      %v2404 = vadd.f32 0.0, %v2403
      %v2405 = vpop.f32.mrb[0].mxu0
      %2406 = vmatprep.mubr.bf16.mxu0 0
      %2407 = vmatmul.mubr.bf16.gmra.mrb[0].mxu0 %v1641
      %v2408 = vpop.f32.mrb[0].mxu0
      %v2409 = vadd.f32 0.0, %v2408
      %v2410 = vpop.f32.mrb[0].mxu0
      %v2411 = vpop.f32.mrb[0].mxu0
      %v2412 = vadd.f32 0.0, %v2411
      %v2413 = vpop.f32.mrb[0].mxu0
      %2414 = vmatprep.mubr.bf16.mxu0 0
      %2415 = vmatmul.mubr.bf16.gmra.mrb[0].mxu0 %v1644
      %v2416 = vpop.f32.mrb[0].mxu0
      %v2417 = vadd.f32 0.0, %v2416
      %v2418 = vpop.f32.mrb[0].mxu0
      %v2419 = vpop.f32.mrb[0].mxu0
      %v2420 = vadd.f32 0.0, %v2419
      %v2421 = vpop.f32.mrb[0].mxu0
      %2422 = vmatprep.mubr.bf16.mxu0 0
      %2423 = vmatmul.mubr.bf16.gmra.mrb[0].mxu0 %v1647
      %v2424 = vpop.f32.mrb[0].mxu0
      %v2425 = vadd.f32 0.0, %v2424
      %v2426 = vpop.f32.mrb[0].mxu0
      %v2427 = vpop.f32.mrb[0].mxu0
      %v2428 = vadd.f32 0.0, %v2427
      %v2429 = vpop.f32.mrb[0].mxu0
      %2430 = vmatprep.mubr.bf16.mxu0 0
      %2431 = vmatmul.mubr.bf16.gmra.mrb[0].mxu0 %v1650
      %v2432 = vpop.f32.mrb[0].mxu0
      %v2433 = vadd.f32 0.0, %v2432
      %v2434 = vpop.f32.mrb[0].mxu0
      %v2435 = vpop.f32.mrb[0].mxu0
      %v2436 = vadd.f32 0.0, %v2435
      %v2437 = vpop.f32.mrb[0].mxu0
      %2438 = vmatprep.mubr.bf16.mxu0 0
      %2439 = vmatmul.mubr.bf16.gmra.mrb[0].mxu0 %v1653
      %v2440 = vpop.f32.mrb[0].mxu0
      %v2441 = vadd.f32 0.0, %v2440
      %v2442 = vpop.f32.mrb[0].mxu0
      %v2443 = vpop.f32.mrb[0].mxu0
      %v2444 = vadd.f32 0.0, %v2443
      %v2445 = vpop.f32.mrb[0].mxu0
      %2446 = vmatprep.mubr.bf16.mxu0 0
      %2447 = vmatmul.mubr.bf16.gmra.mrb[0].mxu0 %v1656
      %v2448 = vpop.f32.mrb[0].mxu0
      %v2449 = vadd.f32 0.0, %v2448
      %v2450 = vpop.f32.mrb[0].mxu0
      %v2451 = vpop.f32.mrb[0].mxu0
      %v2452 = vadd.f32 0.0, %v2451
      %v2453 = vpop.f32.mrb[0].mxu0
      %2454 = vmatprep.mubr.bf16.mxu0 0
      %2455 = vmatmul.mubr.bf16.gmra.mrb[0].mxu0 %v1659
      %v2456 = vpop.f32.mrb[0].mxu0
      %v2457 = vadd.f32 0.0, %v2456
      %v2458 = vpop.f32.mrb[0].mxu0
      %v2459 = vpop.f32.mrb[0].mxu0
      %v2460 = vadd.f32 0.0, %v2459
      %v2461 = vpop.f32.mrb[0].mxu0
      %2462 = vmatprep.mubr.bf16.mxu0 0
      %2463 = vmatmul.mubr.bf16.gmra.mrb[0].mxu0 %v2305
      %v2464 = vpop.f32.mrb[0].mxu0
      %v2465 = vadd.f32 0.0, %v2464
      %v2466 = vpop.f32.mrb[0].mxu0
      %v2467 = vpop.f32.mrb[0].mxu0
      %v2468 = vadd.f32 0.0, %v2467
      %v2469 = vpop.f32.mrb[0].mxu0
      %2470 = vdwg.mxu0
      %v2471 = vadd.f32 %v2259, %v2345
      %v2472 = vadd.f32 %v2260, %v2348
      %v2473 = vadd.f32 %v2261, %v2353
      %v2474 = vadd.f32 %v2262, %v2356
      %v2475 = vadd.f32 %v2263, %v2361
      %v2476 = vadd.f32 %v2264, %v2364
      %v2477 = vadd.f32 %v2265, %v2369
      %v2478 = vadd.f32 %v2266, %v2372
      %v2479 = vadd.f32 %v2267, %v2377
      %v2480 = vadd.f32 %v2268, %v2380
      %v2481 = vadd.f32 %v2269, %v2385
      %v2482 = vadd.f32 %v2270, %v2388
      %v2483 = vadd.f32 %v2271, %v2393
      %v2484 = vadd.f32 %v2272, %v2396
      %v2485 = vadd.f32 %v2273, %v2401
      %v2486 = vadd.f32 %v2274, %v2404
      %v2487 = vadd.f32 %v2275, %v2409
      %v2488 = vadd.f32 %v2276, %v2412
      %v2489 = vadd.f32 %v2277, %v2417
      %v2490 = vadd.f32 %v2278, %v2420
      %v2491 = vadd.f32 %v2279, %v2425
      %v2492 = vadd.f32 %v2280, %v2428
      %v2493 = vadd.f32 %v2281, %v2433
      %v2494 = vadd.f32 %v2282, %v2436
      %v2495 = vadd.f32 %v2283, %v2441
      %v2496 = vadd.f32 %v2284, %v2444
      %v2497 = vadd.f32 %v2285, %v2449
      %v2498 = vadd.f32 %v2286, %v2452
      %v2499 = vadd.f32 %v2287, %v2457
      %v2500 = vadd.f32 %v2288, %v2460
      %v2501 = vadd.f32 %v2289, %v2465
      %v2502 = vadd.f32 %v2290, %v2468
      %s2503 = scalar_lea.vmem %s3, 12
      %v2504 = vld [vmem:[%s2503] sm:$0x3]
      %v2507 = vunpack.c.l.b16 %v485
      %v2508 = vunpack.c.l.b16 %v486
      %v2509 = vpack.c.b16 %v2508, %v2507
      %v2511 = vsel %vm926, %v2509, 0
      %v2514 = vsel %vm975, %v2504, 0
      %2516 = vmatprep.subr.bf16.mxu0 0
      %2517 = vmatpush1.bf16.msra.mxu0 %v2514
      %2518 = vmatprep.subr.bf16.mxu0 0
      %2519 = vmatpush1.bf16.msra.mxu0 0
      %2520 = vmatprep.subr.bf16.mxu0 0
      %2521 = vmatpush1.bf16.msra.mxu0 0
      %2522 = vmatprep.subr.bf16.mxu0 0
      %2523 = vmatpush1.bf16.msra.mxu0 0
      %2524 = vmatprep.subr.bf16.mxu0 0
      %2525 = vmatpush1.bf16.msra.mxu0 0
      %2526 = vmatprep.subr.bf16.mxu0 0
      %2527 = vmatpush1.bf16.msra.mxu0 0
      %2528 = vmatprep.subr.bf16.mxu0 0
      %2529 = vmatpush1.bf16.msra.mxu0 0
      %2530 = vmatprep.subr.bf16.mxu0 0
      %2531 = vmatpush1.bf16.msra.mxu0 0
      %2532 = vmatprep.subr.bf16.mxu0 0
      %2533 = vmatpush1.bf16.msra.mxu0 0
      %2534 = vmatprep.subr.bf16.mxu0 0
      %2535 = vmatpush1.bf16.msra.mxu0 0
      %2536 = vmatprep.subr.bf16.mxu0 0
      %2537 = vmatpush1.bf16.msra.mxu0 0
      %2538 = vmatprep.subr.bf16.mxu0 0
      %2539 = vmatpush1.bf16.msra.mxu0 0
      %2540 = vmatprep.subr.bf16.mxu0 0
      %2541 = vmatpush1.bf16.msra.mxu0 0
      %2542 = vmatprep.subr.bf16.mxu0 0
      %2543 = vmatpush1.bf16.msra.mxu0 0
      %2544 = vmatprep.subr.bf16.mxu0 0
      %2545 = vmatpush1.bf16.msra.mxu0 0
      %2546 = vmatprep.subr.bf16.mxu0 0
      %2547 = vmatpush1.bf16.msra.mxu0 0
      %2548 = vmatprep.mubr.bf16.mxu0 0
      %2549 = vmatmul.mubr.bf16.gmra.mrb[0].mxu0 %v1227
      %v2550 = vpop.f32.mrb[0].mxu0
      %v2551 = vadd.f32 0.0, %v2550
      %v2552 = vpop.f32.mrb[0].mxu0
      %v2553 = vpop.f32.mrb[0].mxu0
      %v2554 = vadd.f32 0.0, %v2553
      %v2555 = vpop.f32.mrb[0].mxu0
      %2556 = vmatprep.mubr.bf16.mxu0 0
      %2557 = vmatmul.mubr.bf16.gmra.mrb[0].mxu0 %v1230
      %v2558 = vpop.f32.mrb[0].mxu0
      %v2559 = vadd.f32 0.0, %v2558
      %v2560 = vpop.f32.mrb[0].mxu0
      %v2561 = vpop.f32.mrb[0].mxu0
      %v2562 = vadd.f32 0.0, %v2561
      %v2563 = vpop.f32.mrb[0].mxu0
      %2564 = vmatprep.mubr.bf16.mxu0 0
      %2565 = vmatmul.mubr.bf16.gmra.mrb[0].mxu0 %v1233
      %v2566 = vpop.f32.mrb[0].mxu0
      %v2567 = vadd.f32 0.0, %v2566
      %v2568 = vpop.f32.mrb[0].mxu0
      %v2569 = vpop.f32.mrb[0].mxu0
      %v2570 = vadd.f32 0.0, %v2569
      %v2571 = vpop.f32.mrb[0].mxu0
      %2572 = vmatprep.mubr.bf16.mxu0 0
      %2573 = vmatmul.mubr.bf16.gmra.mrb[0].mxu0 %v1236
      %v2574 = vpop.f32.mrb[0].mxu0
      %v2575 = vadd.f32 0.0, %v2574
      %v2576 = vpop.f32.mrb[0].mxu0
      %v2577 = vpop.f32.mrb[0].mxu0
      %v2578 = vadd.f32 0.0, %v2577
      %v2579 = vpop.f32.mrb[0].mxu0
      %2580 = vmatprep.mubr.bf16.mxu0 0
      %2581 = vmatmul.mubr.bf16.gmra.mrb[0].mxu0 %v1239
      %v2582 = vpop.f32.mrb[0].mxu0
      %v2583 = vadd.f32 0.0, %v2582
      %v2584 = vpop.f32.mrb[0].mxu0
      %v2585 = vpop.f32.mrb[0].mxu0
      %v2586 = vadd.f32 0.0, %v2585
      %v2587 = vpop.f32.mrb[0].mxu0
      %2588 = vmatprep.mubr.bf16.mxu0 0
      %2589 = vmatmul.mubr.bf16.gmra.mrb[0].mxu0 %v1242
      %v2590 = vpop.f32.mrb[0].mxu0
      %v2591 = vadd.f32 0.0, %v2590
      %v2592 = vpop.f32.mrb[0].mxu0
      %v2593 = vpop.f32.mrb[0].mxu0
      %v2594 = vadd.f32 0.0, %v2593
      %v2595 = vpop.f32.mrb[0].mxu0
      %2596 = vmatprep.mubr.bf16.mxu0 0
      %2597 = vmatmul.mubr.bf16.gmra.mrb[0].mxu0 %v1245
      %v2598 = vpop.f32.mrb[0].mxu0
      %v2599 = vadd.f32 0.0, %v2598
      %v2600 = vpop.f32.mrb[0].mxu0
      %v2601 = vpop.f32.mrb[0].mxu0
      %v2602 = vadd.f32 0.0, %v2601
      %v2603 = vpop.f32.mrb[0].mxu0
      %2604 = vmatprep.mubr.bf16.mxu0 0
      %2605 = vmatmul.mubr.bf16.gmra.mrb[0].mxu0 %v1248
      %v2606 = vpop.f32.mrb[0].mxu0
      %v2607 = vadd.f32 0.0, %v2606
      %v2608 = vpop.f32.mrb[0].mxu0
      %v2609 = vpop.f32.mrb[0].mxu0
      %v2610 = vadd.f32 0.0, %v2609
      %v2611 = vpop.f32.mrb[0].mxu0
      %2612 = vmatprep.mubr.bf16.mxu0 0
      %2613 = vmatmul.mubr.bf16.gmra.mrb[0].mxu0 %v1251
      %v2614 = vpop.f32.mrb[0].mxu0
      %v2615 = vadd.f32 0.0, %v2614
      %v2616 = vpop.f32.mrb[0].mxu0
      %v2617 = vpop.f32.mrb[0].mxu0
      %v2618 = vadd.f32 0.0, %v2617
      %v2619 = vpop.f32.mrb[0].mxu0
      %2620 = vmatprep.mubr.bf16.mxu0 0
      %2621 = vmatmul.mubr.bf16.gmra.mrb[0].mxu0 %v1254
      %v2622 = vpop.f32.mrb[0].mxu0
      %v2623 = vadd.f32 0.0, %v2622
      %v2624 = vpop.f32.mrb[0].mxu0
      %v2625 = vpop.f32.mrb[0].mxu0
      %v2626 = vadd.f32 0.0, %v2625
      %v2627 = vpop.f32.mrb[0].mxu0
      %2628 = vmatprep.mubr.bf16.mxu0 0
      %2629 = vmatmul.mubr.bf16.gmra.mrb[0].mxu0 %v1257
      %v2630 = vpop.f32.mrb[0].mxu0
      %v2631 = vadd.f32 0.0, %v2630
      %v2632 = vpop.f32.mrb[0].mxu0
      %v2633 = vpop.f32.mrb[0].mxu0
      %v2634 = vadd.f32 0.0, %v2633
      %v2635 = vpop.f32.mrb[0].mxu0
      %2636 = vmatprep.mubr.bf16.mxu0 0
      %2637 = vmatmul.mubr.bf16.gmra.mrb[0].mxu0 %v1260
      %v2638 = vpop.f32.mrb[0].mxu0
      %v2639 = vadd.f32 0.0, %v2638
      %v2640 = vpop.f32.mrb[0].mxu0
      %v2641 = vpop.f32.mrb[0].mxu0
      %v2642 = vadd.f32 0.0, %v2641
      %v2643 = vpop.f32.mrb[0].mxu0
      %2644 = vmatprep.mubr.bf16.mxu0 0
      %2645 = vmatmul.mubr.bf16.gmra.mrb[0].mxu0 %v1263
      %v2646 = vpop.f32.mrb[0].mxu0
      %v2647 = vadd.f32 0.0, %v2646
      %v2648 = vpop.f32.mrb[0].mxu0
      %v2649 = vpop.f32.mrb[0].mxu0
      %v2650 = vadd.f32 0.0, %v2649
      %v2651 = vpop.f32.mrb[0].mxu0
      %2652 = vmatprep.mubr.bf16.mxu0 0
      %2653 = vmatmul.mubr.bf16.gmra.mrb[0].mxu0 %v1266
      %v2654 = vpop.f32.mrb[0].mxu0
      %v2655 = vadd.f32 0.0, %v2654
      %v2656 = vpop.f32.mrb[0].mxu0
      %v2657 = vpop.f32.mrb[0].mxu0
      %v2658 = vadd.f32 0.0, %v2657
      %v2659 = vpop.f32.mrb[0].mxu0
      %2660 = vmatprep.mubr.bf16.mxu0 0
      %2661 = vmatmul.mubr.bf16.gmra.mrb[0].mxu0 %v1865
      %v2662 = vpop.f32.mrb[0].mxu0
      %v2663 = vadd.f32 0.0, %v2662
      %v2664 = vpop.f32.mrb[0].mxu0
      %v2665 = vpop.f32.mrb[0].mxu0
      %v2666 = vadd.f32 0.0, %v2665
      %v2667 = vpop.f32.mrb[0].mxu0
      %2668 = vmatprep.mubr.bf16.mxu0 0
      %2669 = vmatmul.mubr.bf16.gmra.mrb[0].mxu0 %v2511
      %v2670 = vpop.f32.mrb[0].mxu0
      %v2671 = vadd.f32 0.0, %v2670
      %v2672 = vpop.f32.mrb[0].mxu0
      %v2673 = vpop.f32.mrb[0].mxu0
      %v2674 = vadd.f32 0.0, %v2673
      %v2675 = vpop.f32.mrb[0].mxu0
      %2676 = vdwg.mxu0
      %v2677 = vadd.f32 %v2471, %v2551
      %v2678 = vadd.f32 %v2472, %v2554
      %v2679 = vadd.f32 %v2473, %v2559
      %v2680 = vadd.f32 %v2474, %v2562
      %v2681 = vadd.f32 %v2475, %v2567
      %v2682 = vadd.f32 %v2476, %v2570
      %v2683 = vadd.f32 %v2477, %v2575
      %v2684 = vadd.f32 %v2478, %v2578
      %v2685 = vadd.f32 %v2479, %v2583
      %v2686 = vadd.f32 %v2480, %v2586
      %v2687 = vadd.f32 %v2481, %v2591
      %v2688 = vadd.f32 %v2482, %v2594
      %v2689 = vadd.f32 %v2483, %v2599
      %v2690 = vadd.f32 %v2484, %v2602
      %v2691 = vadd.f32 %v2485, %v2607
      %v2692 = vadd.f32 %v2486, %v2610
      %v2693 = vadd.f32 %v2487, %v2615
      %v2694 = vadd.f32 %v2488, %v2618
      %v2695 = vadd.f32 %v2489, %v2623
      %v2696 = vadd.f32 %v2490, %v2626
      %v2697 = vadd.f32 %v2491, %v2631
      %v2698 = vadd.f32 %v2492, %v2634
      %v2699 = vadd.f32 %v2493, %v2639
      %v2700 = vadd.f32 %v2494, %v2642
      %v2701 = vadd.f32 %v2495, %v2647
      %v2702 = vadd.f32 %v2496, %v2650
      %v2703 = vadd.f32 %v2497, %v2655
      %v2704 = vadd.f32 %v2498, %v2658
      %v2705 = vadd.f32 %v2499, %v2663
      %v2706 = vadd.f32 %v2500, %v2666
      %v2707 = vadd.f32 %v2501, %v2671
      %v2708 = vadd.f32 %v2502, %v2674
      %v2710 = vshrl.u32 %v485, 16
      %v2712 = vrot.slane %v2710, 4
      %v2713 = vshll.u32 %v485, 16
      %v2715 = vrot.slane %v2713, 5
      %v2716 = vor.u32 %v2712, %v2715
      %v2717 = vrot.slane %v2716, 4
      %v2719 = vshll.u32 %v486, 16
      %v2721 = vrot.slane %v2719, 5
      %v2722 = vsel %vm491, %v2717, %v2721
      %v2723 = vshrl.u32 %v486, 16
      %v2725 = vrot.slane %v2723, 4
      %v2726 = vor.u32 %v2725, %v2721
      %v2727 = vrot.slane %v2726, 4
      %v2729 = vshll.u32 %v487, 16
      %v2731 = vrot.slane %v2729, 5
      %v2732 = vsel %vm491, %v2727, %v2731
      %s2733 = scalar_lea.vmem %s3, 14
      %v2734 = vld [vmem:[%s2733] sm:$0x3]
      %v2735 = vunpack.c.l.b16 %v2722
      %v2736 = vunpack.c.l.b16 %v2732
      %v2737 = vpack.c.b16 %v2736, %v2735
      %v2739 = vsel %vm926, %v2737, 0
      %v2742 = vsel %vm975, %v2734, 0
      %2744 = vmatprep.subr.bf16.mxu0 0
      %2745 = vmatpush1.bf16.msra.mxu0 %v2742
      %2746 = vmatprep.subr.bf16.mxu0 0
      %2747 = vmatpush1.bf16.msra.mxu0 0
      %2748 = vmatprep.subr.bf16.mxu0 0
      %2749 = vmatpush1.bf16.msra.mxu0 0
      %2750 = vmatprep.subr.bf16.mxu0 0
      %2751 = vmatpush1.bf16.msra.mxu0 0
      %2752 = vmatprep.subr.bf16.mxu0 0
      %2753 = vmatpush1.bf16.msra.mxu0 0
      %2754 = vmatprep.subr.bf16.mxu0 0
      %2755 = vmatpush1.bf16.msra.mxu0 0
      %2756 = vmatprep.subr.bf16.mxu0 0
      %2757 = vmatpush1.bf16.msra.mxu0 0
      %2758 = vmatprep.subr.bf16.mxu0 0
      %2759 = vmatpush1.bf16.msra.mxu0 0
      %2760 = vmatprep.subr.bf16.mxu0 0
      %2761 = vmatpush1.bf16.msra.mxu0 0
      %2762 = vmatprep.subr.bf16.mxu0 0
      %2763 = vmatpush1.bf16.msra.mxu0 0
      %2764 = vmatprep.subr.bf16.mxu0 0
      %2765 = vmatpush1.bf16.msra.mxu0 0
      %2766 = vmatprep.subr.bf16.mxu0 0
      %2767 = vmatpush1.bf16.msra.mxu0 0
      %2768 = vmatprep.subr.bf16.mxu0 0
      %2769 = vmatpush1.bf16.msra.mxu0 0
      %2770 = vmatprep.subr.bf16.mxu0 0
      %2771 = vmatpush1.bf16.msra.mxu0 0
      %2772 = vmatprep.subr.bf16.mxu0 0
      %2773 = vmatpush1.bf16.msra.mxu0 0
      %2774 = vmatprep.subr.bf16.mxu0 0
      %2775 = vmatpush1.bf16.msra.mxu0 0
      %2776 = vmatprep.mubr.bf16.mxu0 0
      %2777 = vmatmul.mubr.bf16.gmra.mrb[0].mxu0 %v934
      %v2778 = vpop.f32.mrb[0].mxu0
      %v2779 = vadd.f32 0.0, %v2778
      %v2780 = vpop.f32.mrb[0].mxu0
      %v2781 = vpop.f32.mrb[0].mxu0
      %v2782 = vadd.f32 0.0, %v2781
      %v2783 = vpop.f32.mrb[0].mxu0
      %2784 = vmatprep.mubr.bf16.mxu0 0
      %2785 = vmatmul.mubr.bf16.gmra.mrb[0].mxu0 %v937
      %v2786 = vpop.f32.mrb[0].mxu0
      %v2787 = vadd.f32 0.0, %v2786
      %v2788 = vpop.f32.mrb[0].mxu0
      %v2789 = vpop.f32.mrb[0].mxu0
      %v2790 = vadd.f32 0.0, %v2789
      %v2791 = vpop.f32.mrb[0].mxu0
      %2792 = vmatprep.mubr.bf16.mxu0 0
      %2793 = vmatmul.mubr.bf16.gmra.mrb[0].mxu0 %v940
      %v2794 = vpop.f32.mrb[0].mxu0
      %v2795 = vadd.f32 0.0, %v2794
      %v2796 = vpop.f32.mrb[0].mxu0
      %v2797 = vpop.f32.mrb[0].mxu0
      %v2798 = vadd.f32 0.0, %v2797
      %v2799 = vpop.f32.mrb[0].mxu0
      %2800 = vmatprep.mubr.bf16.mxu0 0
      %2801 = vmatmul.mubr.bf16.gmra.mrb[0].mxu0 %v943
      %v2802 = vpop.f32.mrb[0].mxu0
      %v2803 = vadd.f32 0.0, %v2802
      %v2804 = vpop.f32.mrb[0].mxu0
      %v2805 = vpop.f32.mrb[0].mxu0
      %v2806 = vadd.f32 0.0, %v2805
      %v2807 = vpop.f32.mrb[0].mxu0
      %2808 = vmatprep.mubr.bf16.mxu0 0
      %2809 = vmatmul.mubr.bf16.gmra.mrb[0].mxu0 %v946
      %v2810 = vpop.f32.mrb[0].mxu0
      %v2811 = vadd.f32 0.0, %v2810
      %v2812 = vpop.f32.mrb[0].mxu0
      %v2813 = vpop.f32.mrb[0].mxu0
      %v2814 = vadd.f32 0.0, %v2813
      %v2815 = vpop.f32.mrb[0].mxu0
      %2816 = vmatprep.mubr.bf16.mxu0 0
      %2817 = vmatmul.mubr.bf16.gmra.mrb[0].mxu0 %v949
      %v2818 = vpop.f32.mrb[0].mxu0
      %v2819 = vadd.f32 0.0, %v2818
      %v2820 = vpop.f32.mrb[0].mxu0
      %v2821 = vpop.f32.mrb[0].mxu0
      %v2822 = vadd.f32 0.0, %v2821
      %v2823 = vpop.f32.mrb[0].mxu0
      %2824 = vmatprep.mubr.bf16.mxu0 0
      %2825 = vmatmul.mubr.bf16.gmra.mrb[0].mxu0 %v952
      %v2826 = vpop.f32.mrb[0].mxu0
      %v2827 = vadd.f32 0.0, %v2826
      %v2828 = vpop.f32.mrb[0].mxu0
      %v2829 = vpop.f32.mrb[0].mxu0
      %v2830 = vadd.f32 0.0, %v2829
      %v2831 = vpop.f32.mrb[0].mxu0
      %2832 = vmatprep.mubr.bf16.mxu0 0
      %2833 = vmatmul.mubr.bf16.gmra.mrb[0].mxu0 %v955
      %v2834 = vpop.f32.mrb[0].mxu0
      %v2835 = vadd.f32 0.0, %v2834
      %v2836 = vpop.f32.mrb[0].mxu0
      %v2837 = vpop.f32.mrb[0].mxu0
      %v2838 = vadd.f32 0.0, %v2837
      %v2839 = vpop.f32.mrb[0].mxu0
      %2840 = vmatprep.mubr.bf16.mxu0 0
      %2841 = vmatmul.mubr.bf16.gmra.mrb[0].mxu0 %v958
      %v2842 = vpop.f32.mrb[0].mxu0
      %v2843 = vadd.f32 0.0, %v2842
      %v2844 = vpop.f32.mrb[0].mxu0
      %v2845 = vpop.f32.mrb[0].mxu0
      %v2846 = vadd.f32 0.0, %v2845
      %v2847 = vpop.f32.mrb[0].mxu0
      %2848 = vmatprep.mubr.bf16.mxu0 0
      %2849 = vmatmul.mubr.bf16.gmra.mrb[0].mxu0 %v961
      %v2850 = vpop.f32.mrb[0].mxu0
      %v2851 = vadd.f32 0.0, %v2850
      %v2852 = vpop.f32.mrb[0].mxu0
      %v2853 = vpop.f32.mrb[0].mxu0
      %v2854 = vadd.f32 0.0, %v2853
      %v2855 = vpop.f32.mrb[0].mxu0
      %2856 = vmatprep.mubr.bf16.mxu0 0
      %2857 = vmatmul.mubr.bf16.gmra.mrb[0].mxu0 %v964
      %v2858 = vpop.f32.mrb[0].mxu0
      %v2859 = vadd.f32 0.0, %v2858
      %v2860 = vpop.f32.mrb[0].mxu0
      %v2861 = vpop.f32.mrb[0].mxu0
      %v2862 = vadd.f32 0.0, %v2861
      %v2863 = vpop.f32.mrb[0].mxu0
      %2864 = vmatprep.mubr.bf16.mxu0 0
      %2865 = vmatmul.mubr.bf16.gmra.mrb[0].mxu0 %v967
      %v2866 = vpop.f32.mrb[0].mxu0
      %v2867 = vadd.f32 0.0, %v2866
      %v2868 = vpop.f32.mrb[0].mxu0
      %v2869 = vpop.f32.mrb[0].mxu0
      %v2870 = vadd.f32 0.0, %v2869
      %v2871 = vpop.f32.mrb[0].mxu0
      %2872 = vmatprep.mubr.bf16.mxu0 0
      %2873 = vmatmul.mubr.bf16.gmra.mrb[0].mxu0 %v970
      %v2874 = vpop.f32.mrb[0].mxu0
      %v2875 = vadd.f32 0.0, %v2874
      %v2876 = vpop.f32.mrb[0].mxu0
      %v2877 = vpop.f32.mrb[0].mxu0
      %v2878 = vadd.f32 0.0, %v2877
      %v2879 = vpop.f32.mrb[0].mxu0
      %2880 = vmatprep.mubr.bf16.mxu0 0
      %2881 = vmatmul.mubr.bf16.gmra.mrb[0].mxu0 %v973
      %v2882 = vpop.f32.mrb[0].mxu0
      %v2883 = vadd.f32 0.0, %v2882
      %v2884 = vpop.f32.mrb[0].mxu0
      %v2885 = vpop.f32.mrb[0].mxu0
      %v2886 = vadd.f32 0.0, %v2885
      %v2887 = vpop.f32.mrb[0].mxu0
      %2888 = vmatprep.mubr.bf16.mxu0 0
      %2889 = vmatmul.mubr.bf16.gmra.mrb[0].mxu0 %v2093
      %v2890 = vpop.f32.mrb[0].mxu0
      %v2891 = vadd.f32 0.0, %v2890
      %v2892 = vpop.f32.mrb[0].mxu0
      %v2893 = vpop.f32.mrb[0].mxu0
      %v2894 = vadd.f32 0.0, %v2893
      %v2895 = vpop.f32.mrb[0].mxu0
      %2896 = vmatprep.mubr.bf16.mxu0 0
      %2897 = vmatmul.mubr.bf16.gmra.mrb[0].mxu0 %v2739
      %v2898 = vpop.f32.mrb[0].mxu0
      %v2899 = vadd.f32 0.0, %v2898
      %v2900 = vpop.f32.mrb[0].mxu0
      %v2901 = vpop.f32.mrb[0].mxu0
      %v2902 = vadd.f32 0.0, %v2901
      %v2903 = vpop.f32.mrb[0].mxu0
      %2904 = vdwg.mxu0
      %v2905 = vadd.f32 %v2677, %v2779
      %v2906 = vadd.f32 %v2678, %v2782
      %v2907 = vadd.f32 %v2679, %v2787
      %v2908 = vadd.f32 %v2680, %v2790
      %v2909 = vadd.f32 %v2681, %v2795
      %v2910 = vadd.f32 %v2682, %v2798
      %v2911 = vadd.f32 %v2683, %v2803
      %v2912 = vadd.f32 %v2684, %v2806
      %v2913 = vadd.f32 %v2685, %v2811
      %v2914 = vadd.f32 %v2686, %v2814
      %v2915 = vadd.f32 %v2687, %v2819
      %v2916 = vadd.f32 %v2688, %v2822
      %v2917 = vadd.f32 %v2689, %v2827
      %v2918 = vadd.f32 %v2690, %v2830
      %v2919 = vadd.f32 %v2691, %v2835
      %v2920 = vadd.f32 %v2692, %v2838
      %v2921 = vadd.f32 %v2693, %v2843
      %v2922 = vadd.f32 %v2694, %v2846
      %v2923 = vadd.f32 %v2695, %v2851
      %v2924 = vadd.f32 %v2696, %v2854
      %v2925 = vadd.f32 %v2697, %v2859
      %v2926 = vadd.f32 %v2698, %v2862
      %v2927 = vadd.f32 %v2699, %v2867
      %v2928 = vadd.f32 %v2700, %v2870
      %v2929 = vadd.f32 %v2701, %v2875
      %v2930 = vadd.f32 %v2702, %v2878
      %v2931 = vadd.f32 %v2703, %v2883
      %v2932 = vadd.f32 %v2704, %v2886
      %v2933 = vadd.f32 %v2705, %v2891
      %v2934 = vadd.f32 %v2706, %v2894
      %v2935 = vadd.f32 %v2707, %v2899
      %v2936 = vadd.f32 %v2708, %v2902
      %v2938 = vrot.slane %v485, 5
      %v2939 = vrot.slane %v2938, 4
      %v2940 = vrot.slane %v486, 5
      %v2941 = vsel %vm1450, %v2939, %v2940
      %v2942 = vrot.slane %v2940, 4
      %v2943 = vrot.slane %v487, 5
      %v2944 = vsel %vm1450, %v2942, %v2943
      %s2945 = scalar_lea.vmem %s3, 16
      %v2946 = vld [vmem:[%s2945] sm:$0x3]
      %v2947 = vunpack.c.l.b16 %v2941
      %v2948 = vunpack.c.l.b16 %v2944
      %v2949 = vpack.c.b16 %v2948, %v2947
      %v2951 = vsel %vm926, %v2949, 0
      %v2954 = vsel %vm975, %v2946, 0
      %2956 = vmatprep.subr.bf16.mxu0 0
      %2957 = vmatpush1.bf16.msra.mxu0 %v2954
      %2958 = vmatprep.subr.bf16.mxu0 0
      %2959 = vmatpush1.bf16.msra.mxu0 0
      %2960 = vmatprep.subr.bf16.mxu0 0
      %2961 = vmatpush1.bf16.msra.mxu0 0
      %2962 = vmatprep.subr.bf16.mxu0 0
      %2963 = vmatpush1.bf16.msra.mxu0 0
      %2964 = vmatprep.subr.bf16.mxu0 0
      %2965 = vmatpush1.bf16.msra.mxu0 0
      %2966 = vmatprep.subr.bf16.mxu0 0
      %2967 = vmatpush1.bf16.msra.mxu0 0
      %2968 = vmatprep.subr.bf16.mxu0 0
      %2969 = vmatpush1.bf16.msra.mxu0 0
      %2970 = vmatprep.subr.bf16.mxu0 0
      %2971 = vmatpush1.bf16.msra.mxu0 0
      %2972 = vmatprep.subr.bf16.mxu0 0
      %2973 = vmatpush1.bf16.msra.mxu0 0
      %2974 = vmatprep.subr.bf16.mxu0 0
      %2975 = vmatpush1.bf16.msra.mxu0 0
      %2976 = vmatprep.subr.bf16.mxu0 0
      %2977 = vmatpush1.bf16.msra.mxu0 0
      %2978 = vmatprep.subr.bf16.mxu0 0
      %2979 = vmatpush1.bf16.msra.mxu0 0
      %2980 = vmatprep.subr.bf16.mxu0 0
      %2981 = vmatpush1.bf16.msra.mxu0 0
      %2982 = vmatprep.subr.bf16.mxu0 0
      %2983 = vmatpush1.bf16.msra.mxu0 0
      %2984 = vmatprep.subr.bf16.mxu0 0
      %2985 = vmatpush1.bf16.msra.mxu0 0
      %2986 = vmatprep.subr.bf16.mxu0 0
      %2987 = vmatpush1.bf16.msra.mxu0 0
      %2988 = vmatprep.mubr.bf16.mxu0 0
      %2989 = vmatmul.mubr.bf16.gmra.mrb[0].mxu0 %v1620
      %v2990 = vpop.f32.mrb[0].mxu0
      %v2991 = vadd.f32 0.0, %v2990
      %v2992 = vpop.f32.mrb[0].mxu0
      %v2993 = vpop.f32.mrb[0].mxu0
      %v2994 = vadd.f32 0.0, %v2993
      %v2995 = vpop.f32.mrb[0].mxu0
      %2996 = vmatprep.mubr.bf16.mxu0 0
      %2997 = vmatmul.mubr.bf16.gmra.mrb[0].mxu0 %v1623
      %v2998 = vpop.f32.mrb[0].mxu0
      %v2999 = vadd.f32 0.0, %v2998
      %v3000 = vpop.f32.mrb[0].mxu0
      %v3001 = vpop.f32.mrb[0].mxu0
      %v3002 = vadd.f32 0.0, %v3001
      %v3003 = vpop.f32.mrb[0].mxu0
      %3004 = vmatprep.mubr.bf16.mxu0 0
      %3005 = vmatmul.mubr.bf16.gmra.mrb[0].mxu0 %v1626
      %v3006 = vpop.f32.mrb[0].mxu0
      %v3007 = vadd.f32 0.0, %v3006
      %v3008 = vpop.f32.mrb[0].mxu0
      %v3009 = vpop.f32.mrb[0].mxu0
      %v3010 = vadd.f32 0.0, %v3009
      %v3011 = vpop.f32.mrb[0].mxu0
      %3012 = vmatprep.mubr.bf16.mxu0 0
      %3013 = vmatmul.mubr.bf16.gmra.mrb[0].mxu0 %v1629
      %v3014 = vpop.f32.mrb[0].mxu0
      %v3015 = vadd.f32 0.0, %v3014
      %v3016 = vpop.f32.mrb[0].mxu0
      %v3017 = vpop.f32.mrb[0].mxu0
      %v3018 = vadd.f32 0.0, %v3017
      %v3019 = vpop.f32.mrb[0].mxu0
      %3020 = vmatprep.mubr.bf16.mxu0 0
      %3021 = vmatmul.mubr.bf16.gmra.mrb[0].mxu0 %v1632
      %v3022 = vpop.f32.mrb[0].mxu0
      %v3023 = vadd.f32 0.0, %v3022
      %v3024 = vpop.f32.mrb[0].mxu0
      %v3025 = vpop.f32.mrb[0].mxu0
      %v3026 = vadd.f32 0.0, %v3025
      %v3027 = vpop.f32.mrb[0].mxu0
      %3028 = vmatprep.mubr.bf16.mxu0 0
      %3029 = vmatmul.mubr.bf16.gmra.mrb[0].mxu0 %v1635
      %v3030 = vpop.f32.mrb[0].mxu0
      %v3031 = vadd.f32 0.0, %v3030
      %v3032 = vpop.f32.mrb[0].mxu0
      %v3033 = vpop.f32.mrb[0].mxu0
      %v3034 = vadd.f32 0.0, %v3033
      %v3035 = vpop.f32.mrb[0].mxu0
      %3036 = vmatprep.mubr.bf16.mxu0 0
      %3037 = vmatmul.mubr.bf16.gmra.mrb[0].mxu0 %v1638
      %v3038 = vpop.f32.mrb[0].mxu0
      %v3039 = vadd.f32 0.0, %v3038
      %v3040 = vpop.f32.mrb[0].mxu0
      %v3041 = vpop.f32.mrb[0].mxu0
      %v3042 = vadd.f32 0.0, %v3041
      %v3043 = vpop.f32.mrb[0].mxu0
      %3044 = vmatprep.mubr.bf16.mxu0 0
      %3045 = vmatmul.mubr.bf16.gmra.mrb[0].mxu0 %v1641
      %v3046 = vpop.f32.mrb[0].mxu0
      %v3047 = vadd.f32 0.0, %v3046
      %v3048 = vpop.f32.mrb[0].mxu0
      %v3049 = vpop.f32.mrb[0].mxu0
      %v3050 = vadd.f32 0.0, %v3049
      %v3051 = vpop.f32.mrb[0].mxu0
      %3052 = vmatprep.mubr.bf16.mxu0 0
      %3053 = vmatmul.mubr.bf16.gmra.mrb[0].mxu0 %v1644
      %v3054 = vpop.f32.mrb[0].mxu0
      %v3055 = vadd.f32 0.0, %v3054
      %v3056 = vpop.f32.mrb[0].mxu0
      %v3057 = vpop.f32.mrb[0].mxu0
      %v3058 = vadd.f32 0.0, %v3057
      %v3059 = vpop.f32.mrb[0].mxu0
      %3060 = vmatprep.mubr.bf16.mxu0 0
      %3061 = vmatmul.mubr.bf16.gmra.mrb[0].mxu0 %v1647
      %v3062 = vpop.f32.mrb[0].mxu0
      %v3063 = vadd.f32 0.0, %v3062
      %v3064 = vpop.f32.mrb[0].mxu0
      %v3065 = vpop.f32.mrb[0].mxu0
      %v3066 = vadd.f32 0.0, %v3065
      %v3067 = vpop.f32.mrb[0].mxu0
      %3068 = vmatprep.mubr.bf16.mxu0 0
      %3069 = vmatmul.mubr.bf16.gmra.mrb[0].mxu0 %v1650
      %v3070 = vpop.f32.mrb[0].mxu0
      %v3071 = vadd.f32 0.0, %v3070
      %v3072 = vpop.f32.mrb[0].mxu0
      %v3073 = vpop.f32.mrb[0].mxu0
      %v3074 = vadd.f32 0.0, %v3073
      %v3075 = vpop.f32.mrb[0].mxu0
      %3076 = vmatprep.mubr.bf16.mxu0 0
      %3077 = vmatmul.mubr.bf16.gmra.mrb[0].mxu0 %v1653
      %v3078 = vpop.f32.mrb[0].mxu0
      %v3079 = vadd.f32 0.0, %v3078
      %v3080 = vpop.f32.mrb[0].mxu0
      %v3081 = vpop.f32.mrb[0].mxu0
      %v3082 = vadd.f32 0.0, %v3081
      %v3083 = vpop.f32.mrb[0].mxu0
      %3084 = vmatprep.mubr.bf16.mxu0 0
      %3085 = vmatmul.mubr.bf16.gmra.mrb[0].mxu0 %v1656
      %v3086 = vpop.f32.mrb[0].mxu0
      %v3087 = vadd.f32 0.0, %v3086
      %v3088 = vpop.f32.mrb[0].mxu0
      %v3089 = vpop.f32.mrb[0].mxu0
      %v3090 = vadd.f32 0.0, %v3089
      %v3091 = vpop.f32.mrb[0].mxu0
      %3092 = vmatprep.mubr.bf16.mxu0 0
      %3093 = vmatmul.mubr.bf16.gmra.mrb[0].mxu0 %v1659
      %v3094 = vpop.f32.mrb[0].mxu0
      %v3095 = vadd.f32 0.0, %v3094
      %v3096 = vpop.f32.mrb[0].mxu0
      %v3097 = vpop.f32.mrb[0].mxu0
      %v3098 = vadd.f32 0.0, %v3097
      %v3099 = vpop.f32.mrb[0].mxu0
      %3100 = vmatprep.mubr.bf16.mxu0 0
      %3101 = vmatmul.mubr.bf16.gmra.mrb[0].mxu0 %v2305
      %v3102 = vpop.f32.mrb[0].mxu0
      %v3103 = vadd.f32 0.0, %v3102
      %v3104 = vpop.f32.mrb[0].mxu0
      %v3105 = vpop.f32.mrb[0].mxu0
      %v3106 = vadd.f32 0.0, %v3105
      %v3107 = vpop.f32.mrb[0].mxu0
      %3108 = vmatprep.mubr.bf16.mxu0 0
      %3109 = vmatmul.mubr.bf16.gmra.mrb[0].mxu0 %v2951
      %v3110 = vpop.f32.mrb[0].mxu0
      %v3111 = vadd.f32 0.0, %v3110
      %v3112 = vpop.f32.mrb[0].mxu0
      %v3113 = vpop.f32.mrb[0].mxu0
      %v3114 = vadd.f32 0.0, %v3113
      %v3115 = vpop.f32.mrb[0].mxu0
      %3116 = vdwg.mxu0
      %v3117 = vadd.f32 %v2905, %v2991
      %v3118 = vadd.f32 %v2906, %v2994
      %v3119 = vadd.f32 %v2907, %v2999
      %v3120 = vadd.f32 %v2908, %v3002
      %v3121 = vadd.f32 %v2909, %v3007
      %v3122 = vadd.f32 %v2910, %v3010
      %v3123 = vadd.f32 %v2911, %v3015
      %v3124 = vadd.f32 %v2912, %v3018
      %v3125 = vadd.f32 %v2913, %v3023
      %v3126 = vadd.f32 %v2914, %v3026
      %v3127 = vadd.f32 %v2915, %v3031
      %v3128 = vadd.f32 %v2916, %v3034
      %v3129 = vadd.f32 %v2917, %v3039
      %v3130 = vadd.f32 %v2918, %v3042
      %v3131 = vadd.f32 %v2919, %v3047
      %v3132 = vadd.f32 %v2920, %v3050
      %v3133 = vadd.f32 %v2921, %v3055
      %v3134 = vadd.f32 %v2922, %v3058
      %v3135 = vadd.f32 %v2923, %v3063
      %v3136 = vadd.f32 %v2924, %v3066
      %v3137 = vadd.f32 %v2925, %v3071
      %v3138 = vadd.f32 %v2926, %v3074
      %v3139 = vadd.f32 %v2927, %v3079
      %v3140 = vadd.f32 %v2928, %v3082
      %v3141 = vadd.f32 %v2929, %v3087
      %v3142 = vadd.f32 %v2930, %v3090
      %v3143 = vadd.f32 %v2931, %v3095
      %v3144 = vadd.f32 %v2932, %v3098
      %v3145 = vadd.f32 %v2933, %v3103
      %v3146 = vadd.f32 %v2934, %v3106
      %v3147 = vadd.f32 %v2935, %v3111
      %v3148 = vadd.f32 %v2936, %v3114
      %v3149 = vld [vmem:[%s4] sm:$0x1]
      %v3151 = vlaneseq
      %v3152 = vshrl.u32 %v3151, 7
      %v3153 = vsub.s32 0, %v3152
      %v3154 = vrot.slane %v3149, %v3153
      %v3156 = vadd.f32 %v3117, %v3154
      %v3157 = vadd.f32 %v3118, %v3154
      %v3158 = vadd.f32 %v3119, %v3154
      %v3159 = vadd.f32 %v3120, %v3154
      %v3160 = vadd.f32 %v3121, %v3154
      %v3161 = vadd.f32 %v3122, %v3154
      %v3162 = vadd.f32 %v3123, %v3154
      %v3163 = vadd.f32 %v3124, %v3154
      %v3164 = vadd.f32 %v3125, %v3154
      %v3165 = vadd.f32 %v3126, %v3154
      %v3166 = vadd.f32 %v3127, %v3154
      %v3167 = vadd.f32 %v3128, %v3154
      %v3168 = vadd.f32 %v3129, %v3154
      %v3169 = vadd.f32 %v3130, %v3154
      %v3170 = vadd.f32 %v3131, %v3154
      %v3171 = vadd.f32 %v3132, %v3154
      %v3172 = vadd.f32 %v3133, %v3154
      %v3173 = vadd.f32 %v3134, %v3154
      %v3174 = vadd.f32 %v3135, %v3154
      %v3175 = vadd.f32 %v3136, %v3154
      %v3176 = vadd.f32 %v3137, %v3154
      %v3177 = vadd.f32 %v3138, %v3154
      %v3178 = vadd.f32 %v3139, %v3154
      %v3179 = vadd.f32 %v3140, %v3154
      %v3180 = vadd.f32 %v3141, %v3154
      %v3181 = vadd.f32 %v3142, %v3154
      %v3182 = vadd.f32 %v3143, %v3154
      %v3183 = vadd.f32 %v3144, %v3154
      %v3184 = vadd.f32 %v3145, %v3154
      %v3185 = vadd.f32 %v3146, %v3154
      %v3186 = vadd.f32 %v3147, %v3154
      %v3187 = vadd.f32 %v3148, %v3154
      %v3188 = vpack.c.bf16 %v3157, %v3156
      %v3189 = vpack.c.bf16 %v3159, %v3158
      %v3190 = vpack.c.bf16 %v3161, %v3160
      %v3191 = vpack.c.bf16 %v3163, %v3162
      %v3192 = vpack.c.bf16 %v3165, %v3164
      %v3193 = vpack.c.bf16 %v3167, %v3166
      %v3194 = vpack.c.bf16 %v3169, %v3168
      %v3195 = vpack.c.bf16 %v3171, %v3170
      %v3196 = vpack.c.bf16 %v3173, %v3172
      %v3197 = vpack.c.bf16 %v3175, %v3174
      %v3198 = vpack.c.bf16 %v3177, %v3176
      %v3199 = vpack.c.bf16 %v3179, %v3178
      %v3200 = vpack.c.bf16 %v3181, %v3180
      %v3201 = vpack.c.bf16 %v3183, %v3182
      %v3202 = vpack.c.bf16 %v3185, %v3184
      %v3203 = vpack.c.bf16 %v3187, %v3186
      %v3220 = vunpack.c.l.b16 %v3188
      %v3221 = vunpack.c.h.b16 %v3188
      %v3222 = vunpack.c.l.b16 %v3189
      %v3223 = vunpack.c.h.b16 %v3189
      %v3224 = vunpack.c.l.b16 %v3190
      %v3225 = vunpack.c.h.b16 %v3190
      %v3226 = vunpack.c.l.b16 %v3191
      %v3227 = vunpack.c.h.b16 %v3191
      %v3228 = vunpack.c.l.b16 %v3192
      %v3229 = vunpack.c.h.b16 %v3192
      %v3230 = vunpack.c.l.b16 %v3193
      %v3231 = vunpack.c.h.b16 %v3193
      %v3232 = vunpack.c.l.b16 %v3194
      %v3233 = vunpack.c.h.b16 %v3194
      %v3234 = vunpack.c.l.b16 %v3195
      %v3235 = vunpack.c.h.b16 %v3195
      %v3236 = vunpack.c.l.b16 %v3196
      %v3237 = vunpack.c.h.b16 %v3196
      %v3238 = vunpack.c.l.b16 %v3197
      %v3239 = vunpack.c.h.b16 %v3197
      %v3240 = vunpack.c.l.b16 %v3198
      %v3241 = vunpack.c.h.b16 %v3198
      %v3242 = vunpack.c.l.b16 %v3199
      %v3243 = vunpack.c.h.b16 %v3199
      %v3244 = vunpack.c.l.b16 %v3200
      %v3245 = vunpack.c.h.b16 %v3200
      %v3246 = vunpack.c.l.b16 %v3201
      %v3247 = vunpack.c.h.b16 %v3201
      %v3248 = vunpack.c.l.b16 %v3202
      %v3249 = vunpack.c.h.b16 %v3202
      %v3250 = vunpack.c.l.b16 %v3203
      %v3251 = vunpack.c.h.b16 %v3203
      %v3252 = vpack.c.b16 %v3220, %v3220
      %v3253 = vpack.c.b16 %v3221, %v3221
      %v3254 = vpack.c.b16 %v3222, %v3222
      %v3255 = vpack.c.b16 %v3223, %v3223
      %v3256 = vpack.c.b16 %v3224, %v3224
      %v3257 = vpack.c.b16 %v3225, %v3225
      %v3258 = vpack.c.b16 %v3226, %v3226
      %v3259 = vpack.c.b16 %v3227, %v3227
      %v3260 = vpack.c.b16 %v3228, %v3228
      %v3261 = vpack.c.b16 %v3229, %v3229
      %v3262 = vpack.c.b16 %v3230, %v3230
      %v3263 = vpack.c.b16 %v3231, %v3231
      %v3264 = vpack.c.b16 %v3232, %v3232
      %v3265 = vpack.c.b16 %v3233, %v3233
      %v3266 = vpack.c.b16 %v3234, %v3234
      %v3267 = vpack.c.b16 %v3235, %v3235
      %v3268 = vpack.c.b16 %v3236, %v3236
      %v3269 = vpack.c.b16 %v3237, %v3237
      %v3270 = vpack.c.b16 %v3238, %v3238
      %v3271 = vpack.c.b16 %v3239, %v3239
      %v3272 = vpack.c.b16 %v3240, %v3240
      %v3273 = vpack.c.b16 %v3241, %v3241
      %v3274 = vpack.c.b16 %v3242, %v3242
      %v3275 = vpack.c.b16 %v3243, %v3243
      %v3276 = vpack.c.b16 %v3244, %v3244
      %v3277 = vpack.c.b16 %v3245, %v3245
      %v3278 = vpack.c.b16 %v3246, %v3246
      %v3279 = vpack.c.b16 %v3247, %v3247
      %v3280 = vpack.c.b16 %v3248, %v3248
      %v3281 = vpack.c.b16 %v3249, %v3249
      %v3282 = vpack.c.b16 %v3250, %v3250
      %v3283 = vpack.c.b16 %v3251, %v3251
      %3316 = vst [vmem:[%s424] sm:$0xf] %v3252
      %3317 = vst [vmem:[%s424 + $0x4] sm:$0xf] %v3253
      %3318 = vst [vmem:[%s424 + $0x8] sm:$0xf] %v3254
      %3319 = vst [vmem:[%s424 + $0xc] sm:$0xf] %v3255
      %3320 = vst [vmem:[%s424 + $0x10] sm:$0xf] %v3256
      %3321 = vst [vmem:[%s424 + $0x14] sm:$0xf] %v3257
      %3322 = vst [vmem:[%s424 + $0x18] sm:$0xf] %v3258
      %3323 = vst [vmem:[%s424 + $0x1c] sm:$0xf] %v3259
      %3324 = vst [vmem:[%s424 + $0x20] sm:$0xf] %v3260
      %3325 = vst [vmem:[%s424 + $0x24] sm:$0xf] %v3261
      %3326 = vst [vmem:[%s424 + $0x28] sm:$0xf] %v3262
      %3327 = vst [vmem:[%s424 + $0x2c] sm:$0xf] %v3263
      %3328 = vst [vmem:[%s424 + $0x30] sm:$0xf] %v3264
      %3329 = vst [vmem:[%s424 + $0x34] sm:$0xf] %v3265
      %3330 = vst [vmem:[%s424 + $0x38] sm:$0xf] %v3266
      %3331 = vst [vmem:[%s424 + $0x3c] sm:$0xf] %v3267
      %3332 = vst [vmem:[%s424 + $0x40] sm:$0xf] %v3268
      %3333 = vst [vmem:[%s424 + $0x44] sm:$0xf] %v3269
      %3334 = vst [vmem:[%s424 + $0x48] sm:$0xf] %v3270
      %3335 = vst [vmem:[%s424 + $0x4c] sm:$0xf] %v3271
      %3336 = vst [vmem:[%s424 + $0x50] sm:$0xf] %v3272
      %3337 = vst [vmem:[%s424 + $0x54] sm:$0xf] %v3273
      %3338 = vst [vmem:[%s424 + $0x58] sm:$0xf] %v3274
      %3339 = vst [vmem:[%s424 + $0x5c] sm:$0xf] %v3275
      %3340 = vst [vmem:[%s424 + $0x60] sm:$0xf] %v3276
      %3341 = vst [vmem:[%s424 + $0x64] sm:$0xf] %v3277
      %3342 = vst [vmem:[%s424 + $0x68] sm:$0xf] %v3278
      %3343 = vst [vmem:[%s424 + $0x6c] sm:$0xf] %v3279
      %3344 = vst [vmem:[%s424 + $0x70] sm:$0xf] %v3280
      %3345 = vst [vmem:[%s424 + $0x74] sm:$0xf] %v3281
      %3346 = vst [vmem:[%s424 + $0x78] sm:$0xf] %v3282
      %3347 = vst [vmem:[%s424 + $0x7c] sm:$0xf] %v3283
      %v3348 = vadd.f32 %v3156, %v3157
      %v3349 = vadd.f32 %v3348, %v3158
      %v3350 = vadd.f32 %v3349, %v3159
      %v3351 = vadd.f32 %v3350, %v3160
      %v3352 = vadd.f32 %v3351, %v3161
      %v3353 = vadd.f32 %v3352, %v3162
      %v3354 = vadd.f32 %v3353, %v3163
      %v3355 = vadd.f32 %v3354, %v3164
      %v3356 = vadd.f32 %v3355, %v3165
      %v3357 = vadd.f32 %v3356, %v3166
      %v3358 = vadd.f32 %v3357, %v3167
      %v3359 = vadd.f32 %v3358, %v3168
      %v3360 = vadd.f32 %v3359, %v3169
      %v3361 = vadd.f32 %v3360, %v3170
      %v3362 = vadd.f32 %v3361, %v3171
      %v3363 = vadd.f32 %v3362, %v3172
      %v3364 = vadd.f32 %v3363, %v3173
      %v3365 = vadd.f32 %v3364, %v3174
      %v3366 = vadd.f32 %v3365, %v3175
      %v3367 = vadd.f32 %v3366, %v3176
      %v3368 = vadd.f32 %v3367, %v3177
      %v3369 = vadd.f32 %v3368, %v3178
      %v3370 = vadd.f32 %v3369, %v3179
      %v3371 = vadd.f32 %v3370, %v3180
      %v3372 = vadd.f32 %v3371, %v3181
      %v3373 = vadd.f32 %v3372, %v3182
      %v3374 = vadd.f32 %v3373, %v3183
      %v3375 = vadd.f32 %v3374, %v3184
      %v3376 = vadd.f32 %v3375, %v3185
      %v3377 = vadd.f32 %v3376, %v3186
      %v3378 = vadd.f32 %v3377, %v3187
      %v3379 = vrot.slane %v3378, 4
      %v3380 = vadd.f32 %v3378, %v3379
      %v3381 = vrot.slane %v3380, 2
      %v3382 = vadd.f32 %v3380, %v3381
      %v3383 = vrot.slane %v3382, 1
      %v3384 = vadd.f32 %v3382, %v3383
      %3385 = vst [vmem:[%s431] sm:$0x1] %v3384
      %v3386 = vmul.f32 %v3156, %v3156
      %v3387 = vmul.f32 %v3157, %v3157
      %v3388 = vmul.f32 %v3158, %v3158
      %v3389 = vmul.f32 %v3159, %v3159
      %v3390 = vmul.f32 %v3160, %v3160
      %v3391 = vmul.f32 %v3161, %v3161
      %v3392 = vmul.f32 %v3162, %v3162
      %v3393 = vmul.f32 %v3163, %v3163
      %v3394 = vmul.f32 %v3164, %v3164
      %v3395 = vmul.f32 %v3165, %v3165
      %v3396 = vmul.f32 %v3166, %v3166
      %v3397 = vmul.f32 %v3167, %v3167
      %v3398 = vmul.f32 %v3168, %v3168
      %v3399 = vmul.f32 %v3169, %v3169
      %v3400 = vmul.f32 %v3170, %v3170
      %v3401 = vmul.f32 %v3171, %v3171
      %v3402 = vmul.f32 %v3172, %v3172
      %v3403 = vmul.f32 %v3173, %v3173
      %v3404 = vmul.f32 %v3174, %v3174
      %v3405 = vmul.f32 %v3175, %v3175
      %v3406 = vmul.f32 %v3176, %v3176
      %v3407 = vmul.f32 %v3177, %v3177
      %v3408 = vmul.f32 %v3178, %v3178
      %v3409 = vmul.f32 %v3179, %v3179
      %v3410 = vmul.f32 %v3180, %v3180
      %v3411 = vmul.f32 %v3181, %v3181
      %v3412 = vmul.f32 %v3182, %v3182
      %v3413 = vmul.f32 %v3183, %v3183
      %v3414 = vmul.f32 %v3184, %v3184
      %v3415 = vmul.f32 %v3185, %v3185
      %v3416 = vmul.f32 %v3186, %v3186
      %v3417 = vmul.f32 %v3187, %v3187
      %v3418 = vadd.f32 %v3386, %v3387
      %v3419 = vadd.f32 %v3418, %v3388
      %v3420 = vadd.f32 %v3419, %v3389
      %v3421 = vadd.f32 %v3420, %v3390
      %v3422 = vadd.f32 %v3421, %v3391
      %v3423 = vadd.f32 %v3422, %v3392
      %v3424 = vadd.f32 %v3423, %v3393
      %v3425 = vadd.f32 %v3424, %v3394
      %v3426 = vadd.f32 %v3425, %v3395
      %v3427 = vadd.f32 %v3426, %v3396
      %v3428 = vadd.f32 %v3427, %v3397
      %v3429 = vadd.f32 %v3428, %v3398
      %v3430 = vadd.f32 %v3429, %v3399
      %v3431 = vadd.f32 %v3430, %v3400
      %v3432 = vadd.f32 %v3431, %v3401
      %v3433 = vadd.f32 %v3432, %v3402
      %v3434 = vadd.f32 %v3433, %v3403
      %v3435 = vadd.f32 %v3434, %v3404
      %v3436 = vadd.f32 %v3435, %v3405
      %v3437 = vadd.f32 %v3436, %v3406
      %v3438 = vadd.f32 %v3437, %v3407
      %v3439 = vadd.f32 %v3438, %v3408
      %v3440 = vadd.f32 %v3439, %v3409
      %v3441 = vadd.f32 %v3440, %v3410
      %v3442 = vadd.f32 %v3441, %v3411
      %v3443 = vadd.f32 %v3442, %v3412
      %v3444 = vadd.f32 %v3443, %v3413
      %v3445 = vadd.f32 %v3444, %v3414
      %v3446 = vadd.f32 %v3445, %v3415
      %v3447 = vadd.f32 %v3446, %v3416
      %v3448 = vadd.f32 %v3447, %v3417
      %v3449 = vrot.slane %v3448, 4
      %v3450 = vadd.f32 %v3448, %v3449
      %v3451 = vrot.slane %v3450, 2
      %v3452 = vadd.f32 %v3450, %v3451
      %v3453 = vrot.slane %v3452, 1
      %v3454 = vadd.f32 %v3452, %v3453
      %3455 = vst [vmem:[%s431 + $0x1] sm:$0x1] %v3454
      %s3456 = sadd.s32 %s22, %s23
      %s3457 = smul.u32 32, %s3456
      %p3458 = scmp.lt.s32.totalorder %s3457, 63
      %s3459 = scalar_select %p3458, %s3457, 63
      %s3460 = smul.addr %s3459, 4
      %s3461 = scalar_lea.vmem %s5, %s3460
      %s3462 = sadd.s32 %s22, %s23
      %p3463 = scmp.lt.s32.totalorder %s3462, 1
      %s3464 = scalar_select %p3463, %s3462, 1
      %s3465 = smul.addr %s3464, 2
      %s3466 = scalar_lea.vmem %s6, %s3465
      // Predicated region
      $region41: #{double_conv_forward.7} parent=39 // pred_check
        %p3467 = pneg %p186
      $region42: #{double_conv_forward.7} parent=39 // pred_check_branch
        %3469 = sbr.rel (%p3467) target = $region44
      $region43: #{double_conv_forward.7} parent=39 // pred_region
        %s3470 = sadd.s32 %s22, %s23
        %s3471 = smul.u32 32, %s3470
      $region44: #{double_conv_forward.7} parent=39 // pred_fallthru
        _
      // Predicated region
      $region45: #{double_conv_forward.7} parent=39 // pred_check
        %p3472 = pneg %p214
      $region46: #{double_conv_forward.7} parent=39 // pred_check_branch
        %3474 = sbr.rel (%p3472) target = $region48
      $region47: #{double_conv_forward.7} parent=39 // pred_region
        %s3475 = sadd.s32 %s22, %s23
      $region48: #{double_conv_forward.7} parent=39 // pred_fallthru
        _
    $region40: #{double_conv_forward.7} parent=5 // pred_fallthru
      _
    %p3476 = scmp.le.s32.totalorder 2, %s13
    // Predicated region
    $region49: #{double_conv_forward.7} parent=5 // pred_check
      %p3477 = pneg %p3476
    $region50: #{double_conv_forward.7} parent=5 // pred_check_branch
      %3479 = sbr.rel (%p3477) target = $region52
    $region51: #{double_conv_forward.7} parent=5 // pred_region
      %s3480 = ssub.s32 %s13, 2
      // Predicated region
      $region53: #{double_conv_forward.7} parent=51 // pred_check
        %p3481 = pneg %p192
      $region54: #{double_conv_forward.7} parent=51 // pred_check_branch
        %3483 = sbr.rel (%p3481) target = $region56
      $region55: #{double_conv_forward.7} parent=51 // pred_region
        %s3484 = sadd.s32 %s24, %s25
        %s3485 = smul.u32 32, %s3484
        %p3486 = scmp.lt.s32.totalorder %s3485, 63
        %s3487 = scalar_select %p3486, %s3485, 63
        %s3488 = smul.addr %s3487, 4
        %s3489 = scalar_lea.vmem %s5, %s3488
      $region56: #{double_conv_forward.7} parent=51 // pred_fallthru
        _
      // Predicated region
      $region57: #{double_conv_forward.7} parent=51 // pred_check
        %p3490 = pneg %p220
      $region58: #{double_conv_forward.7} parent=51 // pred_check_branch
        %3492 = sbr.rel (%p3490) target = $region60
      $region59: #{double_conv_forward.7} parent=51 // pred_region
        %s3493 = sadd.s32 %s24, %s25
        %p3494 = scmp.lt.s32.totalorder %s3493, 1
        %s3495 = scalar_select %p3494, %s3493, 1
        %s3496 = smul.addr %s3495, 2
        %s3497 = scalar_lea.vmem %s6, %s3496
      $region60: #{double_conv_forward.7} parent=51 // pred_fallthru
        _
    $region52: #{double_conv_forward.7} parent=5 // pred_fallthru
      _
  $region6: #{double_conv_forward.7} parent=0 // loop_footer
    %s17 = sadd.s32 1, %s13
  $region7: #{double_conv_forward.7} parent=0 // loop_footer_branch
    %12 = sbr.rel target = $region3
  $region8: #{double_conv_forward.7} parent=0 // loop_exit
    _

// kernel: double_conv_forward.9
$region0: #{double_conv_forward.9}
  #allocation0 [shape = 'u32[]', space=smem, size = 0x4, offset = 0x4, fixed_abs, tag = 'smem constant byte address 0x4 - core index']
  #allocation1 [shape = 'u32[144,128]{1,0:T(1,128)}', space=vmem, size = 0x12000, scoped, tag = 'internal scratch']
  %s0 = inlined_call_operand.vmem [shape: bf16[2,18,18,128], index: 0, kind: input, shape index: {}, may-alias: {0,1,2}]
  %s1 = inlined_call_operand.vmem [shape: bf16[2,18,18,128], index: 1, kind: input, shape index: {}, may-alias: {0,1,2}]
  %s2 = inlined_call_operand.vmem [shape: bf16[2,18,18,128], index: 2, kind: input, shape index: {}, may-alias: {0,1,2}]
  %s3 = inlined_call_operand.vmem [shape: bf16[9,128,128], index: 3, kind: input, shape index: {}]
  %s4 = inlined_call_operand.vmem [shape: f32[1,128], index: 4, kind: input, shape index: {}]
  %s5 = inlined_call_operand.vmem [shape: bf16[512,128], index: 5, kind: output, shape index: {0}]
  %s6 = inlined_call_operand.vmem [shape: f32[2,2,128], index: 6, kind: output, shape index: {1}]
  %7 = xla_tuple %s5, %s6
  %s8 = sld [smem:[#allocation0]]
  $region61: #{double_conv_forward.9} parent=0
    _
  %s10 = ssub.s32 1, %s8
  %s11 = scalar_select 0, %s10, %s8
  loop: start=0, step=1, limit=4
  $region2: #{double_conv_forward.9} parent=0 // loop_pre_header
    _
  $region3: #{double_conv_forward.9} parent=0 // loop_header
    %s13 = sphi 0, %s17
    %p14 = scmp.ge.s32.totalorder %s13, 4
    %s20 = sphi 0, %s32
    %s21 = sphi 0, %s28
    %s22 = sphi 0, %s20
    %s23 = sphi 0, %s21
    %s24 = sphi 0, %s22
    %s25 = sphi 0, %s23
    %s37 = sphi 0, %s39
    %s40 = sphi 0, %s37
    %s41 = sphi 0, %s40
    %s57 = sphi 0, %s41
    %s69 = sphi 0, %s71
    %s72 = sphi 0, %s69
    %s73 = sphi 0, %s72
    %s89 = sphi 0, %s73
    %s103 = sphi 0, %s105
    %s106 = sphi 0, %s103
    %s107 = sphi 0, %s106
    %s123 = sphi 0, %s107
    %s127 = sphi 0, %s127
    %s129 = sphi 0, %s127
    %s130 = sphi 0, %s129
    %s144 = sphi 0, %s130
    %s148 = sphi 0, %s148
    %s150 = sphi 0, %s148
    %s151 = sphi 0, %s150
    %s165 = sphi 0, %s151
    %s173 = sphi 0, %s175
    %s176 = sphi 0, %s173
    %s177 = sphi 0, %s176
    %s193 = sphi 0, %s177
    %s201 = sphi 0, %s203
    %s204 = sphi 0, %s201
    %s205 = sphi 0, %s204
    %s221 = sphi 0, %s205
  $region4: #{double_conv_forward.9} parent=0 // loop_header_branch
    %16 = sbr.rel (%p14) target = $region8
  $region5: #{double_conv_forward.9} parent=0 // loop_body
    %s18 = ssub.s32 %s13, 1
    %s19 = ssub.s32 %s13, 2
    %s26 = sadd.s32 1, %s21
    %p27 = scmp.ge.s32.totalorder %s26, 1
    %s28 = scalar_select %p27, 0, %s26
    %s29 = sadd.s32 1, %s20
    %s30 = scalar_select %p27, %s29, %s20
    %p31 = scmp.ge.s32.totalorder %s30, 2
    %s32 = scalar_select %p31, 0, %s30
    %s33 = ssub.s32 %s20, %s32
    %s34 = ssub.s32 %s21, %s28
    %s35 = sor.u32 %s33, %s34
    %p36 = scmp.eq.s32.totalorder %s35, 0
    %s38 = sadd.s32 %s37, 1
    %s39 = scalar_select %p36, %s37, %s38
    %p42 = pneg %p36
    %p43 = scmp.eq.s32.totalorder %s13, 1
    %p44 = por %p42, %p43
    %p45 = scmp.ne.s32.totalorder %s37, %s40
    %p46 = scmp.eq.s32.totalorder %s13, 0
    %p47 = por %p45, %p46
    %p48 = scmp.ne.s32.totalorder %s37, %s40
    %p49 = scmp.eq.s32.totalorder %s18, 1
    %p50 = por %p48, %p49
    %p51 = scmp.ne.s32.totalorder %s40, %s41
    %p52 = scmp.eq.s32.totalorder %s18, 0
    %p53 = por %p51, %p52
    %p54 = scmp.ne.s32.totalorder %s40, %s41
    %p55 = scmp.eq.s32.totalorder %s19, 1
    %p56 = por %p54, %p55
    %p58 = scmp.ne.s32.totalorder %s41, %s57
    %p59 = scmp.eq.s32.totalorder %s19, 0
    %p60 = por %p58, %p59
    %s61 = sadd.s32 %s21, 1
    %s62 = smul.u32 %s61, 16
    %s63 = sadd.s32 %s28, 1
    %s64 = smul.u32 %s63, 16
    %s65 = ssub.s32 %s20, %s32
    %s66 = ssub.s32 %s62, %s64
    %s67 = sor.u32 %s65, %s66
    %p68 = scmp.eq.s32.totalorder %s67, 0
    %s70 = sadd.s32 %s69, 1
    %s71 = scalar_select %p68, %s69, %s70
    %p74 = pneg %p68
    %p75 = scmp.eq.s32.totalorder %s13, 1
    %p76 = por %p74, %p75
    %p77 = scmp.ne.s32.totalorder %s69, %s72
    %p78 = scmp.eq.s32.totalorder %s13, 0
    %p79 = por %p77, %p78
    %p80 = scmp.ne.s32.totalorder %s69, %s72
    %p81 = scmp.eq.s32.totalorder %s18, 1
    %p82 = por %p80, %p81
    %p83 = scmp.ne.s32.totalorder %s72, %s73
    %p84 = scmp.eq.s32.totalorder %s18, 0
    %p85 = por %p83, %p84
    %p86 = scmp.ne.s32.totalorder %s72, %s73
    %p87 = scmp.eq.s32.totalorder %s19, 1
    %p88 = por %p86, %p87
    %p90 = scmp.ne.s32.totalorder %s73, %s89
    %p91 = scmp.eq.s32.totalorder %s19, 0
    %p92 = por %p90, %p91
    %s93 = sadd.s32 %s21, 1
    %s94 = smul.u32 %s93, 16
    %s95 = sadd.s32 %s94, 1
    %s96 = sadd.s32 %s28, 1
    %s97 = smul.u32 %s96, 16
    %s98 = sadd.s32 %s97, 1
    %s99 = ssub.s32 %s20, %s32
    %s100 = ssub.s32 %s95, %s98
    %s101 = sor.u32 %s99, %s100
    %p102 = scmp.eq.s32.totalorder %s101, 0
    %s104 = sadd.s32 %s103, 1
    %s105 = scalar_select %p102, %s103, %s104
    %p108 = pneg %p102
    %p109 = scmp.eq.s32.totalorder %s13, 1
    %p110 = por %p108, %p109
    %p111 = scmp.ne.s32.totalorder %s103, %s106
    %p112 = scmp.eq.s32.totalorder %s13, 0
    %p113 = por %p111, %p112
    %p114 = scmp.ne.s32.totalorder %s103, %s106
    %p115 = scmp.eq.s32.totalorder %s18, 1
    %p116 = por %p114, %p115
    %p117 = scmp.ne.s32.totalorder %s106, %s107
    %p118 = scmp.eq.s32.totalorder %s18, 0
    %p119 = por %p117, %p118
    %p120 = scmp.ne.s32.totalorder %s106, %s107
    %p121 = scmp.eq.s32.totalorder %s19, 1
    %p122 = por %p120, %p121
    %p124 = scmp.ne.s32.totalorder %s107, %s123
    %p125 = scmp.eq.s32.totalorder %s19, 0
    %p126 = por %p124, %p125
    %s128 = sadd.s32 %s127, 1
    %p131 = scmp.eq.s32.totalorder %s13, 1
    %p132 = scmp.ne.s32.totalorder %s127, %s129
    %p133 = scmp.eq.s32.totalorder %s13, 0
    %p134 = por %p132, %p133
    %p135 = scmp.ne.s32.totalorder %s127, %s129
    %p136 = scmp.eq.s32.totalorder %s18, 1
    %p137 = por %p135, %p136
    %p138 = scmp.ne.s32.totalorder %s129, %s130
    %p139 = scmp.eq.s32.totalorder %s18, 0
    %p140 = por %p138, %p139
    %p141 = scmp.ne.s32.totalorder %s129, %s130
    %p142 = scmp.eq.s32.totalorder %s19, 1
    %p143 = por %p141, %p142
    %p145 = scmp.ne.s32.totalorder %s130, %s144
    %p146 = scmp.eq.s32.totalorder %s19, 0
    %p147 = por %p145, %p146
    %s149 = sadd.s32 %s148, 1
    %p152 = scmp.eq.s32.totalorder %s13, 1
    %p153 = scmp.ne.s32.totalorder %s148, %s150
    %p154 = scmp.eq.s32.totalorder %s13, 0
    %p155 = por %p153, %p154
    %p156 = scmp.ne.s32.totalorder %s148, %s150
    %p157 = scmp.eq.s32.totalorder %s18, 1
    %p158 = por %p156, %p157
    %p159 = scmp.ne.s32.totalorder %s150, %s151
    %p160 = scmp.eq.s32.totalorder %s18, 0
    %p161 = por %p159, %p160
    %p162 = scmp.ne.s32.totalorder %s150, %s151
    %p163 = scmp.eq.s32.totalorder %s19, 1
    %p164 = por %p162, %p163
    %p166 = scmp.ne.s32.totalorder %s151, %s165
    %p167 = scmp.eq.s32.totalorder %s19, 0
    %p168 = por %p166, %p167
    %s169 = sadd.s32 %s20, %s21
    %s170 = sadd.s32 %s32, %s28
    %s171 = ssub.s32 %s169, %s170
    %p172 = scmp.eq.s32.totalorder %s171, 0
    %s174 = sadd.s32 %s173, 1
    %s175 = scalar_select %p172, %s173, %s174
    %p178 = pneg %p172
    %p179 = scmp.eq.s32.totalorder %s13, 1
    %p180 = por %p178, %p179
    %p181 = scmp.ne.s32.totalorder %s173, %s176
    %p182 = scmp.eq.s32.totalorder %s13, 0
    %p183 = por %p181, %p182
    %p184 = scmp.ne.s32.totalorder %s173, %s176
    %p185 = scmp.eq.s32.totalorder %s18, 1
    %p186 = por %p184, %p185
    %p187 = scmp.ne.s32.totalorder %s176, %s177
    %p188 = scmp.eq.s32.totalorder %s18, 0
    %p189 = por %p187, %p188
    %p190 = scmp.ne.s32.totalorder %s176, %s177
    %p191 = scmp.eq.s32.totalorder %s19, 1
    %p192 = por %p190, %p191
    %p194 = scmp.ne.s32.totalorder %s177, %s193
    %p195 = scmp.eq.s32.totalorder %s19, 0
    %p196 = por %p194, %p195
    %s197 = sadd.s32 %s20, %s21
    %s198 = sadd.s32 %s32, %s28
    %s199 = ssub.s32 %s197, %s198
    %p200 = scmp.eq.s32.totalorder %s199, 0
    %s202 = sadd.s32 %s201, 1
    %s203 = scalar_select %p200, %s201, %s202
    %p206 = pneg %p200
    %p207 = scmp.eq.s32.totalorder %s13, 1
    %p208 = por %p206, %p207
    %p209 = scmp.ne.s32.totalorder %s201, %s204
    %p210 = scmp.eq.s32.totalorder %s13, 0
    %p211 = por %p209, %p210
    %p212 = scmp.ne.s32.totalorder %s201, %s204
    %p213 = scmp.eq.s32.totalorder %s18, 1
    %p214 = por %p212, %p213
    %p215 = scmp.ne.s32.totalorder %s204, %s205
    %p216 = scmp.eq.s32.totalorder %s18, 0
    %p217 = por %p215, %p216
    %p218 = scmp.ne.s32.totalorder %s204, %s205
    %p219 = scmp.eq.s32.totalorder %s19, 1
    %p220 = por %p218, %p219
    %p222 = scmp.ne.s32.totalorder %s205, %s221
    %p223 = scmp.eq.s32.totalorder %s19, 0
    %p224 = por %p222, %p223
    %p225 = scmp.le.s32.totalorder 1, %s13
    %p226 = scmp.lt.s32.totalorder %s13, 3
    %p227 = pnand %p225, %p226
    %p228 = pneg %p227
    // Predicated region
    $region9: #{double_conv_forward.9} parent=5 // pred_check
      _
    $region10: #{double_conv_forward.9} parent=5 // pred_check_branch
      %230 = sbr.rel (%p227) target = $region12
    $region11: #{double_conv_forward.9} parent=5 // pred_region
      %s231 = ssub.s32 %s13, 1
      // Predicated region
      $region13: #{double_conv_forward.9} parent=11 // pred_check
        %p232 = pneg %p140
      $region14: #{double_conv_forward.9} parent=11 // pred_check_branch
        %234 = sbr.rel (%p232) target = $region16
      $region15: #{double_conv_forward.9} parent=11 // pred_region
        _
      $region16: #{double_conv_forward.9} parent=11 // pred_fallthru
        _
      // Predicated region
      $region17: #{double_conv_forward.9} parent=11 // pred_check
        %p235 = pneg %p161
      $region18: #{double_conv_forward.9} parent=11 // pred_check_branch
        %237 = sbr.rel (%p235) target = $region20
      $region19: #{double_conv_forward.9} parent=11 // pred_region
        _
      $region20: #{double_conv_forward.9} parent=11 // pred_fallthru
        _
    $region12: #{double_conv_forward.9} parent=5 // pred_fallthru
      _
    %p238 = scmp.lt.s32.totalorder %s13, 2
    // Predicated region
    $region21: #{double_conv_forward.9} parent=5 // pred_check
      %p239 = pneg %p238
    $region22: #{double_conv_forward.9} parent=5 // pred_check_branch
      %241 = sbr.rel (%p239) target = $region24
    $region23: #{double_conv_forward.9} parent=5 // pred_region
      // Predicated region
      $region25: #{double_conv_forward.9} parent=23 // pred_check
        %p242 = pneg %p47
      $region26: #{double_conv_forward.9} parent=23 // pred_check_branch
        %244 = sbr.rel (%p242) target = $region28
      $region27: #{double_conv_forward.9} parent=23 // pred_region
        %s245 = smul.u32 16, %s21
        %s246 = ssub.s32 18, %s245
        %p247 = scmp.lt.s32.totalorder %s246, 16
        %s248 = scalar_select %p247, %s246, 16
        %s249 = smul.u32 64, %s248
        %s250 = smul.u32 %s249, 3
        %p251 = scmp.lt.s32.totalorder %s20, 1
        %s252 = scalar_select %p251, %s20, 1
        %p253 = scmp.lt.s32.totalorder %s245, 17
        %s254 = scalar_select %p253, %s245, 17
        %s255 = smul.addr %s254, 3
        %s256 = smul.addr %s252, 54
        %s257 = sadd.s32 %s255, %s256
        %s258 = smul.addr %s257, 4
        %s259 = scalar_lea.vmem %s0, %s258
        %s260 = smul.u32 16, %s21
        %s261 = ssub.s32 18, %s260
        %p262 = scmp.lt.s32.totalorder %s261, 16
        %s263 = scalar_select %p262, %s261, 16
        %s264 = smul.u32 64, %s263
        %s265 = smul.u32 %s264, 3
      $region28: #{double_conv_forward.9} parent=23 // pred_fallthru
        _
      // Predicated region
      $region29: #{double_conv_forward.9} parent=23 // pred_check
        %p266 = pneg %p79
      $region30: #{double_conv_forward.9} parent=23 // pred_check_branch
        %268 = sbr.rel (%p266) target = $region32
      $region31: #{double_conv_forward.9} parent=23 // pred_region
        %s269 = sadd.s32 %s21, 1
        %s270 = smul.u32 %s269, 16
        %p271 = scmp.lt.s32.totalorder %s20, 1
        %s272 = scalar_select %p271, %s20, 1
        %p273 = scmp.lt.s32.totalorder %s270, 17
        %s274 = scalar_select %p273, %s270, 17
        %s275 = smul.addr %s274, 3
        %s276 = smul.addr %s272, 54
        %s277 = sadd.s32 %s275, %s276
        %s278 = smul.addr %s277, 4
        %s279 = scalar_lea.vmem %s1, %s278
        %s280 = sadd.s32 %s21, 1
        %s281 = smul.u32 %s280, 16
      $region32: #{double_conv_forward.9} parent=23 // pred_fallthru
        _
      // Predicated region
      $region33: #{double_conv_forward.9} parent=23 // pred_check
        %p282 = pneg %p113
      $region34: #{double_conv_forward.9} parent=23 // pred_check_branch
        %284 = sbr.rel (%p282) target = $region36
      $region35: #{double_conv_forward.9} parent=23 // pred_region
        %s285 = sadd.s32 %s21, 1
        %s286 = smul.u32 %s285, 16
        %s287 = sadd.s32 %s286, 1
        %p288 = scmp.lt.s32.totalorder %s20, 1
        %s289 = scalar_select %p288, %s20, 1
        %p290 = scmp.lt.s32.totalorder %s287, 17
        %s291 = scalar_select %p290, %s287, 17
        %s292 = smul.addr %s291, 3
        %s293 = smul.addr %s289, 54
        %s294 = sadd.s32 %s292, %s293
        %s295 = smul.addr %s294, 4
        %s296 = scalar_lea.vmem %s2, %s295
        %s297 = sadd.s32 %s21, 1
        %s298 = smul.u32 %s297, 16
        %s299 = sadd.s32 %s298, 1
      $region36: #{double_conv_forward.9} parent=23 // pred_fallthru
        _
    $region24: #{double_conv_forward.9} parent=5 // pred_fallthru
      _
    %p300 = scmp.le.s32.totalorder 1, %s13
    %p301 = scmp.lt.s32.totalorder %s13, 3
    %p302 = pnand %p300, %p301
    %p303 = pneg %p302
    // Predicated region
    $region37: #{double_conv_forward.9} parent=5 // pred_check
      _
    $region38: #{double_conv_forward.9} parent=5 // pred_check_branch
      %305 = sbr.rel (%p302) target = $region40
    $region39: #{double_conv_forward.9} parent=5 // pred_region
      %s306 = ssub.s32 %s13, 1
      %s307 = smul.u32 16, %s23
      %s308 = ssub.s32 18, %s307
      %p309 = scmp.lt.s32.totalorder %s308, 16
      %s310 = scalar_select %p309, %s308, 16
      %s311 = smul.u32 64, %s310
      %s312 = smul.u32 %s311, 3
      %p313 = scmp.lt.s32.totalorder %s22, 1
      %s314 = scalar_select %p313, %s22, 1
      %p315 = scmp.lt.s32.totalorder %s307, 17
      %s316 = scalar_select %p315, %s307, 17
      %s317 = smul.addr %s316, 3
      %s318 = smul.addr %s314, 54
      %s319 = sadd.s32 %s317, %s318
      %s320 = smul.addr %s319, 4
      %s321 = scalar_lea.vmem %s0, %s320
      %p322 = pneg %p53
      %p323 = pneg %p50
      %s324 = sadd.s32 %s23, 1
      %s325 = smul.u32 %s324, 16
      %p326 = scmp.lt.s32.totalorder %s22, 1
      %s327 = scalar_select %p326, %s22, 1
      %p328 = scmp.lt.s32.totalorder %s325, 17
      %s329 = scalar_select %p328, %s325, 17
      %s330 = smul.addr %s329, 3
      %s331 = smul.addr %s327, 54
      %s332 = sadd.s32 %s330, %s331
      %s333 = smul.addr %s332, 4
      %s334 = scalar_lea.vmem %s1, %s333
      %p335 = pneg %p85
      %p336 = pneg %p82
      %s337 = sadd.s32 %s23, 1
      %s338 = smul.u32 %s337, 16
      %s339 = sadd.s32 %s338, 1
      %p340 = scmp.lt.s32.totalorder %s22, 1
      %s341 = scalar_select %p340, %s22, 1
      %p342 = scmp.lt.s32.totalorder %s339, 17
      %s343 = scalar_select %p342, %s339, 17
      %s344 = smul.addr %s343, 3
      %s345 = smul.addr %s341, 54
      %s346 = sadd.s32 %s344, %s345
      %s347 = smul.addr %s346, 4
      %s348 = scalar_lea.vmem %s2, %s347
      %p349 = pneg %p119
      %p350 = pneg %p116
      %p351 = pneg %p140
      %p352 = pneg %p137
      %p353 = pneg %p161
      %p354 = pneg %p158
      %p355 = pneg %p189
      %p356 = pneg %p186
      %s357 = sadd.s32 %s22, %s23
      %s358 = smul.u32 32, %s357
      %p359 = scmp.lt.s32.totalorder %s358, 63
      %s360 = scalar_select %p359, %s358, 63
      %s361 = smul.addr %s360, 4
      %s362 = scalar_lea.vmem %s5, %s361
      %p363 = pneg %p217
      %p364 = pneg %p214
      %s365 = sadd.s32 %s22, %s23
      %p366 = scmp.lt.s32.totalorder %s365, 1
      %s367 = scalar_select %p366, %s365, 1
      %s368 = smul.addr %s367, 2
      %s369 = scalar_lea.vmem %s6, %s368
      %s370 = smul.u32 16, %s23
      %s371 = ssub.s32 18, %s370
      %p372 = scmp.lt.s32.totalorder %s371, 16
      %s373 = scalar_select %p372, %s371, 16
      %s374 = smul.u32 64, %s373
      %s375 = smul.u32 %s374, 3
      %p376 = scmp.lt.s32.totalorder %s22, 1
      %s377 = scalar_select %p376, %s22, 1
      %p378 = scmp.lt.s32.totalorder %s370, 17
      %s379 = scalar_select %p378, %s370, 17
      %s380 = smul.addr %s379, 3
      %s381 = smul.addr %s377, 54
      %s382 = sadd.s32 %s380, %s381
      %s383 = smul.addr %s382, 4
      %s384 = scalar_lea.vmem %s0, %s383
      %s385 = smul.u32 16, %s23
      %s386 = ssub.s32 18, %s385
      %p387 = scmp.lt.s32.totalorder %s386, 16
      %s388 = scalar_select %p387, %s386, 16
      %s389 = smul.u32 64, %s388
      %s390 = smul.u32 %s389, 3
      %s391 = sadd.s32 %s23, 1
      %s392 = smul.u32 %s391, 16
      %p393 = scmp.lt.s32.totalorder %s22, 1
      %s394 = scalar_select %p393, %s22, 1
      %p395 = scmp.lt.s32.totalorder %s392, 17
      %s396 = scalar_select %p395, %s392, 17
      %s397 = smul.addr %s396, 3
      %s398 = smul.addr %s394, 54
      %s399 = sadd.s32 %s397, %s398
      %s400 = smul.addr %s399, 4
      %s401 = scalar_lea.vmem %s1, %s400
      %s402 = sadd.s32 %s23, 1
      %s403 = smul.u32 %s402, 16
      %s404 = sadd.s32 %s23, 1
      %s405 = smul.u32 %s404, 16
      %s406 = sadd.s32 %s405, 1
      %p407 = scmp.lt.s32.totalorder %s22, 1
      %s408 = scalar_select %p407, %s22, 1
      %p409 = scmp.lt.s32.totalorder %s406, 17
      %s410 = scalar_select %p409, %s406, 17
      %s411 = smul.addr %s410, 3
      %s412 = smul.addr %s408, 54
      %s413 = sadd.s32 %s411, %s412
      %s414 = smul.addr %s413, 4
      %s415 = scalar_lea.vmem %s2, %s414
      %s416 = sadd.s32 %s23, 1
      %s417 = smul.u32 %s416, 16
      %s418 = sadd.s32 %s417, 1
      %s419 = sadd.s32 %s22, %s23
      %s420 = smul.u32 32, %s419
      %p421 = scmp.lt.s32.totalorder %s420, 63
      %s422 = scalar_select %p421, %s420, 63
      %s423 = smul.addr %s422, 4
      %s424 = scalar_lea.vmem %s5, %s423
      %s425 = sadd.s32 %s22, %s23
      %s426 = smul.u32 32, %s425
      %s427 = sadd.s32 %s22, %s23
      %p428 = scmp.lt.s32.totalorder %s427, 1
      %s429 = scalar_select %p428, %s427, 1
      %s430 = smul.addr %s429, 2
      %s431 = scalar_lea.vmem %s6, %s430
      %s432 = sadd.s32 %s22, %s23
      %v434 = vld [vmem:[%s384] sm:$0xf]
      %v435 = vld [vmem:[%s384 + $0x4] sm:$0xf]
      %v436 = vld [vmem:[%s384 + $0x8] sm:$0x1]
      %v437 = vld [vmem:[%s384 + $0xc] sm:$0xf]
      %v438 = vld [vmem:[%s384 + $0x10] sm:$0xf]
      %v439 = vld [vmem:[%s384 + $0x14] sm:$0x1]
      %v440 = vld [vmem:[%s384 + $0x18] sm:$0xf]
      %v441 = vld [vmem:[%s384 + $0x1c] sm:$0xf]
      %v442 = vld [vmem:[%s384 + $0x20] sm:$0x1]
      %v443 = vld [vmem:[%s384 + $0x24] sm:$0xf]
      %v444 = vld [vmem:[%s384 + $0x28] sm:$0xf]
      %v445 = vld [vmem:[%s384 + $0x2c] sm:$0x1]
      %v446 = vld [vmem:[%s384 + $0x30] sm:$0xf]
      %v447 = vld [vmem:[%s384 + $0x34] sm:$0xf]
      %v448 = vld [vmem:[%s384 + $0x38] sm:$0x1]
      %v449 = vld [vmem:[%s384 + $0x3c] sm:$0xf]
      %v450 = vld [vmem:[%s384 + $0x40] sm:$0xf]
      %v451 = vld [vmem:[%s384 + $0x44] sm:$0x1]
      %v452 = vld [vmem:[%s384 + $0x48] sm:$0xf]
      %v453 = vld [vmem:[%s384 + $0x4c] sm:$0xf]
      %v454 = vld [vmem:[%s384 + $0x50] sm:$0x1]
      %v455 = vld [vmem:[%s384 + $0x54] sm:$0xf]
      %v456 = vld [vmem:[%s384 + $0x58] sm:$0xf]
      %v457 = vld [vmem:[%s384 + $0x5c] sm:$0x1]
      %v458 = vld [vmem:[%s384 + $0x60] sm:$0xf]
      %v459 = vld [vmem:[%s384 + $0x64] sm:$0xf]
      %v460 = vld [vmem:[%s384 + $0x68] sm:$0x1]
      %v461 = vld [vmem:[%s384 + $0x6c] sm:$0xf]
      %v462 = vld [vmem:[%s384 + $0x70] sm:$0xf]
      %v463 = vld [vmem:[%s384 + $0x74] sm:$0x1]
      %v464 = vld [vmem:[%s384 + $0x78] sm:$0xf]
      %v465 = vld [vmem:[%s384 + $0x7c] sm:$0xf]
      %v466 = vld [vmem:[%s384 + $0x80] sm:$0x1]
      %v467 = vld [vmem:[%s384 + $0x84] sm:$0xf]
      %v468 = vld [vmem:[%s384 + $0x88] sm:$0xf]
      %v469 = vld [vmem:[%s384 + $0x8c] sm:$0x1]
      %v470 = vld [vmem:[%s384 + $0x90] sm:$0xf]
      %v471 = vld [vmem:[%s384 + $0x94] sm:$0xf]
      %v472 = vld [vmem:[%s384 + $0x98] sm:$0x1]
      %v473 = vld [vmem:[%s384 + $0x9c] sm:$0xf]
      %v474 = vld [vmem:[%s384 + $0xa0] sm:$0xf]
      %v475 = vld [vmem:[%s384 + $0xa4] sm:$0x1]
      %v476 = vld [vmem:[%s384 + $0xa8] sm:$0xf]
      %v477 = vld [vmem:[%s384 + $0xac] sm:$0xf]
      %v478 = vld [vmem:[%s384 + $0xb0] sm:$0x1]
      %v479 = vld [vmem:[%s384 + $0xb4] sm:$0xf]
      %v480 = vld [vmem:[%s384 + $0xb8] sm:$0xf]
      %v481 = vld [vmem:[%s384 + $0xbc] sm:$0x1]
      %v482 = vld [vmem:[%s401] sm:$0xf]
      %v483 = vld [vmem:[%s401 + $0x4] sm:$0xf]
      %v484 = vld [vmem:[%s401 + $0x8] sm:$0x1]
      %v485 = vld [vmem:[%s415] sm:$0xf]
      %v486 = vld [vmem:[%s415 + $0x4] sm:$0xf]
      %v487 = vld [vmem:[%s415 + $0x8] sm:$0x1]
      %v488 = vld [vmem:[%s3] sm:$0xf]
      %v489 = vld [vmem:[%s3 + $0x4] sm:$0xf]
      %v490 = vld [vmem:[%s3 + $0x8] sm:$0xf]
      %v491 = vld [vmem:[%s3 + $0xc] sm:$0xf]
      %v492 = vld [vmem:[%s3 + $0x10] sm:$0xf]
      %v493 = vld [vmem:[%s3 + $0x14] sm:$0xf]
      %v494 = vld [vmem:[%s3 + $0x18] sm:$0xf]
      %v495 = vld [vmem:[%s3 + $0x1c] sm:$0xf]
      %v496 = vld [vmem:[%s3 + $0x20] sm:$0xf]
      %v497 = vld [vmem:[%s3 + $0x24] sm:$0xf]
      %v498 = vld [vmem:[%s3 + $0x28] sm:$0xf]
      %v499 = vld [vmem:[%s3 + $0x2c] sm:$0xf]
      %v500 = vld [vmem:[%s3 + $0x30] sm:$0xf]
      %v501 = vld [vmem:[%s3 + $0x34] sm:$0xf]
      %v502 = vld [vmem:[%s3 + $0x38] sm:$0xf]
      %v503 = vld [vmem:[%s3 + $0x3c] sm:$0xf]
      %vm504 = vsmask.f32 3328
      %vm505 = vsmask.f32 7440
      %vm506 = vmor %vm504, %vm505
      %v508 = vshrl.u32 %v434, 16
      %v510 = vrot.slane %v508, 4
      %v511 = vshll.u32 %v434, 16
      %v513 = vrot.slane %v511, 5
      %v514 = vor.u32 %v510, %v513
      %v515 = vrot.slane %v514, 4
      %v517 = vshll.u32 %v435, 16
      %v519 = vrot.slane %v517, 5
      %v520 = vsel %vm506, %v515, %v519
      %v521 = vshrl.u32 %v435, 16
      %v523 = vrot.slane %v521, 4
      %v524 = vor.u32 %v523, %v519
      %v525 = vrot.slane %v524, 4
      %v527 = vshll.u32 %v436, 16
      %v529 = vrot.slane %v527, 5
      %v530 = vsel %vm506, %v525, %v529
      %v532 = vshrl.u32 %v437, 16
      %v534 = vrot.slane %v532, 4
      %v535 = vshll.u32 %v437, 16
      %v537 = vrot.slane %v535, 5
      %v538 = vor.u32 %v534, %v537
      %v539 = vrot.slane %v538, 4
      %v541 = vshll.u32 %v438, 16
      %v543 = vrot.slane %v541, 5
      %v544 = vsel %vm506, %v539, %v543
      %v545 = vshrl.u32 %v438, 16
      %v547 = vrot.slane %v545, 4
      %v548 = vor.u32 %v547, %v543
      %v549 = vrot.slane %v548, 4
      %v551 = vshll.u32 %v439, 16
      %v553 = vrot.slane %v551, 5
      %v554 = vsel %vm506, %v549, %v553
      %v556 = vshrl.u32 %v440, 16
      %v558 = vrot.slane %v556, 4
      %v559 = vshll.u32 %v440, 16
      %v561 = vrot.slane %v559, 5
      %v562 = vor.u32 %v558, %v561
      %v563 = vrot.slane %v562, 4
      %v565 = vshll.u32 %v441, 16
      %v567 = vrot.slane %v565, 5
      %v568 = vsel %vm506, %v563, %v567
      %v569 = vshrl.u32 %v441, 16
      %v571 = vrot.slane %v569, 4
      %v572 = vor.u32 %v571, %v567
      %v573 = vrot.slane %v572, 4
      %v575 = vshll.u32 %v442, 16
      %v577 = vrot.slane %v575, 5
      %v578 = vsel %vm506, %v573, %v577
      %v580 = vshrl.u32 %v443, 16
      %v582 = vrot.slane %v580, 4
      %v583 = vshll.u32 %v443, 16
      %v585 = vrot.slane %v583, 5
      %v586 = vor.u32 %v582, %v585
      %v587 = vrot.slane %v586, 4
      %v589 = vshll.u32 %v444, 16
      %v591 = vrot.slane %v589, 5
      %v592 = vsel %vm506, %v587, %v591
      %v593 = vshrl.u32 %v444, 16
      %v595 = vrot.slane %v593, 4
      %v596 = vor.u32 %v595, %v591
      %v597 = vrot.slane %v596, 4
      %v599 = vshll.u32 %v445, 16
      %v601 = vrot.slane %v599, 5
      %v602 = vsel %vm506, %v597, %v601
      %v604 = vshrl.u32 %v446, 16
      %v606 = vrot.slane %v604, 4
      %v607 = vshll.u32 %v446, 16
      %v609 = vrot.slane %v607, 5
      %v610 = vor.u32 %v606, %v609
      %v611 = vrot.slane %v610, 4
      %v613 = vshll.u32 %v447, 16
      %v615 = vrot.slane %v613, 5
      %v616 = vsel %vm506, %v611, %v615
      %v617 = vshrl.u32 %v447, 16
      %v619 = vrot.slane %v617, 4
      %v620 = vor.u32 %v619, %v615
      %v621 = vrot.slane %v620, 4
      %v623 = vshll.u32 %v448, 16
      %v625 = vrot.slane %v623, 5
      %v626 = vsel %vm506, %v621, %v625
      %v628 = vshrl.u32 %v449, 16
      %v630 = vrot.slane %v628, 4
      %v631 = vshll.u32 %v449, 16
      %v633 = vrot.slane %v631, 5
      %v634 = vor.u32 %v630, %v633
      %v635 = vrot.slane %v634, 4
      %v637 = vshll.u32 %v450, 16
      %v639 = vrot.slane %v637, 5
      %v640 = vsel %vm506, %v635, %v639
      %v641 = vshrl.u32 %v450, 16
      %v643 = vrot.slane %v641, 4
      %v644 = vor.u32 %v643, %v639
      %v645 = vrot.slane %v644, 4
      %v647 = vshll.u32 %v451, 16
      %v649 = vrot.slane %v647, 5
      %v650 = vsel %vm506, %v645, %v649
      %v652 = vshrl.u32 %v452, 16
      %v654 = vrot.slane %v652, 4
      %v655 = vshll.u32 %v452, 16
      %v657 = vrot.slane %v655, 5
      %v658 = vor.u32 %v654, %v657
      %v659 = vrot.slane %v658, 4
      %v661 = vshll.u32 %v453, 16
      %v663 = vrot.slane %v661, 5
      %v664 = vsel %vm506, %v659, %v663
      %v665 = vshrl.u32 %v453, 16
      %v667 = vrot.slane %v665, 4
      %v668 = vor.u32 %v667, %v663
      %v669 = vrot.slane %v668, 4
      %v671 = vshll.u32 %v454, 16
      %v673 = vrot.slane %v671, 5
      %v674 = vsel %vm506, %v669, %v673
      %v676 = vshrl.u32 %v455, 16
      %v678 = vrot.slane %v676, 4
      %v679 = vshll.u32 %v455, 16
      %v681 = vrot.slane %v679, 5
      %v682 = vor.u32 %v678, %v681
      %v683 = vrot.slane %v682, 4
      %v685 = vshll.u32 %v456, 16
      %v687 = vrot.slane %v685, 5
      %v688 = vsel %vm506, %v683, %v687
      %v689 = vshrl.u32 %v456, 16
      %v691 = vrot.slane %v689, 4
      %v692 = vor.u32 %v691, %v687
      %v693 = vrot.slane %v692, 4
      %v695 = vshll.u32 %v457, 16
      %v697 = vrot.slane %v695, 5
      %v698 = vsel %vm506, %v693, %v697
      %v700 = vshrl.u32 %v458, 16
      %v702 = vrot.slane %v700, 4
      %v703 = vshll.u32 %v458, 16
      %v705 = vrot.slane %v703, 5
      %v706 = vor.u32 %v702, %v705
      %v707 = vrot.slane %v706, 4
      %v709 = vshll.u32 %v459, 16
      %v711 = vrot.slane %v709, 5
      %v712 = vsel %vm506, %v707, %v711
      %v713 = vshrl.u32 %v459, 16
      %v715 = vrot.slane %v713, 4
      %v716 = vor.u32 %v715, %v711
      %v717 = vrot.slane %v716, 4
      %v719 = vshll.u32 %v460, 16
      %v721 = vrot.slane %v719, 5
      %v722 = vsel %vm506, %v717, %v721
      %v724 = vshrl.u32 %v461, 16
      %v726 = vrot.slane %v724, 4
      %v727 = vshll.u32 %v461, 16
      %v729 = vrot.slane %v727, 5
      %v730 = vor.u32 %v726, %v729
      %v731 = vrot.slane %v730, 4
      %v733 = vshll.u32 %v462, 16
      %v735 = vrot.slane %v733, 5
      %v736 = vsel %vm506, %v731, %v735
      %v737 = vshrl.u32 %v462, 16
      %v739 = vrot.slane %v737, 4
      %v740 = vor.u32 %v739, %v735
      %v741 = vrot.slane %v740, 4
      %v743 = vshll.u32 %v463, 16
      %v745 = vrot.slane %v743, 5
      %v746 = vsel %vm506, %v741, %v745
      %v748 = vshrl.u32 %v464, 16
      %v750 = vrot.slane %v748, 4
      %v751 = vshll.u32 %v464, 16
      %v753 = vrot.slane %v751, 5
      %v754 = vor.u32 %v750, %v753
      %v755 = vrot.slane %v754, 4
      %v757 = vshll.u32 %v465, 16
      %v759 = vrot.slane %v757, 5
      %v760 = vsel %vm506, %v755, %v759
      %v761 = vshrl.u32 %v465, 16
      %v763 = vrot.slane %v761, 4
      %v764 = vor.u32 %v763, %v759
      %v765 = vrot.slane %v764, 4
      %v767 = vshll.u32 %v466, 16
      %v769 = vrot.slane %v767, 5
      %v770 = vsel %vm506, %v765, %v769
      %v772 = vshrl.u32 %v467, 16
      %v774 = vrot.slane %v772, 4
      %v775 = vshll.u32 %v467, 16
      %v777 = vrot.slane %v775, 5
      %v778 = vor.u32 %v774, %v777
      %v779 = vrot.slane %v778, 4
      %v781 = vshll.u32 %v468, 16
      %v783 = vrot.slane %v781, 5
      %v784 = vsel %vm506, %v779, %v783
      %v785 = vshrl.u32 %v468, 16
      %v787 = vrot.slane %v785, 4
      %v788 = vor.u32 %v787, %v783
      %v789 = vrot.slane %v788, 4
      %v791 = vshll.u32 %v469, 16
      %v793 = vrot.slane %v791, 5
      %v794 = vsel %vm506, %v789, %v793
      %v796 = vshrl.u32 %v470, 16
      %v798 = vrot.slane %v796, 4
      %v799 = vshll.u32 %v470, 16
      %v801 = vrot.slane %v799, 5
      %v802 = vor.u32 %v798, %v801
      %v803 = vrot.slane %v802, 4
      %v805 = vshll.u32 %v471, 16
      %v807 = vrot.slane %v805, 5
      %v808 = vsel %vm506, %v803, %v807
      %v809 = vshrl.u32 %v471, 16
      %v811 = vrot.slane %v809, 4
      %v812 = vor.u32 %v811, %v807
      %v813 = vrot.slane %v812, 4
      %v815 = vshll.u32 %v472, 16
      %v817 = vrot.slane %v815, 5
      %v818 = vsel %vm506, %v813, %v817
      %v820 = vshrl.u32 %v473, 16
      %v822 = vrot.slane %v820, 4
      %v823 = vshll.u32 %v473, 16
      %v825 = vrot.slane %v823, 5
      %v826 = vor.u32 %v822, %v825
      %v827 = vrot.slane %v826, 4
      %v829 = vshll.u32 %v474, 16
      %v831 = vrot.slane %v829, 5
      %v832 = vsel %vm506, %v827, %v831
      %v833 = vshrl.u32 %v474, 16
      %v835 = vrot.slane %v833, 4
      %v836 = vor.u32 %v835, %v831
      %v837 = vrot.slane %v836, 4
      %v839 = vshll.u32 %v475, 16
      %v841 = vrot.slane %v839, 5
      %v842 = vsel %vm506, %v837, %v841
      %v844 = vshrl.u32 %v476, 16
      %v846 = vrot.slane %v844, 4
      %v847 = vshll.u32 %v476, 16
      %v849 = vrot.slane %v847, 5
      %v850 = vor.u32 %v846, %v849
      %v851 = vrot.slane %v850, 4
      %v853 = vshll.u32 %v477, 16
      %v855 = vrot.slane %v853, 5
      %v856 = vsel %vm506, %v851, %v855
      %v857 = vshrl.u32 %v477, 16
      %v859 = vrot.slane %v857, 4
      %v860 = vor.u32 %v859, %v855
      %v861 = vrot.slane %v860, 4
      %v863 = vshll.u32 %v478, 16
      %v865 = vrot.slane %v863, 5
      %v866 = vsel %vm506, %v861, %v865
      %v868 = vshrl.u32 %v479, 16
      %v870 = vrot.slane %v868, 4
      %v871 = vshll.u32 %v479, 16
      %v873 = vrot.slane %v871, 5
      %v874 = vor.u32 %v870, %v873
      %v875 = vrot.slane %v874, 4
      %v877 = vshll.u32 %v480, 16
      %v879 = vrot.slane %v877, 5
      %v880 = vsel %vm506, %v875, %v879
      %v881 = vshrl.u32 %v480, 16
      %v883 = vrot.slane %v881, 4
      %v884 = vor.u32 %v883, %v879
      %v885 = vrot.slane %v884, 4
      %v887 = vshll.u32 %v481, 16
      %v889 = vrot.slane %v887, 5
      %v890 = vsel %vm506, %v885, %v889
      %s891 = scalar_lea.vmem %s3, 64
      %v892 = vld [vmem:[%s891] sm:$0xf]
      %v893 = vld [vmem:[%s891 + $0x4] sm:$0xf]
      %v894 = vld [vmem:[%s891 + $0x8] sm:$0xf]
      %v895 = vld [vmem:[%s891 + $0xc] sm:$0xf]
      %v896 = vld [vmem:[%s891 + $0x10] sm:$0xf]
      %v897 = vld [vmem:[%s891 + $0x14] sm:$0xf]
      %v898 = vld [vmem:[%s891 + $0x18] sm:$0xf]
      %v899 = vld [vmem:[%s891 + $0x1c] sm:$0xf]
      %v900 = vld [vmem:[%s891 + $0x20] sm:$0xf]
      %v901 = vld [vmem:[%s891 + $0x24] sm:$0xf]
      %v902 = vld [vmem:[%s891 + $0x28] sm:$0xf]
      %v903 = vld [vmem:[%s891 + $0x2c] sm:$0xf]
      %v904 = vld [vmem:[%s891 + $0x30] sm:$0xf]
      %v905 = vld [vmem:[%s891 + $0x34] sm:$0xf]
      %v906 = vld [vmem:[%s891 + $0x38] sm:$0xf]
      %v907 = vld [vmem:[%s891 + $0x3c] sm:$0xf]
      %v908 = vunpack.c.l.b16 %v520
      %v909 = vunpack.c.l.b16 %v530
      %v910 = vunpack.c.l.b16 %v544
      %v911 = vunpack.c.l.b16 %v554
      %v912 = vunpack.c.l.b16 %v568
      %v913 = vunpack.c.l.b16 %v578
      %v914 = vunpack.c.l.b16 %v592
      %v915 = vunpack.c.l.b16 %v602
      %v916 = vunpack.c.l.b16 %v616
      %v917 = vunpack.c.l.b16 %v626
      %v918 = vunpack.c.l.b16 %v640
      %v919 = vunpack.c.l.b16 %v650
      %v920 = vunpack.c.l.b16 %v664
      %v921 = vunpack.c.l.b16 %v674
      %v922 = vunpack.c.l.b16 %v688
      %v923 = vunpack.c.l.b16 %v698
      %v924 = vunpack.c.l.b16 %v712
      %v925 = vunpack.c.l.b16 %v722
      %v926 = vunpack.c.l.b16 %v736
      %v927 = vunpack.c.l.b16 %v746
      %v928 = vunpack.c.l.b16 %v760
      %v929 = vunpack.c.l.b16 %v770
      %v930 = vunpack.c.l.b16 %v784
      %v931 = vunpack.c.l.b16 %v794
      %v932 = vunpack.c.l.b16 %v808
      %v933 = vunpack.c.l.b16 %v818
      %v934 = vunpack.c.l.b16 %v832
      %v935 = vunpack.c.l.b16 %v842
      %v936 = vunpack.c.l.b16 %v856
      %v937 = vunpack.c.l.b16 %v866
      %v938 = vunpack.c.l.b16 %v880
      %v939 = vunpack.c.l.b16 %v890
      %v940 = vpack.c.b16 %v909, %v908
      %v941 = vpack.c.b16 %v911, %v910
      %v942 = vpack.c.b16 %v913, %v912
      %v943 = vpack.c.b16 %v915, %v914
      %v944 = vpack.c.b16 %v917, %v916
      %v945 = vpack.c.b16 %v919, %v918
      %v946 = vpack.c.b16 %v921, %v920
      %v947 = vpack.c.b16 %v923, %v922
      %v948 = vpack.c.b16 %v925, %v924
      %v949 = vpack.c.b16 %v927, %v926
      %v950 = vpack.c.b16 %v929, %v928
      %v951 = vpack.c.b16 %v931, %v930
      %v952 = vpack.c.b16 %v933, %v932
      %v953 = vpack.c.b16 %v935, %v934
      %v954 = vpack.c.b16 %v937, %v936
      %v955 = vpack.c.b16 %v939, %v938
      %v988 = vunpack.c.l.b16 %v892
      %v989 = vunpack.c.l.b16 %v893
      %v990 = vunpack.c.l.b16 %v894
      %v991 = vunpack.c.l.b16 %v895
      %v992 = vunpack.c.l.b16 %v896
      %v993 = vunpack.c.l.b16 %v897
      %v994 = vunpack.c.l.b16 %v898
      %v995 = vunpack.c.l.b16 %v899
      %v996 = vunpack.c.l.b16 %v900
      %v997 = vunpack.c.l.b16 %v901
      %v998 = vunpack.c.l.b16 %v902
      %v999 = vunpack.c.l.b16 %v903
      %v1000 = vunpack.c.l.b16 %v904
      %v1001 = vunpack.c.l.b16 %v905
      %v1002 = vunpack.c.l.b16 %v906
      %v1003 = vunpack.c.l.b16 %v907
      %v1004 = vpack.c.b16 %v989, %v988
      %v1005 = vpack.c.b16 %v991, %v990
      %v1006 = vpack.c.b16 %v993, %v992
      %v1007 = vpack.c.b16 %v995, %v994
      %v1008 = vpack.c.b16 %v997, %v996
      %v1009 = vpack.c.b16 %v999, %v998
      %v1010 = vpack.c.b16 %v1001, %v1000
      %v1011 = vpack.c.b16 %v1003, %v1002
      %1020 = vmatprep.subr.bf16.mxu0 0
      %1021 = vmatpush1.bf16.msra.mxu0 %v1004
      %1022 = vmatprep.subr.bf16.mxu0 0
      %1023 = vmatpush1.bf16.msra.mxu0 %v1005
      %1024 = vmatprep.subr.bf16.mxu0 0
      %1025 = vmatpush1.bf16.msra.mxu0 %v1006
      %1026 = vmatprep.subr.bf16.mxu0 0
      %1027 = vmatpush1.bf16.msra.mxu0 %v1007
      %1028 = vmatprep.subr.bf16.mxu0 0
      %1029 = vmatpush1.bf16.msra.mxu0 %v1008
      %1030 = vmatprep.subr.bf16.mxu0 0
      %1031 = vmatpush1.bf16.msra.mxu0 %v1009
      %1032 = vmatprep.subr.bf16.mxu0 0
      %1033 = vmatpush1.bf16.msra.mxu0 %v1010
      %1034 = vmatprep.subr.bf16.mxu0 0
      %1035 = vmatpush1.bf16.msra.mxu0 %v1011
      %1036 = vmatprep.subr.bf16.mxu0 0
      %1037 = vmatpush1.bf16.msra.mxu0 0
      %1038 = vmatprep.subr.bf16.mxu0 0
      %1039 = vmatpush1.bf16.msra.mxu0 0
      %1040 = vmatprep.subr.bf16.mxu0 0
      %1041 = vmatpush1.bf16.msra.mxu0 0
      %1042 = vmatprep.subr.bf16.mxu0 0
      %1043 = vmatpush1.bf16.msra.mxu0 0
      %1044 = vmatprep.subr.bf16.mxu0 0
      %1045 = vmatpush1.bf16.msra.mxu0 0
      %1046 = vmatprep.subr.bf16.mxu0 0
      %1047 = vmatpush1.bf16.msra.mxu0 0
      %1048 = vmatprep.subr.bf16.mxu0 0
      %1049 = vmatpush1.bf16.msra.mxu0 0
      %1050 = vmatprep.subr.bf16.mxu0 0
      %1051 = vmatpush1.bf16.msra.mxu0 0
      %1052 = vmatprep.mubr.bf16.mxu0 0
      %1053 = vmatmul.mubr.bf16.gmra.mrb[0].mxu0 %v940
      %v1054 = vpop.f32.mrb[0].mxu0
      %v1055 = vadd.f32 0.0, %v1054
      %v1056 = vpop.f32.mrb[0].mxu0
      %v1057 = vpop.f32.mrb[0].mxu0
      %v1058 = vadd.f32 0.0, %v1057
      %v1059 = vpop.f32.mrb[0].mxu0
      %1060 = vmatprep.mubr.bf16.mxu0 0
      %1061 = vmatmul.mubr.bf16.gmra.mrb[0].mxu0 %v941
      %v1062 = vpop.f32.mrb[0].mxu0
      %v1063 = vadd.f32 0.0, %v1062
      %v1064 = vpop.f32.mrb[0].mxu0
      %v1065 = vpop.f32.mrb[0].mxu0
      %v1066 = vadd.f32 0.0, %v1065
      %v1067 = vpop.f32.mrb[0].mxu0
      %1068 = vmatprep.mubr.bf16.mxu0 0
      %1069 = vmatmul.mubr.bf16.gmra.mrb[0].mxu0 %v942
      %v1070 = vpop.f32.mrb[0].mxu0
      %v1071 = vadd.f32 0.0, %v1070
      %v1072 = vpop.f32.mrb[0].mxu0
      %v1073 = vpop.f32.mrb[0].mxu0
      %v1074 = vadd.f32 0.0, %v1073
      %v1075 = vpop.f32.mrb[0].mxu0
      %1076 = vmatprep.mubr.bf16.mxu0 0
      %1077 = vmatmul.mubr.bf16.gmra.mrb[0].mxu0 %v943
      %v1078 = vpop.f32.mrb[0].mxu0
      %v1079 = vadd.f32 0.0, %v1078
      %v1080 = vpop.f32.mrb[0].mxu0
      %v1081 = vpop.f32.mrb[0].mxu0
      %v1082 = vadd.f32 0.0, %v1081
      %v1083 = vpop.f32.mrb[0].mxu0
      %1084 = vmatprep.mubr.bf16.mxu0 0
      %1085 = vmatmul.mubr.bf16.gmra.mrb[0].mxu0 %v944
      %v1086 = vpop.f32.mrb[0].mxu0
      %v1087 = vadd.f32 0.0, %v1086
      %v1088 = vpop.f32.mrb[0].mxu0
      %v1089 = vpop.f32.mrb[0].mxu0
      %v1090 = vadd.f32 0.0, %v1089
      %v1091 = vpop.f32.mrb[0].mxu0
      %1092 = vmatprep.mubr.bf16.mxu0 0
      %1093 = vmatmul.mubr.bf16.gmra.mrb[0].mxu0 %v945
      %v1094 = vpop.f32.mrb[0].mxu0
      %v1095 = vadd.f32 0.0, %v1094
      %v1096 = vpop.f32.mrb[0].mxu0
      %v1097 = vpop.f32.mrb[0].mxu0
      %v1098 = vadd.f32 0.0, %v1097
      %v1099 = vpop.f32.mrb[0].mxu0
      %1100 = vmatprep.mubr.bf16.mxu0 0
      %1101 = vmatmul.mubr.bf16.gmra.mrb[0].mxu0 %v946
      %v1102 = vpop.f32.mrb[0].mxu0
      %v1103 = vadd.f32 0.0, %v1102
      %v1104 = vpop.f32.mrb[0].mxu0
      %v1105 = vpop.f32.mrb[0].mxu0
      %v1106 = vadd.f32 0.0, %v1105
      %v1107 = vpop.f32.mrb[0].mxu0
      %1108 = vmatprep.mubr.bf16.mxu0 0
      %1109 = vmatmul.mubr.bf16.gmra.mrb[0].mxu0 %v947
      %v1110 = vpop.f32.mrb[0].mxu0
      %v1111 = vadd.f32 0.0, %v1110
      %v1112 = vpop.f32.mrb[0].mxu0
      %v1113 = vpop.f32.mrb[0].mxu0
      %v1114 = vadd.f32 0.0, %v1113
      %v1115 = vpop.f32.mrb[0].mxu0
      %1116 = vmatprep.mubr.bf16.mxu0 0
      %1117 = vmatmul.mubr.bf16.gmra.mrb[0].mxu0 %v948
      %v1118 = vpop.f32.mrb[0].mxu0
      %v1119 = vadd.f32 0.0, %v1118
      %v1120 = vpop.f32.mrb[0].mxu0
      %v1121 = vpop.f32.mrb[0].mxu0
      %v1122 = vadd.f32 0.0, %v1121
      %v1123 = vpop.f32.mrb[0].mxu0
      %1124 = vmatprep.mubr.bf16.mxu0 0
      %1125 = vmatmul.mubr.bf16.gmra.mrb[0].mxu0 %v949
      %v1126 = vpop.f32.mrb[0].mxu0
      %v1127 = vadd.f32 0.0, %v1126
      %v1128 = vpop.f32.mrb[0].mxu0
      %v1129 = vpop.f32.mrb[0].mxu0
      %v1130 = vadd.f32 0.0, %v1129
      %v1131 = vpop.f32.mrb[0].mxu0
      %1132 = vmatprep.mubr.bf16.mxu0 0
      %1133 = vmatmul.mubr.bf16.gmra.mrb[0].mxu0 %v950
      %v1134 = vpop.f32.mrb[0].mxu0
      %v1135 = vadd.f32 0.0, %v1134
      %v1136 = vpop.f32.mrb[0].mxu0
      %v1137 = vpop.f32.mrb[0].mxu0
      %v1138 = vadd.f32 0.0, %v1137
      %v1139 = vpop.f32.mrb[0].mxu0
      %1140 = vmatprep.mubr.bf16.mxu0 0
      %1141 = vmatmul.mubr.bf16.gmra.mrb[0].mxu0 %v951
      %v1142 = vpop.f32.mrb[0].mxu0
      %v1143 = vadd.f32 0.0, %v1142
      %v1144 = vpop.f32.mrb[0].mxu0
      %v1145 = vpop.f32.mrb[0].mxu0
      %v1146 = vadd.f32 0.0, %v1145
      %v1147 = vpop.f32.mrb[0].mxu0
      %1148 = vmatprep.mubr.bf16.mxu0 0
      %1149 = vmatmul.mubr.bf16.gmra.mrb[0].mxu0 %v952
      %v1150 = vpop.f32.mrb[0].mxu0
      %v1151 = vadd.f32 0.0, %v1150
      %v1152 = vpop.f32.mrb[0].mxu0
      %v1153 = vpop.f32.mrb[0].mxu0
      %v1154 = vadd.f32 0.0, %v1153
      %v1155 = vpop.f32.mrb[0].mxu0
      %1156 = vmatprep.mubr.bf16.mxu0 0
      %1157 = vmatmul.mubr.bf16.gmra.mrb[0].mxu0 %v953
      %v1158 = vpop.f32.mrb[0].mxu0
      %v1159 = vadd.f32 0.0, %v1158
      %v1160 = vpop.f32.mrb[0].mxu0
      %v1161 = vpop.f32.mrb[0].mxu0
      %v1162 = vadd.f32 0.0, %v1161
      %v1163 = vpop.f32.mrb[0].mxu0
      %1164 = vmatprep.mubr.bf16.mxu0 0
      %1165 = vmatmul.mubr.bf16.gmra.mrb[0].mxu0 %v954
      %v1166 = vpop.f32.mrb[0].mxu0
      %v1167 = vadd.f32 0.0, %v1166
      %v1168 = vpop.f32.mrb[0].mxu0
      %v1169 = vpop.f32.mrb[0].mxu0
      %v1170 = vadd.f32 0.0, %v1169
      %v1171 = vpop.f32.mrb[0].mxu0
      %1172 = vmatprep.mubr.bf16.mxu0 0
      %1173 = vmatmul.mubr.bf16.gmra.mrb[0].mxu0 %v955
      %v1174 = vpop.f32.mrb[0].mxu0
      %v1175 = vadd.f32 0.0, %v1174
      %v1176 = vpop.f32.mrb[0].mxu0
      %v1177 = vpop.f32.mrb[0].mxu0
      %v1178 = vadd.f32 0.0, %v1177
      %v1179 = vpop.f32.mrb[0].mxu0
      %1180 = vdwg.mxu0
      %v1213 = vunpack.c.l.b16 %v434
      %v1214 = vunpack.c.l.b16 %v435
      %v1215 = vunpack.c.l.b16 %v437
      %v1216 = vunpack.c.l.b16 %v438
      %v1217 = vunpack.c.l.b16 %v440
      %v1218 = vunpack.c.l.b16 %v441
      %v1219 = vunpack.c.l.b16 %v443
      %v1220 = vunpack.c.l.b16 %v444
      %v1221 = vunpack.c.l.b16 %v446
      %v1222 = vunpack.c.l.b16 %v447
      %v1223 = vunpack.c.l.b16 %v449
      %v1224 = vunpack.c.l.b16 %v450
      %v1225 = vunpack.c.l.b16 %v452
      %v1226 = vunpack.c.l.b16 %v453
      %v1227 = vunpack.c.l.b16 %v455
      %v1228 = vunpack.c.l.b16 %v456
      %v1229 = vunpack.c.l.b16 %v458
      %v1230 = vunpack.c.l.b16 %v459
      %v1231 = vunpack.c.l.b16 %v461
      %v1232 = vunpack.c.l.b16 %v462
      %v1233 = vunpack.c.l.b16 %v464
      %v1234 = vunpack.c.l.b16 %v465
      %v1235 = vunpack.c.l.b16 %v467
      %v1236 = vunpack.c.l.b16 %v468
      %v1237 = vunpack.c.l.b16 %v470
      %v1238 = vunpack.c.l.b16 %v471
      %v1239 = vunpack.c.l.b16 %v473
      %v1240 = vunpack.c.l.b16 %v474
      %v1241 = vunpack.c.l.b16 %v476
      %v1242 = vunpack.c.l.b16 %v477
      %v1243 = vunpack.c.l.b16 %v479
      %v1244 = vunpack.c.l.b16 %v480
      %v1245 = vpack.c.b16 %v1214, %v1213
      %v1246 = vpack.c.b16 %v1216, %v1215
      %v1247 = vpack.c.b16 %v1218, %v1217
      %v1248 = vpack.c.b16 %v1220, %v1219
      %v1249 = vpack.c.b16 %v1222, %v1221
      %v1250 = vpack.c.b16 %v1224, %v1223
      %v1251 = vpack.c.b16 %v1226, %v1225
      %v1252 = vpack.c.b16 %v1228, %v1227
      %v1253 = vpack.c.b16 %v1230, %v1229
      %v1254 = vpack.c.b16 %v1232, %v1231
      %v1255 = vpack.c.b16 %v1234, %v1233
      %v1256 = vpack.c.b16 %v1236, %v1235
      %v1257 = vpack.c.b16 %v1238, %v1237
      %v1258 = vpack.c.b16 %v1240, %v1239
      %v1259 = vpack.c.b16 %v1242, %v1241
      %v1260 = vpack.c.b16 %v1244, %v1243
      %v1293 = vunpack.c.l.b16 %v488
      %v1294 = vunpack.c.l.b16 %v489
      %v1295 = vunpack.c.l.b16 %v490
      %v1296 = vunpack.c.l.b16 %v491
      %v1297 = vunpack.c.l.b16 %v492
      %v1298 = vunpack.c.l.b16 %v493
      %v1299 = vunpack.c.l.b16 %v494
      %v1300 = vunpack.c.l.b16 %v495
      %v1301 = vunpack.c.l.b16 %v496
      %v1302 = vunpack.c.l.b16 %v497
      %v1303 = vunpack.c.l.b16 %v498
      %v1304 = vunpack.c.l.b16 %v499
      %v1305 = vunpack.c.l.b16 %v500
      %v1306 = vunpack.c.l.b16 %v501
      %v1307 = vunpack.c.l.b16 %v502
      %v1308 = vunpack.c.l.b16 %v503
      %v1309 = vpack.c.b16 %v1294, %v1293
      %v1310 = vpack.c.b16 %v1296, %v1295
      %v1311 = vpack.c.b16 %v1298, %v1297
      %v1312 = vpack.c.b16 %v1300, %v1299
      %v1313 = vpack.c.b16 %v1302, %v1301
      %v1314 = vpack.c.b16 %v1304, %v1303
      %v1315 = vpack.c.b16 %v1306, %v1305
      %v1316 = vpack.c.b16 %v1308, %v1307
      %1325 = vmatprep.subr.bf16.mxu0 0
      %1326 = vmatpush1.bf16.msra.mxu0 %v1309
      %1327 = vmatprep.subr.bf16.mxu0 0
      %1328 = vmatpush1.bf16.msra.mxu0 %v1310
      %1329 = vmatprep.subr.bf16.mxu0 0
      %1330 = vmatpush1.bf16.msra.mxu0 %v1311
      %1331 = vmatprep.subr.bf16.mxu0 0
      %1332 = vmatpush1.bf16.msra.mxu0 %v1312
      %1333 = vmatprep.subr.bf16.mxu0 0
      %1334 = vmatpush1.bf16.msra.mxu0 %v1313
      %1335 = vmatprep.subr.bf16.mxu0 0
      %1336 = vmatpush1.bf16.msra.mxu0 %v1314
      %1337 = vmatprep.subr.bf16.mxu0 0
      %1338 = vmatpush1.bf16.msra.mxu0 %v1315
      %1339 = vmatprep.subr.bf16.mxu0 0
      %1340 = vmatpush1.bf16.msra.mxu0 %v1316
      %1341 = vmatprep.subr.bf16.mxu0 0
      %1342 = vmatpush1.bf16.msra.mxu0 0
      %1343 = vmatprep.subr.bf16.mxu0 0
      %1344 = vmatpush1.bf16.msra.mxu0 0
      %1345 = vmatprep.subr.bf16.mxu0 0
      %1346 = vmatpush1.bf16.msra.mxu0 0
      %1347 = vmatprep.subr.bf16.mxu0 0
      %1348 = vmatpush1.bf16.msra.mxu0 0
      %1349 = vmatprep.subr.bf16.mxu0 0
      %1350 = vmatpush1.bf16.msra.mxu0 0
      %1351 = vmatprep.subr.bf16.mxu0 0
      %1352 = vmatpush1.bf16.msra.mxu0 0
      %1353 = vmatprep.subr.bf16.mxu0 0
      %1354 = vmatpush1.bf16.msra.mxu0 0
      %1355 = vmatprep.subr.bf16.mxu0 0
      %1356 = vmatpush1.bf16.msra.mxu0 0
      %1357 = vmatprep.mubr.bf16.mxu0 0
      %1358 = vmatmul.mubr.bf16.gmra.mrb[0].mxu0 %v1245
      %v1359 = vpop.f32.mrb[0].mxu0
      %v1360 = vadd.f32 %v1055, %v1359
      %v1361 = vpop.f32.mrb[0].mxu0
      %v1362 = vpop.f32.mrb[0].mxu0
      %v1363 = vadd.f32 %v1058, %v1362
      %v1364 = vpop.f32.mrb[0].mxu0
      %1365 = vmatprep.mubr.bf16.mxu0 0
      %1366 = vmatmul.mubr.bf16.gmra.mrb[0].mxu0 %v1246
      %v1367 = vpop.f32.mrb[0].mxu0
      %v1368 = vadd.f32 %v1063, %v1367
      %v1369 = vpop.f32.mrb[0].mxu0
      %v1370 = vpop.f32.mrb[0].mxu0
      %v1371 = vadd.f32 %v1066, %v1370
      %v1372 = vpop.f32.mrb[0].mxu0
      %1373 = vmatprep.mubr.bf16.mxu0 0
      %1374 = vmatmul.mubr.bf16.gmra.mrb[0].mxu0 %v1247
      %v1375 = vpop.f32.mrb[0].mxu0
      %v1376 = vadd.f32 %v1071, %v1375
      %v1377 = vpop.f32.mrb[0].mxu0
      %v1378 = vpop.f32.mrb[0].mxu0
      %v1379 = vadd.f32 %v1074, %v1378
      %v1380 = vpop.f32.mrb[0].mxu0
      %1381 = vmatprep.mubr.bf16.mxu0 0
      %1382 = vmatmul.mubr.bf16.gmra.mrb[0].mxu0 %v1248
      %v1383 = vpop.f32.mrb[0].mxu0
      %v1384 = vadd.f32 %v1079, %v1383
      %v1385 = vpop.f32.mrb[0].mxu0
      %v1386 = vpop.f32.mrb[0].mxu0
      %v1387 = vadd.f32 %v1082, %v1386
      %v1388 = vpop.f32.mrb[0].mxu0
      %1389 = vmatprep.mubr.bf16.mxu0 0
      %1390 = vmatmul.mubr.bf16.gmra.mrb[0].mxu0 %v1249
      %v1391 = vpop.f32.mrb[0].mxu0
      %v1392 = vadd.f32 %v1087, %v1391
      %v1393 = vpop.f32.mrb[0].mxu0
      %v1394 = vpop.f32.mrb[0].mxu0
      %v1395 = vadd.f32 %v1090, %v1394
      %v1396 = vpop.f32.mrb[0].mxu0
      %1397 = vmatprep.mubr.bf16.mxu0 0
      %1398 = vmatmul.mubr.bf16.gmra.mrb[0].mxu0 %v1250
      %v1399 = vpop.f32.mrb[0].mxu0
      %v1400 = vadd.f32 %v1095, %v1399
      %v1401 = vpop.f32.mrb[0].mxu0
      %v1402 = vpop.f32.mrb[0].mxu0
      %v1403 = vadd.f32 %v1098, %v1402
      %v1404 = vpop.f32.mrb[0].mxu0
      %1405 = vmatprep.mubr.bf16.mxu0 0
      %1406 = vmatmul.mubr.bf16.gmra.mrb[0].mxu0 %v1251
      %v1407 = vpop.f32.mrb[0].mxu0
      %v1408 = vadd.f32 %v1103, %v1407
      %v1409 = vpop.f32.mrb[0].mxu0
      %v1410 = vpop.f32.mrb[0].mxu0
      %v1411 = vadd.f32 %v1106, %v1410
      %v1412 = vpop.f32.mrb[0].mxu0
      %1413 = vmatprep.mubr.bf16.mxu0 0
      %1414 = vmatmul.mubr.bf16.gmra.mrb[0].mxu0 %v1252
      %v1415 = vpop.f32.mrb[0].mxu0
      %v1416 = vadd.f32 %v1111, %v1415
      %v1417 = vpop.f32.mrb[0].mxu0
      %v1418 = vpop.f32.mrb[0].mxu0
      %v1419 = vadd.f32 %v1114, %v1418
      %v1420 = vpop.f32.mrb[0].mxu0
      %1421 = vmatprep.mubr.bf16.mxu0 0
      %1422 = vmatmul.mubr.bf16.gmra.mrb[0].mxu0 %v1253
      %v1423 = vpop.f32.mrb[0].mxu0
      %v1424 = vadd.f32 %v1119, %v1423
      %v1425 = vpop.f32.mrb[0].mxu0
      %v1426 = vpop.f32.mrb[0].mxu0
      %v1427 = vadd.f32 %v1122, %v1426
      %v1428 = vpop.f32.mrb[0].mxu0
      %1429 = vmatprep.mubr.bf16.mxu0 0
      %1430 = vmatmul.mubr.bf16.gmra.mrb[0].mxu0 %v1254
      %v1431 = vpop.f32.mrb[0].mxu0
      %v1432 = vadd.f32 %v1127, %v1431
      %v1433 = vpop.f32.mrb[0].mxu0
      %v1434 = vpop.f32.mrb[0].mxu0
      %v1435 = vadd.f32 %v1130, %v1434
      %v1436 = vpop.f32.mrb[0].mxu0
      %1437 = vmatprep.mubr.bf16.mxu0 0
      %1438 = vmatmul.mubr.bf16.gmra.mrb[0].mxu0 %v1255
      %v1439 = vpop.f32.mrb[0].mxu0
      %v1440 = vadd.f32 %v1135, %v1439
      %v1441 = vpop.f32.mrb[0].mxu0
      %v1442 = vpop.f32.mrb[0].mxu0
      %v1443 = vadd.f32 %v1138, %v1442
      %v1444 = vpop.f32.mrb[0].mxu0
      %1445 = vmatprep.mubr.bf16.mxu0 0
      %1446 = vmatmul.mubr.bf16.gmra.mrb[0].mxu0 %v1256
      %v1447 = vpop.f32.mrb[0].mxu0
      %v1448 = vadd.f32 %v1143, %v1447
      %v1449 = vpop.f32.mrb[0].mxu0
      %v1450 = vpop.f32.mrb[0].mxu0
      %v1451 = vadd.f32 %v1146, %v1450
      %v1452 = vpop.f32.mrb[0].mxu0
      %1453 = vmatprep.mubr.bf16.mxu0 0
      %1454 = vmatmul.mubr.bf16.gmra.mrb[0].mxu0 %v1257
      %v1455 = vpop.f32.mrb[0].mxu0
      %v1456 = vadd.f32 %v1151, %v1455
      %v1457 = vpop.f32.mrb[0].mxu0
      %v1458 = vpop.f32.mrb[0].mxu0
      %v1459 = vadd.f32 %v1154, %v1458
      %v1460 = vpop.f32.mrb[0].mxu0
      %1461 = vmatprep.mubr.bf16.mxu0 0
      %1462 = vmatmul.mubr.bf16.gmra.mrb[0].mxu0 %v1258
      %v1463 = vpop.f32.mrb[0].mxu0
      %v1464 = vadd.f32 %v1159, %v1463
      %v1465 = vpop.f32.mrb[0].mxu0
      %v1466 = vpop.f32.mrb[0].mxu0
      %v1467 = vadd.f32 %v1162, %v1466
      %v1468 = vpop.f32.mrb[0].mxu0
      %1469 = vmatprep.mubr.bf16.mxu0 0
      %1470 = vmatmul.mubr.bf16.gmra.mrb[0].mxu0 %v1259
      %v1471 = vpop.f32.mrb[0].mxu0
      %v1472 = vadd.f32 %v1167, %v1471
      %v1473 = vpop.f32.mrb[0].mxu0
      %v1474 = vpop.f32.mrb[0].mxu0
      %v1475 = vadd.f32 %v1170, %v1474
      %v1476 = vpop.f32.mrb[0].mxu0
      %1477 = vmatprep.mubr.bf16.mxu0 0
      %1478 = vmatmul.mubr.bf16.gmra.mrb[0].mxu0 %v1260
      %v1479 = vpop.f32.mrb[0].mxu0
      %v1480 = vadd.f32 %v1175, %v1479
      %v1481 = vpop.f32.mrb[0].mxu0
      %v1482 = vpop.f32.mrb[0].mxu0
      %v1483 = vadd.f32 %v1178, %v1482
      %v1484 = vpop.f32.mrb[0].mxu0
      %1485 = vdwg.mxu0
      %vm1502 = vcmask 1042432
      %vm1503 = vcmask 1046532
      %vm1504 = vmor %vm1502, %vm1503
      %v1505 = vrot.slane %v434, 5
      %v1506 = vrot.slane %v1505, 4
      %v1507 = vrot.slane %v435, 5
      %v1508 = vsel %vm1504, %v1506, %v1507
      %v1509 = vrot.slane %v1507, 4
      %v1510 = vrot.slane %v436, 5
      %v1511 = vsel %vm1504, %v1509, %v1510
      %v1512 = vrot.slane %v437, 5
      %v1513 = vrot.slane %v1512, 4
      %v1514 = vrot.slane %v438, 5
      %v1515 = vsel %vm1504, %v1513, %v1514
      %v1516 = vrot.slane %v1514, 4
      %v1517 = vrot.slane %v439, 5
      %v1518 = vsel %vm1504, %v1516, %v1517
      %v1519 = vrot.slane %v440, 5
      %v1520 = vrot.slane %v1519, 4
      %v1521 = vrot.slane %v441, 5
      %v1522 = vsel %vm1504, %v1520, %v1521
      %v1523 = vrot.slane %v1521, 4
      %v1524 = vrot.slane %v442, 5
      %v1525 = vsel %vm1504, %v1523, %v1524
      %v1526 = vrot.slane %v443, 5
      %v1527 = vrot.slane %v1526, 4
      %v1528 = vrot.slane %v444, 5
      %v1529 = vsel %vm1504, %v1527, %v1528
      %v1530 = vrot.slane %v1528, 4
      %v1531 = vrot.slane %v445, 5
      %v1532 = vsel %vm1504, %v1530, %v1531
      %v1533 = vrot.slane %v446, 5
      %v1534 = vrot.slane %v1533, 4
      %v1535 = vrot.slane %v447, 5
      %v1536 = vsel %vm1504, %v1534, %v1535
      %v1537 = vrot.slane %v1535, 4
      %v1538 = vrot.slane %v448, 5
      %v1539 = vsel %vm1504, %v1537, %v1538
      %v1540 = vrot.slane %v449, 5
      %v1541 = vrot.slane %v1540, 4
      %v1542 = vrot.slane %v450, 5
      %v1543 = vsel %vm1504, %v1541, %v1542
      %v1544 = vrot.slane %v1542, 4
      %v1545 = vrot.slane %v451, 5
      %v1546 = vsel %vm1504, %v1544, %v1545
      %v1547 = vrot.slane %v452, 5
      %v1548 = vrot.slane %v1547, 4
      %v1549 = vrot.slane %v453, 5
      %v1550 = vsel %vm1504, %v1548, %v1549
      %v1551 = vrot.slane %v1549, 4
      %v1552 = vrot.slane %v454, 5
      %v1553 = vsel %vm1504, %v1551, %v1552
      %v1554 = vrot.slane %v455, 5
      %v1555 = vrot.slane %v1554, 4
      %v1556 = vrot.slane %v456, 5
      %v1557 = vsel %vm1504, %v1555, %v1556
      %v1558 = vrot.slane %v1556, 4
      %v1559 = vrot.slane %v457, 5
      %v1560 = vsel %vm1504, %v1558, %v1559
      %v1561 = vrot.slane %v458, 5
      %v1562 = vrot.slane %v1561, 4
      %v1563 = vrot.slane %v459, 5
      %v1564 = vsel %vm1504, %v1562, %v1563
      %v1565 = vrot.slane %v1563, 4
      %v1566 = vrot.slane %v460, 5
      %v1567 = vsel %vm1504, %v1565, %v1566
      %v1568 = vrot.slane %v461, 5
      %v1569 = vrot.slane %v1568, 4
      %v1570 = vrot.slane %v462, 5
      %v1571 = vsel %vm1504, %v1569, %v1570
      %v1572 = vrot.slane %v1570, 4
      %v1573 = vrot.slane %v463, 5
      %v1574 = vsel %vm1504, %v1572, %v1573
      %v1575 = vrot.slane %v464, 5
      %v1576 = vrot.slane %v1575, 4
      %v1577 = vrot.slane %v465, 5
      %v1578 = vsel %vm1504, %v1576, %v1577
      %v1579 = vrot.slane %v1577, 4
      %v1580 = vrot.slane %v466, 5
      %v1581 = vsel %vm1504, %v1579, %v1580
      %v1582 = vrot.slane %v467, 5
      %v1583 = vrot.slane %v1582, 4
      %v1584 = vrot.slane %v468, 5
      %v1585 = vsel %vm1504, %v1583, %v1584
      %v1586 = vrot.slane %v1584, 4
      %v1587 = vrot.slane %v469, 5
      %v1588 = vsel %vm1504, %v1586, %v1587
      %v1589 = vrot.slane %v470, 5
      %v1590 = vrot.slane %v1589, 4
      %v1591 = vrot.slane %v471, 5
      %v1592 = vsel %vm1504, %v1590, %v1591
      %v1593 = vrot.slane %v1591, 4
      %v1594 = vrot.slane %v472, 5
      %v1595 = vsel %vm1504, %v1593, %v1594
      %v1596 = vrot.slane %v473, 5
      %v1597 = vrot.slane %v1596, 4
      %v1598 = vrot.slane %v474, 5
      %v1599 = vsel %vm1504, %v1597, %v1598
      %v1600 = vrot.slane %v1598, 4
      %v1601 = vrot.slane %v475, 5
      %v1602 = vsel %vm1504, %v1600, %v1601
      %v1603 = vrot.slane %v476, 5
      %v1604 = vrot.slane %v1603, 4
      %v1605 = vrot.slane %v477, 5
      %v1606 = vsel %vm1504, %v1604, %v1605
      %v1607 = vrot.slane %v1605, 4
      %v1608 = vrot.slane %v478, 5
      %v1609 = vsel %vm1504, %v1607, %v1608
      %v1610 = vrot.slane %v479, 5
      %v1611 = vrot.slane %v1610, 4
      %v1612 = vrot.slane %v480, 5
      %v1613 = vsel %vm1504, %v1611, %v1612
      %v1614 = vrot.slane %v1612, 4
      %v1615 = vrot.slane %v481, 5
      %v1616 = vsel %vm1504, %v1614, %v1615
      %s1617 = scalar_lea.vmem %s3, 128
      %v1618 = vld [vmem:[%s1617] sm:$0xf]
      %v1619 = vld [vmem:[%s1617 + $0x4] sm:$0xf]
      %v1620 = vld [vmem:[%s1617 + $0x8] sm:$0xf]
      %v1621 = vld [vmem:[%s1617 + $0xc] sm:$0xf]
      %v1622 = vld [vmem:[%s1617 + $0x10] sm:$0xf]
      %v1623 = vld [vmem:[%s1617 + $0x14] sm:$0xf]
      %v1624 = vld [vmem:[%s1617 + $0x18] sm:$0xf]
      %v1625 = vld [vmem:[%s1617 + $0x1c] sm:$0xf]
      %v1626 = vld [vmem:[%s1617 + $0x20] sm:$0xf]
      %v1627 = vld [vmem:[%s1617 + $0x24] sm:$0xf]
      %v1628 = vld [vmem:[%s1617 + $0x28] sm:$0xf]
      %v1629 = vld [vmem:[%s1617 + $0x2c] sm:$0xf]
      %v1630 = vld [vmem:[%s1617 + $0x30] sm:$0xf]
      %v1631 = vld [vmem:[%s1617 + $0x34] sm:$0xf]
      %v1632 = vld [vmem:[%s1617 + $0x38] sm:$0xf]
      %v1633 = vld [vmem:[%s1617 + $0x3c] sm:$0xf]
      %v1634 = vunpack.c.l.b16 %v1508
      %v1635 = vunpack.c.l.b16 %v1511
      %v1636 = vunpack.c.l.b16 %v1515
      %v1637 = vunpack.c.l.b16 %v1518
      %v1638 = vunpack.c.l.b16 %v1522
      %v1639 = vunpack.c.l.b16 %v1525
      %v1640 = vunpack.c.l.b16 %v1529
      %v1641 = vunpack.c.l.b16 %v1532
      %v1642 = vunpack.c.l.b16 %v1536
      %v1643 = vunpack.c.l.b16 %v1539
      %v1644 = vunpack.c.l.b16 %v1543
      %v1645 = vunpack.c.l.b16 %v1546
      %v1646 = vunpack.c.l.b16 %v1550
      %v1647 = vunpack.c.l.b16 %v1553
      %v1648 = vunpack.c.l.b16 %v1557
      %v1649 = vunpack.c.l.b16 %v1560
      %v1650 = vunpack.c.l.b16 %v1564
      %v1651 = vunpack.c.l.b16 %v1567
      %v1652 = vunpack.c.l.b16 %v1571
      %v1653 = vunpack.c.l.b16 %v1574
      %v1654 = vunpack.c.l.b16 %v1578
      %v1655 = vunpack.c.l.b16 %v1581
      %v1656 = vunpack.c.l.b16 %v1585
      %v1657 = vunpack.c.l.b16 %v1588
      %v1658 = vunpack.c.l.b16 %v1592
      %v1659 = vunpack.c.l.b16 %v1595
      %v1660 = vunpack.c.l.b16 %v1599
      %v1661 = vunpack.c.l.b16 %v1602
      %v1662 = vunpack.c.l.b16 %v1606
      %v1663 = vunpack.c.l.b16 %v1609
      %v1664 = vunpack.c.l.b16 %v1613
      %v1665 = vunpack.c.l.b16 %v1616
      %v1666 = vpack.c.b16 %v1635, %v1634
      %v1667 = vpack.c.b16 %v1637, %v1636
      %v1668 = vpack.c.b16 %v1639, %v1638
      %v1669 = vpack.c.b16 %v1641, %v1640
      %v1670 = vpack.c.b16 %v1643, %v1642
      %v1671 = vpack.c.b16 %v1645, %v1644
      %v1672 = vpack.c.b16 %v1647, %v1646
      %v1673 = vpack.c.b16 %v1649, %v1648
      %v1674 = vpack.c.b16 %v1651, %v1650
      %v1675 = vpack.c.b16 %v1653, %v1652
      %v1676 = vpack.c.b16 %v1655, %v1654
      %v1677 = vpack.c.b16 %v1657, %v1656
      %v1678 = vpack.c.b16 %v1659, %v1658
      %v1679 = vpack.c.b16 %v1661, %v1660
      %v1680 = vpack.c.b16 %v1663, %v1662
      %v1681 = vpack.c.b16 %v1665, %v1664
      %v1714 = vunpack.c.l.b16 %v1618
      %v1715 = vunpack.c.l.b16 %v1619
      %v1716 = vunpack.c.l.b16 %v1620
      %v1717 = vunpack.c.l.b16 %v1621
      %v1718 = vunpack.c.l.b16 %v1622
      %v1719 = vunpack.c.l.b16 %v1623
      %v1720 = vunpack.c.l.b16 %v1624
      %v1721 = vunpack.c.l.b16 %v1625
      %v1722 = vunpack.c.l.b16 %v1626
      %v1723 = vunpack.c.l.b16 %v1627
      %v1724 = vunpack.c.l.b16 %v1628
      %v1725 = vunpack.c.l.b16 %v1629
      %v1726 = vunpack.c.l.b16 %v1630
      %v1727 = vunpack.c.l.b16 %v1631
      %v1728 = vunpack.c.l.b16 %v1632
      %v1729 = vunpack.c.l.b16 %v1633
      %v1730 = vpack.c.b16 %v1715, %v1714
      %v1731 = vpack.c.b16 %v1717, %v1716
      %v1732 = vpack.c.b16 %v1719, %v1718
      %v1733 = vpack.c.b16 %v1721, %v1720
      %v1734 = vpack.c.b16 %v1723, %v1722
      %v1735 = vpack.c.b16 %v1725, %v1724
      %v1736 = vpack.c.b16 %v1727, %v1726
      %v1737 = vpack.c.b16 %v1729, %v1728
      %1746 = vmatprep.subr.bf16.mxu0 0
      %1747 = vmatpush1.bf16.msra.mxu0 %v1730
      %1748 = vmatprep.subr.bf16.mxu0 0
      %1749 = vmatpush1.bf16.msra.mxu0 %v1731
      %1750 = vmatprep.subr.bf16.mxu0 0
      %1751 = vmatpush1.bf16.msra.mxu0 %v1732
      %1752 = vmatprep.subr.bf16.mxu0 0
      %1753 = vmatpush1.bf16.msra.mxu0 %v1733
      %1754 = vmatprep.subr.bf16.mxu0 0
      %1755 = vmatpush1.bf16.msra.mxu0 %v1734
      %1756 = vmatprep.subr.bf16.mxu0 0
      %1757 = vmatpush1.bf16.msra.mxu0 %v1735
      %1758 = vmatprep.subr.bf16.mxu0 0
      %1759 = vmatpush1.bf16.msra.mxu0 %v1736
      %1760 = vmatprep.subr.bf16.mxu0 0
      %1761 = vmatpush1.bf16.msra.mxu0 %v1737
      %1762 = vmatprep.subr.bf16.mxu0 0
      %1763 = vmatpush1.bf16.msra.mxu0 0
      %1764 = vmatprep.subr.bf16.mxu0 0
      %1765 = vmatpush1.bf16.msra.mxu0 0
      %1766 = vmatprep.subr.bf16.mxu0 0
      %1767 = vmatpush1.bf16.msra.mxu0 0
      %1768 = vmatprep.subr.bf16.mxu0 0
      %1769 = vmatpush1.bf16.msra.mxu0 0
      %1770 = vmatprep.subr.bf16.mxu0 0
      %1771 = vmatpush1.bf16.msra.mxu0 0
      %1772 = vmatprep.subr.bf16.mxu0 0
      %1773 = vmatpush1.bf16.msra.mxu0 0
      %1774 = vmatprep.subr.bf16.mxu0 0
      %1775 = vmatpush1.bf16.msra.mxu0 0
      %1776 = vmatprep.subr.bf16.mxu0 0
      %1777 = vmatpush1.bf16.msra.mxu0 0
      %1778 = vmatprep.mubr.bf16.mxu0 0
      %1779 = vmatmul.mubr.bf16.gmra.mrb[0].mxu0 %v1666
      %v1780 = vpop.f32.mrb[0].mxu0
      %v1781 = vadd.f32 0.0, %v1780
      %v1782 = vpop.f32.mrb[0].mxu0
      %v1783 = vpop.f32.mrb[0].mxu0
      %v1784 = vadd.f32 0.0, %v1783
      %v1785 = vpop.f32.mrb[0].mxu0
      %1786 = vmatprep.mubr.bf16.mxu0 0
      %1787 = vmatmul.mubr.bf16.gmra.mrb[0].mxu0 %v1667
      %v1788 = vpop.f32.mrb[0].mxu0
      %v1789 = vadd.f32 0.0, %v1788
      %v1790 = vpop.f32.mrb[0].mxu0
      %v1791 = vpop.f32.mrb[0].mxu0
      %v1792 = vadd.f32 0.0, %v1791
      %v1793 = vpop.f32.mrb[0].mxu0
      %1794 = vmatprep.mubr.bf16.mxu0 0
      %1795 = vmatmul.mubr.bf16.gmra.mrb[0].mxu0 %v1668
      %v1796 = vpop.f32.mrb[0].mxu0
      %v1797 = vadd.f32 0.0, %v1796
      %v1798 = vpop.f32.mrb[0].mxu0
      %v1799 = vpop.f32.mrb[0].mxu0
      %v1800 = vadd.f32 0.0, %v1799
      %v1801 = vpop.f32.mrb[0].mxu0
      %1802 = vmatprep.mubr.bf16.mxu0 0
      %1803 = vmatmul.mubr.bf16.gmra.mrb[0].mxu0 %v1669
      %v1804 = vpop.f32.mrb[0].mxu0
      %v1805 = vadd.f32 0.0, %v1804
      %v1806 = vpop.f32.mrb[0].mxu0
      %v1807 = vpop.f32.mrb[0].mxu0
      %v1808 = vadd.f32 0.0, %v1807
      %v1809 = vpop.f32.mrb[0].mxu0
      %1810 = vmatprep.mubr.bf16.mxu0 0
      %1811 = vmatmul.mubr.bf16.gmra.mrb[0].mxu0 %v1670
      %v1812 = vpop.f32.mrb[0].mxu0
      %v1813 = vadd.f32 0.0, %v1812
      %v1814 = vpop.f32.mrb[0].mxu0
      %v1815 = vpop.f32.mrb[0].mxu0
      %v1816 = vadd.f32 0.0, %v1815
      %v1817 = vpop.f32.mrb[0].mxu0
      %1818 = vmatprep.mubr.bf16.mxu0 0
      %1819 = vmatmul.mubr.bf16.gmra.mrb[0].mxu0 %v1671
      %v1820 = vpop.f32.mrb[0].mxu0
      %v1821 = vadd.f32 0.0, %v1820
      %v1822 = vpop.f32.mrb[0].mxu0
      %v1823 = vpop.f32.mrb[0].mxu0
      %v1824 = vadd.f32 0.0, %v1823
      %v1825 = vpop.f32.mrb[0].mxu0
      %1826 = vmatprep.mubr.bf16.mxu0 0
      %1827 = vmatmul.mubr.bf16.gmra.mrb[0].mxu0 %v1672
      %v1828 = vpop.f32.mrb[0].mxu0
      %v1829 = vadd.f32 0.0, %v1828
      %v1830 = vpop.f32.mrb[0].mxu0
      %v1831 = vpop.f32.mrb[0].mxu0
      %v1832 = vadd.f32 0.0, %v1831
      %v1833 = vpop.f32.mrb[0].mxu0
      %1834 = vmatprep.mubr.bf16.mxu0 0
      %1835 = vmatmul.mubr.bf16.gmra.mrb[0].mxu0 %v1673
      %v1836 = vpop.f32.mrb[0].mxu0
      %v1837 = vadd.f32 0.0, %v1836
      %v1838 = vpop.f32.mrb[0].mxu0
      %v1839 = vpop.f32.mrb[0].mxu0
      %v1840 = vadd.f32 0.0, %v1839
      %v1841 = vpop.f32.mrb[0].mxu0
      %1842 = vmatprep.mubr.bf16.mxu0 0
      %1843 = vmatmul.mubr.bf16.gmra.mrb[0].mxu0 %v1674
      %v1844 = vpop.f32.mrb[0].mxu0
      %v1845 = vadd.f32 0.0, %v1844
      %v1846 = vpop.f32.mrb[0].mxu0
      %v1847 = vpop.f32.mrb[0].mxu0
      %v1848 = vadd.f32 0.0, %v1847
      %v1849 = vpop.f32.mrb[0].mxu0
      %1850 = vmatprep.mubr.bf16.mxu0 0
      %1851 = vmatmul.mubr.bf16.gmra.mrb[0].mxu0 %v1675
      %v1852 = vpop.f32.mrb[0].mxu0
      %v1853 = vadd.f32 0.0, %v1852
      %v1854 = vpop.f32.mrb[0].mxu0
      %v1855 = vpop.f32.mrb[0].mxu0
      %v1856 = vadd.f32 0.0, %v1855
      %v1857 = vpop.f32.mrb[0].mxu0
      %1858 = vmatprep.mubr.bf16.mxu0 0
      %1859 = vmatmul.mubr.bf16.gmra.mrb[0].mxu0 %v1676
      %v1860 = vpop.f32.mrb[0].mxu0
      %v1861 = vadd.f32 0.0, %v1860
      %v1862 = vpop.f32.mrb[0].mxu0
      %v1863 = vpop.f32.mrb[0].mxu0
      %v1864 = vadd.f32 0.0, %v1863
      %v1865 = vpop.f32.mrb[0].mxu0
      %1866 = vmatprep.mubr.bf16.mxu0 0
      %1867 = vmatmul.mubr.bf16.gmra.mrb[0].mxu0 %v1677
      %v1868 = vpop.f32.mrb[0].mxu0
      %v1869 = vadd.f32 0.0, %v1868
      %v1870 = vpop.f32.mrb[0].mxu0
      %v1871 = vpop.f32.mrb[0].mxu0
      %v1872 = vadd.f32 0.0, %v1871
      %v1873 = vpop.f32.mrb[0].mxu0
      %1874 = vmatprep.mubr.bf16.mxu0 0
      %1875 = vmatmul.mubr.bf16.gmra.mrb[0].mxu0 %v1678
      %v1876 = vpop.f32.mrb[0].mxu0
      %v1877 = vadd.f32 0.0, %v1876
      %v1878 = vpop.f32.mrb[0].mxu0
      %v1879 = vpop.f32.mrb[0].mxu0
      %v1880 = vadd.f32 0.0, %v1879
      %v1881 = vpop.f32.mrb[0].mxu0
      %1882 = vmatprep.mubr.bf16.mxu0 0
      %1883 = vmatmul.mubr.bf16.gmra.mrb[0].mxu0 %v1679
      %v1884 = vpop.f32.mrb[0].mxu0
      %v1885 = vadd.f32 0.0, %v1884
      %v1886 = vpop.f32.mrb[0].mxu0
      %v1887 = vpop.f32.mrb[0].mxu0
      %v1888 = vadd.f32 0.0, %v1887
      %v1889 = vpop.f32.mrb[0].mxu0
      %1890 = vmatprep.mubr.bf16.mxu0 0
      %1891 = vmatmul.mubr.bf16.gmra.mrb[0].mxu0 %v1680
      %v1892 = vpop.f32.mrb[0].mxu0
      %v1893 = vadd.f32 0.0, %v1892
      %v1894 = vpop.f32.mrb[0].mxu0
      %v1895 = vpop.f32.mrb[0].mxu0
      %v1896 = vadd.f32 0.0, %v1895
      %v1897 = vpop.f32.mrb[0].mxu0
      %1898 = vmatprep.mubr.bf16.mxu0 0
      %1899 = vmatmul.mubr.bf16.gmra.mrb[0].mxu0 %v1681
      %v1900 = vpop.f32.mrb[0].mxu0
      %v1901 = vadd.f32 0.0, %v1900
      %v1902 = vpop.f32.mrb[0].mxu0
      %v1903 = vpop.f32.mrb[0].mxu0
      %v1904 = vadd.f32 0.0, %v1903
      %v1905 = vpop.f32.mrb[0].mxu0
      %1906 = vdwg.mxu0
      %v1907 = vadd.f32 %v1360, %v1781
      %v1908 = vadd.f32 %v1363, %v1784
      %v1909 = vadd.f32 %v1368, %v1789
      %v1910 = vadd.f32 %v1371, %v1792
      %v1911 = vadd.f32 %v1376, %v1797
      %v1912 = vadd.f32 %v1379, %v1800
      %v1913 = vadd.f32 %v1384, %v1805
      %v1914 = vadd.f32 %v1387, %v1808
      %v1915 = vadd.f32 %v1392, %v1813
      %v1916 = vadd.f32 %v1395, %v1816
      %v1917 = vadd.f32 %v1400, %v1821
      %v1918 = vadd.f32 %v1403, %v1824
      %v1919 = vadd.f32 %v1408, %v1829
      %v1920 = vadd.f32 %v1411, %v1832
      %v1921 = vadd.f32 %v1416, %v1837
      %v1922 = vadd.f32 %v1419, %v1840
      %v1923 = vadd.f32 %v1424, %v1845
      %v1924 = vadd.f32 %v1427, %v1848
      %v1925 = vadd.f32 %v1432, %v1853
      %v1926 = vadd.f32 %v1435, %v1856
      %v1927 = vadd.f32 %v1440, %v1861
      %v1928 = vadd.f32 %v1443, %v1864
      %v1929 = vadd.f32 %v1448, %v1869
      %v1930 = vadd.f32 %v1451, %v1872
      %v1931 = vadd.f32 %v1456, %v1877
      %v1932 = vadd.f32 %v1459, %v1880
      %v1933 = vadd.f32 %v1464, %v1885
      %v1934 = vadd.f32 %v1467, %v1888
      %v1935 = vadd.f32 %v1472, %v1893
      %v1936 = vadd.f32 %v1475, %v1896
      %v1937 = vadd.f32 %v1480, %v1901
      %v1938 = vadd.f32 %v1483, %v1904
      %s1939 = scalar_lea.vmem %s3, 192
      %v1940 = vld [vmem:[%s1939] sm:$0xf]
      %v1941 = vld [vmem:[%s1939 + $0x4] sm:$0xf]
      %v1942 = vld [vmem:[%s1939 + $0x8] sm:$0xf]
      %v1943 = vld [vmem:[%s1939 + $0xc] sm:$0xf]
      %v1944 = vld [vmem:[%s1939 + $0x10] sm:$0xf]
      %v1945 = vld [vmem:[%s1939 + $0x14] sm:$0xf]
      %v1946 = vld [vmem:[%s1939 + $0x18] sm:$0xf]
      %v1947 = vld [vmem:[%s1939 + $0x1c] sm:$0xf]
      %v1948 = vld [vmem:[%s1939 + $0x20] sm:$0xf]
      %v1949 = vld [vmem:[%s1939 + $0x24] sm:$0xf]
      %v1950 = vld [vmem:[%s1939 + $0x28] sm:$0xf]
      %v1951 = vld [vmem:[%s1939 + $0x2c] sm:$0xf]
      %v1952 = vld [vmem:[%s1939 + $0x30] sm:$0xf]
      %v1953 = vld [vmem:[%s1939 + $0x34] sm:$0xf]
      %v1954 = vld [vmem:[%s1939 + $0x38] sm:$0xf]
      %v1955 = vld [vmem:[%s1939 + $0x3c] sm:$0xf]
      %v1958 = vunpack.c.l.b16 %v482
      %v1959 = vunpack.c.l.b16 %v483
      %v1960 = vpack.c.b16 %v1959, %v1958
      %v1978 = vunpack.c.l.b16 %v1940
      %v1979 = vunpack.c.l.b16 %v1941
      %v1980 = vunpack.c.l.b16 %v1942
      %v1981 = vunpack.c.l.b16 %v1943
      %v1982 = vunpack.c.l.b16 %v1944
      %v1983 = vunpack.c.l.b16 %v1945
      %v1984 = vunpack.c.l.b16 %v1946
      %v1985 = vunpack.c.l.b16 %v1947
      %v1986 = vunpack.c.l.b16 %v1948
      %v1987 = vunpack.c.l.b16 %v1949
      %v1988 = vunpack.c.l.b16 %v1950
      %v1989 = vunpack.c.l.b16 %v1951
      %v1990 = vunpack.c.l.b16 %v1952
      %v1991 = vunpack.c.l.b16 %v1953
      %v1992 = vunpack.c.l.b16 %v1954
      %v1993 = vunpack.c.l.b16 %v1955
      %v1994 = vpack.c.b16 %v1979, %v1978
      %v1995 = vpack.c.b16 %v1981, %v1980
      %v1996 = vpack.c.b16 %v1983, %v1982
      %v1997 = vpack.c.b16 %v1985, %v1984
      %v1998 = vpack.c.b16 %v1987, %v1986
      %v1999 = vpack.c.b16 %v1989, %v1988
      %v2000 = vpack.c.b16 %v1991, %v1990
      %v2001 = vpack.c.b16 %v1993, %v1992
      %2010 = vmatprep.subr.bf16.mxu0 0
      %2011 = vmatpush1.bf16.msra.mxu0 %v1994
      %2012 = vmatprep.subr.bf16.mxu0 0
      %2013 = vmatpush1.bf16.msra.mxu0 %v1995
      %2014 = vmatprep.subr.bf16.mxu0 0
      %2015 = vmatpush1.bf16.msra.mxu0 %v1996
      %2016 = vmatprep.subr.bf16.mxu0 0
      %2017 = vmatpush1.bf16.msra.mxu0 %v1997
      %2018 = vmatprep.subr.bf16.mxu0 0
      %2019 = vmatpush1.bf16.msra.mxu0 %v1998
      %2020 = vmatprep.subr.bf16.mxu0 0
      %2021 = vmatpush1.bf16.msra.mxu0 %v1999
      %2022 = vmatprep.subr.bf16.mxu0 0
      %2023 = vmatpush1.bf16.msra.mxu0 %v2000
      %2024 = vmatprep.subr.bf16.mxu0 0
      %2025 = vmatpush1.bf16.msra.mxu0 %v2001
      %2026 = vmatprep.subr.bf16.mxu0 0
      %2027 = vmatpush1.bf16.msra.mxu0 0
      %2028 = vmatprep.subr.bf16.mxu0 0
      %2029 = vmatpush1.bf16.msra.mxu0 0
      %2030 = vmatprep.subr.bf16.mxu0 0
      %2031 = vmatpush1.bf16.msra.mxu0 0
      %2032 = vmatprep.subr.bf16.mxu0 0
      %2033 = vmatpush1.bf16.msra.mxu0 0
      %2034 = vmatprep.subr.bf16.mxu0 0
      %2035 = vmatpush1.bf16.msra.mxu0 0
      %2036 = vmatprep.subr.bf16.mxu0 0
      %2037 = vmatpush1.bf16.msra.mxu0 0
      %2038 = vmatprep.subr.bf16.mxu0 0
      %2039 = vmatpush1.bf16.msra.mxu0 0
      %2040 = vmatprep.subr.bf16.mxu0 0
      %2041 = vmatpush1.bf16.msra.mxu0 0
      %2042 = vmatprep.mubr.bf16.mxu0 0
      %2043 = vmatmul.mubr.bf16.gmra.mrb[0].mxu0 %v1246
      %v2044 = vpop.f32.mrb[0].mxu0
      %v2045 = vadd.f32 0.0, %v2044
      %v2046 = vpop.f32.mrb[0].mxu0
      %v2047 = vpop.f32.mrb[0].mxu0
      %v2048 = vadd.f32 0.0, %v2047
      %v2049 = vpop.f32.mrb[0].mxu0
      %2050 = vmatprep.mubr.bf16.mxu0 0
      %2051 = vmatmul.mubr.bf16.gmra.mrb[0].mxu0 %v1247
      %v2052 = vpop.f32.mrb[0].mxu0
      %v2053 = vadd.f32 0.0, %v2052
      %v2054 = vpop.f32.mrb[0].mxu0
      %v2055 = vpop.f32.mrb[0].mxu0
      %v2056 = vadd.f32 0.0, %v2055
      %v2057 = vpop.f32.mrb[0].mxu0
      %2058 = vmatprep.mubr.bf16.mxu0 0
      %2059 = vmatmul.mubr.bf16.gmra.mrb[0].mxu0 %v1248
      %v2060 = vpop.f32.mrb[0].mxu0
      %v2061 = vadd.f32 0.0, %v2060
      %v2062 = vpop.f32.mrb[0].mxu0
      %v2063 = vpop.f32.mrb[0].mxu0
      %v2064 = vadd.f32 0.0, %v2063
      %v2065 = vpop.f32.mrb[0].mxu0
      %2066 = vmatprep.mubr.bf16.mxu0 0
      %2067 = vmatmul.mubr.bf16.gmra.mrb[0].mxu0 %v1249
      %v2068 = vpop.f32.mrb[0].mxu0
      %v2069 = vadd.f32 0.0, %v2068
      %v2070 = vpop.f32.mrb[0].mxu0
      %v2071 = vpop.f32.mrb[0].mxu0
      %v2072 = vadd.f32 0.0, %v2071
      %v2073 = vpop.f32.mrb[0].mxu0
      %2074 = vmatprep.mubr.bf16.mxu0 0
      %2075 = vmatmul.mubr.bf16.gmra.mrb[0].mxu0 %v1250
      %v2076 = vpop.f32.mrb[0].mxu0
      %v2077 = vadd.f32 0.0, %v2076
      %v2078 = vpop.f32.mrb[0].mxu0
      %v2079 = vpop.f32.mrb[0].mxu0
      %v2080 = vadd.f32 0.0, %v2079
      %v2081 = vpop.f32.mrb[0].mxu0
      %2082 = vmatprep.mubr.bf16.mxu0 0
      %2083 = vmatmul.mubr.bf16.gmra.mrb[0].mxu0 %v1251
      %v2084 = vpop.f32.mrb[0].mxu0
      %v2085 = vadd.f32 0.0, %v2084
      %v2086 = vpop.f32.mrb[0].mxu0
      %v2087 = vpop.f32.mrb[0].mxu0
      %v2088 = vadd.f32 0.0, %v2087
      %v2089 = vpop.f32.mrb[0].mxu0
      %2090 = vmatprep.mubr.bf16.mxu0 0
      %2091 = vmatmul.mubr.bf16.gmra.mrb[0].mxu0 %v1252
      %v2092 = vpop.f32.mrb[0].mxu0
      %v2093 = vadd.f32 0.0, %v2092
      %v2094 = vpop.f32.mrb[0].mxu0
      %v2095 = vpop.f32.mrb[0].mxu0
      %v2096 = vadd.f32 0.0, %v2095
      %v2097 = vpop.f32.mrb[0].mxu0
      %2098 = vmatprep.mubr.bf16.mxu0 0
      %2099 = vmatmul.mubr.bf16.gmra.mrb[0].mxu0 %v1253
      %v2100 = vpop.f32.mrb[0].mxu0
      %v2101 = vadd.f32 0.0, %v2100
      %v2102 = vpop.f32.mrb[0].mxu0
      %v2103 = vpop.f32.mrb[0].mxu0
      %v2104 = vadd.f32 0.0, %v2103
      %v2105 = vpop.f32.mrb[0].mxu0
      %2106 = vmatprep.mubr.bf16.mxu0 0
      %2107 = vmatmul.mubr.bf16.gmra.mrb[0].mxu0 %v1254
      %v2108 = vpop.f32.mrb[0].mxu0
      %v2109 = vadd.f32 0.0, %v2108
      %v2110 = vpop.f32.mrb[0].mxu0
      %v2111 = vpop.f32.mrb[0].mxu0
      %v2112 = vadd.f32 0.0, %v2111
      %v2113 = vpop.f32.mrb[0].mxu0
      %2114 = vmatprep.mubr.bf16.mxu0 0
      %2115 = vmatmul.mubr.bf16.gmra.mrb[0].mxu0 %v1255
      %v2116 = vpop.f32.mrb[0].mxu0
      %v2117 = vadd.f32 0.0, %v2116
      %v2118 = vpop.f32.mrb[0].mxu0
      %v2119 = vpop.f32.mrb[0].mxu0
      %v2120 = vadd.f32 0.0, %v2119
      %v2121 = vpop.f32.mrb[0].mxu0
      %2122 = vmatprep.mubr.bf16.mxu0 0
      %2123 = vmatmul.mubr.bf16.gmra.mrb[0].mxu0 %v1256
      %v2124 = vpop.f32.mrb[0].mxu0
      %v2125 = vadd.f32 0.0, %v2124
      %v2126 = vpop.f32.mrb[0].mxu0
      %v2127 = vpop.f32.mrb[0].mxu0
      %v2128 = vadd.f32 0.0, %v2127
      %v2129 = vpop.f32.mrb[0].mxu0
      %2130 = vmatprep.mubr.bf16.mxu0 0
      %2131 = vmatmul.mubr.bf16.gmra.mrb[0].mxu0 %v1257
      %v2132 = vpop.f32.mrb[0].mxu0
      %v2133 = vadd.f32 0.0, %v2132
      %v2134 = vpop.f32.mrb[0].mxu0
      %v2135 = vpop.f32.mrb[0].mxu0
      %v2136 = vadd.f32 0.0, %v2135
      %v2137 = vpop.f32.mrb[0].mxu0
      %2138 = vmatprep.mubr.bf16.mxu0 0
      %2139 = vmatmul.mubr.bf16.gmra.mrb[0].mxu0 %v1258
      %v2140 = vpop.f32.mrb[0].mxu0
      %v2141 = vadd.f32 0.0, %v2140
      %v2142 = vpop.f32.mrb[0].mxu0
      %v2143 = vpop.f32.mrb[0].mxu0
      %v2144 = vadd.f32 0.0, %v2143
      %v2145 = vpop.f32.mrb[0].mxu0
      %2146 = vmatprep.mubr.bf16.mxu0 0
      %2147 = vmatmul.mubr.bf16.gmra.mrb[0].mxu0 %v1259
      %v2148 = vpop.f32.mrb[0].mxu0
      %v2149 = vadd.f32 0.0, %v2148
      %v2150 = vpop.f32.mrb[0].mxu0
      %v2151 = vpop.f32.mrb[0].mxu0
      %v2152 = vadd.f32 0.0, %v2151
      %v2153 = vpop.f32.mrb[0].mxu0
      %2154 = vmatprep.mubr.bf16.mxu0 0
      %2155 = vmatmul.mubr.bf16.gmra.mrb[0].mxu0 %v1260
      %v2156 = vpop.f32.mrb[0].mxu0
      %v2157 = vadd.f32 0.0, %v2156
      %v2158 = vpop.f32.mrb[0].mxu0
      %v2159 = vpop.f32.mrb[0].mxu0
      %v2160 = vadd.f32 0.0, %v2159
      %v2161 = vpop.f32.mrb[0].mxu0
      %2162 = vmatprep.mubr.bf16.mxu0 0
      %2163 = vmatmul.mubr.bf16.gmra.mrb[0].mxu0 %v1960
      %v2164 = vpop.f32.mrb[0].mxu0
      %v2165 = vadd.f32 0.0, %v2164
      %v2166 = vpop.f32.mrb[0].mxu0
      %v2167 = vpop.f32.mrb[0].mxu0
      %v2168 = vadd.f32 0.0, %v2167
      %v2169 = vpop.f32.mrb[0].mxu0
      %2170 = vdwg.mxu0
      %v2171 = vadd.f32 %v1907, %v2045
      %v2172 = vadd.f32 %v1908, %v2048
      %v2173 = vadd.f32 %v1909, %v2053
      %v2174 = vadd.f32 %v1910, %v2056
      %v2175 = vadd.f32 %v1911, %v2061
      %v2176 = vadd.f32 %v1912, %v2064
      %v2177 = vadd.f32 %v1913, %v2069
      %v2178 = vadd.f32 %v1914, %v2072
      %v2179 = vadd.f32 %v1915, %v2077
      %v2180 = vadd.f32 %v1916, %v2080
      %v2181 = vadd.f32 %v1917, %v2085
      %v2182 = vadd.f32 %v1918, %v2088
      %v2183 = vadd.f32 %v1919, %v2093
      %v2184 = vadd.f32 %v1920, %v2096
      %v2185 = vadd.f32 %v1921, %v2101
      %v2186 = vadd.f32 %v1922, %v2104
      %v2187 = vadd.f32 %v1923, %v2109
      %v2188 = vadd.f32 %v1924, %v2112
      %v2189 = vadd.f32 %v1925, %v2117
      %v2190 = vadd.f32 %v1926, %v2120
      %v2191 = vadd.f32 %v1927, %v2125
      %v2192 = vadd.f32 %v1928, %v2128
      %v2193 = vadd.f32 %v1929, %v2133
      %v2194 = vadd.f32 %v1930, %v2136
      %v2195 = vadd.f32 %v1931, %v2141
      %v2196 = vadd.f32 %v1932, %v2144
      %v2197 = vadd.f32 %v1933, %v2149
      %v2198 = vadd.f32 %v1934, %v2152
      %v2199 = vadd.f32 %v1935, %v2157
      %v2200 = vadd.f32 %v1936, %v2160
      %v2201 = vadd.f32 %v1937, %v2165
      %v2202 = vadd.f32 %v1938, %v2168
      %v2204 = vshrl.u32 %v482, 16
      %v2206 = vrot.slane %v2204, 4
      %v2207 = vshll.u32 %v482, 16
      %v2209 = vrot.slane %v2207, 5
      %v2210 = vor.u32 %v2206, %v2209
      %v2211 = vrot.slane %v2210, 4
      %v2213 = vshll.u32 %v483, 16
      %v2215 = vrot.slane %v2213, 5
      %v2216 = vsel %vm506, %v2211, %v2215
      %v2217 = vshrl.u32 %v483, 16
      %v2219 = vrot.slane %v2217, 4
      %v2220 = vor.u32 %v2219, %v2215
      %v2221 = vrot.slane %v2220, 4
      %v2223 = vshll.u32 %v484, 16
      %v2225 = vrot.slane %v2223, 5
      %v2226 = vsel %vm506, %v2221, %v2225
      %s2227 = scalar_lea.vmem %s3, 256
      %v2228 = vld [vmem:[%s2227] sm:$0xf]
      %v2229 = vld [vmem:[%s2227 + $0x4] sm:$0xf]
      %v2230 = vld [vmem:[%s2227 + $0x8] sm:$0xf]
      %v2231 = vld [vmem:[%s2227 + $0xc] sm:$0xf]
      %v2232 = vld [vmem:[%s2227 + $0x10] sm:$0xf]
      %v2233 = vld [vmem:[%s2227 + $0x14] sm:$0xf]
      %v2234 = vld [vmem:[%s2227 + $0x18] sm:$0xf]
      %v2235 = vld [vmem:[%s2227 + $0x1c] sm:$0xf]
      %v2236 = vld [vmem:[%s2227 + $0x20] sm:$0xf]
      %v2237 = vld [vmem:[%s2227 + $0x24] sm:$0xf]
      %v2238 = vld [vmem:[%s2227 + $0x28] sm:$0xf]
      %v2239 = vld [vmem:[%s2227 + $0x2c] sm:$0xf]
      %v2240 = vld [vmem:[%s2227 + $0x30] sm:$0xf]
      %v2241 = vld [vmem:[%s2227 + $0x34] sm:$0xf]
      %v2242 = vld [vmem:[%s2227 + $0x38] sm:$0xf]
      %v2243 = vld [vmem:[%s2227 + $0x3c] sm:$0xf]
      %v2244 = vunpack.c.l.b16 %v2216
      %v2245 = vunpack.c.l.b16 %v2226
      %v2246 = vpack.c.b16 %v2245, %v2244
      %v2264 = vunpack.c.l.b16 %v2228
      %v2265 = vunpack.c.l.b16 %v2229
      %v2266 = vunpack.c.l.b16 %v2230
      %v2267 = vunpack.c.l.b16 %v2231
      %v2268 = vunpack.c.l.b16 %v2232
      %v2269 = vunpack.c.l.b16 %v2233
      %v2270 = vunpack.c.l.b16 %v2234
      %v2271 = vunpack.c.l.b16 %v2235
      %v2272 = vunpack.c.l.b16 %v2236
      %v2273 = vunpack.c.l.b16 %v2237
      %v2274 = vunpack.c.l.b16 %v2238
      %v2275 = vunpack.c.l.b16 %v2239
      %v2276 = vunpack.c.l.b16 %v2240
      %v2277 = vunpack.c.l.b16 %v2241
      %v2278 = vunpack.c.l.b16 %v2242
      %v2279 = vunpack.c.l.b16 %v2243
      %v2280 = vpack.c.b16 %v2265, %v2264
      %v2281 = vpack.c.b16 %v2267, %v2266
      %v2282 = vpack.c.b16 %v2269, %v2268
      %v2283 = vpack.c.b16 %v2271, %v2270
      %v2284 = vpack.c.b16 %v2273, %v2272
      %v2285 = vpack.c.b16 %v2275, %v2274
      %v2286 = vpack.c.b16 %v2277, %v2276
      %v2287 = vpack.c.b16 %v2279, %v2278
      %2296 = vmatprep.subr.bf16.mxu0 0
      %2297 = vmatpush1.bf16.msra.mxu0 %v2280
      %2298 = vmatprep.subr.bf16.mxu0 0
      %2299 = vmatpush1.bf16.msra.mxu0 %v2281
      %2300 = vmatprep.subr.bf16.mxu0 0
      %2301 = vmatpush1.bf16.msra.mxu0 %v2282
      %2302 = vmatprep.subr.bf16.mxu0 0
      %2303 = vmatpush1.bf16.msra.mxu0 %v2283
      %2304 = vmatprep.subr.bf16.mxu0 0
      %2305 = vmatpush1.bf16.msra.mxu0 %v2284
      %2306 = vmatprep.subr.bf16.mxu0 0
      %2307 = vmatpush1.bf16.msra.mxu0 %v2285
      %2308 = vmatprep.subr.bf16.mxu0 0
      %2309 = vmatpush1.bf16.msra.mxu0 %v2286
      %2310 = vmatprep.subr.bf16.mxu0 0
      %2311 = vmatpush1.bf16.msra.mxu0 %v2287
      %2312 = vmatprep.subr.bf16.mxu0 0
      %2313 = vmatpush1.bf16.msra.mxu0 0
      %2314 = vmatprep.subr.bf16.mxu0 0
      %2315 = vmatpush1.bf16.msra.mxu0 0
      %2316 = vmatprep.subr.bf16.mxu0 0
      %2317 = vmatpush1.bf16.msra.mxu0 0
      %2318 = vmatprep.subr.bf16.mxu0 0
      %2319 = vmatpush1.bf16.msra.mxu0 0
      %2320 = vmatprep.subr.bf16.mxu0 0
      %2321 = vmatpush1.bf16.msra.mxu0 0
      %2322 = vmatprep.subr.bf16.mxu0 0
      %2323 = vmatpush1.bf16.msra.mxu0 0
      %2324 = vmatprep.subr.bf16.mxu0 0
      %2325 = vmatpush1.bf16.msra.mxu0 0
      %2326 = vmatprep.subr.bf16.mxu0 0
      %2327 = vmatpush1.bf16.msra.mxu0 0
      %2328 = vmatprep.mubr.bf16.mxu0 0
      %2329 = vmatmul.mubr.bf16.gmra.mrb[0].mxu0 %v941
      %v2330 = vpop.f32.mrb[0].mxu0
      %v2331 = vadd.f32 0.0, %v2330
      %v2332 = vpop.f32.mrb[0].mxu0
      %v2333 = vpop.f32.mrb[0].mxu0
      %v2334 = vadd.f32 0.0, %v2333
      %v2335 = vpop.f32.mrb[0].mxu0
      %2336 = vmatprep.mubr.bf16.mxu0 0
      %2337 = vmatmul.mubr.bf16.gmra.mrb[0].mxu0 %v942
      %v2338 = vpop.f32.mrb[0].mxu0
      %v2339 = vadd.f32 0.0, %v2338
      %v2340 = vpop.f32.mrb[0].mxu0
      %v2341 = vpop.f32.mrb[0].mxu0
      %v2342 = vadd.f32 0.0, %v2341
      %v2343 = vpop.f32.mrb[0].mxu0
      %2344 = vmatprep.mubr.bf16.mxu0 0
      %2345 = vmatmul.mubr.bf16.gmra.mrb[0].mxu0 %v943
      %v2346 = vpop.f32.mrb[0].mxu0
      %v2347 = vadd.f32 0.0, %v2346
      %v2348 = vpop.f32.mrb[0].mxu0
      %v2349 = vpop.f32.mrb[0].mxu0
      %v2350 = vadd.f32 0.0, %v2349
      %v2351 = vpop.f32.mrb[0].mxu0
      %2352 = vmatprep.mubr.bf16.mxu0 0
      %2353 = vmatmul.mubr.bf16.gmra.mrb[0].mxu0 %v944
      %v2354 = vpop.f32.mrb[0].mxu0
      %v2355 = vadd.f32 0.0, %v2354
      %v2356 = vpop.f32.mrb[0].mxu0
      %v2357 = vpop.f32.mrb[0].mxu0
      %v2358 = vadd.f32 0.0, %v2357
      %v2359 = vpop.f32.mrb[0].mxu0
      %2360 = vmatprep.mubr.bf16.mxu0 0
      %2361 = vmatmul.mubr.bf16.gmra.mrb[0].mxu0 %v945
      %v2362 = vpop.f32.mrb[0].mxu0
      %v2363 = vadd.f32 0.0, %v2362
      %v2364 = vpop.f32.mrb[0].mxu0
      %v2365 = vpop.f32.mrb[0].mxu0
      %v2366 = vadd.f32 0.0, %v2365
      %v2367 = vpop.f32.mrb[0].mxu0
      %2368 = vmatprep.mubr.bf16.mxu0 0
      %2369 = vmatmul.mubr.bf16.gmra.mrb[0].mxu0 %v946
      %v2370 = vpop.f32.mrb[0].mxu0
      %v2371 = vadd.f32 0.0, %v2370
      %v2372 = vpop.f32.mrb[0].mxu0
      %v2373 = vpop.f32.mrb[0].mxu0
      %v2374 = vadd.f32 0.0, %v2373
      %v2375 = vpop.f32.mrb[0].mxu0
      %2376 = vmatprep.mubr.bf16.mxu0 0
      %2377 = vmatmul.mubr.bf16.gmra.mrb[0].mxu0 %v947
      %v2378 = vpop.f32.mrb[0].mxu0
      %v2379 = vadd.f32 0.0, %v2378
      %v2380 = vpop.f32.mrb[0].mxu0
      %v2381 = vpop.f32.mrb[0].mxu0
      %v2382 = vadd.f32 0.0, %v2381
      %v2383 = vpop.f32.mrb[0].mxu0
      %2384 = vmatprep.mubr.bf16.mxu0 0
      %2385 = vmatmul.mubr.bf16.gmra.mrb[0].mxu0 %v948
      %v2386 = vpop.f32.mrb[0].mxu0
      %v2387 = vadd.f32 0.0, %v2386
      %v2388 = vpop.f32.mrb[0].mxu0
      %v2389 = vpop.f32.mrb[0].mxu0
      %v2390 = vadd.f32 0.0, %v2389
      %v2391 = vpop.f32.mrb[0].mxu0
      %2392 = vmatprep.mubr.bf16.mxu0 0
      %2393 = vmatmul.mubr.bf16.gmra.mrb[0].mxu0 %v949
      %v2394 = vpop.f32.mrb[0].mxu0
      %v2395 = vadd.f32 0.0, %v2394
      %v2396 = vpop.f32.mrb[0].mxu0
      %v2397 = vpop.f32.mrb[0].mxu0
      %v2398 = vadd.f32 0.0, %v2397
      %v2399 = vpop.f32.mrb[0].mxu0
      %2400 = vmatprep.mubr.bf16.mxu0 0
      %2401 = vmatmul.mubr.bf16.gmra.mrb[0].mxu0 %v950
      %v2402 = vpop.f32.mrb[0].mxu0
      %v2403 = vadd.f32 0.0, %v2402
      %v2404 = vpop.f32.mrb[0].mxu0
      %v2405 = vpop.f32.mrb[0].mxu0
      %v2406 = vadd.f32 0.0, %v2405
      %v2407 = vpop.f32.mrb[0].mxu0
      %2408 = vmatprep.mubr.bf16.mxu0 0
      %2409 = vmatmul.mubr.bf16.gmra.mrb[0].mxu0 %v951
      %v2410 = vpop.f32.mrb[0].mxu0
      %v2411 = vadd.f32 0.0, %v2410
      %v2412 = vpop.f32.mrb[0].mxu0
      %v2413 = vpop.f32.mrb[0].mxu0
      %v2414 = vadd.f32 0.0, %v2413
      %v2415 = vpop.f32.mrb[0].mxu0
      %2416 = vmatprep.mubr.bf16.mxu0 0
      %2417 = vmatmul.mubr.bf16.gmra.mrb[0].mxu0 %v952
      %v2418 = vpop.f32.mrb[0].mxu0
      %v2419 = vadd.f32 0.0, %v2418
      %v2420 = vpop.f32.mrb[0].mxu0
      %v2421 = vpop.f32.mrb[0].mxu0
      %v2422 = vadd.f32 0.0, %v2421
      %v2423 = vpop.f32.mrb[0].mxu0
      %2424 = vmatprep.mubr.bf16.mxu0 0
      %2425 = vmatmul.mubr.bf16.gmra.mrb[0].mxu0 %v953
      %v2426 = vpop.f32.mrb[0].mxu0
      %v2427 = vadd.f32 0.0, %v2426
      %v2428 = vpop.f32.mrb[0].mxu0
      %v2429 = vpop.f32.mrb[0].mxu0
      %v2430 = vadd.f32 0.0, %v2429
      %v2431 = vpop.f32.mrb[0].mxu0
      %2432 = vmatprep.mubr.bf16.mxu0 0
      %2433 = vmatmul.mubr.bf16.gmra.mrb[0].mxu0 %v954
      %v2434 = vpop.f32.mrb[0].mxu0
      %v2435 = vadd.f32 0.0, %v2434
      %v2436 = vpop.f32.mrb[0].mxu0
      %v2437 = vpop.f32.mrb[0].mxu0
      %v2438 = vadd.f32 0.0, %v2437
      %v2439 = vpop.f32.mrb[0].mxu0
      %2440 = vmatprep.mubr.bf16.mxu0 0
      %2441 = vmatmul.mubr.bf16.gmra.mrb[0].mxu0 %v955
      %v2442 = vpop.f32.mrb[0].mxu0
      %v2443 = vadd.f32 0.0, %v2442
      %v2444 = vpop.f32.mrb[0].mxu0
      %v2445 = vpop.f32.mrb[0].mxu0
      %v2446 = vadd.f32 0.0, %v2445
      %v2447 = vpop.f32.mrb[0].mxu0
      %2448 = vmatprep.mubr.bf16.mxu0 0
      %2449 = vmatmul.mubr.bf16.gmra.mrb[0].mxu0 %v2246
      %v2450 = vpop.f32.mrb[0].mxu0
      %v2451 = vadd.f32 0.0, %v2450
      %v2452 = vpop.f32.mrb[0].mxu0
      %v2453 = vpop.f32.mrb[0].mxu0
      %v2454 = vadd.f32 0.0, %v2453
      %v2455 = vpop.f32.mrb[0].mxu0
      %2456 = vdwg.mxu0
      %v2457 = vadd.f32 %v2171, %v2331
      %v2458 = vadd.f32 %v2172, %v2334
      %v2459 = vadd.f32 %v2173, %v2339
      %v2460 = vadd.f32 %v2174, %v2342
      %v2461 = vadd.f32 %v2175, %v2347
      %v2462 = vadd.f32 %v2176, %v2350
      %v2463 = vadd.f32 %v2177, %v2355
      %v2464 = vadd.f32 %v2178, %v2358
      %v2465 = vadd.f32 %v2179, %v2363
      %v2466 = vadd.f32 %v2180, %v2366
      %v2467 = vadd.f32 %v2181, %v2371
      %v2468 = vadd.f32 %v2182, %v2374
      %v2469 = vadd.f32 %v2183, %v2379
      %v2470 = vadd.f32 %v2184, %v2382
      %v2471 = vadd.f32 %v2185, %v2387
      %v2472 = vadd.f32 %v2186, %v2390
      %v2473 = vadd.f32 %v2187, %v2395
      %v2474 = vadd.f32 %v2188, %v2398
      %v2475 = vadd.f32 %v2189, %v2403
      %v2476 = vadd.f32 %v2190, %v2406
      %v2477 = vadd.f32 %v2191, %v2411
      %v2478 = vadd.f32 %v2192, %v2414
      %v2479 = vadd.f32 %v2193, %v2419
      %v2480 = vadd.f32 %v2194, %v2422
      %v2481 = vadd.f32 %v2195, %v2427
      %v2482 = vadd.f32 %v2196, %v2430
      %v2483 = vadd.f32 %v2197, %v2435
      %v2484 = vadd.f32 %v2198, %v2438
      %v2485 = vadd.f32 %v2199, %v2443
      %v2486 = vadd.f32 %v2200, %v2446
      %v2487 = vadd.f32 %v2201, %v2451
      %v2488 = vadd.f32 %v2202, %v2454
      %v2490 = vrot.slane %v482, 5
      %v2491 = vrot.slane %v2490, 4
      %v2492 = vrot.slane %v483, 5
      %v2493 = vsel %vm1504, %v2491, %v2492
      %v2494 = vrot.slane %v2492, 4
      %v2495 = vrot.slane %v484, 5
      %v2496 = vsel %vm1504, %v2494, %v2495
      %s2497 = scalar_lea.vmem %s3, 320
      %v2498 = vld [vmem:[%s2497] sm:$0xf]
      %v2499 = vld [vmem:[%s2497 + $0x4] sm:$0xf]
      %v2500 = vld [vmem:[%s2497 + $0x8] sm:$0xf]
      %v2501 = vld [vmem:[%s2497 + $0xc] sm:$0xf]
      %v2502 = vld [vmem:[%s2497 + $0x10] sm:$0xf]
      %v2503 = vld [vmem:[%s2497 + $0x14] sm:$0xf]
      %v2504 = vld [vmem:[%s2497 + $0x18] sm:$0xf]
      %v2505 = vld [vmem:[%s2497 + $0x1c] sm:$0xf]
      %v2506 = vld [vmem:[%s2497 + $0x20] sm:$0xf]
      %v2507 = vld [vmem:[%s2497 + $0x24] sm:$0xf]
      %v2508 = vld [vmem:[%s2497 + $0x28] sm:$0xf]
      %v2509 = vld [vmem:[%s2497 + $0x2c] sm:$0xf]
      %v2510 = vld [vmem:[%s2497 + $0x30] sm:$0xf]
      %v2511 = vld [vmem:[%s2497 + $0x34] sm:$0xf]
      %v2512 = vld [vmem:[%s2497 + $0x38] sm:$0xf]
      %v2513 = vld [vmem:[%s2497 + $0x3c] sm:$0xf]
      %v2514 = vunpack.c.l.b16 %v2493
      %v2515 = vunpack.c.l.b16 %v2496
      %v2516 = vpack.c.b16 %v2515, %v2514
      %v2534 = vunpack.c.l.b16 %v2498
      %v2535 = vunpack.c.l.b16 %v2499
      %v2536 = vunpack.c.l.b16 %v2500
      %v2537 = vunpack.c.l.b16 %v2501
      %v2538 = vunpack.c.l.b16 %v2502
      %v2539 = vunpack.c.l.b16 %v2503
      %v2540 = vunpack.c.l.b16 %v2504
      %v2541 = vunpack.c.l.b16 %v2505
      %v2542 = vunpack.c.l.b16 %v2506
      %v2543 = vunpack.c.l.b16 %v2507
      %v2544 = vunpack.c.l.b16 %v2508
      %v2545 = vunpack.c.l.b16 %v2509
      %v2546 = vunpack.c.l.b16 %v2510
      %v2547 = vunpack.c.l.b16 %v2511
      %v2548 = vunpack.c.l.b16 %v2512
      %v2549 = vunpack.c.l.b16 %v2513
      %v2550 = vpack.c.b16 %v2535, %v2534
      %v2551 = vpack.c.b16 %v2537, %v2536
      %v2552 = vpack.c.b16 %v2539, %v2538
      %v2553 = vpack.c.b16 %v2541, %v2540
      %v2554 = vpack.c.b16 %v2543, %v2542
      %v2555 = vpack.c.b16 %v2545, %v2544
      %v2556 = vpack.c.b16 %v2547, %v2546
      %v2557 = vpack.c.b16 %v2549, %v2548
      %2566 = vmatprep.subr.bf16.mxu0 0
      %2567 = vmatpush1.bf16.msra.mxu0 %v2550
      %2568 = vmatprep.subr.bf16.mxu0 0
      %2569 = vmatpush1.bf16.msra.mxu0 %v2551
      %2570 = vmatprep.subr.bf16.mxu0 0
      %2571 = vmatpush1.bf16.msra.mxu0 %v2552
      %2572 = vmatprep.subr.bf16.mxu0 0
      %2573 = vmatpush1.bf16.msra.mxu0 %v2553
      %2574 = vmatprep.subr.bf16.mxu0 0
      %2575 = vmatpush1.bf16.msra.mxu0 %v2554
      %2576 = vmatprep.subr.bf16.mxu0 0
      %2577 = vmatpush1.bf16.msra.mxu0 %v2555
      %2578 = vmatprep.subr.bf16.mxu0 0
      %2579 = vmatpush1.bf16.msra.mxu0 %v2556
      %2580 = vmatprep.subr.bf16.mxu0 0
      %2581 = vmatpush1.bf16.msra.mxu0 %v2557
      %2582 = vmatprep.subr.bf16.mxu0 0
      %2583 = vmatpush1.bf16.msra.mxu0 0
      %2584 = vmatprep.subr.bf16.mxu0 0
      %2585 = vmatpush1.bf16.msra.mxu0 0
      %2586 = vmatprep.subr.bf16.mxu0 0
      %2587 = vmatpush1.bf16.msra.mxu0 0
      %2588 = vmatprep.subr.bf16.mxu0 0
      %2589 = vmatpush1.bf16.msra.mxu0 0
      %2590 = vmatprep.subr.bf16.mxu0 0
      %2591 = vmatpush1.bf16.msra.mxu0 0
      %2592 = vmatprep.subr.bf16.mxu0 0
      %2593 = vmatpush1.bf16.msra.mxu0 0
      %2594 = vmatprep.subr.bf16.mxu0 0
      %2595 = vmatpush1.bf16.msra.mxu0 0
      %2596 = vmatprep.subr.bf16.mxu0 0
      %2597 = vmatpush1.bf16.msra.mxu0 0
      %2598 = vmatprep.mubr.bf16.mxu0 0
      %2599 = vmatmul.mubr.bf16.gmra.mrb[0].mxu0 %v1667
      %v2600 = vpop.f32.mrb[0].mxu0
      %v2601 = vadd.f32 0.0, %v2600
      %v2602 = vpop.f32.mrb[0].mxu0
      %v2603 = vpop.f32.mrb[0].mxu0
      %v2604 = vadd.f32 0.0, %v2603
      %v2605 = vpop.f32.mrb[0].mxu0
      %2606 = vmatprep.mubr.bf16.mxu0 0
      %2607 = vmatmul.mubr.bf16.gmra.mrb[0].mxu0 %v1668
      %v2608 = vpop.f32.mrb[0].mxu0
      %v2609 = vadd.f32 0.0, %v2608
      %v2610 = vpop.f32.mrb[0].mxu0
      %v2611 = vpop.f32.mrb[0].mxu0
      %v2612 = vadd.f32 0.0, %v2611
      %v2613 = vpop.f32.mrb[0].mxu0
      %2614 = vmatprep.mubr.bf16.mxu0 0
      %2615 = vmatmul.mubr.bf16.gmra.mrb[0].mxu0 %v1669
      %v2616 = vpop.f32.mrb[0].mxu0
      %v2617 = vadd.f32 0.0, %v2616
      %v2618 = vpop.f32.mrb[0].mxu0
      %v2619 = vpop.f32.mrb[0].mxu0
      %v2620 = vadd.f32 0.0, %v2619
      %v2621 = vpop.f32.mrb[0].mxu0
      %2622 = vmatprep.mubr.bf16.mxu0 0
      %2623 = vmatmul.mubr.bf16.gmra.mrb[0].mxu0 %v1670
      %v2624 = vpop.f32.mrb[0].mxu0
      %v2625 = vadd.f32 0.0, %v2624
      %v2626 = vpop.f32.mrb[0].mxu0
      %v2627 = vpop.f32.mrb[0].mxu0
      %v2628 = vadd.f32 0.0, %v2627
      %v2629 = vpop.f32.mrb[0].mxu0
      %2630 = vmatprep.mubr.bf16.mxu0 0
      %2631 = vmatmul.mubr.bf16.gmra.mrb[0].mxu0 %v1671
      %v2632 = vpop.f32.mrb[0].mxu0
      %v2633 = vadd.f32 0.0, %v2632
      %v2634 = vpop.f32.mrb[0].mxu0
      %v2635 = vpop.f32.mrb[0].mxu0
      %v2636 = vadd.f32 0.0, %v2635
      %v2637 = vpop.f32.mrb[0].mxu0
      %2638 = vmatprep.mubr.bf16.mxu0 0
      %2639 = vmatmul.mubr.bf16.gmra.mrb[0].mxu0 %v1672
      %v2640 = vpop.f32.mrb[0].mxu0
      %v2641 = vadd.f32 0.0, %v2640
      %v2642 = vpop.f32.mrb[0].mxu0
      %v2643 = vpop.f32.mrb[0].mxu0
      %v2644 = vadd.f32 0.0, %v2643
      %v2645 = vpop.f32.mrb[0].mxu0
      %2646 = vmatprep.mubr.bf16.mxu0 0
      %2647 = vmatmul.mubr.bf16.gmra.mrb[0].mxu0 %v1673
      %v2648 = vpop.f32.mrb[0].mxu0
      %v2649 = vadd.f32 0.0, %v2648
      %v2650 = vpop.f32.mrb[0].mxu0
      %v2651 = vpop.f32.mrb[0].mxu0
      %v2652 = vadd.f32 0.0, %v2651
      %v2653 = vpop.f32.mrb[0].mxu0
      %2654 = vmatprep.mubr.bf16.mxu0 0
      %2655 = vmatmul.mubr.bf16.gmra.mrb[0].mxu0 %v1674
      %v2656 = vpop.f32.mrb[0].mxu0
      %v2657 = vadd.f32 0.0, %v2656
      %v2658 = vpop.f32.mrb[0].mxu0
      %v2659 = vpop.f32.mrb[0].mxu0
      %v2660 = vadd.f32 0.0, %v2659
      %v2661 = vpop.f32.mrb[0].mxu0
      %2662 = vmatprep.mubr.bf16.mxu0 0
      %2663 = vmatmul.mubr.bf16.gmra.mrb[0].mxu0 %v1675
      %v2664 = vpop.f32.mrb[0].mxu0
      %v2665 = vadd.f32 0.0, %v2664
      %v2666 = vpop.f32.mrb[0].mxu0
      %v2667 = vpop.f32.mrb[0].mxu0
      %v2668 = vadd.f32 0.0, %v2667
      %v2669 = vpop.f32.mrb[0].mxu0
      %2670 = vmatprep.mubr.bf16.mxu0 0
      %2671 = vmatmul.mubr.bf16.gmra.mrb[0].mxu0 %v1676
      %v2672 = vpop.f32.mrb[0].mxu0
      %v2673 = vadd.f32 0.0, %v2672
      %v2674 = vpop.f32.mrb[0].mxu0
      %v2675 = vpop.f32.mrb[0].mxu0
      %v2676 = vadd.f32 0.0, %v2675
      %v2677 = vpop.f32.mrb[0].mxu0
      %2678 = vmatprep.mubr.bf16.mxu0 0
      %2679 = vmatmul.mubr.bf16.gmra.mrb[0].mxu0 %v1677
      %v2680 = vpop.f32.mrb[0].mxu0
      %v2681 = vadd.f32 0.0, %v2680
      %v2682 = vpop.f32.mrb[0].mxu0
      %v2683 = vpop.f32.mrb[0].mxu0
      %v2684 = vadd.f32 0.0, %v2683
      %v2685 = vpop.f32.mrb[0].mxu0
      %2686 = vmatprep.mubr.bf16.mxu0 0
      %2687 = vmatmul.mubr.bf16.gmra.mrb[0].mxu0 %v1678
      %v2688 = vpop.f32.mrb[0].mxu0
      %v2689 = vadd.f32 0.0, %v2688
      %v2690 = vpop.f32.mrb[0].mxu0
      %v2691 = vpop.f32.mrb[0].mxu0
      %v2692 = vadd.f32 0.0, %v2691
      %v2693 = vpop.f32.mrb[0].mxu0
      %2694 = vmatprep.mubr.bf16.mxu0 0
      %2695 = vmatmul.mubr.bf16.gmra.mrb[0].mxu0 %v1679
      %v2696 = vpop.f32.mrb[0].mxu0
      %v2697 = vadd.f32 0.0, %v2696
      %v2698 = vpop.f32.mrb[0].mxu0
      %v2699 = vpop.f32.mrb[0].mxu0
      %v2700 = vadd.f32 0.0, %v2699
      %v2701 = vpop.f32.mrb[0].mxu0
      %2702 = vmatprep.mubr.bf16.mxu0 0
      %2703 = vmatmul.mubr.bf16.gmra.mrb[0].mxu0 %v1680
      %v2704 = vpop.f32.mrb[0].mxu0
      %v2705 = vadd.f32 0.0, %v2704
      %v2706 = vpop.f32.mrb[0].mxu0
      %v2707 = vpop.f32.mrb[0].mxu0
      %v2708 = vadd.f32 0.0, %v2707
      %v2709 = vpop.f32.mrb[0].mxu0
      %2710 = vmatprep.mubr.bf16.mxu0 0
      %2711 = vmatmul.mubr.bf16.gmra.mrb[0].mxu0 %v1681
      %v2712 = vpop.f32.mrb[0].mxu0
      %v2713 = vadd.f32 0.0, %v2712
      %v2714 = vpop.f32.mrb[0].mxu0
      %v2715 = vpop.f32.mrb[0].mxu0
      %v2716 = vadd.f32 0.0, %v2715
      %v2717 = vpop.f32.mrb[0].mxu0
      %2718 = vmatprep.mubr.bf16.mxu0 0
      %2719 = vmatmul.mubr.bf16.gmra.mrb[0].mxu0 %v2516
      %v2720 = vpop.f32.mrb[0].mxu0
      %v2721 = vadd.f32 0.0, %v2720
      %v2722 = vpop.f32.mrb[0].mxu0
      %v2723 = vpop.f32.mrb[0].mxu0
      %v2724 = vadd.f32 0.0, %v2723
      %v2725 = vpop.f32.mrb[0].mxu0
      %2726 = vdwg.mxu0
      %v2727 = vadd.f32 %v2457, %v2601
      %v2728 = vadd.f32 %v2458, %v2604
      %v2729 = vadd.f32 %v2459, %v2609
      %v2730 = vadd.f32 %v2460, %v2612
      %v2731 = vadd.f32 %v2461, %v2617
      %v2732 = vadd.f32 %v2462, %v2620
      %v2733 = vadd.f32 %v2463, %v2625
      %v2734 = vadd.f32 %v2464, %v2628
      %v2735 = vadd.f32 %v2465, %v2633
      %v2736 = vadd.f32 %v2466, %v2636
      %v2737 = vadd.f32 %v2467, %v2641
      %v2738 = vadd.f32 %v2468, %v2644
      %v2739 = vadd.f32 %v2469, %v2649
      %v2740 = vadd.f32 %v2470, %v2652
      %v2741 = vadd.f32 %v2471, %v2657
      %v2742 = vadd.f32 %v2472, %v2660
      %v2743 = vadd.f32 %v2473, %v2665
      %v2744 = vadd.f32 %v2474, %v2668
      %v2745 = vadd.f32 %v2475, %v2673
      %v2746 = vadd.f32 %v2476, %v2676
      %v2747 = vadd.f32 %v2477, %v2681
      %v2748 = vadd.f32 %v2478, %v2684
      %v2749 = vadd.f32 %v2479, %v2689
      %v2750 = vadd.f32 %v2480, %v2692
      %v2751 = vadd.f32 %v2481, %v2697
      %v2752 = vadd.f32 %v2482, %v2700
      %v2753 = vadd.f32 %v2483, %v2705
      %v2754 = vadd.f32 %v2484, %v2708
      %v2755 = vadd.f32 %v2485, %v2713
      %v2756 = vadd.f32 %v2486, %v2716
      %v2757 = vadd.f32 %v2487, %v2721
      %v2758 = vadd.f32 %v2488, %v2724
      %s2759 = scalar_lea.vmem %s3, 384
      %v2760 = vld [vmem:[%s2759] sm:$0xf]
      %v2761 = vld [vmem:[%s2759 + $0x4] sm:$0xf]
      %v2762 = vld [vmem:[%s2759 + $0x8] sm:$0xf]
      %v2763 = vld [vmem:[%s2759 + $0xc] sm:$0xf]
      %v2764 = vld [vmem:[%s2759 + $0x10] sm:$0xf]
      %v2765 = vld [vmem:[%s2759 + $0x14] sm:$0xf]
      %v2766 = vld [vmem:[%s2759 + $0x18] sm:$0xf]
      %v2767 = vld [vmem:[%s2759 + $0x1c] sm:$0xf]
      %v2768 = vld [vmem:[%s2759 + $0x20] sm:$0xf]
      %v2769 = vld [vmem:[%s2759 + $0x24] sm:$0xf]
      %v2770 = vld [vmem:[%s2759 + $0x28] sm:$0xf]
      %v2771 = vld [vmem:[%s2759 + $0x2c] sm:$0xf]
      %v2772 = vld [vmem:[%s2759 + $0x30] sm:$0xf]
      %v2773 = vld [vmem:[%s2759 + $0x34] sm:$0xf]
      %v2774 = vld [vmem:[%s2759 + $0x38] sm:$0xf]
      %v2775 = vld [vmem:[%s2759 + $0x3c] sm:$0xf]
      %v2778 = vunpack.c.l.b16 %v485
      %v2779 = vunpack.c.l.b16 %v486
      %v2780 = vpack.c.b16 %v2779, %v2778
      %v2798 = vunpack.c.l.b16 %v2760
      %v2799 = vunpack.c.l.b16 %v2761
      %v2800 = vunpack.c.l.b16 %v2762
      %v2801 = vunpack.c.l.b16 %v2763
      %v2802 = vunpack.c.l.b16 %v2764
      %v2803 = vunpack.c.l.b16 %v2765
      %v2804 = vunpack.c.l.b16 %v2766
      %v2805 = vunpack.c.l.b16 %v2767
      %v2806 = vunpack.c.l.b16 %v2768
      %v2807 = vunpack.c.l.b16 %v2769
      %v2808 = vunpack.c.l.b16 %v2770
      %v2809 = vunpack.c.l.b16 %v2771
      %v2810 = vunpack.c.l.b16 %v2772
      %v2811 = vunpack.c.l.b16 %v2773
      %v2812 = vunpack.c.l.b16 %v2774
      %v2813 = vunpack.c.l.b16 %v2775
      %v2814 = vpack.c.b16 %v2799, %v2798
      %v2815 = vpack.c.b16 %v2801, %v2800
      %v2816 = vpack.c.b16 %v2803, %v2802
      %v2817 = vpack.c.b16 %v2805, %v2804
      %v2818 = vpack.c.b16 %v2807, %v2806
      %v2819 = vpack.c.b16 %v2809, %v2808
      %v2820 = vpack.c.b16 %v2811, %v2810
      %v2821 = vpack.c.b16 %v2813, %v2812
      %2830 = vmatprep.subr.bf16.mxu0 0
      %2831 = vmatpush1.bf16.msra.mxu0 %v2814
      %2832 = vmatprep.subr.bf16.mxu0 0
      %2833 = vmatpush1.bf16.msra.mxu0 %v2815
      %2834 = vmatprep.subr.bf16.mxu0 0
      %2835 = vmatpush1.bf16.msra.mxu0 %v2816
      %2836 = vmatprep.subr.bf16.mxu0 0
      %2837 = vmatpush1.bf16.msra.mxu0 %v2817
      %2838 = vmatprep.subr.bf16.mxu0 0
      %2839 = vmatpush1.bf16.msra.mxu0 %v2818
      %2840 = vmatprep.subr.bf16.mxu0 0
      %2841 = vmatpush1.bf16.msra.mxu0 %v2819
      %2842 = vmatprep.subr.bf16.mxu0 0
      %2843 = vmatpush1.bf16.msra.mxu0 %v2820
      %2844 = vmatprep.subr.bf16.mxu0 0
      %2845 = vmatpush1.bf16.msra.mxu0 %v2821
      %2846 = vmatprep.subr.bf16.mxu0 0
      %2847 = vmatpush1.bf16.msra.mxu0 0
      %2848 = vmatprep.subr.bf16.mxu0 0
      %2849 = vmatpush1.bf16.msra.mxu0 0
      %2850 = vmatprep.subr.bf16.mxu0 0
      %2851 = vmatpush1.bf16.msra.mxu0 0
      %2852 = vmatprep.subr.bf16.mxu0 0
      %2853 = vmatpush1.bf16.msra.mxu0 0
      %2854 = vmatprep.subr.bf16.mxu0 0
      %2855 = vmatpush1.bf16.msra.mxu0 0
      %2856 = vmatprep.subr.bf16.mxu0 0
      %2857 = vmatpush1.bf16.msra.mxu0 0
      %2858 = vmatprep.subr.bf16.mxu0 0
      %2859 = vmatpush1.bf16.msra.mxu0 0
      %2860 = vmatprep.subr.bf16.mxu0 0
      %2861 = vmatpush1.bf16.msra.mxu0 0
      %2862 = vmatprep.mubr.bf16.mxu0 0
      %2863 = vmatmul.mubr.bf16.gmra.mrb[0].mxu0 %v1247
      %v2864 = vpop.f32.mrb[0].mxu0
      %v2865 = vadd.f32 0.0, %v2864
      %v2866 = vpop.f32.mrb[0].mxu0
      %v2867 = vpop.f32.mrb[0].mxu0
      %v2868 = vadd.f32 0.0, %v2867
      %v2869 = vpop.f32.mrb[0].mxu0
      %2870 = vmatprep.mubr.bf16.mxu0 0
      %2871 = vmatmul.mubr.bf16.gmra.mrb[0].mxu0 %v1248
      %v2872 = vpop.f32.mrb[0].mxu0
      %v2873 = vadd.f32 0.0, %v2872
      %v2874 = vpop.f32.mrb[0].mxu0
      %v2875 = vpop.f32.mrb[0].mxu0
      %v2876 = vadd.f32 0.0, %v2875
      %v2877 = vpop.f32.mrb[0].mxu0
      %2878 = vmatprep.mubr.bf16.mxu0 0
      %2879 = vmatmul.mubr.bf16.gmra.mrb[0].mxu0 %v1249
      %v2880 = vpop.f32.mrb[0].mxu0
      %v2881 = vadd.f32 0.0, %v2880
      %v2882 = vpop.f32.mrb[0].mxu0
      %v2883 = vpop.f32.mrb[0].mxu0
      %v2884 = vadd.f32 0.0, %v2883
      %v2885 = vpop.f32.mrb[0].mxu0
      %2886 = vmatprep.mubr.bf16.mxu0 0
      %2887 = vmatmul.mubr.bf16.gmra.mrb[0].mxu0 %v1250
      %v2888 = vpop.f32.mrb[0].mxu0
      %v2889 = vadd.f32 0.0, %v2888
      %v2890 = vpop.f32.mrb[0].mxu0
      %v2891 = vpop.f32.mrb[0].mxu0
      %v2892 = vadd.f32 0.0, %v2891
      %v2893 = vpop.f32.mrb[0].mxu0
      %2894 = vmatprep.mubr.bf16.mxu0 0
      %2895 = vmatmul.mubr.bf16.gmra.mrb[0].mxu0 %v1251
      %v2896 = vpop.f32.mrb[0].mxu0
      %v2897 = vadd.f32 0.0, %v2896
      %v2898 = vpop.f32.mrb[0].mxu0
      %v2899 = vpop.f32.mrb[0].mxu0
      %v2900 = vadd.f32 0.0, %v2899
      %v2901 = vpop.f32.mrb[0].mxu0
      %2902 = vmatprep.mubr.bf16.mxu0 0
      %2903 = vmatmul.mubr.bf16.gmra.mrb[0].mxu0 %v1252
      %v2904 = vpop.f32.mrb[0].mxu0
      %v2905 = vadd.f32 0.0, %v2904
      %v2906 = vpop.f32.mrb[0].mxu0
      %v2907 = vpop.f32.mrb[0].mxu0
      %v2908 = vadd.f32 0.0, %v2907
      %v2909 = vpop.f32.mrb[0].mxu0
      %2910 = vmatprep.mubr.bf16.mxu0 0
      %2911 = vmatmul.mubr.bf16.gmra.mrb[0].mxu0 %v1253
      %v2912 = vpop.f32.mrb[0].mxu0
      %v2913 = vadd.f32 0.0, %v2912
      %v2914 = vpop.f32.mrb[0].mxu0
      %v2915 = vpop.f32.mrb[0].mxu0
      %v2916 = vadd.f32 0.0, %v2915
      %v2917 = vpop.f32.mrb[0].mxu0
      %2918 = vmatprep.mubr.bf16.mxu0 0
      %2919 = vmatmul.mubr.bf16.gmra.mrb[0].mxu0 %v1254
      %v2920 = vpop.f32.mrb[0].mxu0
      %v2921 = vadd.f32 0.0, %v2920
      %v2922 = vpop.f32.mrb[0].mxu0
      %v2923 = vpop.f32.mrb[0].mxu0
      %v2924 = vadd.f32 0.0, %v2923
      %v2925 = vpop.f32.mrb[0].mxu0
      %2926 = vmatprep.mubr.bf16.mxu0 0
      %2927 = vmatmul.mubr.bf16.gmra.mrb[0].mxu0 %v1255
      %v2928 = vpop.f32.mrb[0].mxu0
      %v2929 = vadd.f32 0.0, %v2928
      %v2930 = vpop.f32.mrb[0].mxu0
      %v2931 = vpop.f32.mrb[0].mxu0
      %v2932 = vadd.f32 0.0, %v2931
      %v2933 = vpop.f32.mrb[0].mxu0
      %2934 = vmatprep.mubr.bf16.mxu0 0
      %2935 = vmatmul.mubr.bf16.gmra.mrb[0].mxu0 %v1256
      %v2936 = vpop.f32.mrb[0].mxu0
      %v2937 = vadd.f32 0.0, %v2936
      %v2938 = vpop.f32.mrb[0].mxu0
      %v2939 = vpop.f32.mrb[0].mxu0
      %v2940 = vadd.f32 0.0, %v2939
      %v2941 = vpop.f32.mrb[0].mxu0
      %2942 = vmatprep.mubr.bf16.mxu0 0
      %2943 = vmatmul.mubr.bf16.gmra.mrb[0].mxu0 %v1257
      %v2944 = vpop.f32.mrb[0].mxu0
      %v2945 = vadd.f32 0.0, %v2944
      %v2946 = vpop.f32.mrb[0].mxu0
      %v2947 = vpop.f32.mrb[0].mxu0
      %v2948 = vadd.f32 0.0, %v2947
      %v2949 = vpop.f32.mrb[0].mxu0
      %2950 = vmatprep.mubr.bf16.mxu0 0
      %2951 = vmatmul.mubr.bf16.gmra.mrb[0].mxu0 %v1258
      %v2952 = vpop.f32.mrb[0].mxu0
      %v2953 = vadd.f32 0.0, %v2952
      %v2954 = vpop.f32.mrb[0].mxu0
      %v2955 = vpop.f32.mrb[0].mxu0
      %v2956 = vadd.f32 0.0, %v2955
      %v2957 = vpop.f32.mrb[0].mxu0
      %2958 = vmatprep.mubr.bf16.mxu0 0
      %2959 = vmatmul.mubr.bf16.gmra.mrb[0].mxu0 %v1259
      %v2960 = vpop.f32.mrb[0].mxu0
      %v2961 = vadd.f32 0.0, %v2960
      %v2962 = vpop.f32.mrb[0].mxu0
      %v2963 = vpop.f32.mrb[0].mxu0
      %v2964 = vadd.f32 0.0, %v2963
      %v2965 = vpop.f32.mrb[0].mxu0
      %2966 = vmatprep.mubr.bf16.mxu0 0
      %2967 = vmatmul.mubr.bf16.gmra.mrb[0].mxu0 %v1260
      %v2968 = vpop.f32.mrb[0].mxu0
      %v2969 = vadd.f32 0.0, %v2968
      %v2970 = vpop.f32.mrb[0].mxu0
      %v2971 = vpop.f32.mrb[0].mxu0
      %v2972 = vadd.f32 0.0, %v2971
      %v2973 = vpop.f32.mrb[0].mxu0
      %2974 = vmatprep.mubr.bf16.mxu0 0
      %2975 = vmatmul.mubr.bf16.gmra.mrb[0].mxu0 %v1960
      %v2976 = vpop.f32.mrb[0].mxu0
      %v2977 = vadd.f32 0.0, %v2976
      %v2978 = vpop.f32.mrb[0].mxu0
      %v2979 = vpop.f32.mrb[0].mxu0
      %v2980 = vadd.f32 0.0, %v2979
      %v2981 = vpop.f32.mrb[0].mxu0
      %2982 = vmatprep.mubr.bf16.mxu0 0
      %2983 = vmatmul.mubr.bf16.gmra.mrb[0].mxu0 %v2780
      %v2984 = vpop.f32.mrb[0].mxu0
      %v2985 = vadd.f32 0.0, %v2984
      %v2986 = vpop.f32.mrb[0].mxu0
      %v2987 = vpop.f32.mrb[0].mxu0
      %v2988 = vadd.f32 0.0, %v2987
      %v2989 = vpop.f32.mrb[0].mxu0
      %2990 = vdwg.mxu0
      %v2991 = vadd.f32 %v2727, %v2865
      %v2992 = vadd.f32 %v2728, %v2868
      %v2993 = vadd.f32 %v2729, %v2873
      %v2994 = vadd.f32 %v2730, %v2876
      %v2995 = vadd.f32 %v2731, %v2881
      %v2996 = vadd.f32 %v2732, %v2884
      %v2997 = vadd.f32 %v2733, %v2889
      %v2998 = vadd.f32 %v2734, %v2892
      %v2999 = vadd.f32 %v2735, %v2897
      %v3000 = vadd.f32 %v2736, %v2900
      %v3001 = vadd.f32 %v2737, %v2905
      %v3002 = vadd.f32 %v2738, %v2908
      %v3003 = vadd.f32 %v2739, %v2913
      %v3004 = vadd.f32 %v2740, %v2916
      %v3005 = vadd.f32 %v2741, %v2921
      %v3006 = vadd.f32 %v2742, %v2924
      %v3007 = vadd.f32 %v2743, %v2929
      %v3008 = vadd.f32 %v2744, %v2932
      %v3009 = vadd.f32 %v2745, %v2937
      %v3010 = vadd.f32 %v2746, %v2940
      %v3011 = vadd.f32 %v2747, %v2945
      %v3012 = vadd.f32 %v2748, %v2948
      %v3013 = vadd.f32 %v2749, %v2953
      %v3014 = vadd.f32 %v2750, %v2956
      %v3015 = vadd.f32 %v2751, %v2961
      %v3016 = vadd.f32 %v2752, %v2964
      %v3017 = vadd.f32 %v2753, %v2969
      %v3018 = vadd.f32 %v2754, %v2972
      %v3019 = vadd.f32 %v2755, %v2977
      %v3020 = vadd.f32 %v2756, %v2980
      %v3021 = vadd.f32 %v2757, %v2985
      %v3022 = vadd.f32 %v2758, %v2988
      %v3024 = vshrl.u32 %v485, 16
      %v3026 = vrot.slane %v3024, 4
      %v3027 = vshll.u32 %v485, 16
      %v3029 = vrot.slane %v3027, 5
      %v3030 = vor.u32 %v3026, %v3029
      %v3031 = vrot.slane %v3030, 4
      %v3033 = vshll.u32 %v486, 16
      %v3035 = vrot.slane %v3033, 5
      %v3036 = vsel %vm506, %v3031, %v3035
      %v3037 = vshrl.u32 %v486, 16
      %v3039 = vrot.slane %v3037, 4
      %v3040 = vor.u32 %v3039, %v3035
      %v3041 = vrot.slane %v3040, 4
      %v3043 = vshll.u32 %v487, 16
      %v3045 = vrot.slane %v3043, 5
      %v3046 = vsel %vm506, %v3041, %v3045
      %s3047 = scalar_lea.vmem %s3, 448
      %v3048 = vld [vmem:[%s3047] sm:$0xf]
      %v3049 = vld [vmem:[%s3047 + $0x4] sm:$0xf]
      %v3050 = vld [vmem:[%s3047 + $0x8] sm:$0xf]
      %v3051 = vld [vmem:[%s3047 + $0xc] sm:$0xf]
      %v3052 = vld [vmem:[%s3047 + $0x10] sm:$0xf]
      %v3053 = vld [vmem:[%s3047 + $0x14] sm:$0xf]
      %v3054 = vld [vmem:[%s3047 + $0x18] sm:$0xf]
      %v3055 = vld [vmem:[%s3047 + $0x1c] sm:$0xf]
      %v3056 = vld [vmem:[%s3047 + $0x20] sm:$0xf]
      %v3057 = vld [vmem:[%s3047 + $0x24] sm:$0xf]
      %v3058 = vld [vmem:[%s3047 + $0x28] sm:$0xf]
      %v3059 = vld [vmem:[%s3047 + $0x2c] sm:$0xf]
      %v3060 = vld [vmem:[%s3047 + $0x30] sm:$0xf]
      %v3061 = vld [vmem:[%s3047 + $0x34] sm:$0xf]
      %v3062 = vld [vmem:[%s3047 + $0x38] sm:$0xf]
      %v3063 = vld [vmem:[%s3047 + $0x3c] sm:$0xf]
      %v3064 = vunpack.c.l.b16 %v3036
      %v3065 = vunpack.c.l.b16 %v3046
      %v3066 = vpack.c.b16 %v3065, %v3064
      %v3084 = vunpack.c.l.b16 %v3048
      %v3085 = vunpack.c.l.b16 %v3049
      %v3086 = vunpack.c.l.b16 %v3050
      %v3087 = vunpack.c.l.b16 %v3051
      %v3088 = vunpack.c.l.b16 %v3052
      %v3089 = vunpack.c.l.b16 %v3053
      %v3090 = vunpack.c.l.b16 %v3054
      %v3091 = vunpack.c.l.b16 %v3055
      %v3092 = vunpack.c.l.b16 %v3056
      %v3093 = vunpack.c.l.b16 %v3057
      %v3094 = vunpack.c.l.b16 %v3058
      %v3095 = vunpack.c.l.b16 %v3059
      %v3096 = vunpack.c.l.b16 %v3060
      %v3097 = vunpack.c.l.b16 %v3061
      %v3098 = vunpack.c.l.b16 %v3062
      %v3099 = vunpack.c.l.b16 %v3063
      %v3100 = vpack.c.b16 %v3085, %v3084
      %v3101 = vpack.c.b16 %v3087, %v3086
      %v3102 = vpack.c.b16 %v3089, %v3088
      %v3103 = vpack.c.b16 %v3091, %v3090
      %v3104 = vpack.c.b16 %v3093, %v3092
      %v3105 = vpack.c.b16 %v3095, %v3094
      %v3106 = vpack.c.b16 %v3097, %v3096
      %v3107 = vpack.c.b16 %v3099, %v3098
      %3116 = vmatprep.subr.bf16.mxu0 0
      %3117 = vmatpush1.bf16.msra.mxu0 %v3100
      %3118 = vmatprep.subr.bf16.mxu0 0
      %3119 = vmatpush1.bf16.msra.mxu0 %v3101
      %3120 = vmatprep.subr.bf16.mxu0 0
      %3121 = vmatpush1.bf16.msra.mxu0 %v3102
      %3122 = vmatprep.subr.bf16.mxu0 0
      %3123 = vmatpush1.bf16.msra.mxu0 %v3103
      %3124 = vmatprep.subr.bf16.mxu0 0
      %3125 = vmatpush1.bf16.msra.mxu0 %v3104
      %3126 = vmatprep.subr.bf16.mxu0 0
      %3127 = vmatpush1.bf16.msra.mxu0 %v3105
      %3128 = vmatprep.subr.bf16.mxu0 0
      %3129 = vmatpush1.bf16.msra.mxu0 %v3106
      %3130 = vmatprep.subr.bf16.mxu0 0
      %3131 = vmatpush1.bf16.msra.mxu0 %v3107
      %3132 = vmatprep.subr.bf16.mxu0 0
      %3133 = vmatpush1.bf16.msra.mxu0 0
      %3134 = vmatprep.subr.bf16.mxu0 0
      %3135 = vmatpush1.bf16.msra.mxu0 0
      %3136 = vmatprep.subr.bf16.mxu0 0
      %3137 = vmatpush1.bf16.msra.mxu0 0
      %3138 = vmatprep.subr.bf16.mxu0 0
      %3139 = vmatpush1.bf16.msra.mxu0 0
      %3140 = vmatprep.subr.bf16.mxu0 0
      %3141 = vmatpush1.bf16.msra.mxu0 0
      %3142 = vmatprep.subr.bf16.mxu0 0
      %3143 = vmatpush1.bf16.msra.mxu0 0
      %3144 = vmatprep.subr.bf16.mxu0 0
      %3145 = vmatpush1.bf16.msra.mxu0 0
      %3146 = vmatprep.subr.bf16.mxu0 0
      %3147 = vmatpush1.bf16.msra.mxu0 0
      %3148 = vmatprep.mubr.bf16.mxu0 0
      %3149 = vmatmul.mubr.bf16.gmra.mrb[0].mxu0 %v942
      %v3150 = vpop.f32.mrb[0].mxu0
      %v3151 = vadd.f32 0.0, %v3150
      %v3152 = vpop.f32.mrb[0].mxu0
      %v3153 = vpop.f32.mrb[0].mxu0
      %v3154 = vadd.f32 0.0, %v3153
      %v3155 = vpop.f32.mrb[0].mxu0
      %3156 = vmatprep.mubr.bf16.mxu0 0
      %3157 = vmatmul.mubr.bf16.gmra.mrb[0].mxu0 %v943
      %v3158 = vpop.f32.mrb[0].mxu0
      %v3159 = vadd.f32 0.0, %v3158
      %v3160 = vpop.f32.mrb[0].mxu0
      %v3161 = vpop.f32.mrb[0].mxu0
      %v3162 = vadd.f32 0.0, %v3161
      %v3163 = vpop.f32.mrb[0].mxu0
      %3164 = vmatprep.mubr.bf16.mxu0 0
      %3165 = vmatmul.mubr.bf16.gmra.mrb[0].mxu0 %v944
      %v3166 = vpop.f32.mrb[0].mxu0
      %v3167 = vadd.f32 0.0, %v3166
      %v3168 = vpop.f32.mrb[0].mxu0
      %v3169 = vpop.f32.mrb[0].mxu0
      %v3170 = vadd.f32 0.0, %v3169
      %v3171 = vpop.f32.mrb[0].mxu0
      %3172 = vmatprep.mubr.bf16.mxu0 0
      %3173 = vmatmul.mubr.bf16.gmra.mrb[0].mxu0 %v945
      %v3174 = vpop.f32.mrb[0].mxu0
      %v3175 = vadd.f32 0.0, %v3174
      %v3176 = vpop.f32.mrb[0].mxu0
      %v3177 = vpop.f32.mrb[0].mxu0
      %v3178 = vadd.f32 0.0, %v3177
      %v3179 = vpop.f32.mrb[0].mxu0
      %3180 = vmatprep.mubr.bf16.mxu0 0
      %3181 = vmatmul.mubr.bf16.gmra.mrb[0].mxu0 %v946
      %v3182 = vpop.f32.mrb[0].mxu0
      %v3183 = vadd.f32 0.0, %v3182
      %v3184 = vpop.f32.mrb[0].mxu0
      %v3185 = vpop.f32.mrb[0].mxu0
      %v3186 = vadd.f32 0.0, %v3185
      %v3187 = vpop.f32.mrb[0].mxu0
      %3188 = vmatprep.mubr.bf16.mxu0 0
      %3189 = vmatmul.mubr.bf16.gmra.mrb[0].mxu0 %v947
      %v3190 = vpop.f32.mrb[0].mxu0
      %v3191 = vadd.f32 0.0, %v3190
      %v3192 = vpop.f32.mrb[0].mxu0
      %v3193 = vpop.f32.mrb[0].mxu0
      %v3194 = vadd.f32 0.0, %v3193
      %v3195 = vpop.f32.mrb[0].mxu0
      %3196 = vmatprep.mubr.bf16.mxu0 0
      %3197 = vmatmul.mubr.bf16.gmra.mrb[0].mxu0 %v948
      %v3198 = vpop.f32.mrb[0].mxu0
      %v3199 = vadd.f32 0.0, %v3198
      %v3200 = vpop.f32.mrb[0].mxu0
      %v3201 = vpop.f32.mrb[0].mxu0
      %v3202 = vadd.f32 0.0, %v3201
      %v3203 = vpop.f32.mrb[0].mxu0
      %3204 = vmatprep.mubr.bf16.mxu0 0
      %3205 = vmatmul.mubr.bf16.gmra.mrb[0].mxu0 %v949
      %v3206 = vpop.f32.mrb[0].mxu0
      %v3207 = vadd.f32 0.0, %v3206
      %v3208 = vpop.f32.mrb[0].mxu0
      %v3209 = vpop.f32.mrb[0].mxu0
      %v3210 = vadd.f32 0.0, %v3209
      %v3211 = vpop.f32.mrb[0].mxu0
      %3212 = vmatprep.mubr.bf16.mxu0 0
      %3213 = vmatmul.mubr.bf16.gmra.mrb[0].mxu0 %v950
      %v3214 = vpop.f32.mrb[0].mxu0
      %v3215 = vadd.f32 0.0, %v3214
      %v3216 = vpop.f32.mrb[0].mxu0
      %v3217 = vpop.f32.mrb[0].mxu0
      %v3218 = vadd.f32 0.0, %v3217
      %v3219 = vpop.f32.mrb[0].mxu0
      %3220 = vmatprep.mubr.bf16.mxu0 0
      %3221 = vmatmul.mubr.bf16.gmra.mrb[0].mxu0 %v951
      %v3222 = vpop.f32.mrb[0].mxu0
      %v3223 = vadd.f32 0.0, %v3222
      %v3224 = vpop.f32.mrb[0].mxu0
      %v3225 = vpop.f32.mrb[0].mxu0
      %v3226 = vadd.f32 0.0, %v3225
      %v3227 = vpop.f32.mrb[0].mxu0
      %3228 = vmatprep.mubr.bf16.mxu0 0
      %3229 = vmatmul.mubr.bf16.gmra.mrb[0].mxu0 %v952
      %v3230 = vpop.f32.mrb[0].mxu0
      %v3231 = vadd.f32 0.0, %v3230
      %v3232 = vpop.f32.mrb[0].mxu0
      %v3233 = vpop.f32.mrb[0].mxu0
      %v3234 = vadd.f32 0.0, %v3233
      %v3235 = vpop.f32.mrb[0].mxu0
      %3236 = vmatprep.mubr.bf16.mxu0 0
      %3237 = vmatmul.mubr.bf16.gmra.mrb[0].mxu0 %v953
      %v3238 = vpop.f32.mrb[0].mxu0
      %v3239 = vadd.f32 0.0, %v3238
      %v3240 = vpop.f32.mrb[0].mxu0
      %v3241 = vpop.f32.mrb[0].mxu0
      %v3242 = vadd.f32 0.0, %v3241
      %v3243 = vpop.f32.mrb[0].mxu0
      %3244 = vmatprep.mubr.bf16.mxu0 0
      %3245 = vmatmul.mubr.bf16.gmra.mrb[0].mxu0 %v954
      %v3246 = vpop.f32.mrb[0].mxu0
      %v3247 = vadd.f32 0.0, %v3246
      %v3248 = vpop.f32.mrb[0].mxu0
      %v3249 = vpop.f32.mrb[0].mxu0
      %v3250 = vadd.f32 0.0, %v3249
      %v3251 = vpop.f32.mrb[0].mxu0
      %3252 = vmatprep.mubr.bf16.mxu0 0
      %3253 = vmatmul.mubr.bf16.gmra.mrb[0].mxu0 %v955
      %v3254 = vpop.f32.mrb[0].mxu0
      %v3255 = vadd.f32 0.0, %v3254
      %v3256 = vpop.f32.mrb[0].mxu0
      %v3257 = vpop.f32.mrb[0].mxu0
      %v3258 = vadd.f32 0.0, %v3257
      %v3259 = vpop.f32.mrb[0].mxu0
      %3260 = vmatprep.mubr.bf16.mxu0 0
      %3261 = vmatmul.mubr.bf16.gmra.mrb[0].mxu0 %v2246
      %v3262 = vpop.f32.mrb[0].mxu0
      %v3263 = vadd.f32 0.0, %v3262
      %v3264 = vpop.f32.mrb[0].mxu0
      %v3265 = vpop.f32.mrb[0].mxu0
      %v3266 = vadd.f32 0.0, %v3265
      %v3267 = vpop.f32.mrb[0].mxu0
      %3268 = vmatprep.mubr.bf16.mxu0 0
      %3269 = vmatmul.mubr.bf16.gmra.mrb[0].mxu0 %v3066
      %v3270 = vpop.f32.mrb[0].mxu0
      %v3271 = vadd.f32 0.0, %v3270
      %v3272 = vpop.f32.mrb[0].mxu0
      %v3273 = vpop.f32.mrb[0].mxu0
      %v3274 = vadd.f32 0.0, %v3273
      %v3275 = vpop.f32.mrb[0].mxu0
      %3276 = vdwg.mxu0
      %v3277 = vadd.f32 %v2991, %v3151
      %v3278 = vadd.f32 %v2992, %v3154
      %v3279 = vadd.f32 %v2993, %v3159
      %v3280 = vadd.f32 %v2994, %v3162
      %v3281 = vadd.f32 %v2995, %v3167
      %v3282 = vadd.f32 %v2996, %v3170
      %v3283 = vadd.f32 %v2997, %v3175
      %v3284 = vadd.f32 %v2998, %v3178
      %v3285 = vadd.f32 %v2999, %v3183
      %v3286 = vadd.f32 %v3000, %v3186
      %v3287 = vadd.f32 %v3001, %v3191
      %v3288 = vadd.f32 %v3002, %v3194
      %v3289 = vadd.f32 %v3003, %v3199
      %v3290 = vadd.f32 %v3004, %v3202
      %v3291 = vadd.f32 %v3005, %v3207
      %v3292 = vadd.f32 %v3006, %v3210
      %v3293 = vadd.f32 %v3007, %v3215
      %v3294 = vadd.f32 %v3008, %v3218
      %v3295 = vadd.f32 %v3009, %v3223
      %v3296 = vadd.f32 %v3010, %v3226
      %v3297 = vadd.f32 %v3011, %v3231
      %v3298 = vadd.f32 %v3012, %v3234
      %v3299 = vadd.f32 %v3013, %v3239
      %v3300 = vadd.f32 %v3014, %v3242
      %v3301 = vadd.f32 %v3015, %v3247
      %v3302 = vadd.f32 %v3016, %v3250
      %v3303 = vadd.f32 %v3017, %v3255
      %v3304 = vadd.f32 %v3018, %v3258
      %v3305 = vadd.f32 %v3019, %v3263
      %v3306 = vadd.f32 %v3020, %v3266
      %v3307 = vadd.f32 %v3021, %v3271
      %v3308 = vadd.f32 %v3022, %v3274
      %v3310 = vrot.slane %v485, 5
      %v3311 = vrot.slane %v3310, 4
      %v3312 = vrot.slane %v486, 5
      %v3313 = vsel %vm1504, %v3311, %v3312
      %v3314 = vrot.slane %v3312, 4
      %v3315 = vrot.slane %v487, 5
      %v3316 = vsel %vm1504, %v3314, %v3315
      %s3317 = scalar_lea.vmem %s3, 512
      %v3318 = vld [vmem:[%s3317] sm:$0xf]
      %v3319 = vld [vmem:[%s3317 + $0x4] sm:$0xf]
      %v3320 = vld [vmem:[%s3317 + $0x8] sm:$0xf]
      %v3321 = vld [vmem:[%s3317 + $0xc] sm:$0xf]
      %v3322 = vld [vmem:[%s3317 + $0x10] sm:$0xf]
      %v3323 = vld [vmem:[%s3317 + $0x14] sm:$0xf]
      %v3324 = vld [vmem:[%s3317 + $0x18] sm:$0xf]
      %v3325 = vld [vmem:[%s3317 + $0x1c] sm:$0xf]
      %v3326 = vld [vmem:[%s3317 + $0x20] sm:$0xf]
      %v3327 = vld [vmem:[%s3317 + $0x24] sm:$0xf]
      %v3328 = vld [vmem:[%s3317 + $0x28] sm:$0xf]
      %v3329 = vld [vmem:[%s3317 + $0x2c] sm:$0xf]
      %v3330 = vld [vmem:[%s3317 + $0x30] sm:$0xf]
      %v3331 = vld [vmem:[%s3317 + $0x34] sm:$0xf]
      %v3332 = vld [vmem:[%s3317 + $0x38] sm:$0xf]
      %v3333 = vld [vmem:[%s3317 + $0x3c] sm:$0xf]
      %v3334 = vunpack.c.l.b16 %v3313
      %v3335 = vunpack.c.l.b16 %v3316
      %v3336 = vpack.c.b16 %v3335, %v3334
      %v3354 = vunpack.c.l.b16 %v3318
      %v3355 = vunpack.c.l.b16 %v3319
      %v3356 = vunpack.c.l.b16 %v3320
      %v3357 = vunpack.c.l.b16 %v3321
      %v3358 = vunpack.c.l.b16 %v3322
      %v3359 = vunpack.c.l.b16 %v3323
      %v3360 = vunpack.c.l.b16 %v3324
      %v3361 = vunpack.c.l.b16 %v3325
      %v3362 = vunpack.c.l.b16 %v3326
      %v3363 = vunpack.c.l.b16 %v3327
      %v3364 = vunpack.c.l.b16 %v3328
      %v3365 = vunpack.c.l.b16 %v3329
      %v3366 = vunpack.c.l.b16 %v3330
      %v3367 = vunpack.c.l.b16 %v3331
      %v3368 = vunpack.c.l.b16 %v3332
      %v3369 = vunpack.c.l.b16 %v3333
      %v3370 = vpack.c.b16 %v3355, %v3354
      %v3371 = vpack.c.b16 %v3357, %v3356
      %v3372 = vpack.c.b16 %v3359, %v3358
      %v3373 = vpack.c.b16 %v3361, %v3360
      %v3374 = vpack.c.b16 %v3363, %v3362
      %v3375 = vpack.c.b16 %v3365, %v3364
      %v3376 = vpack.c.b16 %v3367, %v3366
      %v3377 = vpack.c.b16 %v3369, %v3368
      %3386 = vmatprep.subr.bf16.mxu0 0
      %3387 = vmatpush1.bf16.msra.mxu0 %v3370
      %3388 = vmatprep.subr.bf16.mxu0 0
      %3389 = vmatpush1.bf16.msra.mxu0 %v3371
      %3390 = vmatprep.subr.bf16.mxu0 0
      %3391 = vmatpush1.bf16.msra.mxu0 %v3372
      %3392 = vmatprep.subr.bf16.mxu0 0
      %3393 = vmatpush1.bf16.msra.mxu0 %v3373
      %3394 = vmatprep.subr.bf16.mxu0 0
      %3395 = vmatpush1.bf16.msra.mxu0 %v3374
      %3396 = vmatprep.subr.bf16.mxu0 0
      %3397 = vmatpush1.bf16.msra.mxu0 %v3375
      %3398 = vmatprep.subr.bf16.mxu0 0
      %3399 = vmatpush1.bf16.msra.mxu0 %v3376
      %3400 = vmatprep.subr.bf16.mxu0 0
      %3401 = vmatpush1.bf16.msra.mxu0 %v3377
      %3402 = vmatprep.subr.bf16.mxu0 0
      %3403 = vmatpush1.bf16.msra.mxu0 0
      %3404 = vmatprep.subr.bf16.mxu0 0
      %3405 = vmatpush1.bf16.msra.mxu0 0
      %3406 = vmatprep.subr.bf16.mxu0 0
      %3407 = vmatpush1.bf16.msra.mxu0 0
      %3408 = vmatprep.subr.bf16.mxu0 0
      %3409 = vmatpush1.bf16.msra.mxu0 0
      %3410 = vmatprep.subr.bf16.mxu0 0
      %3411 = vmatpush1.bf16.msra.mxu0 0
      %3412 = vmatprep.subr.bf16.mxu0 0
      %3413 = vmatpush1.bf16.msra.mxu0 0
      %3414 = vmatprep.subr.bf16.mxu0 0
      %3415 = vmatpush1.bf16.msra.mxu0 0
      %3416 = vmatprep.subr.bf16.mxu0 0
      %3417 = vmatpush1.bf16.msra.mxu0 0
      %3418 = vmatprep.mubr.bf16.mxu0 0
      %3419 = vmatmul.mubr.bf16.gmra.mrb[0].mxu0 %v1668
      %v3420 = vpop.f32.mrb[0].mxu0
      %v3421 = vadd.f32 0.0, %v3420
      %v3422 = vpop.f32.mrb[0].mxu0
      %v3423 = vpop.f32.mrb[0].mxu0
      %v3424 = vadd.f32 0.0, %v3423
      %v3425 = vpop.f32.mrb[0].mxu0
      %3426 = vmatprep.mubr.bf16.mxu0 0
      %3427 = vmatmul.mubr.bf16.gmra.mrb[0].mxu0 %v1669
      %v3428 = vpop.f32.mrb[0].mxu0
      %v3429 = vadd.f32 0.0, %v3428
      %v3430 = vpop.f32.mrb[0].mxu0
      %v3431 = vpop.f32.mrb[0].mxu0
      %v3432 = vadd.f32 0.0, %v3431
      %v3433 = vpop.f32.mrb[0].mxu0
      %3434 = vmatprep.mubr.bf16.mxu0 0
      %3435 = vmatmul.mubr.bf16.gmra.mrb[0].mxu0 %v1670
      %v3436 = vpop.f32.mrb[0].mxu0
      %v3437 = vadd.f32 0.0, %v3436
      %v3438 = vpop.f32.mrb[0].mxu0
      %v3439 = vpop.f32.mrb[0].mxu0
      %v3440 = vadd.f32 0.0, %v3439
      %v3441 = vpop.f32.mrb[0].mxu0
      %3442 = vmatprep.mubr.bf16.mxu0 0
      %3443 = vmatmul.mubr.bf16.gmra.mrb[0].mxu0 %v1671
      %v3444 = vpop.f32.mrb[0].mxu0
      %v3445 = vadd.f32 0.0, %v3444
      %v3446 = vpop.f32.mrb[0].mxu0
      %v3447 = vpop.f32.mrb[0].mxu0
      %v3448 = vadd.f32 0.0, %v3447
      %v3449 = vpop.f32.mrb[0].mxu0
      %3450 = vmatprep.mubr.bf16.mxu0 0
      %3451 = vmatmul.mubr.bf16.gmra.mrb[0].mxu0 %v1672
      %v3452 = vpop.f32.mrb[0].mxu0
      %v3453 = vadd.f32 0.0, %v3452
      %v3454 = vpop.f32.mrb[0].mxu0
      %v3455 = vpop.f32.mrb[0].mxu0
      %v3456 = vadd.f32 0.0, %v3455
      %v3457 = vpop.f32.mrb[0].mxu0
      %3458 = vmatprep.mubr.bf16.mxu0 0
      %3459 = vmatmul.mubr.bf16.gmra.mrb[0].mxu0 %v1673
      %v3460 = vpop.f32.mrb[0].mxu0
      %v3461 = vadd.f32 0.0, %v3460
      %v3462 = vpop.f32.mrb[0].mxu0
      %v3463 = vpop.f32.mrb[0].mxu0
      %v3464 = vadd.f32 0.0, %v3463
      %v3465 = vpop.f32.mrb[0].mxu0
      %3466 = vmatprep.mubr.bf16.mxu0 0
      %3467 = vmatmul.mubr.bf16.gmra.mrb[0].mxu0 %v1674
      %v3468 = vpop.f32.mrb[0].mxu0
      %v3469 = vadd.f32 0.0, %v3468
      %v3470 = vpop.f32.mrb[0].mxu0
      %v3471 = vpop.f32.mrb[0].mxu0
      %v3472 = vadd.f32 0.0, %v3471
      %v3473 = vpop.f32.mrb[0].mxu0
      %3474 = vmatprep.mubr.bf16.mxu0 0
      %3475 = vmatmul.mubr.bf16.gmra.mrb[0].mxu0 %v1675
      %v3476 = vpop.f32.mrb[0].mxu0
      %v3477 = vadd.f32 0.0, %v3476
      %v3478 = vpop.f32.mrb[0].mxu0
      %v3479 = vpop.f32.mrb[0].mxu0
      %v3480 = vadd.f32 0.0, %v3479
      %v3481 = vpop.f32.mrb[0].mxu0
      %3482 = vmatprep.mubr.bf16.mxu0 0
      %3483 = vmatmul.mubr.bf16.gmra.mrb[0].mxu0 %v1676
      %v3484 = vpop.f32.mrb[0].mxu0
      %v3485 = vadd.f32 0.0, %v3484
      %v3486 = vpop.f32.mrb[0].mxu0
      %v3487 = vpop.f32.mrb[0].mxu0
      %v3488 = vadd.f32 0.0, %v3487
      %v3489 = vpop.f32.mrb[0].mxu0
      %3490 = vmatprep.mubr.bf16.mxu0 0
      %3491 = vmatmul.mubr.bf16.gmra.mrb[0].mxu0 %v1677
      %v3492 = vpop.f32.mrb[0].mxu0
      %v3493 = vadd.f32 0.0, %v3492
      %v3494 = vpop.f32.mrb[0].mxu0
      %v3495 = vpop.f32.mrb[0].mxu0
      %v3496 = vadd.f32 0.0, %v3495
      %v3497 = vpop.f32.mrb[0].mxu0
      %3498 = vmatprep.mubr.bf16.mxu0 0
      %3499 = vmatmul.mubr.bf16.gmra.mrb[0].mxu0 %v1678
      %v3500 = vpop.f32.mrb[0].mxu0
      %v3501 = vadd.f32 0.0, %v3500
      %v3502 = vpop.f32.mrb[0].mxu0
      %v3503 = vpop.f32.mrb[0].mxu0
      %v3504 = vadd.f32 0.0, %v3503
      %v3505 = vpop.f32.mrb[0].mxu0
      %3506 = vmatprep.mubr.bf16.mxu0 0
      %3507 = vmatmul.mubr.bf16.gmra.mrb[0].mxu0 %v1679
      %v3508 = vpop.f32.mrb[0].mxu0
      %v3509 = vadd.f32 0.0, %v3508
      %v3510 = vpop.f32.mrb[0].mxu0
      %v3511 = vpop.f32.mrb[0].mxu0
      %v3512 = vadd.f32 0.0, %v3511
      %v3513 = vpop.f32.mrb[0].mxu0
      %3514 = vmatprep.mubr.bf16.mxu0 0
      %3515 = vmatmul.mubr.bf16.gmra.mrb[0].mxu0 %v1680
      %v3516 = vpop.f32.mrb[0].mxu0
      %v3517 = vadd.f32 0.0, %v3516
      %v3518 = vpop.f32.mrb[0].mxu0
      %v3519 = vpop.f32.mrb[0].mxu0
      %v3520 = vadd.f32 0.0, %v3519
      %v3521 = vpop.f32.mrb[0].mxu0
      %3522 = vmatprep.mubr.bf16.mxu0 0
      %3523 = vmatmul.mubr.bf16.gmra.mrb[0].mxu0 %v1681
      %v3524 = vpop.f32.mrb[0].mxu0
      %v3525 = vadd.f32 0.0, %v3524
      %v3526 = vpop.f32.mrb[0].mxu0
      %v3527 = vpop.f32.mrb[0].mxu0
      %v3528 = vadd.f32 0.0, %v3527
      %v3529 = vpop.f32.mrb[0].mxu0
      %3530 = vmatprep.mubr.bf16.mxu0 0
      %3531 = vmatmul.mubr.bf16.gmra.mrb[0].mxu0 %v2516
      %v3532 = vpop.f32.mrb[0].mxu0
      %v3533 = vadd.f32 0.0, %v3532
      %v3534 = vpop.f32.mrb[0].mxu0
      %v3535 = vpop.f32.mrb[0].mxu0
      %v3536 = vadd.f32 0.0, %v3535
      %v3537 = vpop.f32.mrb[0].mxu0
      %3538 = vmatprep.mubr.bf16.mxu0 0
      %3539 = vmatmul.mubr.bf16.gmra.mrb[0].mxu0 %v3336
      %v3540 = vpop.f32.mrb[0].mxu0
      %v3541 = vadd.f32 0.0, %v3540
      %v3542 = vpop.f32.mrb[0].mxu0
      %v3543 = vpop.f32.mrb[0].mxu0
      %v3544 = vadd.f32 0.0, %v3543
      %v3545 = vpop.f32.mrb[0].mxu0
      %3546 = vdwg.mxu0
      %v3547 = vadd.f32 %v3277, %v3421
      %v3548 = vadd.f32 %v3278, %v3424
      %v3549 = vadd.f32 %v3279, %v3429
      %v3550 = vadd.f32 %v3280, %v3432
      %v3551 = vadd.f32 %v3281, %v3437
      %v3552 = vadd.f32 %v3282, %v3440
      %v3553 = vadd.f32 %v3283, %v3445
      %v3554 = vadd.f32 %v3284, %v3448
      %v3555 = vadd.f32 %v3285, %v3453
      %v3556 = vadd.f32 %v3286, %v3456
      %v3557 = vadd.f32 %v3287, %v3461
      %v3558 = vadd.f32 %v3288, %v3464
      %v3559 = vadd.f32 %v3289, %v3469
      %v3560 = vadd.f32 %v3290, %v3472
      %v3561 = vadd.f32 %v3291, %v3477
      %v3562 = vadd.f32 %v3292, %v3480
      %v3563 = vadd.f32 %v3293, %v3485
      %v3564 = vadd.f32 %v3294, %v3488
      %v3565 = vadd.f32 %v3295, %v3493
      %v3566 = vadd.f32 %v3296, %v3496
      %v3567 = vadd.f32 %v3297, %v3501
      %v3568 = vadd.f32 %v3298, %v3504
      %v3569 = vadd.f32 %v3299, %v3509
      %v3570 = vadd.f32 %v3300, %v3512
      %v3571 = vadd.f32 %v3301, %v3517
      %v3572 = vadd.f32 %v3302, %v3520
      %v3573 = vadd.f32 %v3303, %v3525
      %v3574 = vadd.f32 %v3304, %v3528
      %v3575 = vadd.f32 %v3305, %v3533
      %v3576 = vadd.f32 %v3306, %v3536
      %v3577 = vadd.f32 %v3307, %v3541
      %v3578 = vadd.f32 %v3308, %v3544
      %v3579 = vld [vmem:[%s4] sm:$0x1]
      %v3581 = vlaneseq
      %v3582 = vshrl.u32 %v3581, 7
      %v3583 = vsub.s32 0, %v3582
      %v3584 = vrot.slane %v3579, %v3583
      %v3586 = vadd.f32 %v3547, %v3584
      %v3587 = vadd.f32 %v3548, %v3584
      %v3588 = vadd.f32 %v3549, %v3584
      %v3589 = vadd.f32 %v3550, %v3584
      %v3590 = vadd.f32 %v3551, %v3584
      %v3591 = vadd.f32 %v3552, %v3584
      %v3592 = vadd.f32 %v3553, %v3584
      %v3593 = vadd.f32 %v3554, %v3584
      %v3594 = vadd.f32 %v3555, %v3584
      %v3595 = vadd.f32 %v3556, %v3584
      %v3596 = vadd.f32 %v3557, %v3584
      %v3597 = vadd.f32 %v3558, %v3584
      %v3598 = vadd.f32 %v3559, %v3584
      %v3599 = vadd.f32 %v3560, %v3584
      %v3600 = vadd.f32 %v3561, %v3584
      %v3601 = vadd.f32 %v3562, %v3584
      %v3602 = vadd.f32 %v3563, %v3584
      %v3603 = vadd.f32 %v3564, %v3584
      %v3604 = vadd.f32 %v3565, %v3584
      %v3605 = vadd.f32 %v3566, %v3584
      %v3606 = vadd.f32 %v3567, %v3584
      %v3607 = vadd.f32 %v3568, %v3584
      %v3608 = vadd.f32 %v3569, %v3584
      %v3609 = vadd.f32 %v3570, %v3584
      %v3610 = vadd.f32 %v3571, %v3584
      %v3611 = vadd.f32 %v3572, %v3584
      %v3612 = vadd.f32 %v3573, %v3584
      %v3613 = vadd.f32 %v3574, %v3584
      %v3614 = vadd.f32 %v3575, %v3584
      %v3615 = vadd.f32 %v3576, %v3584
      %v3616 = vadd.f32 %v3577, %v3584
      %v3617 = vadd.f32 %v3578, %v3584
      %v3618 = vpack.c.bf16 %v3587, %v3586
      %v3619 = vpack.c.bf16 %v3589, %v3588
      %v3620 = vpack.c.bf16 %v3591, %v3590
      %v3621 = vpack.c.bf16 %v3593, %v3592
      %v3622 = vpack.c.bf16 %v3595, %v3594
      %v3623 = vpack.c.bf16 %v3597, %v3596
      %v3624 = vpack.c.bf16 %v3599, %v3598
      %v3625 = vpack.c.bf16 %v3601, %v3600
      %v3626 = vpack.c.bf16 %v3603, %v3602
      %v3627 = vpack.c.bf16 %v3605, %v3604
      %v3628 = vpack.c.bf16 %v3607, %v3606
      %v3629 = vpack.c.bf16 %v3609, %v3608
      %v3630 = vpack.c.bf16 %v3611, %v3610
      %v3631 = vpack.c.bf16 %v3613, %v3612
      %v3632 = vpack.c.bf16 %v3615, %v3614
      %v3633 = vpack.c.bf16 %v3617, %v3616
      %v3650 = vunpack.c.l.b16 %v3618
      %v3651 = vunpack.c.h.b16 %v3618
      %v3652 = vunpack.c.l.b16 %v3619
      %v3653 = vunpack.c.h.b16 %v3619
      %v3654 = vunpack.c.l.b16 %v3620
      %v3655 = vunpack.c.h.b16 %v3620
      %v3656 = vunpack.c.l.b16 %v3621
      %v3657 = vunpack.c.h.b16 %v3621
      %v3658 = vunpack.c.l.b16 %v3622
      %v3659 = vunpack.c.h.b16 %v3622
      %v3660 = vunpack.c.l.b16 %v3623
      %v3661 = vunpack.c.h.b16 %v3623
      %v3662 = vunpack.c.l.b16 %v3624
      %v3663 = vunpack.c.h.b16 %v3624
      %v3664 = vunpack.c.l.b16 %v3625
      %v3665 = vunpack.c.h.b16 %v3625
      %v3666 = vunpack.c.l.b16 %v3626
      %v3667 = vunpack.c.h.b16 %v3626
      %v3668 = vunpack.c.l.b16 %v3627
      %v3669 = vunpack.c.h.b16 %v3627
      %v3670 = vunpack.c.l.b16 %v3628
      %v3671 = vunpack.c.h.b16 %v3628
      %v3672 = vunpack.c.l.b16 %v3629
      %v3673 = vunpack.c.h.b16 %v3629
      %v3674 = vunpack.c.l.b16 %v3630
      %v3675 = vunpack.c.h.b16 %v3630
      %v3676 = vunpack.c.l.b16 %v3631
      %v3677 = vunpack.c.h.b16 %v3631
      %v3678 = vunpack.c.l.b16 %v3632
      %v3679 = vunpack.c.h.b16 %v3632
      %v3680 = vunpack.c.l.b16 %v3633
      %v3681 = vunpack.c.h.b16 %v3633
      %v3682 = vpack.c.b16 %v3650, %v3650
      %v3683 = vpack.c.b16 %v3651, %v3651
      %v3684 = vpack.c.b16 %v3652, %v3652
      %v3685 = vpack.c.b16 %v3653, %v3653
      %v3686 = vpack.c.b16 %v3654, %v3654
      %v3687 = vpack.c.b16 %v3655, %v3655
      %v3688 = vpack.c.b16 %v3656, %v3656
      %v3689 = vpack.c.b16 %v3657, %v3657
      %v3690 = vpack.c.b16 %v3658, %v3658
      %v3691 = vpack.c.b16 %v3659, %v3659
      %v3692 = vpack.c.b16 %v3660, %v3660
      %v3693 = vpack.c.b16 %v3661, %v3661
      %v3694 = vpack.c.b16 %v3662, %v3662
      %v3695 = vpack.c.b16 %v3663, %v3663
      %v3696 = vpack.c.b16 %v3664, %v3664
      %v3697 = vpack.c.b16 %v3665, %v3665
      %v3698 = vpack.c.b16 %v3666, %v3666
      %v3699 = vpack.c.b16 %v3667, %v3667
      %v3700 = vpack.c.b16 %v3668, %v3668
      %v3701 = vpack.c.b16 %v3669, %v3669
      %v3702 = vpack.c.b16 %v3670, %v3670
      %v3703 = vpack.c.b16 %v3671, %v3671
      %v3704 = vpack.c.b16 %v3672, %v3672
      %v3705 = vpack.c.b16 %v3673, %v3673
      %v3706 = vpack.c.b16 %v3674, %v3674
      %v3707 = vpack.c.b16 %v3675, %v3675
      %v3708 = vpack.c.b16 %v3676, %v3676
      %v3709 = vpack.c.b16 %v3677, %v3677
      %v3710 = vpack.c.b16 %v3678, %v3678
      %v3711 = vpack.c.b16 %v3679, %v3679
      %v3712 = vpack.c.b16 %v3680, %v3680
      %v3713 = vpack.c.b16 %v3681, %v3681
      %3746 = vst [vmem:[%s424] sm:$0xf] %v3682
      %3747 = vst [vmem:[%s424 + $0x4] sm:$0xf] %v3683
      %3748 = vst [vmem:[%s424 + $0x8] sm:$0xf] %v3684
      %3749 = vst [vmem:[%s424 + $0xc] sm:$0xf] %v3685
      %3750 = vst [vmem:[%s424 + $0x10] sm:$0xf] %v3686
      %3751 = vst [vmem:[%s424 + $0x14] sm:$0xf] %v3687
      %3752 = vst [vmem:[%s424 + $0x18] sm:$0xf] %v3688
      %3753 = vst [vmem:[%s424 + $0x1c] sm:$0xf] %v3689
      %3754 = vst [vmem:[%s424 + $0x20] sm:$0xf] %v3690
      %3755 = vst [vmem:[%s424 + $0x24] sm:$0xf] %v3691
      %3756 = vst [vmem:[%s424 + $0x28] sm:$0xf] %v3692
      %3757 = vst [vmem:[%s424 + $0x2c] sm:$0xf] %v3693
      %3758 = vst [vmem:[%s424 + $0x30] sm:$0xf] %v3694
      %3759 = vst [vmem:[%s424 + $0x34] sm:$0xf] %v3695
      %3760 = vst [vmem:[%s424 + $0x38] sm:$0xf] %v3696
      %3761 = vst [vmem:[%s424 + $0x3c] sm:$0xf] %v3697
      %3762 = vst [vmem:[%s424 + $0x40] sm:$0xf] %v3698
      %3763 = vst [vmem:[%s424 + $0x44] sm:$0xf] %v3699
      %3764 = vst [vmem:[%s424 + $0x48] sm:$0xf] %v3700
      %3765 = vst [vmem:[%s424 + $0x4c] sm:$0xf] %v3701
      %3766 = vst [vmem:[%s424 + $0x50] sm:$0xf] %v3702
      %3767 = vst [vmem:[%s424 + $0x54] sm:$0xf] %v3703
      %3768 = vst [vmem:[%s424 + $0x58] sm:$0xf] %v3704
      %3769 = vst [vmem:[%s424 + $0x5c] sm:$0xf] %v3705
      %3770 = vst [vmem:[%s424 + $0x60] sm:$0xf] %v3706
      %3771 = vst [vmem:[%s424 + $0x64] sm:$0xf] %v3707
      %3772 = vst [vmem:[%s424 + $0x68] sm:$0xf] %v3708
      %3773 = vst [vmem:[%s424 + $0x6c] sm:$0xf] %v3709
      %3774 = vst [vmem:[%s424 + $0x70] sm:$0xf] %v3710
      %3775 = vst [vmem:[%s424 + $0x74] sm:$0xf] %v3711
      %3776 = vst [vmem:[%s424 + $0x78] sm:$0xf] %v3712
      %3777 = vst [vmem:[%s424 + $0x7c] sm:$0xf] %v3713
      %v3778 = vadd.f32 %v3586, %v3587
      %v3779 = vadd.f32 %v3778, %v3588
      %v3780 = vadd.f32 %v3779, %v3589
      %v3781 = vadd.f32 %v3780, %v3590
      %v3782 = vadd.f32 %v3781, %v3591
      %v3783 = vadd.f32 %v3782, %v3592
      %v3784 = vadd.f32 %v3783, %v3593
      %v3785 = vadd.f32 %v3784, %v3594
      %v3786 = vadd.f32 %v3785, %v3595
      %v3787 = vadd.f32 %v3786, %v3596
      %v3788 = vadd.f32 %v3787, %v3597
      %v3789 = vadd.f32 %v3788, %v3598
      %v3790 = vadd.f32 %v3789, %v3599
      %v3791 = vadd.f32 %v3790, %v3600
      %v3792 = vadd.f32 %v3791, %v3601
      %v3793 = vadd.f32 %v3792, %v3602
      %v3794 = vadd.f32 %v3793, %v3603
      %v3795 = vadd.f32 %v3794, %v3604
      %v3796 = vadd.f32 %v3795, %v3605
      %v3797 = vadd.f32 %v3796, %v3606
      %v3798 = vadd.f32 %v3797, %v3607
      %v3799 = vadd.f32 %v3798, %v3608
      %v3800 = vadd.f32 %v3799, %v3609
      %v3801 = vadd.f32 %v3800, %v3610
      %v3802 = vadd.f32 %v3801, %v3611
      %v3803 = vadd.f32 %v3802, %v3612
      %v3804 = vadd.f32 %v3803, %v3613
      %v3805 = vadd.f32 %v3804, %v3614
      %v3806 = vadd.f32 %v3805, %v3615
      %v3807 = vadd.f32 %v3806, %v3616
      %v3808 = vadd.f32 %v3807, %v3617
      %v3809 = vrot.slane %v3808, 4
      %v3810 = vadd.f32 %v3808, %v3809
      %v3811 = vrot.slane %v3810, 2
      %v3812 = vadd.f32 %v3810, %v3811
      %v3813 = vrot.slane %v3812, 1
      %v3814 = vadd.f32 %v3812, %v3813
      %3815 = vst [vmem:[%s431] sm:$0x1] %v3814
      %v3816 = vmul.f32 %v3586, %v3586
      %v3817 = vmul.f32 %v3587, %v3587
      %v3818 = vmul.f32 %v3588, %v3588
      %v3819 = vmul.f32 %v3589, %v3589
      %v3820 = vmul.f32 %v3590, %v3590
      %v3821 = vmul.f32 %v3591, %v3591
      %v3822 = vmul.f32 %v3592, %v3592
      %v3823 = vmul.f32 %v3593, %v3593
      %v3824 = vmul.f32 %v3594, %v3594
      %v3825 = vmul.f32 %v3595, %v3595
      %v3826 = vmul.f32 %v3596, %v3596
      %v3827 = vmul.f32 %v3597, %v3597
      %v3828 = vmul.f32 %v3598, %v3598
      %v3829 = vmul.f32 %v3599, %v3599
      %v3830 = vmul.f32 %v3600, %v3600
      %v3831 = vmul.f32 %v3601, %v3601
      %v3832 = vmul.f32 %v3602, %v3602
      %v3833 = vmul.f32 %v3603, %v3603
      %v3834 = vmul.f32 %v3604, %v3604
      %v3835 = vmul.f32 %v3605, %v3605
      %v3836 = vmul.f32 %v3606, %v3606
      %v3837 = vmul.f32 %v3607, %v3607
      %v3838 = vmul.f32 %v3608, %v3608
      %v3839 = vmul.f32 %v3609, %v3609
      %v3840 = vmul.f32 %v3610, %v3610
      %v3841 = vmul.f32 %v3611, %v3611
      %v3842 = vmul.f32 %v3612, %v3612
      %v3843 = vmul.f32 %v3613, %v3613
      %v3844 = vmul.f32 %v3614, %v3614
      %v3845 = vmul.f32 %v3615, %v3615
      %v3846 = vmul.f32 %v3616, %v3616
      %v3847 = vmul.f32 %v3617, %v3617
      %v3848 = vadd.f32 %v3816, %v3817
      %v3849 = vadd.f32 %v3848, %v3818
      %v3850 = vadd.f32 %v3849, %v3819
      %v3851 = vadd.f32 %v3850, %v3820
      %v3852 = vadd.f32 %v3851, %v3821
      %v3853 = vadd.f32 %v3852, %v3822
      %v3854 = vadd.f32 %v3853, %v3823
      %v3855 = vadd.f32 %v3854, %v3824
      %v3856 = vadd.f32 %v3855, %v3825
      %v3857 = vadd.f32 %v3856, %v3826
      %v3858 = vadd.f32 %v3857, %v3827
      %v3859 = vadd.f32 %v3858, %v3828
      %v3860 = vadd.f32 %v3859, %v3829
      %v3861 = vadd.f32 %v3860, %v3830
      %v3862 = vadd.f32 %v3861, %v3831
      %v3863 = vadd.f32 %v3862, %v3832
      %v3864 = vadd.f32 %v3863, %v3833
      %v3865 = vadd.f32 %v3864, %v3834
      %v3866 = vadd.f32 %v3865, %v3835
      %v3867 = vadd.f32 %v3866, %v3836
      %v3868 = vadd.f32 %v3867, %v3837
      %v3869 = vadd.f32 %v3868, %v3838
      %v3870 = vadd.f32 %v3869, %v3839
      %v3871 = vadd.f32 %v3870, %v3840
      %v3872 = vadd.f32 %v3871, %v3841
      %v3873 = vadd.f32 %v3872, %v3842
      %v3874 = vadd.f32 %v3873, %v3843
      %v3875 = vadd.f32 %v3874, %v3844
      %v3876 = vadd.f32 %v3875, %v3845
      %v3877 = vadd.f32 %v3876, %v3846
      %v3878 = vadd.f32 %v3877, %v3847
      %v3879 = vrot.slane %v3878, 4
      %v3880 = vadd.f32 %v3878, %v3879
      %v3881 = vrot.slane %v3880, 2
      %v3882 = vadd.f32 %v3880, %v3881
      %v3883 = vrot.slane %v3882, 1
      %v3884 = vadd.f32 %v3882, %v3883
      %3885 = vst [vmem:[%s431 + $0x1] sm:$0x1] %v3884
      %s3886 = sadd.s32 %s22, %s23
      %s3887 = smul.u32 32, %s3886
      %p3888 = scmp.lt.s32.totalorder %s3887, 63
      %s3889 = scalar_select %p3888, %s3887, 63
      %s3890 = smul.addr %s3889, 4
      %s3891 = scalar_lea.vmem %s5, %s3890
      %s3892 = sadd.s32 %s22, %s23
      %p3893 = scmp.lt.s32.totalorder %s3892, 1
      %s3894 = scalar_select %p3893, %s3892, 1
      %s3895 = smul.addr %s3894, 2
      %s3896 = scalar_lea.vmem %s6, %s3895
      // Predicated region
      $region41: #{double_conv_forward.9} parent=39 // pred_check
        %p3897 = pneg %p186
      $region42: #{double_conv_forward.9} parent=39 // pred_check_branch
        %3899 = sbr.rel (%p3897) target = $region44
      $region43: #{double_conv_forward.9} parent=39 // pred_region
        %s3900 = sadd.s32 %s22, %s23
        %s3901 = smul.u32 32, %s3900
      $region44: #{double_conv_forward.9} parent=39 // pred_fallthru
        _
      // Predicated region
      $region45: #{double_conv_forward.9} parent=39 // pred_check
        %p3902 = pneg %p214
      $region46: #{double_conv_forward.9} parent=39 // pred_check_branch
        %3904 = sbr.rel (%p3902) target = $region48
      $region47: #{double_conv_forward.9} parent=39 // pred_region
        %s3905 = sadd.s32 %s22, %s23
      $region48: #{double_conv_forward.9} parent=39 // pred_fallthru
        _
    $region40: #{double_conv_forward.9} parent=5 // pred_fallthru
      _
    %p3906 = scmp.le.s32.totalorder 2, %s13
    // Predicated region
    $region49: #{double_conv_forward.9} parent=5 // pred_check
      %p3907 = pneg %p3906
    $region50: #{double_conv_forward.9} parent=5 // pred_check_branch
      %3909 = sbr.rel (%p3907) target = $region52
    $region51: #{double_conv_forward.9} parent=5 // pred_region
      %s3910 = ssub.s32 %s13, 2
      // Predicated region
      $region53: #{double_conv_forward.9} parent=51 // pred_check
        %p3911 = pneg %p192
      $region54: #{double_conv_forward.9} parent=51 // pred_check_branch
        %3913 = sbr.rel (%p3911) target = $region56
      $region55: #{double_conv_forward.9} parent=51 // pred_region
        %s3914 = sadd.s32 %s24, %s25
        %s3915 = smul.u32 32, %s3914
        %p3916 = scmp.lt.s32.totalorder %s3915, 63
        %s3917 = scalar_select %p3916, %s3915, 63
        %s3918 = smul.addr %s3917, 4
        %s3919 = scalar_lea.vmem %s5, %s3918
      $region56: #{double_conv_forward.9} parent=51 // pred_fallthru
        _
      // Predicated region
      $region57: #{double_conv_forward.9} parent=51 // pred_check
        %p3920 = pneg %p220
      $region58: #{double_conv_forward.9} parent=51 // pred_check_branch
        %3922 = sbr.rel (%p3920) target = $region60
      $region59: #{double_conv_forward.9} parent=51 // pred_region
        %s3923 = sadd.s32 %s24, %s25
        %p3924 = scmp.lt.s32.totalorder %s3923, 1
        %s3925 = scalar_select %p3924, %s3923, 1
        %s3926 = smul.addr %s3925, 2
        %s3927 = scalar_lea.vmem %s6, %s3926
      $region60: #{double_conv_forward.9} parent=51 // pred_fallthru
        _
    $region52: #{double_conv_forward.9} parent=5 // pred_fallthru
      _
  $region6: #{double_conv_forward.9} parent=0 // loop_footer
    %s17 = sadd.s32 1, %s13
  $region7: #{double_conv_forward.9} parent=0 // loop_footer_branch
    %12 = sbr.rel target = $region3
  $region8: #{double_conv_forward.9} parent=0 // loop_exit
    _

</llo_original>
